<compile_context>
chip_gen: v6e
topology: v6e:2x2x1
jax: 0.10.0
libtpu: 0.0.40
codegen_flags: <defaults>
</compile_context>

<pallas_src>
import functools
from math import sqrt

import jax
import jax.numpy as jnp
from jax import lax
from jax.experimental import pallas as pl
from jax.experimental.pallas import tpu as pltpu

EPS = 1e-5  # nn.LayerNorm default eps


def _layernorm(x, w, b):
    mu = jnp.mean(x, axis=-1, keepdims=True)
    var = jnp.mean((x - mu) ** 2, axis=-1, keepdims=True)
    return (x - mu) * lax.rsqrt(var + EPS) * w + b


def _gelu_exact(x):
    return 0.5 * x * (1.0 + lax.erf(x * (1.0 / sqrt(2.0))))


def encoder_layer_kernel(x_ref, ln1w_ref, ln1b_ref,
                         wq_ref, bq_ref, wk_ref, bk_ref,
                         wo_ref, bo_ref,
                         ln2w_ref, ln2b_ref,
                         w1_ref, b1_ref, w2_ref, b2_ref,
                         out_ref,
                         xn2_sc, acc_sc, attn_sc,
                         *, num_heads, q_row_tile, approx_recip):
    i = pl.program_id(1)
    n_i = pl.num_programs(1)
    Bb, S, E = x_ref.shape
    D = E // num_heads
    cdtype = wq_ref.dtype     # matmul-operand dtype (f32 or bf16); accumulation stays f32

    # ---- LayerNorm1 + attention + LayerNorm2: once per batch block (first FFN chunk) ----
    @pl.when(i == 0)
    def _attention():
        scale = 1.0 / sqrt(S)          # reproduces /sqrt(q.shape[1]) == 1/sqrt(seq_len)
        for b in range(Bb):
            x = x_ref[b]                                        # (S, E)
            xn = _layernorm(x, ln1w_ref[...], ln1b_ref[...])    # (S, E) f32
            xn_c = xn.astype(cdtype)

            # Fused full-width Q / K projections: two (S,E)@(E,E) MXU matmuls.
            q = jnp.dot(xn_c, wq_ref[...], preferred_element_type=jnp.float32) + bq_ref[...]
            k = jnp.dot(xn_c, wk_ref[...], preferred_element_type=jnp.float32) + bk_ref[...]

            for h in range(num_heads):
                c0, c1 = h * D, (h + 1) * D
                qh = q[:, c0:c1].astype(cdtype)                 # V = Q (reference quirk, unscaled)
                kh = (k[:, c0:c1] * scale).astype(cdtype)       # fold 1/sqrt(S) into K slice
                for r0 in range(0, S, q_row_tile):              # query-row tiling
                    r1 = min(r0 + q_row_tile, S)
                    # Contract last dims directly — no explicit transpose.
                    scores = lax.dot_general(
                        qh[r0:r1, :], kh, (((1,), (1,)), ((), ())),
                        preferred_element_type=jnp.float32)     # (tS, S)
                    m = jnp.max(scores, axis=-1, keepdims=True)
                    e = jnp.exp(scores - m)
                    denom = jnp.sum(e, axis=-1, keepdims=True)
                    attn_w = e * pl.reciprocal(denom, approx=approx_recip)
                    pv = jnp.dot(attn_w.astype(cdtype), qh,
                                 preferred_element_type=jnp.float32)      # (tS, D)
                    attn_sc[r0:r1, c0:c1] = pv                  # head output written in place

            # Single full-width output projection.
            attn_out = jnp.dot(attn_sc[...].astype(wo_ref.dtype), wo_ref[...],
                               preferred_element_type=jnp.float32) + bo_ref[...]

            # Residual 1 onto the LayerNorm output (reference quirk), then LayerNorm 2.
            x1 = xn + attn_out
            xn2 = _layernorm(x1, ln2w_ref[...], ln2b_ref[...])
            xn2_sc[b] = xn2
            acc_sc[b] = xn2 + b2_ref[...]       # residual 2 and final FFN bias folded in

    # ---- FeedForward, streamed over the intermediate dimension (grid axis 1) ----
    for b in range(Bb):
        xn2 = xn2_sc[b]                                         # (S, E)
        h1 = jnp.dot(xn2.astype(w1_ref.dtype), w1_ref[...],
                     preferred_element_type=jnp.float32) + b1_ref[...]
        g = _gelu_exact(h1)
        acc_sc[b] = acc_sc[b] + jnp.dot(g.astype(w2_ref.dtype), w2_ref[...],
                                        preferred_element_type=jnp.float32)

    @pl.when(i == n_i - 1)
    def _write():
        out_ref[...] = acc_sc[...].astype(out_ref.dtype)


def _pack_head_weights(w, b):
    # w: (H, E, D) -> (E, H*D), b: (H, 1, D) -> (1, H*D); head h lands at columns h*D:(h+1)*D,
    # matching the torch.cat(head outputs, dim=-1) ordering.
    H, E, D = w.shape
    w_all = jnp.transpose(w, (1, 0, 2)).reshape(E, H * D)
    b_all = b.reshape(1, H * D)
    return w_all, b_all


def _ffn_tile(intermediate_dim, max_tile):
    """Largest multiple-of-128 divisor of I that is <= max_tile (or the full dim)."""
    if intermediate_dim <= max_tile or intermediate_dim % 128 != 0:
        return intermediate_dim
    t = max_tile - (max_tile % 128)
    while t >= 128:
        if intermediate_dim % t == 0:
            return t
        t -= 128
    return intermediate_dim


def _pick_batch_block(B, max_block=4):
    for bb in range(min(B, max_block), 0, -1):
        if B % bb == 0:
            return bb
    return 1


def _vmem_capacity_bytes():
    try:
        return int(pltpu.get_tpu_info().vmem_capacity_bytes)
    except Exception:
        return None


def transformer_encoder_layer(x, params, num_heads, param_dtype=jnp.float32,
                              batch_block=None, use_buffered=True):
    B, S, E = x.shape
    I = params["w1"].shape[1]

    # Generation-aware VMEM budget / FFN tile (v7x: 64 MiB physical, v5e/v6e: 128 MiB).
    vmem_cap = _vmem_capacity_bytes()
    if vmem_cap is None:
        max_tile, vmem_limit = 1024, None
    elif vmem_cap <= 96 * 1024 * 1024:
        max_tile, vmem_limit = 1024, int(vmem_cap * 0.8)   # v7x-class: leave Mosaic headroom
    else:
        max_tile, vmem_limit = 2048, int(vmem_cap * 0.8)   # v5e/v6e: use the larger VMEM
    tI = _ffn_tile(I, max_tile)
    n_i = I // tI

    Bb = batch_block if batch_block is not None else _pick_batch_block(B)
    assert B % Bb == 0
    q_row_tile = S if S <= 512 else 256

    wq_all, bq_all = _pack_head_weights(params["wq"], params["bq"])
    wk_all, bk_all = _pack_head_weights(params["wk"], params["bk"])

    wd = param_dtype  # matmul-weight storage dtype (bf16 halves DMA bytes; accumulation stays f32)
    inputs = [x,
              params["ln1w"], params["ln1b"],
              wq_all.astype(wd), bq_all,
              wk_all.astype(wd), bk_all,
              params["wo"].astype(wd), params["bo"],
              params["ln2w"], params["ln2b"],
              params["w1"].astype(wd), params["b1"],
              params["w2"].astype(wd), params["b2"]]

    def const_spec(arr):
        nd = arr.ndim
        kw = {"pipeline_mode": pl.Buffered(1)} if use_buffered else {}
        return pl.BlockSpec(arr.shape, lambda b, i, _nd=nd: (0,) * _nd, **kw)

    in_specs = [
        pl.BlockSpec((Bb, S, E), lambda b, i: (b, 0, 0)),     # x (batch blocked)
        const_spec(inputs[1]), const_spec(inputs[2]),         # ln1 w/b
        const_spec(inputs[3]), const_spec(inputs[4]),         # wq_all, bq_all
        const_spec(inputs[5]), const_spec(inputs[6]),         # wk_all, bk_all
        const_spec(inputs[7]), const_spec(inputs[8]),         # wo, bo
        const_spec(inputs[9]), const_spec(inputs[10]),        # ln2 w/b
        pl.BlockSpec((E, tI), lambda b, i: (0, i)),           # w1 (streamed over I)
        pl.BlockSpec((1, tI), lambda b, i: (0, i)),           # b1
        pl.BlockSpec((tI, E), lambda b, i: (i, 0)),           # w2 (streamed over I)
        const_spec(inputs[14]),                               # b2
    ]

    kernel = functools.partial(
        encoder_layer_kernel, num_heads=num_heads, q_row_tile=q_row_tile,
        approx_recip=(jnp.dtype(param_dtype) != jnp.dtype(jnp.float32)))

    # Advisory cost estimate (FFN weights are fetched once per batch block, not per example).
    flops = B * (4 * S * E * E        # fused Q/K projections
                 + 4 * S * S * E      # scores + weighted sum (all heads)
                 + 2 * S * E * E      # output projection
                 + 4 * S * E * I)     # feed-forward
    transcendentals = B * (num_heads * S * S + S * I)
    itemsize = jnp.dtype(wd).itemsize
    ffn_weight_bytes = 2 * E * I * itemsize + I * 4
    other_param_bytes = sum(int(a.size) * a.dtype.itemsize for a in inputs[1:11]) + E * 4
    bytes_accessed = (2 * B * S * E * 4
                      + (B // Bb) * ffn_weight_bytes
                      + other_param_bytes)

    cp_kwargs = dict(dimension_semantics=("parallel", "arbitrary"))
    if vmem_limit is not None:
        cp_kwargs["vmem_limit_bytes"] = vmem_limit

    return pl.pallas_call(
        kernel,
        out_shape=jax.ShapeDtypeStruct((B, S, E), jnp.float32),
        grid_spec=pltpu.PrefetchScalarGridSpec(
            num_scalar_prefetch=0,
            grid=(B // Bb, n_i),                              # batch blocks, FFN-chunk reduction
            in_specs=in_specs,
            out_specs=pl.BlockSpec((Bb, S, E), lambda b, i: (b, 0, 0)),
            scratch_shapes=[pltpu.VMEM((Bb, S, E), jnp.float32),   # xn2 (post-LN2)
                            pltpu.VMEM((Bb, S, E), jnp.float32),   # FFN accumulator
                            pltpu.VMEM((S, E), jnp.float32)],      # per-example head outputs
        ),
        compiler_params=pltpu.CompilerParams(**cp_kwargs),
        cost_estimate=pl.CostEstimate(flops=flops,
                                      transcendentals=transcendentals,
                                      bytes_accessed=bytes_accessed),
    )(*inputs)


def reference_jax(x, p, num_heads):
    """Pure-JAX reference mirroring the PyTorch module's forward (eval mode)."""
    def ln(v, w, b):
        mu = jnp.mean(v, axis=-1, keepdims=True)
        var = jnp.mean((v - mu) ** 2, axis=-1, keepdims=True)
        return (v - mu) * lax.rsqrt(var + EPS) * w + b

    S = x.shape[1]
    xn = ln(x, p["ln1w"][0], p["ln1b"][0])
    outs = []
    for h in range(num_heads):
        q = xn @ p["wq"][h] + p["bq"][h, 0]
        k = xn @ p["wk"][h] + p["bk"][h, 0]
        v = q
        scores = jnp.einsum("bsd,btd->bst", q, k) / sqrt(S)
        w = jax.nn.softmax(scores, axis=-1)
        outs.append(jnp.einsum("bst,btd->bsd", w, v))
    concat = jnp.concatenate(outs, axis=-1)
    attn = concat @ p["wo"] + p["bo"][0]
    x1 = xn + attn
    xn2 = ln(x1, p["ln2w"][0], p["ln2b"][0])
    h1 = xn2 @ p["w1"] + p["b1"][0]
    g = 0.5 * h1 * (1.0 + lax.erf(h1 / jnp.sqrt(2.0)))
    h2 = g @ p["w2"] + p["b2"][0]
    return xn2 + h2


def init_params(key, embed_dim, num_heads, intermediate_dim):
    head_dim = embed_dim // num_heads
    ks = jax.random.split(key, 12)
    n = lambda k, shp, s=0.05: (s * jax.random.normal(k, shp)).astype(jnp.float32)
    return {
        "ln1w": jnp.ones((1, embed_dim), jnp.float32),
        "ln1b": jnp.zeros((1, embed_dim), jnp.float32),
        "wq": n(ks[0], (num_heads, embed_dim, head_dim)),
        "bq": n(ks[1], (num_heads, 1, head_dim)),
        "wk": n(ks[2], (num_heads, embed_dim, head_dim)),
        "bk": n(ks[3], (num_heads, 1, head_dim)),
        # v_net weights exist in the PyTorch module but are never used in forward.
        "wo": n(ks[4], (embed_dim, embed_dim)),
        "bo": n(ks[5], (1, embed_dim)),
        "ln2w": jnp.ones((1, embed_dim), jnp.float32),
        "ln2b": jnp.zeros((1, embed_dim), jnp.float32),
        "w1": n(ks[6], (embed_dim, intermediate_dim)),
        "b1": n(ks[7], (1, intermediate_dim)),
        "w2": n(ks[8], (intermediate_dim, embed_dim)),
        "b2": n(ks[9], (1, embed_dim)),
    }


if __name__ == "__main__":
    B, S, E, H, I = 2, 8, 32, 4, 64

    key = jax.random.PRNGKey(0)
    kx, kp = jax.random.split(key)
    x = jax.random.normal(kx, (B, S, E), dtype=jnp.float32)
    params = init_params(kp, E, H, I)

    ref = reference_jax(x, params, num_heads=H)

    def run(**kw):
        try:
            return jax.block_until_ready(
                transformer_encoder_layer(x, params, num_heads=H, **kw))
        except Exception:
            # Fallback for jax builds that reject pipeline_mode=pl.Buffered(1) on
            # pallas_call BlockSpecs: identical kernel with default double-buffering.
            return jax.block_until_ready(
                transformer_encoder_layer(x, params, num_heads=H,
                                          use_buffered=False, **kw))

    # f32 path — bitwise-faithful semantics, tight tolerance.
    out = run()
    assert out.shape == (B, S, E)
    assert jnp.allclose(out, ref, atol=1e-4, rtol=1e-4), (
        "f32 mismatch vs pure-JAX reference: "
        f"max abs diff = {float(jnp.max(jnp.abs(out - ref)))}")

    # bf16-weight path (f32 accumulation) — exercises the reduced-DMA / bf16-MXU configuration.
    out_bf16 = run(param_dtype=jnp.bfloat16)
    assert jnp.allclose(out_bf16, ref, atol=5e-2, rtol=5e-2), (
        "bf16 mismatch vs pure-JAX reference: "
        f"max abs diff = {float(jnp.max(jnp.abs(out_bf16 - ref)))}")

    print("KERNEL_OK")
</pallas_src>

<mosaic_0001>
module attributes {stable_mosaic.version = 11 : i64} {
  func.func @encoder_layer_kernel(%arg0: i32, %arg1: i32, %arg2: memref<2x8x32xf32, #tpu.memory_space<vmem>>, %arg3: memref<1x32xf32, #tpu.memory_space<vmem>>, %arg4: memref<1x32xf32, #tpu.memory_space<vmem>>, %arg5: memref<32x32xf32, #tpu.memory_space<vmem>>, %arg6: memref<1x32xf32, #tpu.memory_space<vmem>>, %arg7: memref<32x32xf32, #tpu.memory_space<vmem>>, %arg8: memref<1x32xf32, #tpu.memory_space<vmem>>, %arg9: memref<32x32xf32, #tpu.memory_space<vmem>>, %arg10: memref<1x32xf32, #tpu.memory_space<vmem>>, %arg11: memref<1x32xf32, #tpu.memory_space<vmem>>, %arg12: memref<1x32xf32, #tpu.memory_space<vmem>>, %arg13: memref<32x64xf32, #tpu.memory_space<vmem>>, %arg14: memref<1x64xf32, #tpu.memory_space<vmem>>, %arg15: memref<64x32xf32, #tpu.memory_space<vmem>>, %arg16: memref<1x32xf32, #tpu.memory_space<vmem>>, %arg17: memref<2x8x32xf32, #tpu.memory_space<vmem>>, %arg18: memref<2x8x32xf32, #tpu.memory_space<vmem>>, %arg19: memref<2x8x32xf32, #tpu.memory_space<vmem>>, %arg20: memref<8x32xf32, #tpu.memory_space<vmem>>) attributes {dimension_semantics = [#tpu.dimension_semantics<parallel>, #tpu.dimension_semantics<arbitrary>], iteration_bounds = array<i64: 1, 1>, scalar_prefetch = 0 : i64, scratch_operands = 3 : i64, tpu.core_type = #tpu.core_type<tc>, window_params = [{transform_indices = @transform_0, window_bounds = array<i64: 2, 8, 32>}, {pipeline_mode = #tpu.pipeline_mode<synchronous>, transform_indices = @transform_1, window_bounds = array<i64: 1, 32>}, {pipeline_mode = #tpu.pipeline_mode<synchronous>, transform_indices = @transform_2, window_bounds = array<i64: 1, 32>}, {pipeline_mode = #tpu.pipeline_mode<synchronous>, transform_indices = @transform_3, window_bounds = array<i64: 32, 32>}, {pipeline_mode = #tpu.pipeline_mode<synchronous>, transform_indices = @transform_4, window_bounds = array<i64: 1, 32>}, {pipeline_mode = #tpu.pipeline_mode<synchronous>, transform_indices = @transform_5, window_bounds = array<i64: 32, 32>}, {pipeline_mode = #tpu.pipeline_mode<synchronous>, transform_indices = @transform_6, window_bounds = array<i64: 1, 32>}, {pipeline_mode = #tpu.pipeline_mode<synchronous>, transform_indices = @transform_7, window_bounds = array<i64: 32, 32>}, {pipeline_mode = #tpu.pipeline_mode<synchronous>, transform_indices = @transform_8, window_bounds = array<i64: 1, 32>}, {pipeline_mode = #tpu.pipeline_mode<synchronous>, transform_indices = @transform_9, window_bounds = array<i64: 1, 32>}, {pipeline_mode = #tpu.pipeline_mode<synchronous>, transform_indices = @transform_10, window_bounds = array<i64: 1, 32>}, {transform_indices = @transform_11, window_bounds = array<i64: 32, 64>}, {transform_indices = @transform_12, window_bounds = array<i64: 1, 64>}, {transform_indices = @transform_13, window_bounds = array<i64: 64, 32>}, {pipeline_mode = #tpu.pipeline_mode<synchronous>, transform_indices = @transform_14, window_bounds = array<i64: 1, 32>}, {transform_indices = @transform_15, window_bounds = array<i64: 2, 8, 32>}]} {
    %c0_i32 = arith.constant 0 : i32
    %0 = arith.cmpi eq, %arg1, %c0_i32 : i32
    %1 = arith.extui %0 : i1 to i32
    %c0_i32_0 = arith.constant 0 : i32
    %2 = arith.cmpi ne, %1, %c0_i32_0 : i32
    scf.if %2 {
      %c0_40 = arith.constant 0 : index
      %c0_41 = arith.constant 0 : index
      %c0_42 = arith.constant 0 : index
      %52 = vector.load %arg2[%c0_40, %c0_41, %c0_42] : memref<2x8x32xf32, #tpu.memory_space<vmem>>, vector<1x8x32xf32>
      %53 = vector.shape_cast %52 : vector<1x8x32xf32> to vector<8x32xf32>
      %c0_43 = arith.constant 0 : index
      %c0_44 = arith.constant 0 : index
      %54 = vector.load %arg3[%c0_43, %c0_44] : memref<1x32xf32, #tpu.memory_space<vmem>>, vector<1x32xf32>
      %c0_45 = arith.constant 0 : index
      %c0_46 = arith.constant 0 : index
      %55 = vector.load %arg4[%c0_45, %c0_46] : memref<1x32xf32, #tpu.memory_space<vmem>>, vector<1x32xf32>
      %cst_47 = arith.constant dense<0.000000e+00> : vector<8xf32>
      %56 = vector.multi_reduction <add>, %53, %cst_47 [1] : vector<8x32xf32> to vector<8xf32>
      %57 = vector.shape_cast %56 : vector<8xf32> to vector<8x1xf32>
      %cst_48 = arith.constant 3.200000e+01 : f32
      %58 = vector.broadcast %cst_48 : f32 to vector<8x1xf32>
      %59 = arith.divf %57, %58 : vector<8x1xf32>
      %60 = vector.broadcast %59 : vector<8x1xf32> to vector<8x32xf32>
      %61 = arith.subf %53, %60 : vector<8x32xf32>
      %62 = arith.mulf %61, %61 : vector<8x32xf32>
      %cst_49 = arith.constant dense<0.000000e+00> : vector<8xf32>
      %63 = vector.multi_reduction <add>, %62, %cst_49 [1] : vector<8x32xf32> to vector<8xf32>
      %64 = vector.shape_cast %63 : vector<8xf32> to vector<8x1xf32>
      %cst_50 = arith.constant 3.200000e+01 : f32
      %65 = vector.broadcast %cst_50 : f32 to vector<8x1xf32>
      %66 = arith.divf %64, %65 : vector<8x1xf32>
      %67 = vector.broadcast %59 : vector<8x1xf32> to vector<8x32xf32>
      %68 = arith.subf %53, %67 : vector<8x32xf32>
      %cst_51 = arith.constant 9.99999974E-6 : f32
      %69 = vector.broadcast %cst_51 : f32 to vector<8x1xf32>
      %70 = arith.addf %66, %69 : vector<8x1xf32>
      %71 = math.rsqrt %70 : vector<8x1xf32>
      %72 = vector.broadcast %71 : vector<8x1xf32> to vector<8x32xf32>
      %73 = arith.mulf %68, %72 : vector<8x32xf32>
      %74 = vector.broadcast %54 : vector<1x32xf32> to vector<8x32xf32>
      %75 = arith.mulf %73, %74 : vector<8x32xf32>
      %76 = vector.broadcast %55 : vector<1x32xf32> to vector<8x32xf32>
      %77 = arith.addf %75, %76 : vector<8x32xf32>
      %c0_52 = arith.constant 0 : index
      %c0_53 = arith.constant 0 : index
      %78 = vector.load %arg5[%c0_52, %c0_53] : memref<32x32xf32, #tpu.memory_space<vmem>>, vector<32x32xf32>
      %cst_54 = arith.constant dense<0.000000e+00> : vector<8x32xf32>
      %79 = tpu.matmul %77, %78, %cst_54 {dimension_numbers = #tpu.dot_dimension_numbers<[1], [0], [0], [1], [0, 0, 1, 1], [], []>} : vector<8x32xf32>, vector<32x32xf32>, vector<8x32xf32> -> vector<8x32xf32>
      %c0_55 = arith.constant 0 : index
      %c0_56 = arith.constant 0 : index
      %80 = vector.load %arg6[%c0_55, %c0_56] : memref<1x32xf32, #tpu.memory_space<vmem>>, vector<1x32xf32>
      %81 = vector.broadcast %80 : vector<1x32xf32> to vector<8x32xf32>
      %82 = arith.addf %79, %81 : vector<8x32xf32>
      %c0_57 = arith.constant 0 : index
      %c0_58 = arith.constant 0 : index
      %83 = vector.load %arg7[%c0_57, %c0_58] : memref<32x32xf32, #tpu.memory_space<vmem>>, vector<32x32xf32>
      %cst_59 = arith.constant dense<0.000000e+00> : vector<8x32xf32>
      %84 = tpu.matmul %77, %83, %cst_59 {dimension_numbers = #tpu.dot_dimension_numbers<[1], [0], [0], [1], [0, 0, 1, 1], [], []>} : vector<8x32xf32>, vector<32x32xf32>, vector<8x32xf32> -> vector<8x32xf32>
      %c0_60 = arith.constant 0 : index
      %c0_61 = arith.constant 0 : index
      %85 = vector.load %arg8[%c0_60, %c0_61] : memref<1x32xf32, #tpu.memory_space<vmem>>, vector<1x32xf32>
      %86 = vector.broadcast %85 : vector<1x32xf32> to vector<8x32xf32>
      %87 = arith.addf %84, %86 : vector<8x32xf32>
      %88 = vector.extract_strided_slice %82 {offsets = [0, 0], sizes = [8, 8], strides = [1, 1]} : vector<8x32xf32> to vector<8x8xf32>
      %89 = vector.extract_strided_slice %87 {offsets = [0, 0], sizes = [8, 8], strides = [1, 1]} : vector<8x32xf32> to vector<8x8xf32>
      %cst_62 = arith.constant 0.353553385 : f32
      %90 = vector.broadcast %cst_62 : f32 to vector<8x8xf32>
      %91 = arith.mulf %89, %90 : vector<8x8xf32>
      %cst_63 = arith.constant dense<0.000000e+00> : vector<8x8xf32>
      %92 = tpu.matmul %88, %91, %cst_63 {dimension_numbers = #tpu.dot_dimension_numbers<[1], [1], [0], [0], [0, 0, 1, 0], [], []>} : vector<8x8xf32>, vector<8x8xf32>, vector<8x8xf32> -> vector<8x8xf32>
      %cst_64 = arith.constant dense<0xFF800000> : vector<8xf32>
      %93 = vector.multi_reduction <maximumf>, %92, %cst_64 [1] : vector<8x8xf32> to vector<8xf32>
      %94 = vector.shape_cast %93 : vector<8xf32> to vector<8x1xf32>
      %95 = vector.broadcast %94 : vector<8x1xf32> to vector<8x8xf32>
      %96 = arith.subf %92, %95 : vector<8x8xf32>
      %97 = math.exp %96 : vector<8x8xf32>
      %cst_65 = arith.constant dense<0.000000e+00> : vector<8xf32>
      %98 = vector.multi_reduction <add>, %97, %cst_65 [1] : vector<8x8xf32> to vector<8xf32>
      %99 = vector.shape_cast %98 : vector<8xf32> to vector<8x1xf32>
      %100 = tpu.reciprocal %99 : vector<8x1xf32> -> vector<8x1xf32>
      %101 = vector.broadcast %100 : vector<8x1xf32> to vector<8x8xf32>
      %102 = arith.mulf %97, %101 : vector<8x8xf32>
      %cst_66 = arith.constant dense<0.000000e+00> : vector<8x8xf32>
      %103 = tpu.matmul %102, %88, %cst_66 {dimension_numbers = #tpu.dot_dimension_numbers<[1], [0], [0], [1], [0, 0, 1, 1], [], []>} : vector<8x8xf32>, vector<8x8xf32>, vector<8x8xf32> -> vector<8x8xf32>
      %c0_67 = arith.constant 0 : index
      %c0_68 = arith.constant 0 : index
      %104 = vector.load %arg20[%c0_67, %c0_68] : memref<8x32xf32, #tpu.memory_space<vmem>>, vector<8x8xf32>
      tpu.vector_store %arg20[%c0_67, %c0_68], %103 {strides = array<i32>} : memref<8x32xf32, #tpu.memory_space<vmem>>, vector<8x8xf32>,
      %105 = vector.extract_strided_slice %82 {offsets = [0, 8], sizes = [8, 8], strides = [1, 1]} : vector<8x32xf32> to vector<8x8xf32>
      %106 = vector.extract_strided_slice %87 {offsets = [0, 8], sizes = [8, 8], strides = [1, 1]} : vector<8x32xf32> to vector<8x8xf32>
      %cst_69 = arith.constant 0.353553385 : f32
      %107 = vector.broadcast %cst_69 : f32 to vector<8x8xf32>
      %108 = arith.mulf %106, %107 : vector<8x8xf32>
      %cst_70 = arith.constant dense<0.000000e+00> : vector<8x8xf32>
      %109 = tpu.matmul %105, %108, %cst_70 {dimension_numbers = #tpu.dot_dimension_numbers<[1], [1], [0], [0], [0, 0, 1, 0], [], []>} : vector<8x8xf32>, vector<8x8xf32>, vector<8x8xf32> -> vector<8x8xf32>
      %cst_71 = arith.constant dense<0xFF800000> : vector<8xf32>
      %110 = vector.multi_reduction <maximumf>, %109, %cst_71 [1] : vector<8x8xf32> to vector<8xf32>
      %111 = vector.shape_cast %110 : vector<8xf32> to vector<8x1xf32>
      %112 = vector.broadcast %111 : vector<8x1xf32> to vector<8x8xf32>
      %113 = arith.subf %109, %112 : vector<8x8xf32>
      %114 = math.exp %113 : vector<8x8xf32>
      %cst_72 = arith.constant dense<0.000000e+00> : vector<8xf32>
      %115 = vector.multi_reduction <add>, %114, %cst_72 [1] : vector<8x8xf32> to vector<8xf32>
      %116 = vector.shape_cast %115 : vector<8xf32> to vector<8x1xf32>
      %117 = tpu.reciprocal %116 : vector<8x1xf32> -> vector<8x1xf32>
      %118 = vector.broadcast %117 : vector<8x1xf32> to vector<8x8xf32>
      %119 = arith.mulf %114, %118 : vector<8x8xf32>
      %cst_73 = arith.constant dense<0.000000e+00> : vector<8x8xf32>
      %120 = tpu.matmul %119, %105, %cst_73 {dimension_numbers = #tpu.dot_dimension_numbers<[1], [0], [0], [1], [0, 0, 1, 1], [], []>} : vector<8x8xf32>, vector<8x8xf32>, vector<8x8xf32> -> vector<8x8xf32>
      %c0_74 = arith.constant 0 : index
      %c8 = arith.constant 8 : index
      %121 = vector.load %arg20[%c0_74, %c8] : memref<8x32xf32, #tpu.memory_space<vmem>>, vector<8x8xf32>
      tpu.vector_store %arg20[%c0_74, %c8], %120 {strides = array<i32>} : memref<8x32xf32, #tpu.memory_space<vmem>>, vector<8x8xf32>,
      %122 = vector.extract_strided_slice %82 {offsets = [0, 16], sizes = [8, 8], strides = [1, 1]} : vector<8x32xf32> to vector<8x8xf32>
      %123 = vector.extract_strided_slice %87 {offsets = [0, 16], sizes = [8, 8], strides = [1, 1]} : vector<8x32xf32> to vector<8x8xf32>
      %cst_75 = arith.constant 0.353553385 : f32
      %124 = vector.broadcast %cst_75 : f32 to vector<8x8xf32>
      %125 = arith.mulf %123, %124 : vector<8x8xf32>
      %cst_76 = arith.constant dense<0.000000e+00> : vector<8x8xf32>
      %126 = tpu.matmul %122, %125, %cst_76 {dimension_numbers = #tpu.dot_dimension_numbers<[1], [1], [0], [0], [0, 0, 1, 0], [], []>} : vector<8x8xf32>, vector<8x8xf32>, vector<8x8xf32> -> vector<8x8xf32>
      %cst_77 = arith.constant dense<0xFF800000> : vector<8xf32>
      %127 = vector.multi_reduction <maximumf>, %126, %cst_77 [1] : vector<8x8xf32> to vector<8xf32>
      %128 = vector.shape_cast %127 : vector<8xf32> to vector<8x1xf32>
      %129 = vector.broadcast %128 : vector<8x1xf32> to vector<8x8xf32>
      %130 = arith.subf %126, %129 : vector<8x8xf32>
      %131 = math.exp %130 : vector<8x8xf32>
      %cst_78 = arith.constant dense<0.000000e+00> : vector<8xf32>
      %132 = vector.multi_reduction <add>, %131, %cst_78 [1] : vector<8x8xf32> to vector<8xf32>
      %133 = vector.shape_cast %132 : vector<8xf32> to vector<8x1xf32>
      %134 = tpu.reciprocal %133 : vector<8x1xf32> -> vector<8x1xf32>
      %135 = vector.broadcast %134 : vector<8x1xf32> to vector<8x8xf32>
      %136 = arith.mulf %131, %135 : vector<8x8xf32>
      %cst_79 = arith.constant dense<0.000000e+00> : vector<8x8xf32>
      %137 = tpu.matmul %136, %122, %cst_79 {dimension_numbers = #tpu.dot_dimension_numbers<[1], [0], [0], [1], [0, 0, 1, 1], [], []>} : vector<8x8xf32>, vector<8x8xf32>, vector<8x8xf32> -> vector<8x8xf32>
      %c0_80 = arith.constant 0 : index
      %c16 = arith.constant 16 : index
      %138 = vector.load %arg20[%c0_80, %c16] : memref<8x32xf32, #tpu.memory_space<vmem>>, vector<8x8xf32>
      tpu.vector_store %arg20[%c0_80, %c16], %137 {strides = array<i32>} : memref<8x32xf32, #tpu.memory_space<vmem>>, vector<8x8xf32>,
      %139 = vector.extract_strided_slice %82 {offsets = [0, 24], sizes = [8, 8], strides = [1, 1]} : vector<8x32xf32> to vector<8x8xf32>
      %140 = vector.extract_strided_slice %87 {offsets = [0, 24], sizes = [8, 8], strides = [1, 1]} : vector<8x32xf32> to vector<8x8xf32>
      %cst_81 = arith.constant 0.353553385 : f32
      %141 = vector.broadcast %cst_81 : f32 to vector<8x8xf32>
      %142 = arith.mulf %140, %141 : vector<8x8xf32>
      %cst_82 = arith.constant dense<0.000000e+00> : vector<8x8xf32>
      %143 = tpu.matmul %139, %142, %cst_82 {dimension_numbers = #tpu.dot_dimension_numbers<[1], [1], [0], [0], [0, 0, 1, 0], [], []>} : vector<8x8xf32>, vector<8x8xf32>, vector<8x8xf32> -> vector<8x8xf32>
      %cst_83 = arith.constant dense<0xFF800000> : vector<8xf32>
      %144 = vector.multi_reduction <maximumf>, %143, %cst_83 [1] : vector<8x8xf32> to vector<8xf32>
      %145 = vector.shape_cast %144 : vector<8xf32> to vector<8x1xf32>
      %146 = vector.broadcast %145 : vector<8x1xf32> to vector<8x8xf32>
      %147 = arith.subf %143, %146 : vector<8x8xf32>
      %148 = math.exp %147 : vector<8x8xf32>
      %cst_84 = arith.constant dense<0.000000e+00> : vector<8xf32>
      %149 = vector.multi_reduction <add>, %148, %cst_84 [1] : vector<8x8xf32> to vector<8xf32>
      %150 = vector.shape_cast %149 : vector<8xf32> to vector<8x1xf32>
      %151 = tpu.reciprocal %150 : vector<8x1xf32> -> vector<8x1xf32>
      %152 = vector.broadcast %151 : vector<8x1xf32> to vector<8x8xf32>
      %153 = arith.mulf %148, %152 : vector<8x8xf32>
      %cst_85 = arith.constant dense<0.000000e+00> : vector<8x8xf32>
      %154 = tpu.matmul %153, %139, %cst_85 {dimension_numbers = #tpu.dot_dimension_numbers<[1], [0], [0], [1], [0, 0, 1, 1], [], []>} : vector<8x8xf32>, vector<8x8xf32>, vector<8x8xf32> -> vector<8x8xf32>
      %c0_86 = arith.constant 0 : index
      %c24 = arith.constant 24 : index
      %155 = vector.load %arg20[%c0_86, %c24] : memref<8x32xf32, #tpu.memory_space<vmem>>, vector<8x8xf32>
      tpu.vector_store %arg20[%c0_86, %c24], %154 {strides = array<i32>} : memref<8x32xf32, #tpu.memory_space<vmem>>, vector<8x8xf32>,
      %c0_87 = arith.constant 0 : index
      %c0_88 = arith.constant 0 : index
      %156 = vector.load %arg20[%c0_87, %c0_88] : memref<8x32xf32, #tpu.memory_space<vmem>>, vector<8x32xf32>
      %c0_89 = arith.constant 0 : index
      %c0_90 = arith.constant 0 : index
      %157 = vector.load %arg9[%c0_89, %c0_90] : memref<32x32xf32, #tpu.memory_space<vmem>>, vector<32x32xf32>
      %cst_91 = arith.constant dense<0.000000e+00> : vector<8x32xf32>
      %158 = tpu.matmul %156, %157, %cst_91 {dimension_numbers = #tpu.dot_dimension_numbers<[1], [0], [0], [1], [0, 0, 1, 1], [], []>} : vector<8x32xf32>, vector<32x32xf32>, vector<8x32xf32> -> vector<8x32xf32>
      %c0_92 = arith.constant 0 : index
      %c0_93 = arith.constant 0 : index
      %159 = vector.load %arg10[%c0_92, %c0_93] : memref<1x32xf32, #tpu.memory_space<vmem>>, vector<1x32xf32>
      %160 = vector.broadcast %159 : vector<1x32xf32> to vector<8x32xf32>
      %161 = arith.addf %158, %160 : vector<8x32xf32>
      %162 = arith.addf %77, %161 : vector<8x32xf32>
      %c0_94 = arith.constant 0 : index
      %c0_95 = arith.constant 0 : index
      %163 = vector.load %arg11[%c0_94, %c0_95] : memref<1x32xf32, #tpu.memory_space<vmem>>, vector<1x32xf32>
      %c0_96 = arith.constant 0 : index
      %c0_97 = arith.constant 0 : index
      %164 = vector.load %arg12[%c0_96, %c0_97] : memref<1x32xf32, #tpu.memory_space<vmem>>, vector<1x32xf32>
      %cst_98 = arith.constant dense<0.000000e+00> : vector<8xf32>
      %165 = vector.multi_reduction <add>, %162, %cst_98 [1] : vector<8x32xf32> to vector<8xf32>
      %166 = vector.shape_cast %165 : vector<8xf32> to vector<8x1xf32>
      %cst_99 = arith.constant 3.200000e+01 : f32
      %167 = vector.broadcast %cst_99 : f32 to vector<8x1xf32>
      %168 = arith.divf %166, %167 : vector<8x1xf32>
      %169 = vector.broadcast %168 : vector<8x1xf32> to vector<8x32xf32>
      %170 = arith.subf %162, %169 : vector<8x32xf32>
      %171 = arith.mulf %170, %170 : vector<8x32xf32>
      %cst_100 = arith.constant dense<0.000000e+00> : vector<8xf32>
      %172 = vector.multi_reduction <add>, %171, %cst_100 [1] : vector<8x32xf32> to vector<8xf32>
      %173 = vector.shape_cast %172 : vector<8xf32> to vector<8x1xf32>
      %cst_101 = arith.constant 3.200000e+01 : f32
      %174 = vector.broadcast %cst_101 : f32 to vector<8x1xf32>
      %175 = arith.divf %173, %174 : vector<8x1xf32>
      %176 = vector.broadcast %168 : vector<8x1xf32> to vector<8x32xf32>
      %177 = arith.subf %162, %176 : vector<8x32xf32>
      %cst_102 = arith.constant 9.99999974E-6 : f32
      %178 = vector.broadcast %cst_102 : f32 to vector<8x1xf32>
      %179 = arith.addf %175, %178 : vector<8x1xf32>
      %180 = math.rsqrt %179 : vector<8x1xf32>
      %181 = vector.broadcast %180 : vector<8x1xf32> to vector<8x32xf32>
      %182 = arith.mulf %177, %181 : vector<8x32xf32>
      %183 = vector.broadcast %163 : vector<1x32xf32> to vector<8x32xf32>
      %184 = arith.mulf %182, %183 : vector<8x32xf32>
      %185 = vector.broadcast %164 : vector<1x32xf32> to vector<8x32xf32>
      %186 = arith.addf %184, %185 : vector<8x32xf32>
      %c0_103 = arith.constant 0 : index
      %c0_104 = arith.constant 0 : index
      %c0_105 = arith.constant 0 : index
      %187 = vector.load %arg18[%c0_103, %c0_104, %c0_105] : memref<2x8x32xf32, #tpu.memory_space<vmem>>, vector<1x8x32xf32>
      %188 = vector.shape_cast %187 : vector<1x8x32xf32> to vector<8x32xf32>
      %189 = vector.shape_cast %186 : vector<8x32xf32> to vector<1x8x32xf32>
      tpu.vector_store %arg18[%c0_103, %c0_104, %c0_105], %189 {strides = array<i32>} : memref<2x8x32xf32, #tpu.memory_space<vmem>>, vector<1x8x32xf32>,
      %c0_106 = arith.constant 0 : index
      %c0_107 = arith.constant 0 : index
      %190 = vector.load %arg16[%c0_106, %c0_107] : memref<1x32xf32, #tpu.memory_space<vmem>>, vector<1x32xf32>
      %191 = vector.broadcast %190 : vector<1x32xf32> to vector<8x32xf32>
      %192 = arith.addf %186, %191 : vector<8x32xf32>
      %c0_108 = arith.constant 0 : index
      %c0_109 = arith.constant 0 : index
      %c0_110 = arith.constant 0 : index
      %193 = vector.load %arg19[%c0_108, %c0_109, %c0_110] : memref<2x8x32xf32, #tpu.memory_space<vmem>>, vector<1x8x32xf32>
      %194 = vector.shape_cast %193 : vector<1x8x32xf32> to vector<8x32xf32>
      %195 = vector.shape_cast %192 : vector<8x32xf32> to vector<1x8x32xf32>
      tpu.vector_store %arg19[%c0_108, %c0_109, %c0_110], %195 {strides = array<i32>} : memref<2x8x32xf32, #tpu.memory_space<vmem>>, vector<1x8x32xf32>,
      %c1_111 = arith.constant 1 : index
      %c0_112 = arith.constant 0 : index
      %c0_113 = arith.constant 0 : index
      %196 = vector.load %arg2[%c1_111, %c0_112, %c0_113] : memref<2x8x32xf32, #tpu.memory_space<vmem>>, vector<1x8x32xf32>
      %197 = vector.shape_cast %196 : vector<1x8x32xf32> to vector<8x32xf32>
      %c0_114 = arith.constant 0 : index
      %c0_115 = arith.constant 0 : index
      %198 = vector.load %arg3[%c0_114, %c0_115] : memref<1x32xf32, #tpu.memory_space<vmem>>, vector<1x32xf32>
      %c0_116 = arith.constant 0 : index
      %c0_117 = arith.constant 0 : index
      %199 = vector.load %arg4[%c0_116, %c0_117] : memref<1x32xf32, #tpu.memory_space<vmem>>, vector<1x32xf32>
      %cst_118 = arith.constant dense<0.000000e+00> : vector<8xf32>
      %200 = vector.multi_reduction <add>, %197, %cst_118 [1] : vector<8x32xf32> to vector<8xf32>
      %201 = vector.shape_cast %200 : vector<8xf32> to vector<8x1xf32>
      %cst_119 = arith.constant 3.200000e+01 : f32
      %202 = vector.broadcast %cst_119 : f32 to vector<8x1xf32>
      %203 = arith.divf %201, %202 : vector<8x1xf32>
      %204 = vector.broadcast %203 : vector<8x1xf32> to vector<8x32xf32>
      %205 = arith.subf %197, %204 : vector<8x32xf32>
      %206 = arith.mulf %205, %205 : vector<8x32xf32>
      %cst_120 = arith.constant dense<0.000000e+00> : vector<8xf32>
      %207 = vector.multi_reduction <add>, %206, %cst_120 [1] : vector<8x32xf32> to vector<8xf32>
      %208 = vector.shape_cast %207 : vector<8xf32> to vector<8x1xf32>
      %cst_121 = arith.constant 3.200000e+01 : f32
      %209 = vector.broadcast %cst_121 : f32 to vector<8x1xf32>
      %210 = arith.divf %208, %209 : vector<8x1xf32>
      %211 = vector.broadcast %203 : vector<8x1xf32> to vector<8x32xf32>
      %212 = arith.subf %197, %211 : vector<8x32xf32>
      %cst_122 = arith.constant 9.99999974E-6 : f32
      %213 = vector.broadcast %cst_122 : f32 to vector<8x1xf32>
      %214 = arith.addf %210, %213 : vector<8x1xf32>
      %215 = math.rsqrt %214 : vector<8x1xf32>
      %216 = vector.broadcast %215 : vector<8x1xf32> to vector<8x32xf32>
      %217 = arith.mulf %212, %216 : vector<8x32xf32>
      %218 = vector.broadcast %198 : vector<1x32xf32> to vector<8x32xf32>
      %219 = arith.mulf %217, %218 : vector<8x32xf32>
      %220 = vector.broadcast %199 : vector<1x32xf32> to vector<8x32xf32>
      %221 = arith.addf %219, %220 : vector<8x32xf32>
      %c0_123 = arith.constant 0 : index
      %c0_124 = arith.constant 0 : index
      %222 = vector.load %arg5[%c0_123, %c0_124] : memref<32x32xf32, #tpu.memory_space<vmem>>, vector<32x32xf32>
      %cst_125 = arith.constant dense<0.000000e+00> : vector<8x32xf32>
      %223 = tpu.matmul %221, %222, %cst_125 {dimension_numbers = #tpu.dot_dimension_numbers<[1], [0], [0], [1], [0, 0, 1, 1], [], []>} : vector<8x32xf32>, vector<32x32xf32>, vector<8x32xf32> -> vector<8x32xf32>
      %c0_126 = arith.constant 0 : index
      %c0_127 = arith.constant 0 : index
      %224 = vector.load %arg6[%c0_126, %c0_127] : memref<1x32xf32, #tpu.memory_space<vmem>>, vector<1x32xf32>
      %225 = vector.broadcast %224 : vector<1x32xf32> to vector<8x32xf32>
      %226 = arith.addf %223, %225 : vector<8x32xf32>
      %c0_128 = arith.constant 0 : index
      %c0_129 = arith.constant 0 : index
      %227 = vector.load %arg7[%c0_128, %c0_129] : memref<32x32xf32, #tpu.memory_space<vmem>>, vector<32x32xf32>
      %cst_130 = arith.constant dense<0.000000e+00> : vector<8x32xf32>
      %228 = tpu.matmul %221, %227, %cst_130 {dimension_numbers = #tpu.dot_dimension_numbers<[1], [0], [0], [1], [0, 0, 1, 1], [], []>} : vector<8x32xf32>, vector<32x32xf32>, vector<8x32xf32> -> vector<8x32xf32>
      %c0_131 = arith.constant 0 : index
      %c0_132 = arith.constant 0 : index
      %229 = vector.load %arg8[%c0_131, %c0_132] : memref<1x32xf32, #tpu.memory_space<vmem>>, vector<1x32xf32>
      %230 = vector.broadcast %229 : vector<1x32xf32> to vector<8x32xf32>
      %231 = arith.addf %228, %230 : vector<8x32xf32>
      %232 = vector.extract_strided_slice %226 {offsets = [0, 0], sizes = [8, 8], strides = [1, 1]} : vector<8x32xf32> to vector<8x8xf32>
      %233 = vector.extract_strided_slice %231 {offsets = [0, 0], sizes = [8, 8], strides = [1, 1]} : vector<8x32xf32> to vector<8x8xf32>
      %cst_133 = arith.constant 0.353553385 : f32
      %234 = vector.broadcast %cst_133 : f32 to vector<8x8xf32>
      %235 = arith.mulf %233, %234 : vector<8x8xf32>
      %cst_134 = arith.constant dense<0.000000e+00> : vector<8x8xf32>
      %236 = tpu.matmul %232, %235, %cst_134 {dimension_numbers = #tpu.dot_dimension_numbers<[1], [1], [0], [0], [0, 0, 1, 0], [], []>} : vector<8x8xf32>, vector<8x8xf32>, vector<8x8xf32> -> vector<8x8xf32>
      %cst_135 = arith.constant dense<0xFF800000> : vector<8xf32>
      %237 = vector.multi_reduction <maximumf>, %236, %cst_135 [1] : vector<8x8xf32> to vector<8xf32>
      %238 = vector.shape_cast %237 : vector<8xf32> to vector<8x1xf32>
      %239 = vector.broadcast %238 : vector<8x1xf32> to vector<8x8xf32>
      %240 = arith.subf %236, %239 : vector<8x8xf32>
      %241 = math.exp %240 : vector<8x8xf32>
      %cst_136 = arith.constant dense<0.000000e+00> : vector<8xf32>
      %242 = vector.multi_reduction <add>, %241, %cst_136 [1] : vector<8x8xf32> to vector<8xf32>
      %243 = vector.shape_cast %242 : vector<8xf32> to vector<8x1xf32>
      %244 = tpu.reciprocal %243 : vector<8x1xf32> -> vector<8x1xf32>
      %245 = vector.broadcast %244 : vector<8x1xf32> to vector<8x8xf32>
      %246 = arith.mulf %241, %245 : vector<8x8xf32>
      %cst_137 = arith.constant dense<0.000000e+00> : vector<8x8xf32>
      %247 = tpu.matmul %246, %232, %cst_137 {dimension_numbers = #tpu.dot_dimension_numbers<[1], [0], [0], [1], [0, 0, 1, 1], [], []>} : vector<8x8xf32>, vector<8x8xf32>, vector<8x8xf32> -> vector<8x8xf32>
      %c0_138 = arith.constant 0 : index
      %c0_139 = arith.constant 0 : index
      %248 = vector.load %arg20[%c0_138, %c0_139] : memref<8x32xf32, #tpu.memory_space<vmem>>, vector<8x8xf32>
      tpu.vector_store %arg20[%c0_138, %c0_139], %247 {strides = array<i32>} : memref<8x32xf32, #tpu.memory_space<vmem>>, vector<8x8xf32>,
      %249 = vector.extract_strided_slice %226 {offsets = [0, 8], sizes = [8, 8], strides = [1, 1]} : vector<8x32xf32> to vector<8x8xf32>
      %250 = vector.extract_strided_slice %231 {offsets = [0, 8], sizes = [8, 8], strides = [1, 1]} : vector<8x32xf32> to vector<8x8xf32>
      %cst_140 = arith.constant 0.353553385 : f32
      %251 = vector.broadcast %cst_140 : f32 to vector<8x8xf32>
      %252 = arith.mulf %250, %251 : vector<8x8xf32>
      %cst_141 = arith.constant dense<0.000000e+00> : vector<8x8xf32>
      %253 = tpu.matmul %249, %252, %cst_141 {dimension_numbers = #tpu.dot_dimension_numbers<[1], [1], [0], [0], [0, 0, 1, 0], [], []>} : vector<8x8xf32>, vector<8x8xf32>, vector<8x8xf32> -> vector<8x8xf32>
      %cst_142 = arith.constant dense<0xFF800000> : vector<8xf32>
      %254 = vector.multi_reduction <maximumf>, %253, %cst_142 [1] : vector<8x8xf32> to vector<8xf32>
      %255 = vector.shape_cast %254 : vector<8xf32> to vector<8x1xf32>
      %256 = vector.broadcast %255 : vector<8x1xf32> to vector<8x8xf32>
      %257 = arith.subf %253, %256 : vector<8x8xf32>
      %258 = math.exp %257 : vector<8x8xf32>
      %cst_143 = arith.constant dense<0.000000e+00> : vector<8xf32>
      %259 = vector.multi_reduction <add>, %258, %cst_143 [1] : vector<8x8xf32> to vector<8xf32>
      %260 = vector.shape_cast %259 : vector<8xf32> to vector<8x1xf32>
      %261 = tpu.reciprocal %260 : vector<8x1xf32> -> vector<8x1xf32>
      %262 = vector.broadcast %261 : vector<8x1xf32> to vector<8x8xf32>
      %263 = arith.mulf %258, %262 : vector<8x8xf32>
      %cst_144 = arith.constant dense<0.000000e+00> : vector<8x8xf32>
      %264 = tpu.matmul %263, %249, %cst_144 {dimension_numbers = #tpu.dot_dimension_numbers<[1], [0], [0], [1], [0, 0, 1, 1], [], []>} : vector<8x8xf32>, vector<8x8xf32>, vector<8x8xf32> -> vector<8x8xf32>
      %c0_145 = arith.constant 0 : index
      %c8_146 = arith.constant 8 : index
      %265 = vector.load %arg20[%c0_145, %c8_146] : memref<8x32xf32, #tpu.memory_space<vmem>>, vector<8x8xf32>
      tpu.vector_store %arg20[%c0_145, %c8_146], %264 {strides = array<i32>} : memref<8x32xf32, #tpu.memory_space<vmem>>, vector<8x8xf32>,
      %266 = vector.extract_strided_slice %226 {offsets = [0, 16], sizes = [8, 8], strides = [1, 1]} : vector<8x32xf32> to vector<8x8xf32>
      %267 = vector.extract_strided_slice %231 {offsets = [0, 16], sizes = [8, 8], strides = [1, 1]} : vector<8x32xf32> to vector<8x8xf32>
      %cst_147 = arith.constant 0.353553385 : f32
      %268 = vector.broadcast %cst_147 : f32 to vector<8x8xf32>
      %269 = arith.mulf %267, %268 : vector<8x8xf32>
      %cst_148 = arith.constant dense<0.000000e+00> : vector<8x8xf32>
      %270 = tpu.matmul %266, %269, %cst_148 {dimension_numbers = #tpu.dot_dimension_numbers<[1], [1], [0], [0], [0, 0, 1, 0], [], []>} : vector<8x8xf32>, vector<8x8xf32>, vector<8x8xf32> -> vector<8x8xf32>
      %cst_149 = arith.constant dense<0xFF800000> : vector<8xf32>
      %271 = vector.multi_reduction <maximumf>, %270, %cst_149 [1] : vector<8x8xf32> to vector<8xf32>
      %272 = vector.shape_cast %271 : vector<8xf32> to vector<8x1xf32>
      %273 = vector.broadcast %272 : vector<8x1xf32> to vector<8x8xf32>
      %274 = arith.subf %270, %273 : vector<8x8xf32>
      %275 = math.exp %274 : vector<8x8xf32>
      %cst_150 = arith.constant dense<0.000000e+00> : vector<8xf32>
      %276 = vector.multi_reduction <add>, %275, %cst_150 [1] : vector<8x8xf32> to vector<8xf32>
      %277 = vector.shape_cast %276 : vector<8xf32> to vector<8x1xf32>
      %278 = tpu.reciprocal %277 : vector<8x1xf32> -> vector<8x1xf32>
      %279 = vector.broadcast %278 : vector<8x1xf32> to vector<8x8xf32>
      %280 = arith.mulf %275, %279 : vector<8x8xf32>
      %cst_151 = arith.constant dense<0.000000e+00> : vector<8x8xf32>
      %281 = tpu.matmul %280, %266, %cst_151 {dimension_numbers = #tpu.dot_dimension_numbers<[1], [0], [0], [1], [0, 0, 1, 1], [], []>} : vector<8x8xf32>, vector<8x8xf32>, vector<8x8xf32> -> vector<8x8xf32>
      %c0_152 = arith.constant 0 : index
      %c16_153 = arith.constant 16 : index
      %282 = vector.load %arg20[%c0_152, %c16_153] : memref<8x32xf32, #tpu.memory_space<vmem>>, vector<8x8xf32>
      tpu.vector_store %arg20[%c0_152, %c16_153], %281 {strides = array<i32>} : memref<8x32xf32, #tpu.memory_space<vmem>>, vector<8x8xf32>,
      %283 = vector.extract_strided_slice %226 {offsets = [0, 24], sizes = [8, 8], strides = [1, 1]} : vector<8x32xf32> to vector<8x8xf32>
      %284 = vector.extract_strided_slice %231 {offsets = [0, 24], sizes = [8, 8], strides = [1, 1]} : vector<8x32xf32> to vector<8x8xf32>
      %cst_154 = arith.constant 0.353553385 : f32
      %285 = vector.broadcast %cst_154 : f32 to vector<8x8xf32>
      %286 = arith.mulf %284, %285 : vector<8x8xf32>
      %cst_155 = arith.constant dense<0.000000e+00> : vector<8x8xf32>
      %287 = tpu.matmul %283, %286, %cst_155 {dimension_numbers = #tpu.dot_dimension_numbers<[1], [1], [0], [0], [0, 0, 1, 0], [], []>} : vector<8x8xf32>, vector<8x8xf32>, vector<8x8xf32> -> vector<8x8xf32>
      %cst_156 = arith.constant dense<0xFF800000> : vector<8xf32>
      %288 = vector.multi_reduction <maximumf>, %287, %cst_156 [1] : vector<8x8xf32> to vector<8xf32>
      %289 = vector.shape_cast %288 : vector<8xf32> to vector<8x1xf32>
      %290 = vector.broadcast %289 : vector<8x1xf32> to vector<8x8xf32>
      %291 = arith.subf %287, %290 : vector<8x8xf32>
      %292 = math.exp %291 : vector<8x8xf32>
      %cst_157 = arith.constant dense<0.000000e+00> : vector<8xf32>
      %293 = vector.multi_reduction <add>, %292, %cst_157 [1] : vector<8x8xf32> to vector<8xf32>
      %294 = vector.shape_cast %293 : vector<8xf32> to vector<8x1xf32>
      %295 = tpu.reciprocal %294 : vector<8x1xf32> -> vector<8x1xf32>
      %296 = vector.broadcast %295 : vector<8x1xf32> to vector<8x8xf32>
      %297 = arith.mulf %292, %296 : vector<8x8xf32>
      %cst_158 = arith.constant dense<0.000000e+00> : vector<8x8xf32>
      %298 = tpu.matmul %297, %283, %cst_158 {dimension_numbers = #tpu.dot_dimension_numbers<[1], [0], [0], [1], [0, 0, 1, 1], [], []>} : vector<8x8xf32>, vector<8x8xf32>, vector<8x8xf32> -> vector<8x8xf32>
      %c0_159 = arith.constant 0 : index
      %c24_160 = arith.constant 24 : index
      %299 = vector.load %arg20[%c0_159, %c24_160] : memref<8x32xf32, #tpu.memory_space<vmem>>, vector<8x8xf32>
      tpu.vector_store %arg20[%c0_159, %c24_160], %298 {strides = array<i32>} : memref<8x32xf32, #tpu.memory_space<vmem>>, vector<8x8xf32>,
      %c0_161 = arith.constant 0 : index
      %c0_162 = arith.constant 0 : index
      %300 = vector.load %arg20[%c0_161, %c0_162] : memref<8x32xf32, #tpu.memory_space<vmem>>, vector<8x32xf32>
      %c0_163 = arith.constant 0 : index
      %c0_164 = arith.constant 0 : index
      %301 = vector.load %arg9[%c0_163, %c0_164] : memref<32x32xf32, #tpu.memory_space<vmem>>, vector<32x32xf32>
      %cst_165 = arith.constant dense<0.000000e+00> : vector<8x32xf32>
      %302 = tpu.matmul %300, %301, %cst_165 {dimension_numbers = #tpu.dot_dimension_numbers<[1], [0], [0], [1], [0, 0, 1, 1], [], []>} : vector<8x32xf32>, vector<32x32xf32>, vector<8x32xf32> -> vector<8x32xf32>
      %c0_166 = arith.constant 0 : index
      %c0_167 = arith.constant 0 : index
      %303 = vector.load %arg10[%c0_166, %c0_167] : memref<1x32xf32, #tpu.memory_space<vmem>>, vector<1x32xf32>
      %304 = vector.broadcast %303 : vector<1x32xf32> to vector<8x32xf32>
      %305 = arith.addf %302, %304 : vector<8x32xf32>
      %306 = arith.addf %221, %305 : vector<8x32xf32>
      %c0_168 = arith.constant 0 : index
      %c0_169 = arith.constant 0 : index
      %307 = vector.load %arg11[%c0_168, %c0_169] : memref<1x32xf32, #tpu.memory_space<vmem>>, vector<1x32xf32>
      %c0_170 = arith.constant 0 : index
      %c0_171 = arith.constant 0 : index
      %308 = vector.load %arg12[%c0_170, %c0_171] : memref<1x32xf32, #tpu.memory_space<vmem>>, vector<1x32xf32>
      %cst_172 = arith.constant dense<0.000000e+00> : vector<8xf32>
      %309 = vector.multi_reduction <add>, %306, %cst_172 [1] : vector<8x32xf32> to vector<8xf32>
      %310 = vector.shape_cast %309 : vector<8xf32> to vector<8x1xf32>
      %cst_173 = arith.constant 3.200000e+01 : f32
      %311 = vector.broadcast %cst_173 : f32 to vector<8x1xf32>
      %312 = arith.divf %310, %311 : vector<8x1xf32>
      %313 = vector.broadcast %312 : vector<8x1xf32> to vector<8x32xf32>
      %314 = arith.subf %306, %313 : vector<8x32xf32>
      %315 = arith.mulf %314, %314 : vector<8x32xf32>
      %cst_174 = arith.constant dense<0.000000e+00> : vector<8xf32>
      %316 = vector.multi_reduction <add>, %315, %cst_174 [1] : vector<8x32xf32> to vector<8xf32>
      %317 = vector.shape_cast %316 : vector<8xf32> to vector<8x1xf32>
      %cst_175 = arith.constant 3.200000e+01 : f32
      %318 = vector.broadcast %cst_175 : f32 to vector<8x1xf32>
      %319 = arith.divf %317, %318 : vector<8x1xf32>
      %320 = vector.broadcast %312 : vector<8x1xf32> to vector<8x32xf32>
      %321 = arith.subf %306, %320 : vector<8x32xf32>
      %cst_176 = arith.constant 9.99999974E-6 : f32
      %322 = vector.broadcast %cst_176 : f32 to vector<8x1xf32>
      %323 = arith.addf %319, %322 : vector<8x1xf32>
      %324 = math.rsqrt %323 : vector<8x1xf32>
      %325 = vector.broadcast %324 : vector<8x1xf32> to vector<8x32xf32>
      %326 = arith.mulf %321, %325 : vector<8x32xf32>
      %327 = vector.broadcast %307 : vector<1x32xf32> to vector<8x32xf32>
      %328 = arith.mulf %326, %327 : vector<8x32xf32>
      %329 = vector.broadcast %308 : vector<1x32xf32> to vector<8x32xf32>
      %330 = arith.addf %328, %329 : vector<8x32xf32>
      %c1_177 = arith.constant 1 : index
      %c0_178 = arith.constant 0 : index
      %c0_179 = arith.constant 0 : index
      %331 = vector.load %arg18[%c1_177, %c0_178, %c0_179] : memref<2x8x32xf32, #tpu.memory_space<vmem>>, vector<1x8x32xf32>
      %332 = vector.shape_cast %331 : vector<1x8x32xf32> to vector<8x32xf32>
      %333 = vector.shape_cast %330 : vector<8x32xf32> to vector<1x8x32xf32>
      tpu.vector_store %arg18[%c1_177, %c0_178, %c0_179], %333 {strides = array<i32>} : memref<2x8x32xf32, #tpu.memory_space<vmem>>, vector<1x8x32xf32>,
      %c0_180 = arith.constant 0 : index
      %c0_181 = arith.constant 0 : index
      %334 = vector.load %arg16[%c0_180, %c0_181] : memref<1x32xf32, #tpu.memory_space<vmem>>, vector<1x32xf32>
      %335 = vector.broadcast %334 : vector<1x32xf32> to vector<8x32xf32>
      %336 = arith.addf %330, %335 : vector<8x32xf32>
      %c1_182 = arith.constant 1 : index
      %c0_183 = arith.constant 0 : index
      %c0_184 = arith.constant 0 : index
      %337 = vector.load %arg19[%c1_182, %c0_183, %c0_184] : memref<2x8x32xf32, #tpu.memory_space<vmem>>, vector<1x8x32xf32>
      %338 = vector.shape_cast %337 : vector<1x8x32xf32> to vector<8x32xf32>
      %339 = vector.shape_cast %336 : vector<8x32xf32> to vector<1x8x32xf32>
      tpu.vector_store %arg19[%c1_182, %c0_183, %c0_184], %339 {strides = array<i32>} : memref<2x8x32xf32, #tpu.memory_space<vmem>>, vector<1x8x32xf32>,
    } else {
    }
    %c0 = arith.constant 0 : index
    %c0_1 = arith.constant 0 : index
    %c0_2 = arith.constant 0 : index
    %3 = vector.load %arg18[%c0, %c0_1, %c0_2] : memref<2x8x32xf32, #tpu.memory_space<vmem>>, vector<1x8x32xf32>
    %4 = vector.shape_cast %3 : vector<1x8x32xf32> to vector<8x32xf32>
    %c0_3 = arith.constant 0 : index
    %c0_4 = arith.constant 0 : index
    %5 = vector.load %arg13[%c0_3, %c0_4] : memref<32x64xf32, #tpu.memory_space<vmem>>, vector<32x64xf32>
    %cst = arith.constant dense<0.000000e+00> : vector<8x64xf32>
    %6 = tpu.matmul %4, %5, %cst {dimension_numbers = #tpu.dot_dimension_numbers<[1], [0], [0], [1], [0, 0, 1, 1], [], []>} : vector<8x32xf32>, vector<32x64xf32>, vector<8x64xf32> -> vector<8x64xf32>
    %c0_5 = arith.constant 0 : index
    %c0_6 = arith.constant 0 : index
    %7 = vector.load %arg14[%c0_5, %c0_6] : memref<1x64xf32, #tpu.memory_space<vmem>>, vector<1x64xf32>
    %8 = vector.broadcast %7 : vector<1x64xf32> to vector<8x64xf32>
    %9 = arith.addf %6, %8 : vector<8x64xf32>
    %cst_7 = arith.constant 5.000000e-01 : f32
    %10 = vector.broadcast %cst_7 : f32 to vector<8x64xf32>
    %11 = arith.mulf %10, %9 : vector<8x64xf32>
    %cst_8 = arith.constant 0.707106769 : f32
    %12 = vector.broadcast %cst_8 : f32 to vector<8x64xf32>
    %13 = arith.mulf %9, %12 : vector<8x64xf32>
    %14 = math.erf %13 : vector<8x64xf32>
    %cst_9 = arith.constant 1.000000e+00 : f32
    %15 = vector.broadcast %cst_9 : f32 to vector<8x64xf32>
    %16 = arith.addf %15, %14 : vector<8x64xf32>
    %17 = arith.mulf %11, %16 : vector<8x64xf32>
    %c0_10 = arith.constant 0 : index
    %c0_11 = arith.constant 0 : index
    %c0_12 = arith.constant 0 : index
    %18 = vector.load %arg19[%c0_10, %c0_11, %c0_12] : memref<2x8x32xf32, #tpu.memory_space<vmem>>, vector<1x8x32xf32>
    %19 = vector.shape_cast %18 : vector<1x8x32xf32> to vector<8x32xf32>
    %c0_13 = arith.constant 0 : index
    %c0_14 = arith.constant 0 : index
    %20 = vector.load %arg15[%c0_13, %c0_14] : memref<64x32xf32, #tpu.memory_space<vmem>>, vector<64x32xf32>
    %cst_15 = arith.constant dense<0.000000e+00> : vector<8x32xf32>
    %21 = tpu.matmul %17, %20, %cst_15 {dimension_numbers = #tpu.dot_dimension_numbers<[1], [0], [0], [1], [0, 0, 1, 1], [], []>} : vector<8x64xf32>, vector<64x32xf32>, vector<8x32xf32> -> vector<8x32xf32>
    %22 = arith.addf %19, %21 : vector<8x32xf32>
    %c0_16 = arith.constant 0 : index
    %c0_17 = arith.constant 0 : index
    %c0_18 = arith.constant 0 : index
    %23 = vector.load %arg19[%c0_16, %c0_17, %c0_18] : memref<2x8x32xf32, #tpu.memory_space<vmem>>, vector<1x8x32xf32>
    %24 = vector.shape_cast %23 : vector<1x8x32xf32> to vector<8x32xf32>
    %25 = vector.shape_cast %22 : vector<8x32xf32> to vector<1x8x32xf32>
    tpu.vector_store %arg19[%c0_16, %c0_17, %c0_18], %25 {strides = array<i32>} : memref<2x8x32xf32, #tpu.memory_space<vmem>>, vector<1x8x32xf32>,
    %c1 = arith.constant 1 : index
    %c0_19 = arith.constant 0 : index
    %c0_20 = arith.constant 0 : index
    %26 = vector.load %arg18[%c1, %c0_19, %c0_20] : memref<2x8x32xf32, #tpu.memory_space<vmem>>, vector<1x8x32xf32>
    %27 = vector.shape_cast %26 : vector<1x8x32xf32> to vector<8x32xf32>
    %c0_21 = arith.constant 0 : index
    %c0_22 = arith.constant 0 : index
    %28 = vector.load %arg13[%c0_21, %c0_22] : memref<32x64xf32, #tpu.memory_space<vmem>>, vector<32x64xf32>
    %cst_23 = arith.constant dense<0.000000e+00> : vector<8x64xf32>
    %29 = tpu.matmul %27, %28, %cst_23 {dimension_numbers = #tpu.dot_dimension_numbers<[1], [0], [0], [1], [0, 0, 1, 1], [], []>} : vector<8x32xf32>, vector<32x64xf32>, vector<8x64xf32> -> vector<8x64xf32>
    %c0_24 = arith.constant 0 : index
    %c0_25 = arith.constant 0 : index
    %30 = vector.load %arg14[%c0_24, %c0_25] : memref<1x64xf32, #tpu.memory_space<vmem>>, vector<1x64xf32>
    %31 = vector.broadcast %30 : vector<1x64xf32> to vector<8x64xf32>
    %32 = arith.addf %29, %31 : vector<8x64xf32>
    %cst_26 = arith.constant 5.000000e-01 : f32
    %33 = vector.broadcast %cst_26 : f32 to vector<8x64xf32>
    %34 = arith.mulf %33, %32 : vector<8x64xf32>
    %cst_27 = arith.constant 0.707106769 : f32
    %35 = vector.broadcast %cst_27 : f32 to vector<8x64xf32>
    %36 = arith.mulf %32, %35 : vector<8x64xf32>
    %37 = math.erf %36 : vector<8x64xf32>
    %cst_28 = arith.constant 1.000000e+00 : f32
    %38 = vector.broadcast %cst_28 : f32 to vector<8x64xf32>
    %39 = arith.addf %38, %37 : vector<8x64xf32>
    %40 = arith.mulf %34, %39 : vector<8x64xf32>
    %c1_29 = arith.constant 1 : index
    %c0_30 = arith.constant 0 : index
    %c0_31 = arith.constant 0 : index
    %41 = vector.load %arg19[%c1_29, %c0_30, %c0_31] : memref<2x8x32xf32, #tpu.memory_space<vmem>>, vector<1x8x32xf32>
    %42 = vector.shape_cast %41 : vector<1x8x32xf32> to vector<8x32xf32>
    %c0_32 = arith.constant 0 : index
    %c0_33 = arith.constant 0 : index
    %43 = vector.load %arg15[%c0_32, %c0_33] : memref<64x32xf32, #tpu.memory_space<vmem>>, vector<64x32xf32>
    %cst_34 = arith.constant dense<0.000000e+00> : vector<8x32xf32>
    %44 = tpu.matmul %40, %43, %cst_34 {dimension_numbers = #tpu.dot_dimension_numbers<[1], [0], [0], [1], [0, 0, 1, 1], [], []>} : vector<8x64xf32>, vector<64x32xf32>, vector<8x32xf32> -> vector<8x32xf32>
    %45 = arith.addf %42, %44 : vector<8x32xf32>
    %c1_35 = arith.constant 1 : index
    %c0_36 = arith.constant 0 : index
    %c0_37 = arith.constant 0 : index
    %46 = vector.load %arg19[%c1_35, %c0_36, %c0_37] : memref<2x8x32xf32, #tpu.memory_space<vmem>>, vector<1x8x32xf32>
    %47 = vector.shape_cast %46 : vector<1x8x32xf32> to vector<8x32xf32>
    %48 = vector.shape_cast %45 : vector<8x32xf32> to vector<1x8x32xf32>
    tpu.vector_store %arg19[%c1_35, %c0_36, %c0_37], %48 {strides = array<i32>} : memref<2x8x32xf32, #tpu.memory_space<vmem>>, vector<1x8x32xf32>,
    %c0_i32_38 = arith.constant 0 : i32
    %49 = arith.cmpi eq, %arg1, %c0_i32_38 : i32
    %50 = arith.extui %49 : i1 to i32
    %c0_i32_39 = arith.constant 0 : i32
    %51 = arith.cmpi ne, %50, %c0_i32_39 : i32
    scf.if %51 {
      %c0_40 = arith.constant 0 : index
      %c0_41 = arith.constant 0 : index
      %c0_42 = arith.constant 0 : index
      %52 = vector.load %arg19[%c0_40, %c0_41, %c0_42] : memref<2x8x32xf32, #tpu.memory_space<vmem>>, vector<2x8x32xf32>
      %c0_43 = arith.constant 0 : index
      %c0_44 = arith.constant 0 : index
      %c0_45 = arith.constant 0 : index
      %53 = vector.load %arg17[%c0_43, %c0_44, %c0_45] : memref<2x8x32xf32, #tpu.memory_space<vmem>>, vector<2x8x32xf32>
      tpu.vector_store %arg17[%c0_43, %c0_44, %c0_45], %52 {strides = array<i32>} : memref<2x8x32xf32, #tpu.memory_space<vmem>>, vector<2x8x32xf32>,
    } else {
    }
    return
  }
  func.func @transform_0(%arg0: i32, %arg1: i32) -> (i32, i32, i32) {
    %c0_i32 = arith.constant 0 : i32
    %c0_i32_0 = arith.constant 0 : i32
    %c0_i32_1 = arith.constant 0 : i32
    return %arg0, %c0_i32, %c0_i32_0 : i32, i32, i32
  }
  func.func @transform_1(%arg0: i32, %arg1: i32) -> (i32, i32) {
    %c0_i32 = arith.constant 0 : i32
    %c0_i32_0 = arith.constant 0 : i32
    %c0_i32_1 = arith.constant 0 : i32
    return %c0_i32, %c0_i32_0 : i32, i32
  }
  func.func @transform_2(%arg0: i32, %arg1: i32) -> (i32, i32) {
    %c0_i32 = arith.constant 0 : i32
    %c0_i32_0 = arith.constant 0 : i32
    %c0_i32_1 = arith.constant 0 : i32
    return %c0_i32, %c0_i32_0 : i32, i32
  }
  func.func @transform_3(%arg0: i32, %arg1: i32) -> (i32, i32) {
    %c0_i32 = arith.constant 0 : i32
    %c0_i32_0 = arith.constant 0 : i32
    %c0_i32_1 = arith.constant 0 : i32
    return %c0_i32, %c0_i32_0 : i32, i32
  }
  func.func @transform_4(%arg0: i32, %arg1: i32) -> (i32, i32) {
    %c0_i32 = arith.constant 0 : i32
    %c0_i32_0 = arith.constant 0 : i32
    %c0_i32_1 = arith.constant 0 : i32
    return %c0_i32, %c0_i32_0 : i32, i32
  }
  func.func @transform_5(%arg0: i32, %arg1: i32) -> (i32, i32) {
    %c0_i32 = arith.constant 0 : i32
    %c0_i32_0 = arith.constant 0 : i32
    %c0_i32_1 = arith.constant 0 : i32
    return %c0_i32, %c0_i32_0 : i32, i32
  }
  func.func @transform_6(%arg0: i32, %arg1: i32) -> (i32, i32) {
    %c0_i32 = arith.constant 0 : i32
    %c0_i32_0 = arith.constant 0 : i32
    %c0_i32_1 = arith.constant 0 : i32
    return %c0_i32, %c0_i32_0 : i32, i32
  }
  func.func @transform_7(%arg0: i32, %arg1: i32) -> (i32, i32) {
    %c0_i32 = arith.constant 0 : i32
    %c0_i32_0 = arith.constant 0 : i32
    %c0_i32_1 = arith.constant 0 : i32
    return %c0_i32, %c0_i32_0 : i32, i32
  }
  func.func @transform_8(%arg0: i32, %arg1: i32) -> (i32, i32) {
    %c0_i32 = arith.constant 0 : i32
    %c0_i32_0 = arith.constant 0 : i32
    %c0_i32_1 = arith.constant 0 : i32
    return %c0_i32, %c0_i32_0 : i32, i32
  }
  func.func @transform_9(%arg0: i32, %arg1: i32) -> (i32, i32) {
    %c0_i32 = arith.constant 0 : i32
    %c0_i32_0 = arith.constant 0 : i32
    %c0_i32_1 = arith.constant 0 : i32
    return %c0_i32, %c0_i32_0 : i32, i32
  }
  func.func @transform_10(%arg0: i32, %arg1: i32) -> (i32, i32) {
    %c0_i32 = arith.constant 0 : i32
    %c0_i32_0 = arith.constant 0 : i32
    %c0_i32_1 = arith.constant 0 : i32
    return %c0_i32, %c0_i32_0 : i32, i32
  }
  func.func @transform_11(%arg0: i32, %arg1: i32) -> (i32, i32) {
    %c0_i32 = arith.constant 0 : i32
    %c0_i32_0 = arith.constant 0 : i32
    return %c0_i32, %arg1 : i32, i32
  }
  func.func @transform_12(%arg0: i32, %arg1: i32) -> (i32, i32) {
    %c0_i32 = arith.constant 0 : i32
    %c0_i32_0 = arith.constant 0 : i32
    return %c0_i32, %arg1 : i32, i32
  }
  func.func @transform_13(%arg0: i32, %arg1: i32) -> (i32, i32) {
    %c0_i32 = arith.constant 0 : i32
    %c0_i32_0 = arith.constant 0 : i32
    return %arg1, %c0_i32 : i32, i32
  }
  func.func @transform_14(%arg0: i32, %arg1: i32) -> (i32, i32) {
    %c0_i32 = arith.constant 0 : i32
    %c0_i32_0 = arith.constant 0 : i32
    %c0_i32_1 = arith.constant 0 : i32
    return %c0_i32, %c0_i32_0 : i32, i32
  }
  func.func @transform_15(%arg0: i32, %arg1: i32) -> (i32, i32, i32) {
    %c0_i32 = arith.constant 0 : i32
    %c0_i32_0 = arith.constant 0 : i32
    %c0_i32_1 = arith.constant 0 : i32
    return %arg0, %c0_i32, %c0_i32_0 : i32, i32, i32
  }
}

module attributes {stable_mosaic.version = 11 : i64} {
  func.func @encoder_layer_kernel(%arg0: i32, %arg1: i32, %arg2: memref<2x8x32xf32, #tpu.memory_space<vmem>>, %arg3: memref<1x32xf32, #tpu.memory_space<vmem>>, %arg4: memref<1x32xf32, #tpu.memory_space<vmem>>, %arg5: memref<32x32xf32, #tpu.memory_space<vmem>>, %arg6: memref<1x32xf32, #tpu.memory_space<vmem>>, %arg7: memref<32x32xf32, #tpu.memory_space<vmem>>, %arg8: memref<1x32xf32, #tpu.memory_space<vmem>>, %arg9: memref<32x32xf32, #tpu.memory_space<vmem>>, %arg10: memref<1x32xf32, #tpu.memory_space<vmem>>, %arg11: memref<1x32xf32, #tpu.memory_space<vmem>>, %arg12: memref<1x32xf32, #tpu.memory_space<vmem>>, %arg13: memref<32x64xf32, #tpu.memory_space<vmem>>, %arg14: memref<1x64xf32, #tpu.memory_space<vmem>>, %arg15: memref<64x32xf32, #tpu.memory_space<vmem>>, %arg16: memref<1x32xf32, #tpu.memory_space<vmem>>, %arg17: memref<2x8x32xf32, #tpu.memory_space<vmem>>, %arg18: memref<2x8x32xf32, #tpu.memory_space<vmem>>, %arg19: memref<2x8x32xf32, #tpu.memory_space<vmem>>, %arg20: memref<8x32xf32, #tpu.memory_space<vmem>>) attributes {dimension_semantics = [#tpu.dimension_semantics<parallel>, #tpu.dimension_semantics<arbitrary>], iteration_bounds = array<i64: 1, 1>, scalar_prefetch = 0 : i64, scratch_operands = 3 : i64, tpu.core_type = #tpu.core_type<tc>, window_params = [{transform_indices = @transform_0, window_bounds = array<i64: 2, 8, 32>}, {pipeline_mode = #tpu.pipeline_mode<synchronous>, transform_indices = @transform_1, window_bounds = array<i64: 1, 32>}, {pipeline_mode = #tpu.pipeline_mode<synchronous>, transform_indices = @transform_2, window_bounds = array<i64: 1, 32>}, {pipeline_mode = #tpu.pipeline_mode<synchronous>, transform_indices = @transform_3, window_bounds = array<i64: 32, 32>}, {pipeline_mode = #tpu.pipeline_mode<synchronous>, transform_indices = @transform_4, window_bounds = array<i64: 1, 32>}, {pipeline_mode = #tpu.pipeline_mode<synchronous>, transform_indices = @transform_5, window_bounds = array<i64: 32, 32>}, {pipeline_mode = #tpu.pipeline_mode<synchronous>, transform_indices = @transform_6, window_bounds = array<i64: 1, 32>}, {pipeline_mode = #tpu.pipeline_mode<synchronous>, transform_indices = @transform_7, window_bounds = array<i64: 32, 32>}, {pipeline_mode = #tpu.pipeline_mode<synchronous>, transform_indices = @transform_8, window_bounds = array<i64: 1, 32>}, {pipeline_mode = #tpu.pipeline_mode<synchronous>, transform_indices = @transform_9, window_bounds = array<i64: 1, 32>}, {pipeline_mode = #tpu.pipeline_mode<synchronous>, transform_indices = @transform_10, window_bounds = array<i64: 1, 32>}, {transform_indices = @transform_11, window_bounds = array<i64: 32, 64>}, {transform_indices = @transform_12, window_bounds = array<i64: 1, 64>}, {transform_indices = @transform_13, window_bounds = array<i64: 64, 32>}, {pipeline_mode = #tpu.pipeline_mode<synchronous>, transform_indices = @transform_14, window_bounds = array<i64: 1, 32>}, {transform_indices = @transform_15, window_bounds = array<i64: 2, 8, 32>}]} {
    %c0_i32 = arith.constant 0 : i32
    %0 = arith.cmpi eq, %arg1, %c0_i32 : i32
    %1 = arith.extui %0 : i1 to i32
    %c0_i32_0 = arith.constant 0 : i32
    %2 = arith.cmpi ne, %1, %c0_i32_0 : i32
    scf.if %2 {
      %c0_40 = arith.constant 0 : index
      %c0_41 = arith.constant 0 : index
      %c0_42 = arith.constant 0 : index
      %52 = vector.load %arg2[%c0_40, %c0_41, %c0_42] : memref<2x8x32xf32, #tpu.memory_space<vmem>>, vector<1x8x32xf32>
      %53 = vector.shape_cast %52 : vector<1x8x32xf32> to vector<8x32xf32>
      %c0_43 = arith.constant 0 : index
      %c0_44 = arith.constant 0 : index
      %54 = vector.load %arg3[%c0_43, %c0_44] : memref<1x32xf32, #tpu.memory_space<vmem>>, vector<1x32xf32>
      %c0_45 = arith.constant 0 : index
      %c0_46 = arith.constant 0 : index
      %55 = vector.load %arg4[%c0_45, %c0_46] : memref<1x32xf32, #tpu.memory_space<vmem>>, vector<1x32xf32>
      %cst_47 = arith.constant dense<0.000000e+00> : vector<8xf32>
      %56 = vector.multi_reduction <add>, %53, %cst_47 [1] : vector<8x32xf32> to vector<8xf32>
      %57 = vector.shape_cast %56 : vector<8xf32> to vector<8x1xf32>
      %cst_48 = arith.constant 3.200000e+01 : f32
      %58 = vector.broadcast %cst_48 : f32 to vector<8x1xf32>
      %59 = arith.divf %57, %58 : vector<8x1xf32>
      %60 = vector.broadcast %59 : vector<8x1xf32> to vector<8x32xf32>
      %61 = arith.subf %53, %60 : vector<8x32xf32>
      %62 = arith.mulf %61, %61 : vector<8x32xf32>
      %cst_49 = arith.constant dense<0.000000e+00> : vector<8xf32>
      %63 = vector.multi_reduction <add>, %62, %cst_49 [1] : vector<8x32xf32> to vector<8xf32>
      %64 = vector.shape_cast %63 : vector<8xf32> to vector<8x1xf32>
      %cst_50 = arith.constant 3.200000e+01 : f32
      %65 = vector.broadcast %cst_50 : f32 to vector<8x1xf32>
      %66 = arith.divf %64, %65 : vector<8x1xf32>
      %67 = vector.broadcast %59 : vector<8x1xf32> to vector<8x32xf32>
      %68 = arith.subf %53, %67 : vector<8x32xf32>
      %cst_51 = arith.constant 9.99999974E-6 : f32
      %69 = vector.broadcast %cst_51 : f32 to vector<8x1xf32>
      %70 = arith.addf %66, %69 : vector<8x1xf32>
      %71 = math.rsqrt %70 : vector<8x1xf32>
      %72 = vector.broadcast %71 : vector<8x1xf32> to vector<8x32xf32>
      %73 = arith.mulf %68, %72 : vector<8x32xf32>
      %74 = vector.broadcast %54 : vector<1x32xf32> to vector<8x32xf32>
      %75 = arith.mulf %73, %74 : vector<8x32xf32>
      %76 = vector.broadcast %55 : vector<1x32xf32> to vector<8x32xf32>
      %77 = arith.addf %75, %76 : vector<8x32xf32>
      %c0_52 = arith.constant 0 : index
      %c0_53 = arith.constant 0 : index
      %78 = vector.load %arg5[%c0_52, %c0_53] : memref<32x32xf32, #tpu.memory_space<vmem>>, vector<32x32xf32>
      %cst_54 = arith.constant dense<0.000000e+00> : vector<8x32xf32>
      %79 = tpu.matmul %77, %78, %cst_54 {dimension_numbers = #tpu.dot_dimension_numbers<[1], [0], [0], [1], [0, 0, 1, 1], [], []>} : vector<8x32xf32>, vector<32x32xf32>, vector<8x32xf32> -> vector<8x32xf32>
      %c0_55 = arith.constant 0 : index
      %c0_56 = arith.constant 0 : index
      %80 = vector.load %arg6[%c0_55, %c0_56] : memref<1x32xf32, #tpu.memory_space<vmem>>, vector<1x32xf32>
      %81 = vector.broadcast %80 : vector<1x32xf32> to vector<8x32xf32>
      %82 = arith.addf %79, %81 : vector<8x32xf32>
      %c0_57 = arith.constant 0 : index
      %c0_58 = arith.constant 0 : index
      %83 = vector.load %arg7[%c0_57, %c0_58] : memref<32x32xf32, #tpu.memory_space<vmem>>, vector<32x32xf32>
      %cst_59 = arith.constant dense<0.000000e+00> : vector<8x32xf32>
      %84 = tpu.matmul %77, %83, %cst_59 {dimension_numbers = #tpu.dot_dimension_numbers<[1], [0], [0], [1], [0, 0, 1, 1], [], []>} : vector<8x32xf32>, vector<32x32xf32>, vector<8x32xf32> -> vector<8x32xf32>
      %c0_60 = arith.constant 0 : index
      %c0_61 = arith.constant 0 : index
      %85 = vector.load %arg8[%c0_60, %c0_61] : memref<1x32xf32, #tpu.memory_space<vmem>>, vector<1x32xf32>
      %86 = vector.broadcast %85 : vector<1x32xf32> to vector<8x32xf32>
      %87 = arith.addf %84, %86 : vector<8x32xf32>
      %88 = vector.extract_strided_slice %82 {offsets = [0, 0], sizes = [8, 8], strides = [1, 1]} : vector<8x32xf32> to vector<8x8xf32>
      %89 = vector.extract_strided_slice %87 {offsets = [0, 0], sizes = [8, 8], strides = [1, 1]} : vector<8x32xf32> to vector<8x8xf32>
      %cst_62 = arith.constant 0.353553385 : f32
      %90 = vector.broadcast %cst_62 : f32 to vector<8x8xf32>
      %91 = arith.mulf %89, %90 : vector<8x8xf32>
      %cst_63 = arith.constant dense<0.000000e+00> : vector<8x8xf32>
      %92 = tpu.matmul %88, %91, %cst_63 {dimension_numbers = #tpu.dot_dimension_numbers<[1], [1], [0], [0], [0, 0, 1, 0], [], []>} : vector<8x8xf32>, vector<8x8xf32>, vector<8x8xf32> -> vector<8x8xf32>
      %cst_64 = arith.constant dense<0xFF800000> : vector<8xf32>
      %93 = vector.multi_reduction <maximumf>, %92, %cst_64 [1] : vector<8x8xf32> to vector<8xf32>
      %94 = vector.shape_cast %93 : vector<8xf32> to vector<8x1xf32>
      %95 = vector.broadcast %94 : vector<8x1xf32> to vector<8x8xf32>
      %96 = arith.subf %92, %95 : vector<8x8xf32>
      %97 = math.exp %96 : vector<8x8xf32>
      %cst_65 = arith.constant dense<0.000000e+00> : vector<8xf32>
      %98 = vector.multi_reduction <add>, %97, %cst_65 [1] : vector<8x8xf32> to vector<8xf32>
      %99 = vector.shape_cast %98 : vector<8xf32> to vector<8x1xf32>
      %100 = tpu.reciprocal %99 : vector<8x1xf32> -> vector<8x1xf32>
      %101 = vector.broadcast %100 : vector<8x1xf32> to vector<8x8xf32>
      %102 = arith.mulf %97, %101 : vector<8x8xf32>
      %cst_66 = arith.constant dense<0.000000e+00> : vector<8x8xf32>
      %103 = tpu.matmul %102, %88, %cst_66 {dimension_numbers = #tpu.dot_dimension_numbers<[1], [0], [0], [1], [0, 0, 1, 1], [], []>} : vector<8x8xf32>, vector<8x8xf32>, vector<8x8xf32> -> vector<8x8xf32>
      %c0_67 = arith.constant 0 : index
      %c0_68 = arith.constant 0 : index
      %104 = vector.load %arg20[%c0_67, %c0_68] : memref<8x32xf32, #tpu.memory_space<vmem>>, vector<8x8xf32>
      tpu.vector_store %arg20[%c0_67, %c0_68], %103 {strides = array<i32>} : memref<8x32xf32, #tpu.memory_space<vmem>>, vector<8x8xf32>,
      %105 = vector.extract_strided_slice %82 {offsets = [0, 8], sizes = [8, 8], strides = [1, 1]} : vector<8x32xf32> to vector<8x8xf32>
      %106 = vector.extract_strided_slice %87 {offsets = [0, 8], sizes = [8, 8], strides = [1, 1]} : vector<8x32xf32> to vector<8x8xf32>
      %cst_69 = arith.constant 0.353553385 : f32
      %107 = vector.broadcast %cst_69 : f32 to vector<8x8xf32>
      %108 = arith.mulf %106, %107 : vector<8x8xf32>
      %cst_70 = arith.constant dense<0.000000e+00> : vector<8x8xf32>
      %109 = tpu.matmul %105, %108, %cst_70 {dimension_numbers = #tpu.dot_dimension_numbers<[1], [1], [0], [0], [0, 0, 1, 0], [], []>} : vector<8x8xf32>, vector<8x8xf32>, vector<8x8xf32> -> vector<8x8xf32>
      %cst_71 = arith.constant dense<0xFF800000> : vector<8xf32>
      %110 = vector.multi_reduction <maximumf>, %109, %cst_71 [1] : vector<8x8xf32> to vector<8xf32>
      %111 = vector.shape_cast %110 : vector<8xf32> to vector<8x1xf32>
      %112 = vector.broadcast %111 : vector<8x1xf32> to vector<8x8xf32>
      %113 = arith.subf %109, %112 : vector<8x8xf32>
      %114 = math.exp %113 : vector<8x8xf32>
      %cst_72 = arith.constant dense<0.000000e+00> : vector<8xf32>
      %115 = vector.multi_reduction <add>, %114, %cst_72 [1] : vector<8x8xf32> to vector<8xf32>
      %116 = vector.shape_cast %115 : vector<8xf32> to vector<8x1xf32>
      %117 = tpu.reciprocal %116 : vector<8x1xf32> -> vector<8x1xf32>
      %118 = vector.broadcast %117 : vector<8x1xf32> to vector<8x8xf32>
      %119 = arith.mulf %114, %118 : vector<8x8xf32>
      %cst_73 = arith.constant dense<0.000000e+00> : vector<8x8xf32>
      %120 = tpu.matmul %119, %105, %cst_73 {dimension_numbers = #tpu.dot_dimension_numbers<[1], [0], [0], [1], [0, 0, 1, 1], [], []>} : vector<8x8xf32>, vector<8x8xf32>, vector<8x8xf32> -> vector<8x8xf32>
      %c0_74 = arith.constant 0 : index
      %c8 = arith.constant 8 : index
      %121 = vector.load %arg20[%c0_74, %c8] : memref<8x32xf32, #tpu.memory_space<vmem>>, vector<8x8xf32>
      tpu.vector_store %arg20[%c0_74, %c8], %120 {strides = array<i32>} : memref<8x32xf32, #tpu.memory_space<vmem>>, vector<8x8xf32>,
      %122 = vector.extract_strided_slice %82 {offsets = [0, 16], sizes = [8, 8], strides = [1, 1]} : vector<8x32xf32> to vector<8x8xf32>
      %123 = vector.extract_strided_slice %87 {offsets = [0, 16], sizes = [8, 8], strides = [1, 1]} : vector<8x32xf32> to vector<8x8xf32>
      %cst_75 = arith.constant 0.353553385 : f32
      %124 = vector.broadcast %cst_75 : f32 to vector<8x8xf32>
      %125 = arith.mulf %123, %124 : vector<8x8xf32>
      %cst_76 = arith.constant dense<0.000000e+00> : vector<8x8xf32>
      %126 = tpu.matmul %122, %125, %cst_76 {dimension_numbers = #tpu.dot_dimension_numbers<[1], [1], [0], [0], [0, 0, 1, 0], [], []>} : vector<8x8xf32>, vector<8x8xf32>, vector<8x8xf32> -> vector<8x8xf32>
      %cst_77 = arith.constant dense<0xFF800000> : vector<8xf32>
      %127 = vector.multi_reduction <maximumf>, %126, %cst_77 [1] : vector<8x8xf32> to vector<8xf32>
      %128 = vector.shape_cast %127 : vector<8xf32> to vector<8x1xf32>
      %129 = vector.broadcast %128 : vector<8x1xf32> to vector<8x8xf32>
      %130 = arith.subf %126, %129 : vector<8x8xf32>
      %131 = math.exp %130 : vector<8x8xf32>
      %cst_78 = arith.constant dense<0.000000e+00> : vector<8xf32>
      %132 = vector.multi_reduction <add>, %131, %cst_78 [1] : vector<8x8xf32> to vector<8xf32>
      %133 = vector.shape_cast %132 : vector<8xf32> to vector<8x1xf32>
      %134 = tpu.reciprocal %133 : vector<8x1xf32> -> vector<8x1xf32>
      %135 = vector.broadcast %134 : vector<8x1xf32> to vector<8x8xf32>
      %136 = arith.mulf %131, %135 : vector<8x8xf32>
      %cst_79 = arith.constant dense<0.000000e+00> : vector<8x8xf32>
      %137 = tpu.matmul %136, %122, %cst_79 {dimension_numbers = #tpu.dot_dimension_numbers<[1], [0], [0], [1], [0, 0, 1, 1], [], []>} : vector<8x8xf32>, vector<8x8xf32>, vector<8x8xf32> -> vector<8x8xf32>
      %c0_80 = arith.constant 0 : index
      %c16 = arith.constant 16 : index
      %138 = vector.load %arg20[%c0_80, %c16] : memref<8x32xf32, #tpu.memory_space<vmem>>, vector<8x8xf32>
      tpu.vector_store %arg20[%c0_80, %c16], %137 {strides = array<i32>} : memref<8x32xf32, #tpu.memory_space<vmem>>, vector<8x8xf32>,
      %139 = vector.extract_strided_slice %82 {offsets = [0, 24], sizes = [8, 8], strides = [1, 1]} : vector<8x32xf32> to vector<8x8xf32>
      %140 = vector.extract_strided_slice %87 {offsets = [0, 24], sizes = [8, 8], strides = [1, 1]} : vector<8x32xf32> to vector<8x8xf32>
      %cst_81 = arith.constant 0.353553385 : f32
      %141 = vector.broadcast %cst_81 : f32 to vector<8x8xf32>
      %142 = arith.mulf %140, %141 : vector<8x8xf32>
      %cst_82 = arith.constant dense<0.000000e+00> : vector<8x8xf32>
      %143 = tpu.matmul %139, %142, %cst_82 {dimension_numbers = #tpu.dot_dimension_numbers<[1], [1], [0], [0], [0, 0, 1, 0], [], []>} : vector<8x8xf32>, vector<8x8xf32>, vector<8x8xf32> -> vector<8x8xf32>
      %cst_83 = arith.constant dense<0xFF800000> : vector<8xf32>
      %144 = vector.multi_reduction <maximumf>, %143, %cst_83 [1] : vector<8x8xf32> to vector<8xf32>
      %145 = vector.shape_cast %144 : vector<8xf32> to vector<8x1xf32>
      %146 = vector.broadcast %145 : vector<8x1xf32> to vector<8x8xf32>
      %147 = arith.subf %143, %146 : vector<8x8xf32>
      %148 = math.exp %147 : vector<8x8xf32>
      %cst_84 = arith.constant dense<0.000000e+00> : vector<8xf32>
      %149 = vector.multi_reduction <add>, %148, %cst_84 [1] : vector<8x8xf32> to vector<8xf32>
      %150 = vector.shape_cast %149 : vector<8xf32> to vector<8x1xf32>
      %151 = tpu.reciprocal %150 : vector<8x1xf32> -> vector<8x1xf32>
      %152 = vector.broadcast %151 : vector<8x1xf32> to vector<8x8xf32>
      %153 = arith.mulf %148, %152 : vector<8x8xf32>
      %cst_85 = arith.constant dense<0.000000e+00> : vector<8x8xf32>
      %154 = tpu.matmul %153, %139, %cst_85 {dimension_numbers = #tpu.dot_dimension_numbers<[1], [0], [0], [1], [0, 0, 1, 1], [], []>} : vector<8x8xf32>, vector<8x8xf32>, vector<8x8xf32> -> vector<8x8xf32>
      %c0_86 = arith.constant 0 : index
      %c24 = arith.constant 24 : index
      %155 = vector.load %arg20[%c0_86, %c24] : memref<8x32xf32, #tpu.memory_space<vmem>>, vector<8x8xf32>
      tpu.vector_store %arg20[%c0_86, %c24], %154 {strides = array<i32>} : memref<8x32xf32, #tpu.memory_space<vmem>>, vector<8x8xf32>,
      %c0_87 = arith.constant 0 : index
      %c0_88 = arith.constant 0 : index
      %156 = vector.load %arg20[%c0_87, %c0_88] : memref<8x32xf32, #tpu.memory_space<vmem>>, vector<8x32xf32>
      %c0_89 = arith.constant 0 : index
      %c0_90 = arith.constant 0 : index
      %157 = vector.load %arg9[%c0_89, %c0_90] : memref<32x32xf32, #tpu.memory_space<vmem>>, vector<32x32xf32>
      %cst_91 = arith.constant dense<0.000000e+00> : vector<8x32xf32>
      %158 = tpu.matmul %156, %157, %cst_91 {dimension_numbers = #tpu.dot_dimension_numbers<[1], [0], [0], [1], [0, 0, 1, 1], [], []>} : vector<8x32xf32>, vector<32x32xf32>, vector<8x32xf32> -> vector<8x32xf32>
      %c0_92 = arith.constant 0 : index
      %c0_93 = arith.constant 0 : index
      %159 = vector.load %arg10[%c0_92, %c0_93] : memref<1x32xf32, #tpu.memory_space<vmem>>, vector<1x32xf32>
      %160 = vector.broadcast %159 : vector<1x32xf32> to vector<8x32xf32>
      %161 = arith.addf %158, %160 : vector<8x32xf32>
      %162 = arith.addf %77, %161 : vector<8x32xf32>
      %c0_94 = arith.constant 0 : index
      %c0_95 = arith.constant 0 : index
      %163 = vector.load %arg11[%c0_94, %c0_95] : memref<1x32xf32, #tpu.memory_space<vmem>>, vector<1x32xf32>
      %c0_96 = arith.constant 0 : index
      %c0_97 = arith.constant 0 : index
      %164 = vector.load %arg12[%c0_96, %c0_97] : memref<1x32xf32, #tpu.memory_space<vmem>>, vector<1x32xf32>
      %cst_98 = arith.constant dense<0.000000e+00> : vector<8xf32>
      %165 = vector.multi_reduction <add>, %162, %cst_98 [1] : vector<8x32xf32> to vector<8xf32>
      %166 = vector.shape_cast %165 : vector<8xf32> to vector<8x1xf32>
      %cst_99 = arith.constant 3.200000e+01 : f32
      %167 = vector.broadcast %cst_99 : f32 to vector<8x1xf32>
      %168 = arith.divf %166, %167 : vector<8x1xf32>
      %169 = vector.broadcast %168 : vector<8x1xf32> to vector<8x32xf32>
      %170 = arith.subf %162, %169 : vector<8x32xf32>
      %171 = arith.mulf %170, %170 : vector<8x32xf32>
      %cst_100 = arith.constant dense<0.000000e+00> : vector<8xf32>
      %172 = vector.multi_reduction <add>, %171, %cst_100 [1] : vector<8x32xf32> to vector<8xf32>
      %173 = vector.shape_cast %172 : vector<8xf32> to vector<8x1xf32>
      %cst_101 = arith.constant 3.200000e+01 : f32
      %174 = vector.broadcast %cst_101 : f32 to vector<8x1xf32>
      %175 = arith.divf %173, %174 : vector<8x1xf32>
      %176 = vector.broadcast %168 : vector<8x1xf32> to vector<8x32xf32>
      %177 = arith.subf %162, %176 : vector<8x32xf32>
      %cst_102 = arith.constant 9.99999974E-6 : f32
      %178 = vector.broadcast %cst_102 : f32 to vector<8x1xf32>
      %179 = arith.addf %175, %178 : vector<8x1xf32>
      %180 = math.rsqrt %179 : vector<8x1xf32>
      %181 = vector.broadcast %180 : vector<8x1xf32> to vector<8x32xf32>
      %182 = arith.mulf %177, %181 : vector<8x32xf32>
      %183 = vector.broadcast %163 : vector<1x32xf32> to vector<8x32xf32>
      %184 = arith.mulf %182, %183 : vector<8x32xf32>
      %185 = vector.broadcast %164 : vector<1x32xf32> to vector<8x32xf32>
      %186 = arith.addf %184, %185 : vector<8x32xf32>
      %c0_103 = arith.constant 0 : index
      %c0_104 = arith.constant 0 : index
      %c0_105 = arith.constant 0 : index
      %187 = vector.load %arg18[%c0_103, %c0_104, %c0_105] : memref<2x8x32xf32, #tpu.memory_space<vmem>>, vector<1x8x32xf32>
      %188 = vector.shape_cast %187 : vector<1x8x32xf32> to vector<8x32xf32>
      %189 = vector.shape_cast %186 : vector<8x32xf32> to vector<1x8x32xf32>
      tpu.vector_store %arg18[%c0_103, %c0_104, %c0_105], %189 {strides = array<i32>} : memref<2x8x32xf32, #tpu.memory_space<vmem>>, vector<1x8x32xf32>,
      %c0_106 = arith.constant 0 : index
      %c0_107 = arith.constant 0 : index
      %190 = vector.load %arg16[%c0_106, %c0_107] : memref<1x32xf32, #tpu.memory_space<vmem>>, vector<1x32xf32>
      %191 = vector.broadcast %190 : vector<1x32xf32> to vector<8x32xf32>
      %192 = arith.addf %186, %191 : vector<8x32xf32>
      %c0_108 = arith.constant 0 : index
      %c0_109 = arith.constant 0 : index
      %c0_110 = arith.constant 0 : index
      %193 = vector.load %arg19[%c0_108, %c0_109, %c0_110] : memref<2x8x32xf32, #tpu.memory_space<vmem>>, vector<1x8x32xf32>
      %194 = vector.shape_cast %193 : vector<1x8x32xf32> to vector<8x32xf32>
      %195 = vector.shape_cast %192 : vector<8x32xf32> to vector<1x8x32xf32>
      tpu.vector_store %arg19[%c0_108, %c0_109, %c0_110], %195 {strides = array<i32>} : memref<2x8x32xf32, #tpu.memory_space<vmem>>, vector<1x8x32xf32>,
      %c1_111 = arith.constant 1 : index
      %c0_112 = arith.constant 0 : index
      %c0_113 = arith.constant 0 : index
      %196 = vector.load %arg2[%c1_111, %c0_112, %c0_113] : memref<2x8x32xf32, #tpu.memory_space<vmem>>, vector<1x8x32xf32>
      %197 = vector.shape_cast %196 : vector<1x8x32xf32> to vector<8x32xf32>
      %c0_114 = arith.constant 0 : index
      %c0_115 = arith.constant 0 : index
      %198 = vector.load %arg3[%c0_114, %c0_115] : memref<1x32xf32, #tpu.memory_space<vmem>>, vector<1x32xf32>
      %c0_116 = arith.constant 0 : index
      %c0_117 = arith.constant 0 : index
      %199 = vector.load %arg4[%c0_116, %c0_117] : memref<1x32xf32, #tpu.memory_space<vmem>>, vector<1x32xf32>
      %cst_118 = arith.constant dense<0.000000e+00> : vector<8xf32>
      %200 = vector.multi_reduction <add>, %197, %cst_118 [1] : vector<8x32xf32> to vector<8xf32>
      %201 = vector.shape_cast %200 : vector<8xf32> to vector<8x1xf32>
      %cst_119 = arith.constant 3.200000e+01 : f32
      %202 = vector.broadcast %cst_119 : f32 to vector<8x1xf32>
      %203 = arith.divf %201, %202 : vector<8x1xf32>
      %204 = vector.broadcast %203 : vector<8x1xf32> to vector<8x32xf32>
      %205 = arith.subf %197, %204 : vector<8x32xf32>
      %206 = arith.mulf %205, %205 : vector<8x32xf32>
      %cst_120 = arith.constant dense<0.000000e+00> : vector<8xf32>
      %207 = vector.multi_reduction <add>, %206, %cst_120 [1] : vector<8x32xf32> to vector<8xf32>
      %208 = vector.shape_cast %207 : vector<8xf32> to vector<8x1xf32>
      %cst_121 = arith.constant 3.200000e+01 : f32
      %209 = vector.broadcast %cst_121 : f32 to vector<8x1xf32>
      %210 = arith.divf %208, %209 : vector<8x1xf32>
      %211 = vector.broadcast %203 : vector<8x1xf32> to vector<8x32xf32>
      %212 = arith.subf %197, %211 : vector<8x32xf32>
      %cst_122 = arith.constant 9.99999974E-6 : f32
      %213 = vector.broadcast %cst_122 : f32 to vector<8x1xf32>
      %214 = arith.addf %210, %213 : vector<8x1xf32>
      %215 = math.rsqrt %214 : vector<8x1xf32>
      %216 = vector.broadcast %215 : vector<8x1xf32> to vector<8x32xf32>
      %217 = arith.mulf %212, %216 : vector<8x32xf32>
      %218 = vector.broadcast %198 : vector<1x32xf32> to vector<8x32xf32>
      %219 = arith.mulf %217, %218 : vector<8x32xf32>
      %220 = vector.broadcast %199 : vector<1x32xf32> to vector<8x32xf32>
      %221 = arith.addf %219, %220 : vector<8x32xf32>
      %c0_123 = arith.constant 0 : index
      %c0_124 = arith.constant 0 : index
      %222 = vector.load %arg5[%c0_123, %c0_124] : memref<32x32xf32, #tpu.memory_space<vmem>>, vector<32x32xf32>
      %cst_125 = arith.constant dense<0.000000e+00> : vector<8x32xf32>
      %223 = tpu.matmul %221, %222, %cst_125 {dimension_numbers = #tpu.dot_dimension_numbers<[1], [0], [0], [1], [0, 0, 1, 1], [], []>} : vector<8x32xf32>, vector<32x32xf32>, vector<8x32xf32> -> vector<8x32xf32>
      %c0_126 = arith.constant 0 : index
      %c0_127 = arith.constant 0 : index
      %224 = vector.load %arg6[%c0_126, %c0_127] : memref<1x32xf32, #tpu.memory_space<vmem>>, vector<1x32xf32>
      %225 = vector.broadcast %224 : vector<1x32xf32> to vector<8x32xf32>
      %226 = arith.addf %223, %225 : vector<8x32xf32>
      %c0_128 = arith.constant 0 : index
      %c0_129 = arith.constant 0 : index
      %227 = vector.load %arg7[%c0_128, %c0_129] : memref<32x32xf32, #tpu.memory_space<vmem>>, vector<32x32xf32>
      %cst_130 = arith.constant dense<0.000000e+00> : vector<8x32xf32>
      %228 = tpu.matmul %221, %227, %cst_130 {dimension_numbers = #tpu.dot_dimension_numbers<[1], [0], [0], [1], [0, 0, 1, 1], [], []>} : vector<8x32xf32>, vector<32x32xf32>, vector<8x32xf32> -> vector<8x32xf32>
      %c0_131 = arith.constant 0 : index
      %c0_132 = arith.constant 0 : index
      %229 = vector.load %arg8[%c0_131, %c0_132] : memref<1x32xf32, #tpu.memory_space<vmem>>, vector<1x32xf32>
      %230 = vector.broadcast %229 : vector<1x32xf32> to vector<8x32xf32>
      %231 = arith.addf %228, %230 : vector<8x32xf32>
      %232 = vector.extract_strided_slice %226 {offsets = [0, 0], sizes = [8, 8], strides = [1, 1]} : vector<8x32xf32> to vector<8x8xf32>
      %233 = vector.extract_strided_slice %231 {offsets = [0, 0], sizes = [8, 8], strides = [1, 1]} : vector<8x32xf32> to vector<8x8xf32>
      %cst_133 = arith.constant 0.353553385 : f32
      %234 = vector.broadcast %cst_133 : f32 to vector<8x8xf32>
      %235 = arith.mulf %233, %234 : vector<8x8xf32>
      %cst_134 = arith.constant dense<0.000000e+00> : vector<8x8xf32>
      %236 = tpu.matmul %232, %235, %cst_134 {dimension_numbers = #tpu.dot_dimension_numbers<[1], [1], [0], [0], [0, 0, 1, 0], [], []>} : vector<8x8xf32>, vector<8x8xf32>, vector<8x8xf32> -> vector<8x8xf32>
      %cst_135 = arith.constant dense<0xFF800000> : vector<8xf32>
      %237 = vector.multi_reduction <maximumf>, %236, %cst_135 [1] : vector<8x8xf32> to vector<8xf32>
      %238 = vector.shape_cast %237 : vector<8xf32> to vector<8x1xf32>
      %239 = vector.broadcast %238 : vector<8x1xf32> to vector<8x8xf32>
      %240 = arith.subf %236, %239 : vector<8x8xf32>
      %241 = math.exp %240 : vector<8x8xf32>
      %cst_136 = arith.constant dense<0.000000e+00> : vector<8xf32>
      %242 = vector.multi_reduction <add>, %241, %cst_136 [1] : vector<8x8xf32> to vector<8xf32>
      %243 = vector.shape_cast %242 : vector<8xf32> to vector<8x1xf32>
      %244 = tpu.reciprocal %243 : vector<8x1xf32> -> vector<8x1xf32>
      %245 = vector.broadcast %244 : vector<8x1xf32> to vector<8x8xf32>
      %246 = arith.mulf %241, %245 : vector<8x8xf32>
      %cst_137 = arith.constant dense<0.000000e+00> : vector<8x8xf32>
      %247 = tpu.matmul %246, %232, %cst_137 {dimension_numbers = #tpu.dot_dimension_numbers<[1], [0], [0], [1], [0, 0, 1, 1], [], []>} : vector<8x8xf32>, vector<8x8xf32>, vector<8x8xf32> -> vector<8x8xf32>
      %c0_138 = arith.constant 0 : index
      %c0_139 = arith.constant 0 : index
      %248 = vector.load %arg20[%c0_138, %c0_139] : memref<8x32xf32, #tpu.memory_space<vmem>>, vector<8x8xf32>
      tpu.vector_store %arg20[%c0_138, %c0_139], %247 {strides = array<i32>} : memref<8x32xf32, #tpu.memory_space<vmem>>, vector<8x8xf32>,
      %249 = vector.extract_strided_slice %226 {offsets = [0, 8], sizes = [8, 8], strides = [1, 1]} : vector<8x32xf32> to vector<8x8xf32>
      %250 = vector.extract_strided_slice %231 {offsets = [0, 8], sizes = [8, 8], strides = [1, 1]} : vector<8x32xf32> to vector<8x8xf32>
      %cst_140 = arith.constant 0.353553385 : f32
      %251 = vector.broadcast %cst_140 : f32 to vector<8x8xf32>
      %252 = arith.mulf %250, %251 : vector<8x8xf32>
      %cst_141 = arith.constant dense<0.000000e+00> : vector<8x8xf32>
      %253 = tpu.matmul %249, %252, %cst_141 {dimension_numbers = #tpu.dot_dimension_numbers<[1], [1], [0], [0], [0, 0, 1, 0], [], []>} : vector<8x8xf32>, vector<8x8xf32>, vector<8x8xf32> -> vector<8x8xf32>
      %cst_142 = arith.constant dense<0xFF800000> : vector<8xf32>
      %254 = vector.multi_reduction <maximumf>, %253, %cst_142 [1] : vector<8x8xf32> to vector<8xf32>
      %255 = vector.shape_cast %254 : vector<8xf32> to vector<8x1xf32>
      %256 = vector.broadcast %255 : vector<8x1xf32> to vector<8x8xf32>
      %257 = arith.subf %253, %256 : vector<8x8xf32>
      %258 = math.exp %257 : vector<8x8xf32>
      %cst_143 = arith.constant dense<0.000000e+00> : vector<8xf32>
      %259 = vector.multi_reduction <add>, %258, %cst_143 [1] : vector<8x8xf32> to vector<8xf32>
      %260 = vector.shape_cast %259 : vector<8xf32> to vector<8x1xf32>
      %261 = tpu.reciprocal %260 : vector<8x1xf32> -> vector<8x1xf32>
      %262 = vector.broadcast %261 : vector<8x1xf32> to vector<8x8xf32>
      %263 = arith.mulf %258, %262 : vector<8x8xf32>
      %cst_144 = arith.constant dense<0.000000e+00> : vector<8x8xf32>
      %264 = tpu.matmul %263, %249, %cst_144 {dimension_numbers = #tpu.dot_dimension_numbers<[1], [0], [0], [1], [0, 0, 1, 1], [], []>} : vector<8x8xf32>, vector<8x8xf32>, vector<8x8xf32> -> vector<8x8xf32>
      %c0_145 = arith.constant 0 : index
      %c8_146 = arith.constant 8 : index
      %265 = vector.load %arg20[%c0_145, %c8_146] : memref<8x32xf32, #tpu.memory_space<vmem>>, vector<8x8xf32>
      tpu.vector_store %arg20[%c0_145, %c8_146], %264 {strides = array<i32>} : memref<8x32xf32, #tpu.memory_space<vmem>>, vector<8x8xf32>,
      %266 = vector.extract_strided_slice %226 {offsets = [0, 16], sizes = [8, 8], strides = [1, 1]} : vector<8x32xf32> to vector<8x8xf32>
      %267 = vector.extract_strided_slice %231 {offsets = [0, 16], sizes = [8, 8], strides = [1, 1]} : vector<8x32xf32> to vector<8x8xf32>
      %cst_147 = arith.constant 0.353553385 : f32
      %268 = vector.broadcast %cst_147 : f32 to vector<8x8xf32>
      %269 = arith.mulf %267, %268 : vector<8x8xf32>
      %cst_148 = arith.constant dense<0.000000e+00> : vector<8x8xf32>
      %270 = tpu.matmul %266, %269, %cst_148 {dimension_numbers = #tpu.dot_dimension_numbers<[1], [1], [0], [0], [0, 0, 1, 0], [], []>} : vector<8x8xf32>, vector<8x8xf32>, vector<8x8xf32> -> vector<8x8xf32>
      %cst_149 = arith.constant dense<0xFF800000> : vector<8xf32>
      %271 = vector.multi_reduction <maximumf>, %270, %cst_149 [1] : vector<8x8xf32> to vector<8xf32>
      %272 = vector.shape_cast %271 : vector<8xf32> to vector<8x1xf32>
      %273 = vector.broadcast %272 : vector<8x1xf32> to vector<8x8xf32>
      %274 = arith.subf %270, %273 : vector<8x8xf32>
      %275 = math.exp %274 : vector<8x8xf32>
      %cst_150 = arith.constant dense<0.000000e+00> : vector<8xf32>
      %276 = vector.multi_reduction <add>, %275, %cst_150 [1] : vector<8x8xf32> to vector<8xf32>
      %277 = vector.shape_cast %276 : vector<8xf32> to vector<8x1xf32>
      %278 = tpu.reciprocal %277 : vector<8x1xf32> -> vector<8x1xf32>
      %279 = vector.broadcast %278 : vector<8x1xf32> to vector<8x8xf32>
      %280 = arith.mulf %275, %279 : vector<8x8xf32>
      %cst_151 = arith.constant dense<0.000000e+00> : vector<8x8xf32>
      %281 = tpu.matmul %280, %266, %cst_151 {dimension_numbers = #tpu.dot_dimension_numbers<[1], [0], [0], [1], [0, 0, 1, 1], [], []>} : vector<8x8xf32>, vector<8x8xf32>, vector<8x8xf32> -> vector<8x8xf32>
      %c0_152 = arith.constant 0 : index
      %c16_153 = arith.constant 16 : index
      %282 = vector.load %arg20[%c0_152, %c16_153] : memref<8x32xf32, #tpu.memory_space<vmem>>, vector<8x8xf32>
      tpu.vector_store %arg20[%c0_152, %c16_153], %281 {strides = array<i32>} : memref<8x32xf32, #tpu.memory_space<vmem>>, vector<8x8xf32>,
      %283 = vector.extract_strided_slice %226 {offsets = [0, 24], sizes = [8, 8], strides = [1, 1]} : vector<8x32xf32> to vector<8x8xf32>
      %284 = vector.extract_strided_slice %231 {offsets = [0, 24], sizes = [8, 8], strides = [1, 1]} : vector<8x32xf32> to vector<8x8xf32>
      %cst_154 = arith.constant 0.353553385 : f32
      %285 = vector.broadcast %cst_154 : f32 to vector<8x8xf32>
      %286 = arith.mulf %284, %285 : vector<8x8xf32>
      %cst_155 = arith.constant dense<0.000000e+00> : vector<8x8xf32>
      %287 = tpu.matmul %283, %286, %cst_155 {dimension_numbers = #tpu.dot_dimension_numbers<[1], [1], [0], [0], [0, 0, 1, 0], [], []>} : vector<8x8xf32>, vector<8x8xf32>, vector<8x8xf32> -> vector<8x8xf32>
      %cst_156 = arith.constant dense<0xFF800000> : vector<8xf32>
      %288 = vector.multi_reduction <maximumf>, %287, %cst_156 [1] : vector<8x8xf32> to vector<8xf32>
      %289 = vector.shape_cast %288 : vector<8xf32> to vector<8x1xf32>
      %290 = vector.broadcast %289 : vector<8x1xf32> to vector<8x8xf32>
      %291 = arith.subf %287, %290 : vector<8x8xf32>
      %292 = math.exp %291 : vector<8x8xf32>
      %cst_157 = arith.constant dense<0.000000e+00> : vector<8xf32>
      %293 = vector.multi_reduction <add>, %292, %cst_157 [1] : vector<8x8xf32> to vector<8xf32>
      %294 = vector.shape_cast %293 : vector<8xf32> to vector<8x1xf32>
      %295 = tpu.reciprocal %294 : vector<8x1xf32> -> vector<8x1xf32>
      %296 = vector.broadcast %295 : vector<8x1xf32> to vector<8x8xf32>
      %297 = arith.mulf %292, %296 : vector<8x8xf32>
      %cst_158 = arith.constant dense<0.000000e+00> : vector<8x8xf32>
      %298 = tpu.matmul %297, %283, %cst_158 {dimension_numbers = #tpu.dot_dimension_numbers<[1], [0], [0], [1], [0, 0, 1, 1], [], []>} : vector<8x8xf32>, vector<8x8xf32>, vector<8x8xf32> -> vector<8x8xf32>
      %c0_159 = arith.constant 0 : index
      %c24_160 = arith.constant 24 : index
      %299 = vector.load %arg20[%c0_159, %c24_160] : memref<8x32xf32, #tpu.memory_space<vmem>>, vector<8x8xf32>
      tpu.vector_store %arg20[%c0_159, %c24_160], %298 {strides = array<i32>} : memref<8x32xf32, #tpu.memory_space<vmem>>, vector<8x8xf32>,
      %c0_161 = arith.constant 0 : index
      %c0_162 = arith.constant 0 : index
      %300 = vector.load %arg20[%c0_161, %c0_162] : memref<8x32xf32, #tpu.memory_space<vmem>>, vector<8x32xf32>
      %c0_163 = arith.constant 0 : index
      %c0_164 = arith.constant 0 : index
      %301 = vector.load %arg9[%c0_163, %c0_164] : memref<32x32xf32, #tpu.memory_space<vmem>>, vector<32x32xf32>
      %cst_165 = arith.constant dense<0.000000e+00> : vector<8x32xf32>
      %302 = tpu.matmul %300, %301, %cst_165 {dimension_numbers = #tpu.dot_dimension_numbers<[1], [0], [0], [1], [0, 0, 1, 1], [], []>} : vector<8x32xf32>, vector<32x32xf32>, vector<8x32xf32> -> vector<8x32xf32>
      %c0_166 = arith.constant 0 : index
      %c0_167 = arith.constant 0 : index
      %303 = vector.load %arg10[%c0_166, %c0_167] : memref<1x32xf32, #tpu.memory_space<vmem>>, vector<1x32xf32>
      %304 = vector.broadcast %303 : vector<1x32xf32> to vector<8x32xf32>
      %305 = arith.addf %302, %304 : vector<8x32xf32>
      %306 = arith.addf %221, %305 : vector<8x32xf32>
      %c0_168 = arith.constant 0 : index
      %c0_169 = arith.constant 0 : index
      %307 = vector.load %arg11[%c0_168, %c0_169] : memref<1x32xf32, #tpu.memory_space<vmem>>, vector<1x32xf32>
      %c0_170 = arith.constant 0 : index
      %c0_171 = arith.constant 0 : index
      %308 = vector.load %arg12[%c0_170, %c0_171] : memref<1x32xf32, #tpu.memory_space<vmem>>, vector<1x32xf32>
      %cst_172 = arith.constant dense<0.000000e+00> : vector<8xf32>
      %309 = vector.multi_reduction <add>, %306, %cst_172 [1] : vector<8x32xf32> to vector<8xf32>
      %310 = vector.shape_cast %309 : vector<8xf32> to vector<8x1xf32>
      %cst_173 = arith.constant 3.200000e+01 : f32
      %311 = vector.broadcast %cst_173 : f32 to vector<8x1xf32>
      %312 = arith.divf %310, %311 : vector<8x1xf32>
      %313 = vector.broadcast %312 : vector<8x1xf32> to vector<8x32xf32>
      %314 = arith.subf %306, %313 : vector<8x32xf32>
      %315 = arith.mulf %314, %314 : vector<8x32xf32>
      %cst_174 = arith.constant dense<0.000000e+00> : vector<8xf32>
      %316 = vector.multi_reduction <add>, %315, %cst_174 [1] : vector<8x32xf32> to vector<8xf32>
      %317 = vector.shape_cast %316 : vector<8xf32> to vector<8x1xf32>
      %cst_175 = arith.constant 3.200000e+01 : f32
      %318 = vector.broadcast %cst_175 : f32 to vector<8x1xf32>
      %319 = arith.divf %317, %318 : vector<8x1xf32>
      %320 = vector.broadcast %312 : vector<8x1xf32> to vector<8x32xf32>
      %321 = arith.subf %306, %320 : vector<8x32xf32>
      %cst_176 = arith.constant 9.99999974E-6 : f32
      %322 = vector.broadcast %cst_176 : f32 to vector<8x1xf32>
      %323 = arith.addf %319, %322 : vector<8x1xf32>
      %324 = math.rsqrt %323 : vector<8x1xf32>
      %325 = vector.broadcast %324 : vector<8x1xf32> to vector<8x32xf32>
      %326 = arith.mulf %321, %325 : vector<8x32xf32>
      %327 = vector.broadcast %307 : vector<1x32xf32> to vector<8x32xf32>
      %328 = arith.mulf %326, %327 : vector<8x32xf32>
      %329 = vector.broadcast %308 : vector<1x32xf32> to vector<8x32xf32>
      %330 = arith.addf %328, %329 : vector<8x32xf32>
      %c1_177 = arith.constant 1 : index
      %c0_178 = arith.constant 0 : index
      %c0_179 = arith.constant 0 : index
      %331 = vector.load %arg18[%c1_177, %c0_178, %c0_179] : memref<2x8x32xf32, #tpu.memory_space<vmem>>, vector<1x8x32xf32>
      %332 = vector.shape_cast %331 : vector<1x8x32xf32> to vector<8x32xf32>
      %333 = vector.shape_cast %330 : vector<8x32xf32> to vector<1x8x32xf32>
      tpu.vector_store %arg18[%c1_177, %c0_178, %c0_179], %333 {strides = array<i32>} : memref<2x8x32xf32, #tpu.memory_space<vmem>>, vector<1x8x32xf32>,
      %c0_180 = arith.constant 0 : index
      %c0_181 = arith.constant 0 : index
      %334 = vector.load %arg16[%c0_180, %c0_181] : memref<1x32xf32, #tpu.memory_space<vmem>>, vector<1x32xf32>
      %335 = vector.broadcast %334 : vector<1x32xf32> to vector<8x32xf32>
      %336 = arith.addf %330, %335 : vector<8x32xf32>
      %c1_182 = arith.constant 1 : index
      %c0_183 = arith.constant 0 : index
      %c0_184 = arith.constant 0 : index
      %337 = vector.load %arg19[%c1_182, %c0_183, %c0_184] : memref<2x8x32xf32, #tpu.memory_space<vmem>>, vector<1x8x32xf32>
      %338 = vector.shape_cast %337 : vector<1x8x32xf32> to vector<8x32xf32>
      %339 = vector.shape_cast %336 : vector<8x32xf32> to vector<1x8x32xf32>
      tpu.vector_store %arg19[%c1_182, %c0_183, %c0_184], %339 {strides = array<i32>} : memref<2x8x32xf32, #tpu.memory_space<vmem>>, vector<1x8x32xf32>,
    } else {
    }
    %c0 = arith.constant 0 : index
    %c0_1 = arith.constant 0 : index
    %c0_2 = arith.constant 0 : index
    %3 = vector.load %arg18[%c0, %c0_1, %c0_2] : memref<2x8x32xf32, #tpu.memory_space<vmem>>, vector<1x8x32xf32>
    %4 = vector.shape_cast %3 : vector<1x8x32xf32> to vector<8x32xf32>
    %c0_3 = arith.constant 0 : index
    %c0_4 = arith.constant 0 : index
    %5 = vector.load %arg13[%c0_3, %c0_4] : memref<32x64xf32, #tpu.memory_space<vmem>>, vector<32x64xf32>
    %cst = arith.constant dense<0.000000e+00> : vector<8x64xf32>
    %6 = tpu.matmul %4, %5, %cst {dimension_numbers = #tpu.dot_dimension_numbers<[1], [0], [0], [1], [0, 0, 1, 1], [], []>} : vector<8x32xf32>, vector<32x64xf32>, vector<8x64xf32> -> vector<8x64xf32>
    %c0_5 = arith.constant 0 : index
    %c0_6 = arith.constant 0 : index
    %7 = vector.load %arg14[%c0_5, %c0_6] : memref<1x64xf32, #tpu.memory_space<vmem>>, vector<1x64xf32>
    %8 = vector.broadcast %7 : vector<1x64xf32> to vector<8x64xf32>
    %9 = arith.addf %6, %8 : vector<8x64xf32>
    %cst_7 = arith.constant 5.000000e-01 : f32
    %10 = vector.broadcast %cst_7 : f32 to vector<8x64xf32>
    %11 = arith.mulf %10, %9 : vector<8x64xf32>
    %cst_8 = arith.constant 0.707106769 : f32
    %12 = vector.broadcast %cst_8 : f32 to vector<8x64xf32>
    %13 = arith.mulf %9, %12 : vector<8x64xf32>
    %14 = math.erf %13 : vector<8x64xf32>
    %cst_9 = arith.constant 1.000000e+00 : f32
    %15 = vector.broadcast %cst_9 : f32 to vector<8x64xf32>
    %16 = arith.addf %15, %14 : vector<8x64xf32>
    %17 = arith.mulf %11, %16 : vector<8x64xf32>
    %c0_10 = arith.constant 0 : index
    %c0_11 = arith.constant 0 : index
    %c0_12 = arith.constant 0 : index
    %18 = vector.load %arg19[%c0_10, %c0_11, %c0_12] : memref<2x8x32xf32, #tpu.memory_space<vmem>>, vector<1x8x32xf32>
    %19 = vector.shape_cast %18 : vector<1x8x32xf32> to vector<8x32xf32>
    %c0_13 = arith.constant 0 : index
    %c0_14 = arith.constant 0 : index
    %20 = vector.load %arg15[%c0_13, %c0_14] : memref<64x32xf32, #tpu.memory_space<vmem>>, vector<64x32xf32>
    %cst_15 = arith.constant dense<0.000000e+00> : vector<8x32xf32>
    %21 = tpu.matmul %17, %20, %cst_15 {dimension_numbers = #tpu.dot_dimension_numbers<[1], [0], [0], [1], [0, 0, 1, 1], [], []>} : vector<8x64xf32>, vector<64x32xf32>, vector<8x32xf32> -> vector<8x32xf32>
    %22 = arith.addf %19, %21 : vector<8x32xf32>
    %c0_16 = arith.constant 0 : index
    %c0_17 = arith.constant 0 : index
    %c0_18 = arith.constant 0 : index
    %23 = vector.load %arg19[%c0_16, %c0_17, %c0_18] : memref<2x8x32xf32, #tpu.memory_space<vmem>>, vector<1x8x32xf32>
    %24 = vector.shape_cast %23 : vector<1x8x32xf32> to vector<8x32xf32>
    %25 = vector.shape_cast %22 : vector<8x32xf32> to vector<1x8x32xf32>
    tpu.vector_store %arg19[%c0_16, %c0_17, %c0_18], %25 {strides = array<i32>} : memref<2x8x32xf32, #tpu.memory_space<vmem>>, vector<1x8x32xf32>,
    %c1 = arith.constant 1 : index
    %c0_19 = arith.constant 0 : index
    %c0_20 = arith.constant 0 : index
    %26 = vector.load %arg18[%c1, %c0_19, %c0_20] : memref<2x8x32xf32, #tpu.memory_space<vmem>>, vector<1x8x32xf32>
    %27 = vector.shape_cast %26 : vector<1x8x32xf32> to vector<8x32xf32>
    %c0_21 = arith.constant 0 : index
    %c0_22 = arith.constant 0 : index
    %28 = vector.load %arg13[%c0_21, %c0_22] : memref<32x64xf32, #tpu.memory_space<vmem>>, vector<32x64xf32>
    %cst_23 = arith.constant dense<0.000000e+00> : vector<8x64xf32>
    %29 = tpu.matmul %27, %28, %cst_23 {dimension_numbers = #tpu.dot_dimension_numbers<[1], [0], [0], [1], [0, 0, 1, 1], [], []>} : vector<8x32xf32>, vector<32x64xf32>, vector<8x64xf32> -> vector<8x64xf32>
    %c0_24 = arith.constant 0 : index
    %c0_25 = arith.constant 0 : index
    %30 = vector.load %arg14[%c0_24, %c0_25] : memref<1x64xf32, #tpu.memory_space<vmem>>, vector<1x64xf32>
    %31 = vector.broadcast %30 : vector<1x64xf32> to vector<8x64xf32>
    %32 = arith.addf %29, %31 : vector<8x64xf32>
    %cst_26 = arith.constant 5.000000e-01 : f32
    %33 = vector.broadcast %cst_26 : f32 to vector<8x64xf32>
    %34 = arith.mulf %33, %32 : vector<8x64xf32>
    %cst_27 = arith.constant 0.707106769 : f32
    %35 = vector.broadcast %cst_27 : f32 to vector<8x64xf32>
    %36 = arith.mulf %32, %35 : vector<8x64xf32>
    %37 = math.erf %36 : vector<8x64xf32>
    %cst_28 = arith.constant 1.000000e+00 : f32
    %38 = vector.broadcast %cst_28 : f32 to vector<8x64xf32>
    %39 = arith.addf %38, %37 : vector<8x64xf32>
    %40 = arith.mulf %34, %39 : vector<8x64xf32>
    %c1_29 = arith.constant 1 : index
    %c0_30 = arith.constant 0 : index
    %c0_31 = arith.constant 0 : index
    %41 = vector.load %arg19[%c1_29, %c0_30, %c0_31] : memref<2x8x32xf32, #tpu.memory_space<vmem>>, vector<1x8x32xf32>
    %42 = vector.shape_cast %41 : vector<1x8x32xf32> to vector<8x32xf32>
    %c0_32 = arith.constant 0 : index
    %c0_33 = arith.constant 0 : index
    %43 = vector.load %arg15[%c0_32, %c0_33] : memref<64x32xf32, #tpu.memory_space<vmem>>, vector<64x32xf32>
    %cst_34 = arith.constant dense<0.000000e+00> : vector<8x32xf32>
    %44 = tpu.matmul %40, %43, %cst_34 {dimension_numbers = #tpu.dot_dimension_numbers<[1], [0], [0], [1], [0, 0, 1, 1], [], []>} : vector<8x64xf32>, vector<64x32xf32>, vector<8x32xf32> -> vector<8x32xf32>
    %45 = arith.addf %42, %44 : vector<8x32xf32>
    %c1_35 = arith.constant 1 : index
    %c0_36 = arith.constant 0 : index
    %c0_37 = arith.constant 0 : index
    %46 = vector.load %arg19[%c1_35, %c0_36, %c0_37] : memref<2x8x32xf32, #tpu.memory_space<vmem>>, vector<1x8x32xf32>
    %47 = vector.shape_cast %46 : vector<1x8x32xf32> to vector<8x32xf32>
    %48 = vector.shape_cast %45 : vector<8x32xf32> to vector<1x8x32xf32>
    tpu.vector_store %arg19[%c1_35, %c0_36, %c0_37], %48 {strides = array<i32>} : memref<2x8x32xf32, #tpu.memory_space<vmem>>, vector<1x8x32xf32>,
    %c0_i32_38 = arith.constant 0 : i32
    %49 = arith.cmpi eq, %arg1, %c0_i32_38 : i32
    %50 = arith.extui %49 : i1 to i32
    %c0_i32_39 = arith.constant 0 : i32
    %51 = arith.cmpi ne, %50, %c0_i32_39 : i32
    scf.if %51 {
      %c0_40 = arith.constant 0 : index
      %c0_41 = arith.constant 0 : index
      %c0_42 = arith.constant 0 : index
      %52 = vector.load %arg19[%c0_40, %c0_41, %c0_42] : memref<2x8x32xf32, #tpu.memory_space<vmem>>, vector<2x8x32xf32>
      %c0_43 = arith.constant 0 : index
      %c0_44 = arith.constant 0 : index
      %c0_45 = arith.constant 0 : index
      %53 = vector.load %arg17[%c0_43, %c0_44, %c0_45] : memref<2x8x32xf32, #tpu.memory_space<vmem>>, vector<2x8x32xf32>
      tpu.vector_store %arg17[%c0_43, %c0_44, %c0_45], %52 {strides = array<i32>} : memref<2x8x32xf32, #tpu.memory_space<vmem>>, vector<2x8x32xf32>,
    } else {
    }
    return
  }
  func.func @transform_0(%arg0: i32, %arg1: i32) -> (i32, i32, i32) {
    %c0_i32 = arith.constant 0 : i32
    %c0_i32_0 = arith.constant 0 : i32
    %c0_i32_1 = arith.constant 0 : i32
    return %arg0, %c0_i32, %c0_i32_0 : i32, i32, i32
  }
  func.func @transform_1(%arg0: i32, %arg1: i32) -> (i32, i32) {
    %c0_i32 = arith.constant 0 : i32
    %c0_i32_0 = arith.constant 0 : i32
    %c0_i32_1 = arith.constant 0 : i32
    return %c0_i32, %c0_i32_0 : i32, i32
  }
  func.func @transform_2(%arg0: i32, %arg1: i32) -> (i32, i32) {
    %c0_i32 = arith.constant 0 : i32
    %c0_i32_0 = arith.constant 0 : i32
    %c0_i32_1 = arith.constant 0 : i32
    return %c0_i32, %c0_i32_0 : i32, i32
  }
  func.func @transform_3(%arg0: i32, %arg1: i32) -> (i32, i32) {
    %c0_i32 = arith.constant 0 : i32
    %c0_i32_0 = arith.constant 0 : i32
    %c0_i32_1 = arith.constant 0 : i32
    return %c0_i32, %c0_i32_0 : i32, i32
  }
  func.func @transform_4(%arg0: i32, %arg1: i32) -> (i32, i32) {
    %c0_i32 = arith.constant 0 : i32
    %c0_i32_0 = arith.constant 0 : i32
    %c0_i32_1 = arith.constant 0 : i32
    return %c0_i32, %c0_i32_0 : i32, i32
  }
  func.func @transform_5(%arg0: i32, %arg1: i32) -> (i32, i32) {
    %c0_i32 = arith.constant 0 : i32
    %c0_i32_0 = arith.constant 0 : i32
    %c0_i32_1 = arith.constant 0 : i32
    return %c0_i32, %c0_i32_0 : i32, i32
  }
  func.func @transform_6(%arg0: i32, %arg1: i32) -> (i32, i32) {
    %c0_i32 = arith.constant 0 : i32
    %c0_i32_0 = arith.constant 0 : i32
    %c0_i32_1 = arith.constant 0 : i32
    return %c0_i32, %c0_i32_0 : i32, i32
  }
  func.func @transform_7(%arg0: i32, %arg1: i32) -> (i32, i32) {
    %c0_i32 = arith.constant 0 : i32
    %c0_i32_0 = arith.constant 0 : i32
    %c0_i32_1 = arith.constant 0 : i32
    return %c0_i32, %c0_i32_0 : i32, i32
  }
  func.func @transform_8(%arg0: i32, %arg1: i32) -> (i32, i32) {
    %c0_i32 = arith.constant 0 : i32
    %c0_i32_0 = arith.constant 0 : i32
    %c0_i32_1 = arith.constant 0 : i32
    return %c0_i32, %c0_i32_0 : i32, i32
  }
  func.func @transform_9(%arg0: i32, %arg1: i32) -> (i32, i32) {
    %c0_i32 = arith.constant 0 : i32
    %c0_i32_0 = arith.constant 0 : i32
    %c0_i32_1 = arith.constant 0 : i32
    return %c0_i32, %c0_i32_0 : i32, i32
  }
  func.func @transform_10(%arg0: i32, %arg1: i32) -> (i32, i32) {
    %c0_i32 = arith.constant 0 : i32
    %c0_i32_0 = arith.constant 0 : i32
    %c0_i32_1 = arith.constant 0 : i32
    return %c0_i32, %c0_i32_0 : i32, i32
  }
  func.func @transform_11(%arg0: i32, %arg1: i32) -> (i32, i32) {
    %c0_i32 = arith.constant 0 : i32
    %c0_i32_0 = arith.constant 0 : i32
    return %c0_i32, %arg1 : i32, i32
  }
  func.func @transform_12(%arg0: i32, %arg1: i32) -> (i32, i32) {
    %c0_i32 = arith.constant 0 : i32
    %c0_i32_0 = arith.constant 0 : i32
    return %c0_i32, %arg1 : i32, i32
  }
  func.func @transform_13(%arg0: i32, %arg1: i32) -> (i32, i32) {
    %c0_i32 = arith.constant 0 : i32
    %c0_i32_0 = arith.constant 0 : i32
    return %arg1, %c0_i32 : i32, i32
  }
  func.func @transform_14(%arg0: i32, %arg1: i32) -> (i32, i32) {
    %c0_i32 = arith.constant 0 : i32
    %c0_i32_0 = arith.constant 0 : i32
    %c0_i32_1 = arith.constant 0 : i32
    return %c0_i32, %c0_i32_0 : i32, i32
  }
  func.func @transform_15(%arg0: i32, %arg1: i32) -> (i32, i32, i32) {
    %c0_i32 = arith.constant 0 : i32
    %c0_i32_0 = arith.constant 0 : i32
    %c0_i32_1 = arith.constant 0 : i32
    return %arg0, %c0_i32, %c0_i32_0 : i32, i32, i32
  }
}

</mosaic_0001>

<llo_original>
// kernel: tpu_custom_call.1
$region0: #{tpu_custom_call.1}
  #allocation0 [shape = 'u32[]', space=smem, size = 0x4, offset = 0x4, fixed_abs, tag = 'smem constant byte address 0x4 - core index']
  #allocation1 [shape = 'u32[144,128]{1,0:T(1,128)}', space=vmem, size = 0x12000, scoped, tag = 'internal scratch']
  #allocation2 [shape = 'f32[2,8,32]{2,1,0:T(8,128)}', space=vmem, size = 0x2000, scoped, tag = 'scratch operand']
  #allocation3 [shape = 'f32[2,8,32]{2,1,0:T(8,128)}', space=vmem, size = 0x2000, scoped, tag = 'scratch operand']
  #allocation4 [shape = 'f32[8,32]{1,0:T(8,128)}', space=vmem, size = 0x1000, scoped, tag = 'scratch operand']
  %s0 = inlined_call_operand.hbm [shape: f32[2,8,32], index: 0, kind: input, shape index: {}]
  %s1 = inlined_call_operand.vmem [shape: f32[1,32], index: 1, kind: input, shape index: {}]
  %s2 = inlined_call_operand.vmem [shape: f32[1,32], index: 2, kind: input, shape index: {}]
  %s3 = inlined_call_operand.vmem [shape: f32[32,32], index: 3, kind: input, shape index: {}]
  %s4 = inlined_call_operand.vmem [shape: f32[1,32], index: 4, kind: input, shape index: {}]
  %s5 = inlined_call_operand.vmem [shape: f32[32,32], index: 5, kind: input, shape index: {}]
  %s6 = inlined_call_operand.vmem [shape: f32[1,32], index: 6, kind: input, shape index: {}]
  %s7 = inlined_call_operand.vmem [shape: f32[32,32], index: 7, kind: input, shape index: {}]
  %s8 = inlined_call_operand.vmem [shape: f32[1,32], index: 8, kind: input, shape index: {}]
  %s9 = inlined_call_operand.vmem [shape: f32[1,32], index: 9, kind: input, shape index: {}]
  %s10 = inlined_call_operand.vmem [shape: f32[1,32], index: 10, kind: input, shape index: {}]
  %s11 = inlined_call_operand.hbm [shape: f32[32,64], index: 11, kind: input, shape index: {}]
  %s12 = inlined_call_operand.vmem [shape: f32[1,64], index: 12, kind: input, shape index: {}]
  %s13 = inlined_call_operand.vmem [shape: f32[64,32], index: 13, kind: input, shape index: {}]
  %s14 = inlined_call_operand.vmem [shape: f32[1,32], index: 14, kind: input, shape index: {}]
  %s15 = inlined_call_operand.hbm [shape: f32[2,8,32], index: 15, kind: output, shape index: {}]
  %s16 = sld [smem:[#allocation0]]
  $region86: #{tpu_custom_call.1} parent=0
    _
  %s18 = ssub.s32 1, %s16
  %s19 = scalar_select 0, %s18, %s16
  $region1: #{tpu_custom_call.1} parent=0
    #allocation5 [shape = 'u8[8192]{0}', space=vmem, size = 0x2000, scoped, tag = 'input window, operand 0, single buffered']
    #allocation6 [shape = 's32[1]{0}', space=sflag, size = 0x4, scoped, tag = 'scoped memory for tpu_custom_call.1']
    #allocation7 [shape = 's32[1]{0}', space=sflag, size = 0x4, scoped, tag = 'scoped memory for tpu_custom_call.1']
    #allocation8 [shape = 'u8[16384]{0}', space=vmem, size = 0x4000, scoped, tag = 'input window, operand 11, single buffered']
    #allocation9 [shape = 's32[1]{0}', space=sflag, size = 0x4, scoped, tag = 'scoped memory for tpu_custom_call.1']
    #allocation10 [shape = 'u8[8192]{0}', space=vmem, size = 0x2000, scoped, tag = 'output window, operand 0, single buffered']
    %20 = vsyncpa [#allocation6], 0
    %21 = vsyncpa [#allocation9], 0
    %22 = vsyncpa [#allocation7], 0
    // Predicated region
    $region2: #{tpu_custom_call.1} parent=1 // pred_check
      _
    $region3: #{tpu_custom_call.1} parent=1 // pred_check_branch
      %24 = sbr.rel (0) target = $region5
    $region4: #{tpu_custom_call.1} parent=1 // pred_region
      %s26 = ssub.s32 256, 256
      %27 = vsyncadd [#allocation6], %s26
      %s28 = sshll.u32 [#allocation5], 4
      %s29 = int_to_ptr.vmem [resolvable:$true] %s28
      %34 = dma.hbm_to_vmem [thread:$0]  %s0, 256, %s29, [#allocation6], 128, 128, 8
    $region5: #{tpu_custom_call.1} parent=1 // pred_fallthru
      _
    // Predicated region
    $region6: #{tpu_custom_call.1} parent=1 // pred_check
      _
    $region7: #{tpu_custom_call.1} parent=1 // pred_check_branch
      %36 = sbr.rel (0) target = $region9
    $region8: #{tpu_custom_call.1} parent=1 // pred_region
      _
    $region9: #{tpu_custom_call.1} parent=1 // pred_fallthru
      _
    // Predicated region
    $region10: #{tpu_custom_call.1} parent=1 // pred_check
      _
    $region11: #{tpu_custom_call.1} parent=1 // pred_check_branch
      %38 = sbr.rel (0) target = $region13
    $region12: #{tpu_custom_call.1} parent=1 // pred_region
      _
    $region13: #{tpu_custom_call.1} parent=1 // pred_fallthru
      _
    // Predicated region
    $region14: #{tpu_custom_call.1} parent=1 // pred_check
      _
    $region15: #{tpu_custom_call.1} parent=1 // pred_check_branch
      %40 = sbr.rel (0) target = $region17
    $region16: #{tpu_custom_call.1} parent=1 // pred_region
      _
    $region17: #{tpu_custom_call.1} parent=1 // pred_fallthru
      _
    // Predicated region
    $region18: #{tpu_custom_call.1} parent=1 // pred_check
      _
    $region19: #{tpu_custom_call.1} parent=1 // pred_check_branch
      %42 = sbr.rel (0) target = $region21
    $region20: #{tpu_custom_call.1} parent=1 // pred_region
      _
    $region21: #{tpu_custom_call.1} parent=1 // pred_fallthru
      _
    // Predicated region
    $region22: #{tpu_custom_call.1} parent=1 // pred_check
      _
    $region23: #{tpu_custom_call.1} parent=1 // pred_check_branch
      %44 = sbr.rel (0) target = $region25
    $region24: #{tpu_custom_call.1} parent=1 // pred_region
      _
    $region25: #{tpu_custom_call.1} parent=1 // pred_fallthru
      _
    // Predicated region
    $region26: #{tpu_custom_call.1} parent=1 // pred_check
      _
    $region27: #{tpu_custom_call.1} parent=1 // pred_check_branch
      %46 = sbr.rel (0) target = $region29
    $region28: #{tpu_custom_call.1} parent=1 // pred_region
      _
    $region29: #{tpu_custom_call.1} parent=1 // pred_fallthru
      _
    // Predicated region
    $region30: #{tpu_custom_call.1} parent=1 // pred_check
      _
    $region31: #{tpu_custom_call.1} parent=1 // pred_check_branch
      %48 = sbr.rel (0) target = $region33
    $region32: #{tpu_custom_call.1} parent=1 // pred_region
      _
    $region33: #{tpu_custom_call.1} parent=1 // pred_fallthru
      _
    // Predicated region
    $region34: #{tpu_custom_call.1} parent=1 // pred_check
      _
    $region35: #{tpu_custom_call.1} parent=1 // pred_check_branch
      %50 = sbr.rel (0) target = $region37
    $region36: #{tpu_custom_call.1} parent=1 // pred_region
      _
    $region37: #{tpu_custom_call.1} parent=1 // pred_fallthru
      _
    // Predicated region
    $region38: #{tpu_custom_call.1} parent=1 // pred_check
      _
    $region39: #{tpu_custom_call.1} parent=1 // pred_check_branch
      %52 = sbr.rel (0) target = $region41
    $region40: #{tpu_custom_call.1} parent=1 // pred_region
      _
    $region41: #{tpu_custom_call.1} parent=1 // pred_fallthru
      _
    // Predicated region
    $region42: #{tpu_custom_call.1} parent=1 // pred_check
      _
    $region43: #{tpu_custom_call.1} parent=1 // pred_check_branch
      %54 = sbr.rel (0) target = $region45
    $region44: #{tpu_custom_call.1} parent=1 // pred_region
      _
    $region45: #{tpu_custom_call.1} parent=1 // pred_fallthru
      _
    // Predicated region
    $region46: #{tpu_custom_call.1} parent=1 // pred_check
      _
    $region47: #{tpu_custom_call.1} parent=1 // pred_check_branch
      %56 = sbr.rel (0) target = $region49
    $region48: #{tpu_custom_call.1} parent=1 // pred_region
      %s58 = ssub.s32 512, 512
      %59 = vsyncadd [#allocation9], %s58
      %s60 = sshll.u32 [#allocation8], 4
      %s61 = int_to_ptr.vmem [resolvable:$true] %s60
      %66 = dma.hbm_to_vmem [thread:$0]  %s11, 512, %s61, [#allocation9], 128, 128, 8
    $region49: #{tpu_custom_call.1} parent=1 // pred_fallthru
      _
    // Predicated region
    $region50: #{tpu_custom_call.1} parent=1 // pred_check
      _
    $region51: #{tpu_custom_call.1} parent=1 // pred_check_branch
      %68 = sbr.rel (0) target = $region53
    $region52: #{tpu_custom_call.1} parent=1 // pred_region
      _
    $region53: #{tpu_custom_call.1} parent=1 // pred_fallthru
      _
    // Predicated region
    $region54: #{tpu_custom_call.1} parent=1 // pred_check
      _
    $region55: #{tpu_custom_call.1} parent=1 // pred_check_branch
      %70 = sbr.rel (0) target = $region57
    $region56: #{tpu_custom_call.1} parent=1 // pred_region
      _
    $region57: #{tpu_custom_call.1} parent=1 // pred_fallthru
      _
    // Predicated region
    $region58: #{tpu_custom_call.1} parent=1 // pred_check
      _
    $region59: #{tpu_custom_call.1} parent=1 // pred_check_branch
      %72 = sbr.rel (0) target = $region61
    $region60: #{tpu_custom_call.1} parent=1 // pred_region
      _
    $region61: #{tpu_custom_call.1} parent=1 // pred_fallthru
      _
    // Predicated region
    $region62: #{tpu_custom_call.1} parent=1 // pred_check
      _
    $region63: #{tpu_custom_call.1} parent=1 // pred_check_branch
      %74 = sbr.rel (0) target = $region65
    $region64: #{tpu_custom_call.1} parent=1 // pred_region
      %75 = dma.done [#allocation6], 256
    $region65: #{tpu_custom_call.1} parent=1 // pred_fallthru
      _
    // Predicated region
    $region66: #{tpu_custom_call.1} parent=1 // pred_check
      _
    $region67: #{tpu_custom_call.1} parent=1 // pred_check_branch
      %77 = sbr.rel (0) target = $region69
    $region68: #{tpu_custom_call.1} parent=1 // pred_region
      %78 = dma.done [#allocation9], 512
    $region69: #{tpu_custom_call.1} parent=1 // pred_fallthru
      _
    %p79 = scmp.eq.s32.totalorder 0, 0
    // Predicated region
    $region70: #{tpu_custom_call.1} parent=1 // pred_check
      %p80 = pneg %p79
    $region71: #{tpu_custom_call.1} parent=1 // pred_check_branch
      %82 = sbr.rel (%p80) target = $region73
    $region72: #{tpu_custom_call.1} parent=1 // pred_region
      %v83 = vld [vmem:[#allocation5] sm:$0xff]
      %v84 = vld [vmem:[%s1] sm:$0x1]
      %v85 = vld [vmem:[%s2] sm:$0x1]
      %vm86 = vcmask 261120
      %v87 = vsel %vm86, %v83, 0.0
      %88 = vadd.xlane.f32.xlu0 %v87
      %v89 = vpop.xlane.xlu0 %88
      %v90 = vrcp.pop 32.0
      %v91 = vmul.f32 %v89, %v90
      %v92 = vsub.f32 %v83, %v91
      %v93 = vmul.f32 %v92, %v92
      %v94 = vsel %vm86, %v93, 0.0
      %95 = vadd.xlane.f32.xlu0 %v94
      %v96 = vpop.xlane.xlu0 %95
      %v97 = vmul.f32 %v96, %v90
      %v98 = vadd.f32 %v97, 1e-05
      %v99 = vrsqrt.pop %v98
      %v100 = vmul.f32 %v92, %v99
      %v102 = vlaneseq
      %v103 = vshrl.u32 %v102, 7
      %v104 = vsub.s32 0, %v103
      %v105 = vrot.slane %v84, %v104
      %v107 = vmul.f32 %v100, %v105
      %v109 = vlaneseq
      %v110 = vshrl.u32 %v109, 7
      %v111 = vsub.s32 0, %v110
      %v112 = vrot.slane %v85, %v111
      %v114 = vadd.f32 %v107, %v112
      %v115 = vld [vmem:[%s3] sm:$0xff]
      %v116 = vld [vmem:[%s3 + $0x8] sm:$0xff]
      %v117 = vld [vmem:[%s3 + $0x10] sm:$0xff]
      %v118 = vld [vmem:[%s3 + $0x18] sm:$0xff]
      %v119 = vld [vmem:[%s4] sm:$0x1]
      %v121 = vlaneseq
      %v122 = vshrl.u32 %v121, 7
      %v123 = vsub.s32 0, %v122
      %v124 = vrot.slane %v119, %v123
      %v127 = vsel %vm86, %v114, 0
      %129 = vmatprep.subr.mxu0 0.0
      %130 = vmatpush1.msra.mxu0 0.0
      %131 = vmatprep.subr.mxu0 0.0
      %132 = vmatpush1.msra.mxu0 0.0
      %133 = vmatprep.subr.mxu0 0.0
      %134 = vmatpush1.msra.mxu0 0.0
      %135 = vmatprep.subr.mxu0 0.0
      %136 = vmatpush1.msra.mxu0 0.0
      %137 = vmatprep.subr.mxu0 0.0
      %138 = vmatpush1.msra.mxu0 0.0
      %139 = vmatprep.subr.mxu0 0.0
      %140 = vmatpush1.msra.mxu0 0.0
      %141 = vmatprep.subr.mxu0 0.0
      %142 = vmatpush1.msra.mxu0 0.0
      %143 = vmatprep.subr.mxu0 0.0
      %144 = vmatpush1.msra.mxu0 0.0
      %145 = vmatprep.subr.mxu0 0.0
      %146 = vmatpush1.msra.mxu0 0.0
      %147 = vmatprep.subr.mxu0 0.0
      %148 = vmatpush1.msra.mxu0 0.0
      %149 = vmatprep.subr.mxu0 0.0
      %150 = vmatpush1.msra.mxu0 0.0
      %151 = vmatprep.subr.mxu0 0.0
      %152 = vmatpush1.msra.mxu0 0.0
      %153 = vmatprep.subr.mxu0 0.0
      %154 = vmatpush1.msra.mxu0 %v118
      %155 = vmatprep.subr.mxu0 0.0
      %156 = vmatpush1.msra.mxu0 %v117
      %157 = vmatprep.subr.mxu0 0.0
      %158 = vmatpush1.msra.mxu0 %v116
      %159 = vmatprep.subr.mxu0 0.0
      %160 = vmatpush1.msra.mxu0 %v115
      %161 = vmatprep.subr.mxu0 0.0
      %162 = vmatpush2.msra.mxu0 0.0
      %163 = vmatprep.subr.mxu0 0.0
      %164 = vmatpush2.msra.mxu0 0.0
      %165 = vmatprep.subr.mxu0 0.0
      %166 = vmatpush2.msra.mxu0 0.0
      %167 = vmatprep.subr.mxu0 0.0
      %168 = vmatpush2.msra.mxu0 0.0
      %169 = vmatprep.subr.mxu0 0.0
      %170 = vmatpush2.msra.mxu0 0.0
      %171 = vmatprep.subr.mxu0 0.0
      %172 = vmatpush2.msra.mxu0 0.0
      %173 = vmatprep.subr.mxu0 0.0
      %174 = vmatpush2.msra.mxu0 0.0
      %175 = vmatprep.subr.mxu0 0.0
      %176 = vmatpush2.msra.mxu0 0.0
      %177 = vmatprep.subr.mxu0 0.0
      %178 = vmatpush2.msra.mxu0 0.0
      %179 = vmatprep.subr.mxu0 0.0
      %180 = vmatpush2.msra.mxu0 0.0
      %181 = vmatprep.subr.mxu0 0.0
      %182 = vmatpush2.msra.mxu0 0.0
      %183 = vmatprep.subr.mxu0 0.0
      %184 = vmatpush2.msra.mxu0 0.0
      %185 = vmatprep.subr.mxu0 0.0
      %186 = vmatpush2.msra.mxu0 0.0
      %187 = vmatprep.subr.mxu0 0.0
      %188 = vmatpush2.msra.mxu0 0.0
      %189 = vmatprep.subr.mxu0 0.0
      %190 = vmatpush2.msra.mxu0 0.0
      %191 = vmatprep.subr.mxu0 0.0
      %192 = vmatpush2.msra.mxu0 0.0
      %193 = vmatprep.mubr.f32.mxu0 0.0
      %194 = vmatmul.mubr.f32.gmra.mxu0 %v127
      %v195 = vpop.f32.mrf.mxu0
      %v196 = vadd.f32 %v124, %v195
      %v197 = vpop.f32.mrf.mxu0
      %198 = vdwg.mxu0
      %v199 = vld [vmem:[%s5] sm:$0xff]
      %v200 = vld [vmem:[%s5 + $0x8] sm:$0xff]
      %v201 = vld [vmem:[%s5 + $0x10] sm:$0xff]
      %v202 = vld [vmem:[%s5 + $0x18] sm:$0xff]
      %v203 = vld [vmem:[%s6] sm:$0x1]
      %v205 = vlaneseq
      %v206 = vshrl.u32 %v205, 7
      %v207 = vsub.s32 0, %v206
      %v208 = vrot.slane %v203, %v207
      %210 = vmatprep.subr.mxu0 0.0
      %211 = vmatpush1.msra.mxu0 0.0
      %212 = vmatprep.subr.mxu0 0.0
      %213 = vmatpush1.msra.mxu0 0.0
      %214 = vmatprep.subr.mxu0 0.0
      %215 = vmatpush1.msra.mxu0 0.0
      %216 = vmatprep.subr.mxu0 0.0
      %217 = vmatpush1.msra.mxu0 0.0
      %218 = vmatprep.subr.mxu0 0.0
      %219 = vmatpush1.msra.mxu0 0.0
      %220 = vmatprep.subr.mxu0 0.0
      %221 = vmatpush1.msra.mxu0 0.0
      %222 = vmatprep.subr.mxu0 0.0
      %223 = vmatpush1.msra.mxu0 0.0
      %224 = vmatprep.subr.mxu0 0.0
      %225 = vmatpush1.msra.mxu0 0.0
      %226 = vmatprep.subr.mxu0 0.0
      %227 = vmatpush1.msra.mxu0 0.0
      %228 = vmatprep.subr.mxu0 0.0
      %229 = vmatpush1.msra.mxu0 0.0
      %230 = vmatprep.subr.mxu0 0.0
      %231 = vmatpush1.msra.mxu0 0.0
      %232 = vmatprep.subr.mxu0 0.0
      %233 = vmatpush1.msra.mxu0 0.0
      %234 = vmatprep.subr.mxu0 0.0
      %235 = vmatpush1.msra.mxu0 %v202
      %236 = vmatprep.subr.mxu0 0.0
      %237 = vmatpush1.msra.mxu0 %v201
      %238 = vmatprep.subr.mxu0 0.0
      %239 = vmatpush1.msra.mxu0 %v200
      %240 = vmatprep.subr.mxu0 0.0
      %241 = vmatpush1.msra.mxu0 %v199
      %242 = vmatprep.subr.mxu0 0.0
      %243 = vmatpush2.msra.mxu0 0.0
      %244 = vmatprep.subr.mxu0 0.0
      %245 = vmatpush2.msra.mxu0 0.0
      %246 = vmatprep.subr.mxu0 0.0
      %247 = vmatpush2.msra.mxu0 0.0
      %248 = vmatprep.subr.mxu0 0.0
      %249 = vmatpush2.msra.mxu0 0.0
      %250 = vmatprep.subr.mxu0 0.0
      %251 = vmatpush2.msra.mxu0 0.0
      %252 = vmatprep.subr.mxu0 0.0
      %253 = vmatpush2.msra.mxu0 0.0
      %254 = vmatprep.subr.mxu0 0.0
      %255 = vmatpush2.msra.mxu0 0.0
      %256 = vmatprep.subr.mxu0 0.0
      %257 = vmatpush2.msra.mxu0 0.0
      %258 = vmatprep.subr.mxu0 0.0
      %259 = vmatpush2.msra.mxu0 0.0
      %260 = vmatprep.subr.mxu0 0.0
      %261 = vmatpush2.msra.mxu0 0.0
      %262 = vmatprep.subr.mxu0 0.0
      %263 = vmatpush2.msra.mxu0 0.0
      %264 = vmatprep.subr.mxu0 0.0
      %265 = vmatpush2.msra.mxu0 0.0
      %266 = vmatprep.subr.mxu0 0.0
      %267 = vmatpush2.msra.mxu0 0.0
      %268 = vmatprep.subr.mxu0 0.0
      %269 = vmatpush2.msra.mxu0 0.0
      %270 = vmatprep.subr.mxu0 0.0
      %271 = vmatpush2.msra.mxu0 0.0
      %272 = vmatprep.subr.mxu0 0.0
      %273 = vmatpush2.msra.mxu0 0.0
      %274 = vmatprep.mubr.f32.mxu0 0.0
      %275 = vmatmul.mubr.f32.gmra.mxu0 %v127
      %v276 = vpop.f32.mrf.mxu0
      %v277 = vadd.f32 %v208, %v276
      %v278 = vpop.f32.mrf.mxu0
      %279 = vdwg.mxu0
      %v280 = vmul.f32 %v277, 0.35355338
      %vm281 = vcmask 64512
      %v283 = vsel %vm281, %v196, 0
      %v286 = vsel %vm281, %v280, 0
      %288 = vmatprep.subr.mxu0 0.0
      %289 = vmatpush1.xpose.msra.mxu0 0.0
      %290 = vmatprep.subr.mxu0 0.0
      %291 = vmatpush1.xpose.msra.mxu0 0.0
      %292 = vmatprep.subr.mxu0 0.0
      %293 = vmatpush1.xpose.msra.mxu0 0.0
      %294 = vmatprep.subr.mxu0 0.0
      %295 = vmatpush1.xpose.msra.mxu0 0.0
      %296 = vmatprep.subr.mxu0 0.0
      %297 = vmatpush1.xpose.msra.mxu0 0.0
      %298 = vmatprep.subr.mxu0 0.0
      %299 = vmatpush1.xpose.msra.mxu0 0.0
      %300 = vmatprep.subr.mxu0 0.0
      %301 = vmatpush1.xpose.msra.mxu0 0.0
      %302 = vmatprep.subr.mxu0 0.0
      %303 = vmatpush1.xpose.msra.mxu0 0.0
      %304 = vmatprep.subr.mxu0 0.0
      %305 = vmatpush1.xpose.msra.mxu0 0.0
      %306 = vmatprep.subr.mxu0 0.0
      %307 = vmatpush1.xpose.msra.mxu0 0.0
      %308 = vmatprep.subr.mxu0 0.0
      %309 = vmatpush1.xpose.msra.mxu0 0.0
      %310 = vmatprep.subr.mxu0 0.0
      %311 = vmatpush1.xpose.msra.mxu0 0.0
      %312 = vmatprep.subr.mxu0 0.0
      %313 = vmatpush1.xpose.msra.mxu0 0.0
      %314 = vmatprep.subr.mxu0 0.0
      %315 = vmatpush1.xpose.msra.mxu0 0.0
      %316 = vmatprep.subr.mxu0 0.0
      %317 = vmatpush1.xpose.msra.mxu0 0.0
      %318 = vmatprep.subr.mxu0 0.0
      %319 = vmatpush1.xpose.msra.mxu0 %v286
      %320 = vmatprep.subr.mxu0 0.0
      %321 = vmatpush2.xpose.msra.mxu0 0.0
      %322 = vmatprep.subr.mxu0 0.0
      %323 = vmatpush2.xpose.msra.mxu0 0.0
      %324 = vmatprep.subr.mxu0 0.0
      %325 = vmatpush2.xpose.msra.mxu0 0.0
      %326 = vmatprep.subr.mxu0 0.0
      %327 = vmatpush2.xpose.msra.mxu0 0.0
      %328 = vmatprep.subr.mxu0 0.0
      %329 = vmatpush2.xpose.msra.mxu0 0.0
      %330 = vmatprep.subr.mxu0 0.0
      %331 = vmatpush2.xpose.msra.mxu0 0.0
      %332 = vmatprep.subr.mxu0 0.0
      %333 = vmatpush2.xpose.msra.mxu0 0.0
      %334 = vmatprep.subr.mxu0 0.0
      %335 = vmatpush2.xpose.msra.mxu0 0.0
      %336 = vmatprep.subr.mxu0 0.0
      %337 = vmatpush2.xpose.msra.mxu0 0.0
      %338 = vmatprep.subr.mxu0 0.0
      %339 = vmatpush2.xpose.msra.mxu0 0.0
      %340 = vmatprep.subr.mxu0 0.0
      %341 = vmatpush2.xpose.msra.mxu0 0.0
      %342 = vmatprep.subr.mxu0 0.0
      %343 = vmatpush2.xpose.msra.mxu0 0.0
      %344 = vmatprep.subr.mxu0 0.0
      %345 = vmatpush2.xpose.msra.mxu0 0.0
      %346 = vmatprep.subr.mxu0 0.0
      %347 = vmatpush2.xpose.msra.mxu0 0.0
      %348 = vmatprep.subr.mxu0 0.0
      %349 = vmatpush2.xpose.msra.mxu0 0.0
      %350 = vmatprep.subr.mxu0 0.0
      %351 = vmatpush2.xpose.msra.mxu0 0.0
      %352 = vmatprep.mubr.f32.mxu0 0.0
      %353 = vmatmul.mubr.f32.gmra.mxu0 %v283
      %v354 = vpop.f32.mrf.mxu0
      %v355 = vadd.f32 0.0, %v354
      %v356 = vpop.f32.mrf.mxu0
      %357 = vdwg.mxu0
      %v358 = vsel %vm281, %v355, -inf
      %359 = vmax.xlane.f32.xlu0 %v358
      %v360 = vpop.xlane.xlu0 %359
      %v361 = vsub.f32 %v355, %v360
      %v362 = vmul.f32 %v361, 1.442695
      %v363 = vpow.pop %v362
      %v364 = vsel %vm281, %v363, 0.0
      %365 = vadd.xlane.f32.xlu0 %v364
      %v366 = vpop.xlane.xlu0 %365
      %v367 = vrcp.pop %v366
      %v368 = vmul.f32 %v363, %v367
      %v370 = vsel %vm281, %v368, 0
      %372 = vmatprep.subr.mxu0 0.0
      %373 = vmatpush1.msra.mxu0 0.0
      %374 = vmatprep.subr.mxu0 0.0
      %375 = vmatpush1.msra.mxu0 0.0
      %376 = vmatprep.subr.mxu0 0.0
      %377 = vmatpush1.msra.mxu0 0.0
      %378 = vmatprep.subr.mxu0 0.0
      %379 = vmatpush1.msra.mxu0 0.0
      %380 = vmatprep.subr.mxu0 0.0
      %381 = vmatpush1.msra.mxu0 0.0
      %382 = vmatprep.subr.mxu0 0.0
      %383 = vmatpush1.msra.mxu0 0.0
      %384 = vmatprep.subr.mxu0 0.0
      %385 = vmatpush1.msra.mxu0 0.0
      %386 = vmatprep.subr.mxu0 0.0
      %387 = vmatpush1.msra.mxu0 0.0
      %388 = vmatprep.subr.mxu0 0.0
      %389 = vmatpush1.msra.mxu0 0.0
      %390 = vmatprep.subr.mxu0 0.0
      %391 = vmatpush1.msra.mxu0 0.0
      %392 = vmatprep.subr.mxu0 0.0
      %393 = vmatpush1.msra.mxu0 0.0
      %394 = vmatprep.subr.mxu0 0.0
      %395 = vmatpush1.msra.mxu0 0.0
      %396 = vmatprep.subr.mxu0 0.0
      %397 = vmatpush1.msra.mxu0 0.0
      %398 = vmatprep.subr.mxu0 0.0
      %399 = vmatpush1.msra.mxu0 0.0
      %400 = vmatprep.subr.mxu0 0.0
      %401 = vmatpush1.msra.mxu0 0.0
      %402 = vmatprep.subr.mxu0 0.0
      %403 = vmatpush1.msra.mxu0 %v196
      %404 = vmatprep.subr.mxu0 0.0
      %405 = vmatpush2.msra.mxu0 0.0
      %406 = vmatprep.subr.mxu0 0.0
      %407 = vmatpush2.msra.mxu0 0.0
      %408 = vmatprep.subr.mxu0 0.0
      %409 = vmatpush2.msra.mxu0 0.0
      %410 = vmatprep.subr.mxu0 0.0
      %411 = vmatpush2.msra.mxu0 0.0
      %412 = vmatprep.subr.mxu0 0.0
      %413 = vmatpush2.msra.mxu0 0.0
      %414 = vmatprep.subr.mxu0 0.0
      %415 = vmatpush2.msra.mxu0 0.0
      %416 = vmatprep.subr.mxu0 0.0
      %417 = vmatpush2.msra.mxu0 0.0
      %418 = vmatprep.subr.mxu0 0.0
      %419 = vmatpush2.msra.mxu0 0.0
      %420 = vmatprep.subr.mxu0 0.0
      %421 = vmatpush2.msra.mxu0 0.0
      %422 = vmatprep.subr.mxu0 0.0
      %423 = vmatpush2.msra.mxu0 0.0
      %424 = vmatprep.subr.mxu0 0.0
      %425 = vmatpush2.msra.mxu0 0.0
      %426 = vmatprep.subr.mxu0 0.0
      %427 = vmatpush2.msra.mxu0 0.0
      %428 = vmatprep.subr.mxu0 0.0
      %429 = vmatpush2.msra.mxu0 0.0
      %430 = vmatprep.subr.mxu0 0.0
      %431 = vmatpush2.msra.mxu0 0.0
      %432 = vmatprep.subr.mxu0 0.0
      %433 = vmatpush2.msra.mxu0 0.0
      %434 = vmatprep.subr.mxu0 0.0
      %435 = vmatpush2.msra.mxu0 0.0
      %436 = vmatprep.mubr.f32.mxu0 0.0
      %437 = vmatmul.mubr.f32.gmra.mxu0 %v370
      %v438 = vpop.f32.mrf.mxu0
      %v439 = vadd.f32 0.0, %v438
      %v440 = vpop.f32.mrf.mxu0
      %441 = vdwg.mxu0
      %442 = vst.msk [vmem:[#allocation4] sm:$0xff] %vm281, %v439
      %443 = vrot.lane.b32.xlu0 %v196, 120
      %v444 = vpop.permute.xlu0 %443
      %445 = vrot.lane.b32.xlu0 %v280, 120
      %v446 = vpop.permute.xlu0 %445
      %v447 = vsel %vm281, %v444, 0
      %v449 = vsel %vm281, %v446, 0
      %451 = vmatprep.subr.mxu0 0.0
      %452 = vmatpush1.xpose.msra.mxu0 0.0
      %453 = vmatprep.subr.mxu0 0.0
      %454 = vmatpush1.xpose.msra.mxu0 0.0
      %455 = vmatprep.subr.mxu0 0.0
      %456 = vmatpush1.xpose.msra.mxu0 0.0
      %457 = vmatprep.subr.mxu0 0.0
      %458 = vmatpush1.xpose.msra.mxu0 0.0
      %459 = vmatprep.subr.mxu0 0.0
      %460 = vmatpush1.xpose.msra.mxu0 0.0
      %461 = vmatprep.subr.mxu0 0.0
      %462 = vmatpush1.xpose.msra.mxu0 0.0
      %463 = vmatprep.subr.mxu0 0.0
      %464 = vmatpush1.xpose.msra.mxu0 0.0
      %465 = vmatprep.subr.mxu0 0.0
      %466 = vmatpush1.xpose.msra.mxu0 0.0
      %467 = vmatprep.subr.mxu0 0.0
      %468 = vmatpush1.xpose.msra.mxu0 0.0
      %469 = vmatprep.subr.mxu0 0.0
      %470 = vmatpush1.xpose.msra.mxu0 0.0
      %471 = vmatprep.subr.mxu0 0.0
      %472 = vmatpush1.xpose.msra.mxu0 0.0
      %473 = vmatprep.subr.mxu0 0.0
      %474 = vmatpush1.xpose.msra.mxu0 0.0
      %475 = vmatprep.subr.mxu0 0.0
      %476 = vmatpush1.xpose.msra.mxu0 0.0
      %477 = vmatprep.subr.mxu0 0.0
      %478 = vmatpush1.xpose.msra.mxu0 0.0
      %479 = vmatprep.subr.mxu0 0.0
      %480 = vmatpush1.xpose.msra.mxu0 0.0
      %481 = vmatprep.subr.mxu0 0.0
      %482 = vmatpush1.xpose.msra.mxu0 %v449
      %483 = vmatprep.subr.mxu0 0.0
      %484 = vmatpush2.xpose.msra.mxu0 0.0
      %485 = vmatprep.subr.mxu0 0.0
      %486 = vmatpush2.xpose.msra.mxu0 0.0
      %487 = vmatprep.subr.mxu0 0.0
      %488 = vmatpush2.xpose.msra.mxu0 0.0
      %489 = vmatprep.subr.mxu0 0.0
      %490 = vmatpush2.xpose.msra.mxu0 0.0
      %491 = vmatprep.subr.mxu0 0.0
      %492 = vmatpush2.xpose.msra.mxu0 0.0
      %493 = vmatprep.subr.mxu0 0.0
      %494 = vmatpush2.xpose.msra.mxu0 0.0
      %495 = vmatprep.subr.mxu0 0.0
      %496 = vmatpush2.xpose.msra.mxu0 0.0
      %497 = vmatprep.subr.mxu0 0.0
      %498 = vmatpush2.xpose.msra.mxu0 0.0
      %499 = vmatprep.subr.mxu0 0.0
      %500 = vmatpush2.xpose.msra.mxu0 0.0
      %501 = vmatprep.subr.mxu0 0.0
      %502 = vmatpush2.xpose.msra.mxu0 0.0
      %503 = vmatprep.subr.mxu0 0.0
      %504 = vmatpush2.xpose.msra.mxu0 0.0
      %505 = vmatprep.subr.mxu0 0.0
      %506 = vmatpush2.xpose.msra.mxu0 0.0
      %507 = vmatprep.subr.mxu0 0.0
      %508 = vmatpush2.xpose.msra.mxu0 0.0
      %509 = vmatprep.subr.mxu0 0.0
      %510 = vmatpush2.xpose.msra.mxu0 0.0
      %511 = vmatprep.subr.mxu0 0.0
      %512 = vmatpush2.xpose.msra.mxu0 0.0
      %513 = vmatprep.subr.mxu0 0.0
      %514 = vmatpush2.xpose.msra.mxu0 0.0
      %515 = vmatprep.mubr.f32.mxu0 0.0
      %516 = vmatmul.mubr.f32.gmra.mxu0 %v447
      %v517 = vpop.f32.mrf.mxu0
      %v518 = vadd.f32 0.0, %v517
      %v519 = vpop.f32.mrf.mxu0
      %520 = vdwg.mxu0
      %v521 = vsel %vm281, %v518, -inf
      %522 = vmax.xlane.f32.xlu0 %v521
      %v523 = vpop.xlane.xlu0 %522
      %v524 = vsub.f32 %v518, %v523
      %v525 = vmul.f32 %v524, 1.442695
      %v526 = vpow.pop %v525
      %v527 = vsel %vm281, %v526, 0.0
      %528 = vadd.xlane.f32.xlu0 %v527
      %v529 = vpop.xlane.xlu0 %528
      %v530 = vrcp.pop %v529
      %v531 = vmul.f32 %v526, %v530
      %v534 = vsel %vm281, %v531, 0
      %536 = vmatprep.subr.mxu0 0.0
      %537 = vmatpush1.msra.mxu0 0.0
      %538 = vmatprep.subr.mxu0 0.0
      %539 = vmatpush1.msra.mxu0 0.0
      %540 = vmatprep.subr.mxu0 0.0
      %541 = vmatpush1.msra.mxu0 0.0
      %542 = vmatprep.subr.mxu0 0.0
      %543 = vmatpush1.msra.mxu0 0.0
      %544 = vmatprep.subr.mxu0 0.0
      %545 = vmatpush1.msra.mxu0 0.0
      %546 = vmatprep.subr.mxu0 0.0
      %547 = vmatpush1.msra.mxu0 0.0
      %548 = vmatprep.subr.mxu0 0.0
      %549 = vmatpush1.msra.mxu0 0.0
      %550 = vmatprep.subr.mxu0 0.0
      %551 = vmatpush1.msra.mxu0 0.0
      %552 = vmatprep.subr.mxu0 0.0
      %553 = vmatpush1.msra.mxu0 0.0
      %554 = vmatprep.subr.mxu0 0.0
      %555 = vmatpush1.msra.mxu0 0.0
      %556 = vmatprep.subr.mxu0 0.0
      %557 = vmatpush1.msra.mxu0 0.0
      %558 = vmatprep.subr.mxu0 0.0
      %559 = vmatpush1.msra.mxu0 0.0
      %560 = vmatprep.subr.mxu0 0.0
      %561 = vmatpush1.msra.mxu0 0.0
      %562 = vmatprep.subr.mxu0 0.0
      %563 = vmatpush1.msra.mxu0 0.0
      %564 = vmatprep.subr.mxu0 0.0
      %565 = vmatpush1.msra.mxu0 0.0
      %566 = vmatprep.subr.mxu0 0.0
      %567 = vmatpush1.msra.mxu0 %v444
      %568 = vmatprep.subr.mxu0 0.0
      %569 = vmatpush2.msra.mxu0 0.0
      %570 = vmatprep.subr.mxu0 0.0
      %571 = vmatpush2.msra.mxu0 0.0
      %572 = vmatprep.subr.mxu0 0.0
      %573 = vmatpush2.msra.mxu0 0.0
      %574 = vmatprep.subr.mxu0 0.0
      %575 = vmatpush2.msra.mxu0 0.0
      %576 = vmatprep.subr.mxu0 0.0
      %577 = vmatpush2.msra.mxu0 0.0
      %578 = vmatprep.subr.mxu0 0.0
      %579 = vmatpush2.msra.mxu0 0.0
      %580 = vmatprep.subr.mxu0 0.0
      %581 = vmatpush2.msra.mxu0 0.0
      %582 = vmatprep.subr.mxu0 0.0
      %583 = vmatpush2.msra.mxu0 0.0
      %584 = vmatprep.subr.mxu0 0.0
      %585 = vmatpush2.msra.mxu0 0.0
      %586 = vmatprep.subr.mxu0 0.0
      %587 = vmatpush2.msra.mxu0 0.0
      %588 = vmatprep.subr.mxu0 0.0
      %589 = vmatpush2.msra.mxu0 0.0
      %590 = vmatprep.subr.mxu0 0.0
      %591 = vmatpush2.msra.mxu0 0.0
      %592 = vmatprep.subr.mxu0 0.0
      %593 = vmatpush2.msra.mxu0 0.0
      %594 = vmatprep.subr.mxu0 0.0
      %595 = vmatpush2.msra.mxu0 0.0
      %596 = vmatprep.subr.mxu0 0.0
      %597 = vmatpush2.msra.mxu0 0.0
      %598 = vmatprep.subr.mxu0 0.0
      %599 = vmatpush2.msra.mxu0 0.0
      %600 = vmatprep.mubr.f32.mxu0 0.0
      %601 = vmatmul.mubr.f32.gmra.mxu0 %v534
      %v602 = vpop.f32.mrf.mxu0
      %v603 = vadd.f32 0.0, %v602
      %v604 = vpop.f32.mrf.mxu0
      %605 = vdwg.mxu0
      %607 = vrot.lane.b32.xlu0 %v603, 8
      %v608 = vpop.permute.xlu0 %607
      %vm610 = vcmask 130112
      %611 = vst.msk [vmem:[#allocation4] sm:$0xff] %vm610, %v608
      %612 = vrot.lane.b32.xlu0 %v196, 112
      %v613 = vpop.permute.xlu0 %612
      %614 = vrot.lane.b32.xlu0 %v280, 112
      %v615 = vpop.permute.xlu0 %614
      %v616 = vsel %vm281, %v613, 0
      %v618 = vsel %vm281, %v615, 0
      %620 = vmatprep.subr.mxu0 0.0
      %621 = vmatpush1.xpose.msra.mxu0 0.0
      %622 = vmatprep.subr.mxu0 0.0
      %623 = vmatpush1.xpose.msra.mxu0 0.0
      %624 = vmatprep.subr.mxu0 0.0
      %625 = vmatpush1.xpose.msra.mxu0 0.0
      %626 = vmatprep.subr.mxu0 0.0
      %627 = vmatpush1.xpose.msra.mxu0 0.0
      %628 = vmatprep.subr.mxu0 0.0
      %629 = vmatpush1.xpose.msra.mxu0 0.0
      %630 = vmatprep.subr.mxu0 0.0
      %631 = vmatpush1.xpose.msra.mxu0 0.0
      %632 = vmatprep.subr.mxu0 0.0
      %633 = vmatpush1.xpose.msra.mxu0 0.0
      %634 = vmatprep.subr.mxu0 0.0
      %635 = vmatpush1.xpose.msra.mxu0 0.0
      %636 = vmatprep.subr.mxu0 0.0
      %637 = vmatpush1.xpose.msra.mxu0 0.0
      %638 = vmatprep.subr.mxu0 0.0
      %639 = vmatpush1.xpose.msra.mxu0 0.0
      %640 = vmatprep.subr.mxu0 0.0
      %641 = vmatpush1.xpose.msra.mxu0 0.0
      %642 = vmatprep.subr.mxu0 0.0
      %643 = vmatpush1.xpose.msra.mxu0 0.0
      %644 = vmatprep.subr.mxu0 0.0
      %645 = vmatpush1.xpose.msra.mxu0 0.0
      %646 = vmatprep.subr.mxu0 0.0
      %647 = vmatpush1.xpose.msra.mxu0 0.0
      %648 = vmatprep.subr.mxu0 0.0
      %649 = vmatpush1.xpose.msra.mxu0 0.0
      %650 = vmatprep.subr.mxu0 0.0
      %651 = vmatpush1.xpose.msra.mxu0 %v618
      %652 = vmatprep.subr.mxu0 0.0
      %653 = vmatpush2.xpose.msra.mxu0 0.0
      %654 = vmatprep.subr.mxu0 0.0
      %655 = vmatpush2.xpose.msra.mxu0 0.0
      %656 = vmatprep.subr.mxu0 0.0
      %657 = vmatpush2.xpose.msra.mxu0 0.0
      %658 = vmatprep.subr.mxu0 0.0
      %659 = vmatpush2.xpose.msra.mxu0 0.0
      %660 = vmatprep.subr.mxu0 0.0
      %661 = vmatpush2.xpose.msra.mxu0 0.0
      %662 = vmatprep.subr.mxu0 0.0
      %663 = vmatpush2.xpose.msra.mxu0 0.0
      %664 = vmatprep.subr.mxu0 0.0
      %665 = vmatpush2.xpose.msra.mxu0 0.0
      %666 = vmatprep.subr.mxu0 0.0
      %667 = vmatpush2.xpose.msra.mxu0 0.0
      %668 = vmatprep.subr.mxu0 0.0
      %669 = vmatpush2.xpose.msra.mxu0 0.0
      %670 = vmatprep.subr.mxu0 0.0
      %671 = vmatpush2.xpose.msra.mxu0 0.0
      %672 = vmatprep.subr.mxu0 0.0
      %673 = vmatpush2.xpose.msra.mxu0 0.0
      %674 = vmatprep.subr.mxu0 0.0
      %675 = vmatpush2.xpose.msra.mxu0 0.0
      %676 = vmatprep.subr.mxu0 0.0
      %677 = vmatpush2.xpose.msra.mxu0 0.0
      %678 = vmatprep.subr.mxu0 0.0
      %679 = vmatpush2.xpose.msra.mxu0 0.0
      %680 = vmatprep.subr.mxu0 0.0
      %681 = vmatpush2.xpose.msra.mxu0 0.0
      %682 = vmatprep.subr.mxu0 0.0
      %683 = vmatpush2.xpose.msra.mxu0 0.0
      %684 = vmatprep.mubr.f32.mxu0 0.0
      %685 = vmatmul.mubr.f32.gmra.mxu0 %v616
      %v686 = vpop.f32.mrf.mxu0
      %v687 = vadd.f32 0.0, %v686
      %v688 = vpop.f32.mrf.mxu0
      %689 = vdwg.mxu0
      %v690 = vsel %vm281, %v687, -inf
      %691 = vmax.xlane.f32.xlu0 %v690
      %v692 = vpop.xlane.xlu0 %691
      %v693 = vsub.f32 %v687, %v692
      %v694 = vmul.f32 %v693, 1.442695
      %v695 = vpow.pop %v694
      %v696 = vsel %vm281, %v695, 0.0
      %697 = vadd.xlane.f32.xlu0 %v696
      %v698 = vpop.xlane.xlu0 %697
      %v699 = vrcp.pop %v698
      %v700 = vmul.f32 %v695, %v699
      %v703 = vsel %vm281, %v700, 0
      %705 = vmatprep.subr.mxu0 0.0
      %706 = vmatpush1.msra.mxu0 0.0
      %707 = vmatprep.subr.mxu0 0.0
      %708 = vmatpush1.msra.mxu0 0.0
      %709 = vmatprep.subr.mxu0 0.0
      %710 = vmatpush1.msra.mxu0 0.0
      %711 = vmatprep.subr.mxu0 0.0
      %712 = vmatpush1.msra.mxu0 0.0
      %713 = vmatprep.subr.mxu0 0.0
      %714 = vmatpush1.msra.mxu0 0.0
      %715 = vmatprep.subr.mxu0 0.0
      %716 = vmatpush1.msra.mxu0 0.0
      %717 = vmatprep.subr.mxu0 0.0
      %718 = vmatpush1.msra.mxu0 0.0
      %719 = vmatprep.subr.mxu0 0.0
      %720 = vmatpush1.msra.mxu0 0.0
      %721 = vmatprep.subr.mxu0 0.0
      %722 = vmatpush1.msra.mxu0 0.0
      %723 = vmatprep.subr.mxu0 0.0
      %724 = vmatpush1.msra.mxu0 0.0
      %725 = vmatprep.subr.mxu0 0.0
      %726 = vmatpush1.msra.mxu0 0.0
      %727 = vmatprep.subr.mxu0 0.0
      %728 = vmatpush1.msra.mxu0 0.0
      %729 = vmatprep.subr.mxu0 0.0
      %730 = vmatpush1.msra.mxu0 0.0
      %731 = vmatprep.subr.mxu0 0.0
      %732 = vmatpush1.msra.mxu0 0.0
      %733 = vmatprep.subr.mxu0 0.0
      %734 = vmatpush1.msra.mxu0 0.0
      %735 = vmatprep.subr.mxu0 0.0
      %736 = vmatpush1.msra.mxu0 %v613
      %737 = vmatprep.subr.mxu0 0.0
      %738 = vmatpush2.msra.mxu0 0.0
      %739 = vmatprep.subr.mxu0 0.0
      %740 = vmatpush2.msra.mxu0 0.0
      %741 = vmatprep.subr.mxu0 0.0
      %742 = vmatpush2.msra.mxu0 0.0
      %743 = vmatprep.subr.mxu0 0.0
      %744 = vmatpush2.msra.mxu0 0.0
      %745 = vmatprep.subr.mxu0 0.0
      %746 = vmatpush2.msra.mxu0 0.0
      %747 = vmatprep.subr.mxu0 0.0
      %748 = vmatpush2.msra.mxu0 0.0
      %749 = vmatprep.subr.mxu0 0.0
      %750 = vmatpush2.msra.mxu0 0.0
      %751 = vmatprep.subr.mxu0 0.0
      %752 = vmatpush2.msra.mxu0 0.0
      %753 = vmatprep.subr.mxu0 0.0
      %754 = vmatpush2.msra.mxu0 0.0
      %755 = vmatprep.subr.mxu0 0.0
      %756 = vmatpush2.msra.mxu0 0.0
      %757 = vmatprep.subr.mxu0 0.0
      %758 = vmatpush2.msra.mxu0 0.0
      %759 = vmatprep.subr.mxu0 0.0
      %760 = vmatpush2.msra.mxu0 0.0
      %761 = vmatprep.subr.mxu0 0.0
      %762 = vmatpush2.msra.mxu0 0.0
      %763 = vmatprep.subr.mxu0 0.0
      %764 = vmatpush2.msra.mxu0 0.0
      %765 = vmatprep.subr.mxu0 0.0
      %766 = vmatpush2.msra.mxu0 0.0
      %767 = vmatprep.subr.mxu0 0.0
      %768 = vmatpush2.msra.mxu0 0.0
      %769 = vmatprep.mubr.f32.mxu0 0.0
      %770 = vmatmul.mubr.f32.gmra.mxu0 %v703
      %v771 = vpop.f32.mrf.mxu0
      %v772 = vadd.f32 0.0, %v771
      %v773 = vpop.f32.mrf.mxu0
      %774 = vdwg.mxu0
      %776 = vrot.lane.b32.xlu0 %v772, 16
      %v777 = vpop.permute.xlu0 %776
      %vm779 = vcmask 195712
      %780 = vst.msk [vmem:[#allocation4] sm:$0xff] %vm779, %v777
      %781 = vrot.lane.b32.xlu0 %v196, 104
      %v782 = vpop.permute.xlu0 %781
      %783 = vrot.lane.b32.xlu0 %v280, 104
      %v784 = vpop.permute.xlu0 %783
      %v785 = vsel %vm281, %v782, 0
      %v787 = vsel %vm281, %v784, 0
      %789 = vmatprep.subr.mxu0 0.0
      %790 = vmatpush1.xpose.msra.mxu0 0.0
      %791 = vmatprep.subr.mxu0 0.0
      %792 = vmatpush1.xpose.msra.mxu0 0.0
      %793 = vmatprep.subr.mxu0 0.0
      %794 = vmatpush1.xpose.msra.mxu0 0.0
      %795 = vmatprep.subr.mxu0 0.0
      %796 = vmatpush1.xpose.msra.mxu0 0.0
      %797 = vmatprep.subr.mxu0 0.0
      %798 = vmatpush1.xpose.msra.mxu0 0.0
      %799 = vmatprep.subr.mxu0 0.0
      %800 = vmatpush1.xpose.msra.mxu0 0.0
      %801 = vmatprep.subr.mxu0 0.0
      %802 = vmatpush1.xpose.msra.mxu0 0.0
      %803 = vmatprep.subr.mxu0 0.0
      %804 = vmatpush1.xpose.msra.mxu0 0.0
      %805 = vmatprep.subr.mxu0 0.0
      %806 = vmatpush1.xpose.msra.mxu0 0.0
      %807 = vmatprep.subr.mxu0 0.0
      %808 = vmatpush1.xpose.msra.mxu0 0.0
      %809 = vmatprep.subr.mxu0 0.0
      %810 = vmatpush1.xpose.msra.mxu0 0.0
      %811 = vmatprep.subr.mxu0 0.0
      %812 = vmatpush1.xpose.msra.mxu0 0.0
      %813 = vmatprep.subr.mxu0 0.0
      %814 = vmatpush1.xpose.msra.mxu0 0.0
      %815 = vmatprep.subr.mxu0 0.0
      %816 = vmatpush1.xpose.msra.mxu0 0.0
      %817 = vmatprep.subr.mxu0 0.0
      %818 = vmatpush1.xpose.msra.mxu0 0.0
      %819 = vmatprep.subr.mxu0 0.0
      %820 = vmatpush1.xpose.msra.mxu0 %v787
      %821 = vmatprep.subr.mxu0 0.0
      %822 = vmatpush2.xpose.msra.mxu0 0.0
      %823 = vmatprep.subr.mxu0 0.0
      %824 = vmatpush2.xpose.msra.mxu0 0.0
      %825 = vmatprep.subr.mxu0 0.0
      %826 = vmatpush2.xpose.msra.mxu0 0.0
      %827 = vmatprep.subr.mxu0 0.0
      %828 = vmatpush2.xpose.msra.mxu0 0.0
      %829 = vmatprep.subr.mxu0 0.0
      %830 = vmatpush2.xpose.msra.mxu0 0.0
      %831 = vmatprep.subr.mxu0 0.0
      %832 = vmatpush2.xpose.msra.mxu0 0.0
      %833 = vmatprep.subr.mxu0 0.0
      %834 = vmatpush2.xpose.msra.mxu0 0.0
      %835 = vmatprep.subr.mxu0 0.0
      %836 = vmatpush2.xpose.msra.mxu0 0.0
      %837 = vmatprep.subr.mxu0 0.0
      %838 = vmatpush2.xpose.msra.mxu0 0.0
      %839 = vmatprep.subr.mxu0 0.0
      %840 = vmatpush2.xpose.msra.mxu0 0.0
      %841 = vmatprep.subr.mxu0 0.0
      %842 = vmatpush2.xpose.msra.mxu0 0.0
      %843 = vmatprep.subr.mxu0 0.0
      %844 = vmatpush2.xpose.msra.mxu0 0.0
      %845 = vmatprep.subr.mxu0 0.0
      %846 = vmatpush2.xpose.msra.mxu0 0.0
      %847 = vmatprep.subr.mxu0 0.0
      %848 = vmatpush2.xpose.msra.mxu0 0.0
      %849 = vmatprep.subr.mxu0 0.0
      %850 = vmatpush2.xpose.msra.mxu0 0.0
      %851 = vmatprep.subr.mxu0 0.0
      %852 = vmatpush2.xpose.msra.mxu0 0.0
      %853 = vmatprep.mubr.f32.mxu0 0.0
      %854 = vmatmul.mubr.f32.gmra.mxu0 %v785
      %v855 = vpop.f32.mrf.mxu0
      %v856 = vadd.f32 0.0, %v855
      %v857 = vpop.f32.mrf.mxu0
      %858 = vdwg.mxu0
      %v859 = vsel %vm281, %v856, -inf
      %860 = vmax.xlane.f32.xlu0 %v859
      %v861 = vpop.xlane.xlu0 %860
      %v862 = vsub.f32 %v856, %v861
      %v863 = vmul.f32 %v862, 1.442695
      %v864 = vpow.pop %v863
      %v865 = vsel %vm281, %v864, 0.0
      %866 = vadd.xlane.f32.xlu0 %v865
      %v867 = vpop.xlane.xlu0 %866
      %v868 = vrcp.pop %v867
      %v869 = vmul.f32 %v864, %v868
      %v872 = vsel %vm281, %v869, 0
      %874 = vmatprep.subr.mxu0 0.0
      %875 = vmatpush1.msra.mxu0 0.0
      %876 = vmatprep.subr.mxu0 0.0
      %877 = vmatpush1.msra.mxu0 0.0
      %878 = vmatprep.subr.mxu0 0.0
      %879 = vmatpush1.msra.mxu0 0.0
      %880 = vmatprep.subr.mxu0 0.0
      %881 = vmatpush1.msra.mxu0 0.0
      %882 = vmatprep.subr.mxu0 0.0
      %883 = vmatpush1.msra.mxu0 0.0
      %884 = vmatprep.subr.mxu0 0.0
      %885 = vmatpush1.msra.mxu0 0.0
      %886 = vmatprep.subr.mxu0 0.0
      %887 = vmatpush1.msra.mxu0 0.0
      %888 = vmatprep.subr.mxu0 0.0
      %889 = vmatpush1.msra.mxu0 0.0
      %890 = vmatprep.subr.mxu0 0.0
      %891 = vmatpush1.msra.mxu0 0.0
      %892 = vmatprep.subr.mxu0 0.0
      %893 = vmatpush1.msra.mxu0 0.0
      %894 = vmatprep.subr.mxu0 0.0
      %895 = vmatpush1.msra.mxu0 0.0
      %896 = vmatprep.subr.mxu0 0.0
      %897 = vmatpush1.msra.mxu0 0.0
      %898 = vmatprep.subr.mxu0 0.0
      %899 = vmatpush1.msra.mxu0 0.0
      %900 = vmatprep.subr.mxu0 0.0
      %901 = vmatpush1.msra.mxu0 0.0
      %902 = vmatprep.subr.mxu0 0.0
      %903 = vmatpush1.msra.mxu0 0.0
      %904 = vmatprep.subr.mxu0 0.0
      %905 = vmatpush1.msra.mxu0 %v782
      %906 = vmatprep.subr.mxu0 0.0
      %907 = vmatpush2.msra.mxu0 0.0
      %908 = vmatprep.subr.mxu0 0.0
      %909 = vmatpush2.msra.mxu0 0.0
      %910 = vmatprep.subr.mxu0 0.0
      %911 = vmatpush2.msra.mxu0 0.0
      %912 = vmatprep.subr.mxu0 0.0
      %913 = vmatpush2.msra.mxu0 0.0
      %914 = vmatprep.subr.mxu0 0.0
      %915 = vmatpush2.msra.mxu0 0.0
      %916 = vmatprep.subr.mxu0 0.0
      %917 = vmatpush2.msra.mxu0 0.0
      %918 = vmatprep.subr.mxu0 0.0
      %919 = vmatpush2.msra.mxu0 0.0
      %920 = vmatprep.subr.mxu0 0.0
      %921 = vmatpush2.msra.mxu0 0.0
      %922 = vmatprep.subr.mxu0 0.0
      %923 = vmatpush2.msra.mxu0 0.0
      %924 = vmatprep.subr.mxu0 0.0
      %925 = vmatpush2.msra.mxu0 0.0
      %926 = vmatprep.subr.mxu0 0.0
      %927 = vmatpush2.msra.mxu0 0.0
      %928 = vmatprep.subr.mxu0 0.0
      %929 = vmatpush2.msra.mxu0 0.0
      %930 = vmatprep.subr.mxu0 0.0
      %931 = vmatpush2.msra.mxu0 0.0
      %932 = vmatprep.subr.mxu0 0.0
      %933 = vmatpush2.msra.mxu0 0.0
      %934 = vmatprep.subr.mxu0 0.0
      %935 = vmatpush2.msra.mxu0 0.0
      %936 = vmatprep.subr.mxu0 0.0
      %937 = vmatpush2.msra.mxu0 0.0
      %938 = vmatprep.mubr.f32.mxu0 0.0
      %939 = vmatmul.mubr.f32.gmra.mxu0 %v872
      %v940 = vpop.f32.mrf.mxu0
      %v941 = vadd.f32 0.0, %v940
      %v942 = vpop.f32.mrf.mxu0
      %943 = vdwg.mxu0
      %945 = vrot.lane.b32.xlu0 %v941, 24
      %v946 = vpop.permute.xlu0 %945
      %vm948 = vcmask 261312
      %949 = vst.msk [vmem:[#allocation4] sm:$0xff] %vm948, %v946
      %v950 = vld [vmem:[#allocation4] sm:$0xff]
      %v951 = vld [vmem:[%s7] sm:$0xff]
      %v952 = vld [vmem:[%s7 + $0x8] sm:$0xff]
      %v953 = vld [vmem:[%s7 + $0x10] sm:$0xff]
      %v954 = vld [vmem:[%s7 + $0x18] sm:$0xff]
      %v955 = vld [vmem:[%s8] sm:$0x1]
      %v957 = vlaneseq
      %v958 = vshrl.u32 %v957, 7
      %v959 = vsub.s32 0, %v958
      %v960 = vrot.slane %v955, %v959
      %v963 = vsel %vm86, %v950, 0
      %965 = vmatprep.subr.mxu0 0.0
      %966 = vmatpush1.msra.mxu0 0.0
      %967 = vmatprep.subr.mxu0 0.0
      %968 = vmatpush1.msra.mxu0 0.0
      %969 = vmatprep.subr.mxu0 0.0
      %970 = vmatpush1.msra.mxu0 0.0
      %971 = vmatprep.subr.mxu0 0.0
      %972 = vmatpush1.msra.mxu0 0.0
      %973 = vmatprep.subr.mxu0 0.0
      %974 = vmatpush1.msra.mxu0 0.0
      %975 = vmatprep.subr.mxu0 0.0
      %976 = vmatpush1.msra.mxu0 0.0
      %977 = vmatprep.subr.mxu0 0.0
      %978 = vmatpush1.msra.mxu0 0.0
      %979 = vmatprep.subr.mxu0 0.0
      %980 = vmatpush1.msra.mxu0 0.0
      %981 = vmatprep.subr.mxu0 0.0
      %982 = vmatpush1.msra.mxu0 0.0
      %983 = vmatprep.subr.mxu0 0.0
      %984 = vmatpush1.msra.mxu0 0.0
      %985 = vmatprep.subr.mxu0 0.0
      %986 = vmatpush1.msra.mxu0 0.0
      %987 = vmatprep.subr.mxu0 0.0
      %988 = vmatpush1.msra.mxu0 0.0
      %989 = vmatprep.subr.mxu0 0.0
      %990 = vmatpush1.msra.mxu0 %v954
      %991 = vmatprep.subr.mxu0 0.0
      %992 = vmatpush1.msra.mxu0 %v953
      %993 = vmatprep.subr.mxu0 0.0
      %994 = vmatpush1.msra.mxu0 %v952
      %995 = vmatprep.subr.mxu0 0.0
      %996 = vmatpush1.msra.mxu0 %v951
      %997 = vmatprep.subr.mxu0 0.0
      %998 = vmatpush2.msra.mxu0 0.0
      %999 = vmatprep.subr.mxu0 0.0
      %1000 = vmatpush2.msra.mxu0 0.0
      %1001 = vmatprep.subr.mxu0 0.0
      %1002 = vmatpush2.msra.mxu0 0.0
      %1003 = vmatprep.subr.mxu0 0.0
      %1004 = vmatpush2.msra.mxu0 0.0
      %1005 = vmatprep.subr.mxu0 0.0
      %1006 = vmatpush2.msra.mxu0 0.0
      %1007 = vmatprep.subr.mxu0 0.0
      %1008 = vmatpush2.msra.mxu0 0.0
      %1009 = vmatprep.subr.mxu0 0.0
      %1010 = vmatpush2.msra.mxu0 0.0
      %1011 = vmatprep.subr.mxu0 0.0
      %1012 = vmatpush2.msra.mxu0 0.0
      %1013 = vmatprep.subr.mxu0 0.0
      %1014 = vmatpush2.msra.mxu0 0.0
      %1015 = vmatprep.subr.mxu0 0.0
      %1016 = vmatpush2.msra.mxu0 0.0
      %1017 = vmatprep.subr.mxu0 0.0
      %1018 = vmatpush2.msra.mxu0 0.0
      %1019 = vmatprep.subr.mxu0 0.0
      %1020 = vmatpush2.msra.mxu0 0.0
      %1021 = vmatprep.subr.mxu0 0.0
      %1022 = vmatpush2.msra.mxu0 0.0
      %1023 = vmatprep.subr.mxu0 0.0
      %1024 = vmatpush2.msra.mxu0 0.0
      %1025 = vmatprep.subr.mxu0 0.0
      %1026 = vmatpush2.msra.mxu0 0.0
      %1027 = vmatprep.subr.mxu0 0.0
      %1028 = vmatpush2.msra.mxu0 0.0
      %1029 = vmatprep.mubr.f32.mxu0 0.0
      %1030 = vmatmul.mubr.f32.gmra.mxu0 %v963
      %v1031 = vpop.f32.mrf.mxu0
      %v1032 = vadd.f32 %v960, %v1031
      %v1033 = vpop.f32.mrf.mxu0
      %1034 = vdwg.mxu0
      %v1035 = vadd.f32 %v114, %v1032
      %v1036 = vld [vmem:[%s9] sm:$0x1]
      %v1037 = vld [vmem:[%s10] sm:$0x1]
      %v1038 = vsel %vm86, %v1035, 0.0
      %1039 = vadd.xlane.f32.xlu0 %v1038
      %v1040 = vpop.xlane.xlu0 %1039
      %v1041 = vmul.f32 %v1040, %v90
      %v1042 = vsub.f32 %v1035, %v1041
      %v1043 = vmul.f32 %v1042, %v1042
      %v1044 = vsel %vm86, %v1043, 0.0
      %1045 = vadd.xlane.f32.xlu0 %v1044
      %v1046 = vpop.xlane.xlu0 %1045
      %v1047 = vmul.f32 %v1046, %v90
      %v1048 = vadd.f32 %v1047, 1e-05
      %v1049 = vrsqrt.pop %v1048
      %v1050 = vmul.f32 %v1042, %v1049
      %v1052 = vlaneseq
      %v1053 = vshrl.u32 %v1052, 7
      %v1054 = vsub.s32 0, %v1053
      %v1055 = vrot.slane %v1036, %v1054
      %v1057 = vmul.f32 %v1050, %v1055
      %v1059 = vlaneseq
      %v1060 = vshrl.u32 %v1059, 7
      %v1061 = vsub.s32 0, %v1060
      %v1062 = vrot.slane %v1037, %v1061
      %v1064 = vadd.f32 %v1057, %v1062
      %1065 = vst.msk [vmem:[#allocation2] sm:$0xff] %vm86, %v1064
      %v1066 = vld [vmem:[%s14] sm:$0x1]
      %v1068 = vlaneseq
      %v1069 = vshrl.u32 %v1068, 7
      %v1070 = vsub.s32 0, %v1069
      %v1071 = vrot.slane %v1066, %v1070
      %v1073 = vadd.f32 %v1064, %v1071
      %1074 = vst.msk [vmem:[#allocation3] sm:$0xff] %vm86, %v1073
      %s1075 = scalar_lea.vmem [#allocation5], 8
      %v1076 = vld [vmem:[%s1075] sm:$0xff]
      %v1077 = vld [vmem:[%s1] sm:$0x1]
      %v1078 = vld [vmem:[%s2] sm:$0x1]
      %v1079 = vsel %vm86, %v1076, 0.0
      %1080 = vadd.xlane.f32.xlu0 %v1079
      %v1081 = vpop.xlane.xlu0 %1080
      %v1082 = vmul.f32 %v1081, %v90
      %v1083 = vsub.f32 %v1076, %v1082
      %v1084 = vmul.f32 %v1083, %v1083
      %v1085 = vsel %vm86, %v1084, 0.0
      %1086 = vadd.xlane.f32.xlu0 %v1085
      %v1087 = vpop.xlane.xlu0 %1086
      %v1088 = vmul.f32 %v1087, %v90
      %v1089 = vadd.f32 %v1088, 1e-05
      %v1090 = vrsqrt.pop %v1089
      %v1091 = vmul.f32 %v1083, %v1090
      %v1093 = vlaneseq
      %v1094 = vshrl.u32 %v1093, 7
      %v1095 = vsub.s32 0, %v1094
      %v1096 = vrot.slane %v1077, %v1095
      %v1098 = vmul.f32 %v1091, %v1096
      %v1100 = vlaneseq
      %v1101 = vshrl.u32 %v1100, 7
      %v1102 = vsub.s32 0, %v1101
      %v1103 = vrot.slane %v1078, %v1102
      %v1105 = vadd.f32 %v1098, %v1103
      %v1106 = vld [vmem:[%s3] sm:$0xff]
      %v1107 = vld [vmem:[%s3 + $0x8] sm:$0xff]
      %v1108 = vld [vmem:[%s3 + $0x10] sm:$0xff]
      %v1109 = vld [vmem:[%s3 + $0x18] sm:$0xff]
      %v1110 = vld [vmem:[%s4] sm:$0x1]
      %v1112 = vlaneseq
      %v1113 = vshrl.u32 %v1112, 7
      %v1114 = vsub.s32 0, %v1113
      %v1115 = vrot.slane %v1110, %v1114
      %v1118 = vsel %vm86, %v1105, 0
      %1120 = vmatprep.subr.mxu0 0.0
      %1121 = vmatpush1.msra.mxu0 0.0
      %1122 = vmatprep.subr.mxu0 0.0
      %1123 = vmatpush1.msra.mxu0 0.0
      %1124 = vmatprep.subr.mxu0 0.0
      %1125 = vmatpush1.msra.mxu0 0.0
      %1126 = vmatprep.subr.mxu0 0.0
      %1127 = vmatpush1.msra.mxu0 0.0
      %1128 = vmatprep.subr.mxu0 0.0
      %1129 = vmatpush1.msra.mxu0 0.0
      %1130 = vmatprep.subr.mxu0 0.0
      %1131 = vmatpush1.msra.mxu0 0.0
      %1132 = vmatprep.subr.mxu0 0.0
      %1133 = vmatpush1.msra.mxu0 0.0
      %1134 = vmatprep.subr.mxu0 0.0
      %1135 = vmatpush1.msra.mxu0 0.0
      %1136 = vmatprep.subr.mxu0 0.0
      %1137 = vmatpush1.msra.mxu0 0.0
      %1138 = vmatprep.subr.mxu0 0.0
      %1139 = vmatpush1.msra.mxu0 0.0
      %1140 = vmatprep.subr.mxu0 0.0
      %1141 = vmatpush1.msra.mxu0 0.0
      %1142 = vmatprep.subr.mxu0 0.0
      %1143 = vmatpush1.msra.mxu0 0.0
      %1144 = vmatprep.subr.mxu0 0.0
      %1145 = vmatpush1.msra.mxu0 %v1109
      %1146 = vmatprep.subr.mxu0 0.0
      %1147 = vmatpush1.msra.mxu0 %v1108
      %1148 = vmatprep.subr.mxu0 0.0
      %1149 = vmatpush1.msra.mxu0 %v1107
      %1150 = vmatprep.subr.mxu0 0.0
      %1151 = vmatpush1.msra.mxu0 %v1106
      %1152 = vmatprep.subr.mxu0 0.0
      %1153 = vmatpush2.msra.mxu0 0.0
      %1154 = vmatprep.subr.mxu0 0.0
      %1155 = vmatpush2.msra.mxu0 0.0
      %1156 = vmatprep.subr.mxu0 0.0
      %1157 = vmatpush2.msra.mxu0 0.0
      %1158 = vmatprep.subr.mxu0 0.0
      %1159 = vmatpush2.msra.mxu0 0.0
      %1160 = vmatprep.subr.mxu0 0.0
      %1161 = vmatpush2.msra.mxu0 0.0
      %1162 = vmatprep.subr.mxu0 0.0
      %1163 = vmatpush2.msra.mxu0 0.0
      %1164 = vmatprep.subr.mxu0 0.0
      %1165 = vmatpush2.msra.mxu0 0.0
      %1166 = vmatprep.subr.mxu0 0.0
      %1167 = vmatpush2.msra.mxu0 0.0
      %1168 = vmatprep.subr.mxu0 0.0
      %1169 = vmatpush2.msra.mxu0 0.0
      %1170 = vmatprep.subr.mxu0 0.0
      %1171 = vmatpush2.msra.mxu0 0.0
      %1172 = vmatprep.subr.mxu0 0.0
      %1173 = vmatpush2.msra.mxu0 0.0
      %1174 = vmatprep.subr.mxu0 0.0
      %1175 = vmatpush2.msra.mxu0 0.0
      %1176 = vmatprep.subr.mxu0 0.0
      %1177 = vmatpush2.msra.mxu0 0.0
      %1178 = vmatprep.subr.mxu0 0.0
      %1179 = vmatpush2.msra.mxu0 0.0
      %1180 = vmatprep.subr.mxu0 0.0
      %1181 = vmatpush2.msra.mxu0 0.0
      %1182 = vmatprep.subr.mxu0 0.0
      %1183 = vmatpush2.msra.mxu0 0.0
      %1184 = vmatprep.mubr.f32.mxu0 0.0
      %1185 = vmatmul.mubr.f32.gmra.mxu0 %v1118
      %v1186 = vpop.f32.mrf.mxu0
      %v1187 = vadd.f32 %v1115, %v1186
      %v1188 = vpop.f32.mrf.mxu0
      %1189 = vdwg.mxu0
      %v1190 = vld [vmem:[%s5] sm:$0xff]
      %v1191 = vld [vmem:[%s5 + $0x8] sm:$0xff]
      %v1192 = vld [vmem:[%s5 + $0x10] sm:$0xff]
      %v1193 = vld [vmem:[%s5 + $0x18] sm:$0xff]
      %v1194 = vld [vmem:[%s6] sm:$0x1]
      %v1196 = vlaneseq
      %v1197 = vshrl.u32 %v1196, 7
      %v1198 = vsub.s32 0, %v1197
      %v1199 = vrot.slane %v1194, %v1198
      %1201 = vmatprep.subr.mxu0 0.0
      %1202 = vmatpush1.msra.mxu0 0.0
      %1203 = vmatprep.subr.mxu0 0.0
      %1204 = vmatpush1.msra.mxu0 0.0
      %1205 = vmatprep.subr.mxu0 0.0
      %1206 = vmatpush1.msra.mxu0 0.0
      %1207 = vmatprep.subr.mxu0 0.0
      %1208 = vmatpush1.msra.mxu0 0.0
      %1209 = vmatprep.subr.mxu0 0.0
      %1210 = vmatpush1.msra.mxu0 0.0
      %1211 = vmatprep.subr.mxu0 0.0
      %1212 = vmatpush1.msra.mxu0 0.0
      %1213 = vmatprep.subr.mxu0 0.0
      %1214 = vmatpush1.msra.mxu0 0.0
      %1215 = vmatprep.subr.mxu0 0.0
      %1216 = vmatpush1.msra.mxu0 0.0
      %1217 = vmatprep.subr.mxu0 0.0
      %1218 = vmatpush1.msra.mxu0 0.0
      %1219 = vmatprep.subr.mxu0 0.0
      %1220 = vmatpush1.msra.mxu0 0.0
      %1221 = vmatprep.subr.mxu0 0.0
      %1222 = vmatpush1.msra.mxu0 0.0
      %1223 = vmatprep.subr.mxu0 0.0
      %1224 = vmatpush1.msra.mxu0 0.0
      %1225 = vmatprep.subr.mxu0 0.0
      %1226 = vmatpush1.msra.mxu0 %v1193
      %1227 = vmatprep.subr.mxu0 0.0
      %1228 = vmatpush1.msra.mxu0 %v1192
      %1229 = vmatprep.subr.mxu0 0.0
      %1230 = vmatpush1.msra.mxu0 %v1191
      %1231 = vmatprep.subr.mxu0 0.0
      %1232 = vmatpush1.msra.mxu0 %v1190
      %1233 = vmatprep.subr.mxu0 0.0
      %1234 = vmatpush2.msra.mxu0 0.0
      %1235 = vmatprep.subr.mxu0 0.0
      %1236 = vmatpush2.msra.mxu0 0.0
      %1237 = vmatprep.subr.mxu0 0.0
      %1238 = vmatpush2.msra.mxu0 0.0
      %1239 = vmatprep.subr.mxu0 0.0
      %1240 = vmatpush2.msra.mxu0 0.0
      %1241 = vmatprep.subr.mxu0 0.0
      %1242 = vmatpush2.msra.mxu0 0.0
      %1243 = vmatprep.subr.mxu0 0.0
      %1244 = vmatpush2.msra.mxu0 0.0
      %1245 = vmatprep.subr.mxu0 0.0
      %1246 = vmatpush2.msra.mxu0 0.0
      %1247 = vmatprep.subr.mxu0 0.0
      %1248 = vmatpush2.msra.mxu0 0.0
      %1249 = vmatprep.subr.mxu0 0.0
      %1250 = vmatpush2.msra.mxu0 0.0
      %1251 = vmatprep.subr.mxu0 0.0
      %1252 = vmatpush2.msra.mxu0 0.0
      %1253 = vmatprep.subr.mxu0 0.0
      %1254 = vmatpush2.msra.mxu0 0.0
      %1255 = vmatprep.subr.mxu0 0.0
      %1256 = vmatpush2.msra.mxu0 0.0
      %1257 = vmatprep.subr.mxu0 0.0
      %1258 = vmatpush2.msra.mxu0 0.0
      %1259 = vmatprep.subr.mxu0 0.0
      %1260 = vmatpush2.msra.mxu0 0.0
      %1261 = vmatprep.subr.mxu0 0.0
      %1262 = vmatpush2.msra.mxu0 0.0
      %1263 = vmatprep.subr.mxu0 0.0
      %1264 = vmatpush2.msra.mxu0 0.0
      %1265 = vmatprep.mubr.f32.mxu0 0.0
      %1266 = vmatmul.mubr.f32.gmra.mxu0 %v1118
      %v1267 = vpop.f32.mrf.mxu0
      %v1268 = vadd.f32 %v1199, %v1267
      %v1269 = vpop.f32.mrf.mxu0
      %1270 = vdwg.mxu0
      %v1271 = vmul.f32 %v1268, 0.35355338
      %v1273 = vsel %vm281, %v1187, 0
      %v1276 = vsel %vm281, %v1271, 0
      %1278 = vmatprep.subr.mxu0 0.0
      %1279 = vmatpush1.xpose.msra.mxu0 0.0
      %1280 = vmatprep.subr.mxu0 0.0
      %1281 = vmatpush1.xpose.msra.mxu0 0.0
      %1282 = vmatprep.subr.mxu0 0.0
      %1283 = vmatpush1.xpose.msra.mxu0 0.0
      %1284 = vmatprep.subr.mxu0 0.0
      %1285 = vmatpush1.xpose.msra.mxu0 0.0
      %1286 = vmatprep.subr.mxu0 0.0
      %1287 = vmatpush1.xpose.msra.mxu0 0.0
      %1288 = vmatprep.subr.mxu0 0.0
      %1289 = vmatpush1.xpose.msra.mxu0 0.0
      %1290 = vmatprep.subr.mxu0 0.0
      %1291 = vmatpush1.xpose.msra.mxu0 0.0
      %1292 = vmatprep.subr.mxu0 0.0
      %1293 = vmatpush1.xpose.msra.mxu0 0.0
      %1294 = vmatprep.subr.mxu0 0.0
      %1295 = vmatpush1.xpose.msra.mxu0 0.0
      %1296 = vmatprep.subr.mxu0 0.0
      %1297 = vmatpush1.xpose.msra.mxu0 0.0
      %1298 = vmatprep.subr.mxu0 0.0
      %1299 = vmatpush1.xpose.msra.mxu0 0.0
      %1300 = vmatprep.subr.mxu0 0.0
      %1301 = vmatpush1.xpose.msra.mxu0 0.0
      %1302 = vmatprep.subr.mxu0 0.0
      %1303 = vmatpush1.xpose.msra.mxu0 0.0
      %1304 = vmatprep.subr.mxu0 0.0
      %1305 = vmatpush1.xpose.msra.mxu0 0.0
      %1306 = vmatprep.subr.mxu0 0.0
      %1307 = vmatpush1.xpose.msra.mxu0 0.0
      %1308 = vmatprep.subr.mxu0 0.0
      %1309 = vmatpush1.xpose.msra.mxu0 %v1276
      %1310 = vmatprep.subr.mxu0 0.0
      %1311 = vmatpush2.xpose.msra.mxu0 0.0
      %1312 = vmatprep.subr.mxu0 0.0
      %1313 = vmatpush2.xpose.msra.mxu0 0.0
      %1314 = vmatprep.subr.mxu0 0.0
      %1315 = vmatpush2.xpose.msra.mxu0 0.0
      %1316 = vmatprep.subr.mxu0 0.0
      %1317 = vmatpush2.xpose.msra.mxu0 0.0
      %1318 = vmatprep.subr.mxu0 0.0
      %1319 = vmatpush2.xpose.msra.mxu0 0.0
      %1320 = vmatprep.subr.mxu0 0.0
      %1321 = vmatpush2.xpose.msra.mxu0 0.0
      %1322 = vmatprep.subr.mxu0 0.0
      %1323 = vmatpush2.xpose.msra.mxu0 0.0
      %1324 = vmatprep.subr.mxu0 0.0
      %1325 = vmatpush2.xpose.msra.mxu0 0.0
      %1326 = vmatprep.subr.mxu0 0.0
      %1327 = vmatpush2.xpose.msra.mxu0 0.0
      %1328 = vmatprep.subr.mxu0 0.0
      %1329 = vmatpush2.xpose.msra.mxu0 0.0
      %1330 = vmatprep.subr.mxu0 0.0
      %1331 = vmatpush2.xpose.msra.mxu0 0.0
      %1332 = vmatprep.subr.mxu0 0.0
      %1333 = vmatpush2.xpose.msra.mxu0 0.0
      %1334 = vmatprep.subr.mxu0 0.0
      %1335 = vmatpush2.xpose.msra.mxu0 0.0
      %1336 = vmatprep.subr.mxu0 0.0
      %1337 = vmatpush2.xpose.msra.mxu0 0.0
      %1338 = vmatprep.subr.mxu0 0.0
      %1339 = vmatpush2.xpose.msra.mxu0 0.0
      %1340 = vmatprep.subr.mxu0 0.0
      %1341 = vmatpush2.xpose.msra.mxu0 0.0
      %1342 = vmatprep.mubr.f32.mxu0 0.0
      %1343 = vmatmul.mubr.f32.gmra.mxu0 %v1273
      %v1344 = vpop.f32.mrf.mxu0
      %v1345 = vadd.f32 0.0, %v1344
      %v1346 = vpop.f32.mrf.mxu0
      %1347 = vdwg.mxu0
      %v1348 = vsel %vm281, %v1345, -inf
      %1349 = vmax.xlane.f32.xlu0 %v1348
      %v1350 = vpop.xlane.xlu0 %1349
      %v1351 = vsub.f32 %v1345, %v1350
      %v1352 = vmul.f32 %v1351, 1.442695
      %v1353 = vpow.pop %v1352
      %v1354 = vsel %vm281, %v1353, 0.0
      %1355 = vadd.xlane.f32.xlu0 %v1354
      %v1356 = vpop.xlane.xlu0 %1355
      %v1357 = vrcp.pop %v1356
      %v1358 = vmul.f32 %v1353, %v1357
      %v1360 = vsel %vm281, %v1358, 0
      %1362 = vmatprep.subr.mxu0 0.0
      %1363 = vmatpush1.msra.mxu0 0.0
      %1364 = vmatprep.subr.mxu0 0.0
      %1365 = vmatpush1.msra.mxu0 0.0
      %1366 = vmatprep.subr.mxu0 0.0
      %1367 = vmatpush1.msra.mxu0 0.0
      %1368 = vmatprep.subr.mxu0 0.0
      %1369 = vmatpush1.msra.mxu0 0.0
      %1370 = vmatprep.subr.mxu0 0.0
      %1371 = vmatpush1.msra.mxu0 0.0
      %1372 = vmatprep.subr.mxu0 0.0
      %1373 = vmatpush1.msra.mxu0 0.0
      %1374 = vmatprep.subr.mxu0 0.0
      %1375 = vmatpush1.msra.mxu0 0.0
      %1376 = vmatprep.subr.mxu0 0.0
      %1377 = vmatpush1.msra.mxu0 0.0
      %1378 = vmatprep.subr.mxu0 0.0
      %1379 = vmatpush1.msra.mxu0 0.0
      %1380 = vmatprep.subr.mxu0 0.0
      %1381 = vmatpush1.msra.mxu0 0.0
      %1382 = vmatprep.subr.mxu0 0.0
      %1383 = vmatpush1.msra.mxu0 0.0
      %1384 = vmatprep.subr.mxu0 0.0
      %1385 = vmatpush1.msra.mxu0 0.0
      %1386 = vmatprep.subr.mxu0 0.0
      %1387 = vmatpush1.msra.mxu0 0.0
      %1388 = vmatprep.subr.mxu0 0.0
      %1389 = vmatpush1.msra.mxu0 0.0
      %1390 = vmatprep.subr.mxu0 0.0
      %1391 = vmatpush1.msra.mxu0 0.0
      %1392 = vmatprep.subr.mxu0 0.0
      %1393 = vmatpush1.msra.mxu0 %v1187
      %1394 = vmatprep.subr.mxu0 0.0
      %1395 = vmatpush2.msra.mxu0 0.0
      %1396 = vmatprep.subr.mxu0 0.0
      %1397 = vmatpush2.msra.mxu0 0.0
      %1398 = vmatprep.subr.mxu0 0.0
      %1399 = vmatpush2.msra.mxu0 0.0
      %1400 = vmatprep.subr.mxu0 0.0
      %1401 = vmatpush2.msra.mxu0 0.0
      %1402 = vmatprep.subr.mxu0 0.0
      %1403 = vmatpush2.msra.mxu0 0.0
      %1404 = vmatprep.subr.mxu0 0.0
      %1405 = vmatpush2.msra.mxu0 0.0
      %1406 = vmatprep.subr.mxu0 0.0
      %1407 = vmatpush2.msra.mxu0 0.0
      %1408 = vmatprep.subr.mxu0 0.0
      %1409 = vmatpush2.msra.mxu0 0.0
      %1410 = vmatprep.subr.mxu0 0.0
      %1411 = vmatpush2.msra.mxu0 0.0
      %1412 = vmatprep.subr.mxu0 0.0
      %1413 = vmatpush2.msra.mxu0 0.0
      %1414 = vmatprep.subr.mxu0 0.0
      %1415 = vmatpush2.msra.mxu0 0.0
      %1416 = vmatprep.subr.mxu0 0.0
      %1417 = vmatpush2.msra.mxu0 0.0
      %1418 = vmatprep.subr.mxu0 0.0
      %1419 = vmatpush2.msra.mxu0 0.0
      %1420 = vmatprep.subr.mxu0 0.0
      %1421 = vmatpush2.msra.mxu0 0.0
      %1422 = vmatprep.subr.mxu0 0.0
      %1423 = vmatpush2.msra.mxu0 0.0
      %1424 = vmatprep.subr.mxu0 0.0
      %1425 = vmatpush2.msra.mxu0 0.0
      %1426 = vmatprep.mubr.f32.mxu0 0.0
      %1427 = vmatmul.mubr.f32.gmra.mxu0 %v1360
      %v1428 = vpop.f32.mrf.mxu0
      %v1429 = vadd.f32 0.0, %v1428
      %v1430 = vpop.f32.mrf.mxu0
      %1431 = vdwg.mxu0
      %1432 = vst.msk [vmem:[#allocation4] sm:$0xff] %vm281, %v1429
      %1433 = vrot.lane.b32.xlu0 %v1187, 120
      %v1434 = vpop.permute.xlu0 %1433
      %1435 = vrot.lane.b32.xlu0 %v1271, 120
      %v1436 = vpop.permute.xlu0 %1435
      %v1437 = vsel %vm281, %v1434, 0
      %v1439 = vsel %vm281, %v1436, 0
      %1441 = vmatprep.subr.mxu0 0.0
      %1442 = vmatpush1.xpose.msra.mxu0 0.0
      %1443 = vmatprep.subr.mxu0 0.0
      %1444 = vmatpush1.xpose.msra.mxu0 0.0
      %1445 = vmatprep.subr.mxu0 0.0
      %1446 = vmatpush1.xpose.msra.mxu0 0.0
      %1447 = vmatprep.subr.mxu0 0.0
      %1448 = vmatpush1.xpose.msra.mxu0 0.0
      %1449 = vmatprep.subr.mxu0 0.0
      %1450 = vmatpush1.xpose.msra.mxu0 0.0
      %1451 = vmatprep.subr.mxu0 0.0
      %1452 = vmatpush1.xpose.msra.mxu0 0.0
      %1453 = vmatprep.subr.mxu0 0.0
      %1454 = vmatpush1.xpose.msra.mxu0 0.0
      %1455 = vmatprep.subr.mxu0 0.0
      %1456 = vmatpush1.xpose.msra.mxu0 0.0
      %1457 = vmatprep.subr.mxu0 0.0
      %1458 = vmatpush1.xpose.msra.mxu0 0.0
      %1459 = vmatprep.subr.mxu0 0.0
      %1460 = vmatpush1.xpose.msra.mxu0 0.0
      %1461 = vmatprep.subr.mxu0 0.0
      %1462 = vmatpush1.xpose.msra.mxu0 0.0
      %1463 = vmatprep.subr.mxu0 0.0
      %1464 = vmatpush1.xpose.msra.mxu0 0.0
      %1465 = vmatprep.subr.mxu0 0.0
      %1466 = vmatpush1.xpose.msra.mxu0 0.0
      %1467 = vmatprep.subr.mxu0 0.0
      %1468 = vmatpush1.xpose.msra.mxu0 0.0
      %1469 = vmatprep.subr.mxu0 0.0
      %1470 = vmatpush1.xpose.msra.mxu0 0.0
      %1471 = vmatprep.subr.mxu0 0.0
      %1472 = vmatpush1.xpose.msra.mxu0 %v1439
      %1473 = vmatprep.subr.mxu0 0.0
      %1474 = vmatpush2.xpose.msra.mxu0 0.0
      %1475 = vmatprep.subr.mxu0 0.0
      %1476 = vmatpush2.xpose.msra.mxu0 0.0
      %1477 = vmatprep.subr.mxu0 0.0
      %1478 = vmatpush2.xpose.msra.mxu0 0.0
      %1479 = vmatprep.subr.mxu0 0.0
      %1480 = vmatpush2.xpose.msra.mxu0 0.0
      %1481 = vmatprep.subr.mxu0 0.0
      %1482 = vmatpush2.xpose.msra.mxu0 0.0
      %1483 = vmatprep.subr.mxu0 0.0
      %1484 = vmatpush2.xpose.msra.mxu0 0.0
      %1485 = vmatprep.subr.mxu0 0.0
      %1486 = vmatpush2.xpose.msra.mxu0 0.0
      %1487 = vmatprep.subr.mxu0 0.0
      %1488 = vmatpush2.xpose.msra.mxu0 0.0
      %1489 = vmatprep.subr.mxu0 0.0
      %1490 = vmatpush2.xpose.msra.mxu0 0.0
      %1491 = vmatprep.subr.mxu0 0.0
      %1492 = vmatpush2.xpose.msra.mxu0 0.0
      %1493 = vmatprep.subr.mxu0 0.0
      %1494 = vmatpush2.xpose.msra.mxu0 0.0
      %1495 = vmatprep.subr.mxu0 0.0
      %1496 = vmatpush2.xpose.msra.mxu0 0.0
      %1497 = vmatprep.subr.mxu0 0.0
      %1498 = vmatpush2.xpose.msra.mxu0 0.0
      %1499 = vmatprep.subr.mxu0 0.0
      %1500 = vmatpush2.xpose.msra.mxu0 0.0
      %1501 = vmatprep.subr.mxu0 0.0
      %1502 = vmatpush2.xpose.msra.mxu0 0.0
      %1503 = vmatprep.subr.mxu0 0.0
      %1504 = vmatpush2.xpose.msra.mxu0 0.0
      %1505 = vmatprep.mubr.f32.mxu0 0.0
      %1506 = vmatmul.mubr.f32.gmra.mxu0 %v1437
      %v1507 = vpop.f32.mrf.mxu0
      %v1508 = vadd.f32 0.0, %v1507
      %v1509 = vpop.f32.mrf.mxu0
      %1510 = vdwg.mxu0
      %v1511 = vsel %vm281, %v1508, -inf
      %1512 = vmax.xlane.f32.xlu0 %v1511
      %v1513 = vpop.xlane.xlu0 %1512
      %v1514 = vsub.f32 %v1508, %v1513
      %v1515 = vmul.f32 %v1514, 1.442695
      %v1516 = vpow.pop %v1515
      %v1517 = vsel %vm281, %v1516, 0.0
      %1518 = vadd.xlane.f32.xlu0 %v1517
      %v1519 = vpop.xlane.xlu0 %1518
      %v1520 = vrcp.pop %v1519
      %v1521 = vmul.f32 %v1516, %v1520
      %v1524 = vsel %vm281, %v1521, 0
      %1526 = vmatprep.subr.mxu0 0.0
      %1527 = vmatpush1.msra.mxu0 0.0
      %1528 = vmatprep.subr.mxu0 0.0
      %1529 = vmatpush1.msra.mxu0 0.0
      %1530 = vmatprep.subr.mxu0 0.0
      %1531 = vmatpush1.msra.mxu0 0.0
      %1532 = vmatprep.subr.mxu0 0.0
      %1533 = vmatpush1.msra.mxu0 0.0
      %1534 = vmatprep.subr.mxu0 0.0
      %1535 = vmatpush1.msra.mxu0 0.0
      %1536 = vmatprep.subr.mxu0 0.0
      %1537 = vmatpush1.msra.mxu0 0.0
      %1538 = vmatprep.subr.mxu0 0.0
      %1539 = vmatpush1.msra.mxu0 0.0
      %1540 = vmatprep.subr.mxu0 0.0
      %1541 = vmatpush1.msra.mxu0 0.0
      %1542 = vmatprep.subr.mxu0 0.0
      %1543 = vmatpush1.msra.mxu0 0.0
      %1544 = vmatprep.subr.mxu0 0.0
      %1545 = vmatpush1.msra.mxu0 0.0
      %1546 = vmatprep.subr.mxu0 0.0
      %1547 = vmatpush1.msra.mxu0 0.0
      %1548 = vmatprep.subr.mxu0 0.0
      %1549 = vmatpush1.msra.mxu0 0.0
      %1550 = vmatprep.subr.mxu0 0.0
      %1551 = vmatpush1.msra.mxu0 0.0
      %1552 = vmatprep.subr.mxu0 0.0
      %1553 = vmatpush1.msra.mxu0 0.0
      %1554 = vmatprep.subr.mxu0 0.0
      %1555 = vmatpush1.msra.mxu0 0.0
      %1556 = vmatprep.subr.mxu0 0.0
      %1557 = vmatpush1.msra.mxu0 %v1434
      %1558 = vmatprep.subr.mxu0 0.0
      %1559 = vmatpush2.msra.mxu0 0.0
      %1560 = vmatprep.subr.mxu0 0.0
      %1561 = vmatpush2.msra.mxu0 0.0
      %1562 = vmatprep.subr.mxu0 0.0
      %1563 = vmatpush2.msra.mxu0 0.0
      %1564 = vmatprep.subr.mxu0 0.0
      %1565 = vmatpush2.msra.mxu0 0.0
      %1566 = vmatprep.subr.mxu0 0.0
      %1567 = vmatpush2.msra.mxu0 0.0
      %1568 = vmatprep.subr.mxu0 0.0
      %1569 = vmatpush2.msra.mxu0 0.0
      %1570 = vmatprep.subr.mxu0 0.0
      %1571 = vmatpush2.msra.mxu0 0.0
      %1572 = vmatprep.subr.mxu0 0.0
      %1573 = vmatpush2.msra.mxu0 0.0
      %1574 = vmatprep.subr.mxu0 0.0
      %1575 = vmatpush2.msra.mxu0 0.0
      %1576 = vmatprep.subr.mxu0 0.0
      %1577 = vmatpush2.msra.mxu0 0.0
      %1578 = vmatprep.subr.mxu0 0.0
      %1579 = vmatpush2.msra.mxu0 0.0
      %1580 = vmatprep.subr.mxu0 0.0
      %1581 = vmatpush2.msra.mxu0 0.0
      %1582 = vmatprep.subr.mxu0 0.0
      %1583 = vmatpush2.msra.mxu0 0.0
      %1584 = vmatprep.subr.mxu0 0.0
      %1585 = vmatpush2.msra.mxu0 0.0
      %1586 = vmatprep.subr.mxu0 0.0
      %1587 = vmatpush2.msra.mxu0 0.0
      %1588 = vmatprep.subr.mxu0 0.0
      %1589 = vmatpush2.msra.mxu0 0.0
      %1590 = vmatprep.mubr.f32.mxu0 0.0
      %1591 = vmatmul.mubr.f32.gmra.mxu0 %v1524
      %v1592 = vpop.f32.mrf.mxu0
      %v1593 = vadd.f32 0.0, %v1592
      %v1594 = vpop.f32.mrf.mxu0
      %1595 = vdwg.mxu0
      %1597 = vrot.lane.b32.xlu0 %v1593, 8
      %v1598 = vpop.permute.xlu0 %1597
      %1600 = vst.msk [vmem:[#allocation4] sm:$0xff] %vm610, %v1598
      %1601 = vrot.lane.b32.xlu0 %v1187, 112
      %v1602 = vpop.permute.xlu0 %1601
      %1603 = vrot.lane.b32.xlu0 %v1271, 112
      %v1604 = vpop.permute.xlu0 %1603
      %v1605 = vsel %vm281, %v1602, 0
      %v1607 = vsel %vm281, %v1604, 0
      %1609 = vmatprep.subr.mxu0 0.0
      %1610 = vmatpush1.xpose.msra.mxu0 0.0
      %1611 = vmatprep.subr.mxu0 0.0
      %1612 = vmatpush1.xpose.msra.mxu0 0.0
      %1613 = vmatprep.subr.mxu0 0.0
      %1614 = vmatpush1.xpose.msra.mxu0 0.0
      %1615 = vmatprep.subr.mxu0 0.0
      %1616 = vmatpush1.xpose.msra.mxu0 0.0
      %1617 = vmatprep.subr.mxu0 0.0
      %1618 = vmatpush1.xpose.msra.mxu0 0.0
      %1619 = vmatprep.subr.mxu0 0.0
      %1620 = vmatpush1.xpose.msra.mxu0 0.0
      %1621 = vmatprep.subr.mxu0 0.0
      %1622 = vmatpush1.xpose.msra.mxu0 0.0
      %1623 = vmatprep.subr.mxu0 0.0
      %1624 = vmatpush1.xpose.msra.mxu0 0.0
      %1625 = vmatprep.subr.mxu0 0.0
      %1626 = vmatpush1.xpose.msra.mxu0 0.0
      %1627 = vmatprep.subr.mxu0 0.0
      %1628 = vmatpush1.xpose.msra.mxu0 0.0
      %1629 = vmatprep.subr.mxu0 0.0
      %1630 = vmatpush1.xpose.msra.mxu0 0.0
      %1631 = vmatprep.subr.mxu0 0.0
      %1632 = vmatpush1.xpose.msra.mxu0 0.0
      %1633 = vmatprep.subr.mxu0 0.0
      %1634 = vmatpush1.xpose.msra.mxu0 0.0
      %1635 = vmatprep.subr.mxu0 0.0
      %1636 = vmatpush1.xpose.msra.mxu0 0.0
      %1637 = vmatprep.subr.mxu0 0.0
      %1638 = vmatpush1.xpose.msra.mxu0 0.0
      %1639 = vmatprep.subr.mxu0 0.0
      %1640 = vmatpush1.xpose.msra.mxu0 %v1607
      %1641 = vmatprep.subr.mxu0 0.0
      %1642 = vmatpush2.xpose.msra.mxu0 0.0
      %1643 = vmatprep.subr.mxu0 0.0
      %1644 = vmatpush2.xpose.msra.mxu0 0.0
      %1645 = vmatprep.subr.mxu0 0.0
      %1646 = vmatpush2.xpose.msra.mxu0 0.0
      %1647 = vmatprep.subr.mxu0 0.0
      %1648 = vmatpush2.xpose.msra.mxu0 0.0
      %1649 = vmatprep.subr.mxu0 0.0
      %1650 = vmatpush2.xpose.msra.mxu0 0.0
      %1651 = vmatprep.subr.mxu0 0.0
      %1652 = vmatpush2.xpose.msra.mxu0 0.0
      %1653 = vmatprep.subr.mxu0 0.0
      %1654 = vmatpush2.xpose.msra.mxu0 0.0
      %1655 = vmatprep.subr.mxu0 0.0
      %1656 = vmatpush2.xpose.msra.mxu0 0.0
      %1657 = vmatprep.subr.mxu0 0.0
      %1658 = vmatpush2.xpose.msra.mxu0 0.0
      %1659 = vmatprep.subr.mxu0 0.0
      %1660 = vmatpush2.xpose.msra.mxu0 0.0
      %1661 = vmatprep.subr.mxu0 0.0
      %1662 = vmatpush2.xpose.msra.mxu0 0.0
      %1663 = vmatprep.subr.mxu0 0.0
      %1664 = vmatpush2.xpose.msra.mxu0 0.0
      %1665 = vmatprep.subr.mxu0 0.0
      %1666 = vmatpush2.xpose.msra.mxu0 0.0
      %1667 = vmatprep.subr.mxu0 0.0
      %1668 = vmatpush2.xpose.msra.mxu0 0.0
      %1669 = vmatprep.subr.mxu0 0.0
      %1670 = vmatpush2.xpose.msra.mxu0 0.0
      %1671 = vmatprep.subr.mxu0 0.0
      %1672 = vmatpush2.xpose.msra.mxu0 0.0
      %1673 = vmatprep.mubr.f32.mxu0 0.0
      %1674 = vmatmul.mubr.f32.gmra.mxu0 %v1605
      %v1675 = vpop.f32.mrf.mxu0
      %v1676 = vadd.f32 0.0, %v1675
      %v1677 = vpop.f32.mrf.mxu0
      %1678 = vdwg.mxu0
      %v1679 = vsel %vm281, %v1676, -inf
      %1680 = vmax.xlane.f32.xlu0 %v1679
      %v1681 = vpop.xlane.xlu0 %1680
      %v1682 = vsub.f32 %v1676, %v1681
      %v1683 = vmul.f32 %v1682, 1.442695
      %v1684 = vpow.pop %v1683
      %v1685 = vsel %vm281, %v1684, 0.0
      %1686 = vadd.xlane.f32.xlu0 %v1685
      %v1687 = vpop.xlane.xlu0 %1686
      %v1688 = vrcp.pop %v1687
      %v1689 = vmul.f32 %v1684, %v1688
      %v1692 = vsel %vm281, %v1689, 0
      %1694 = vmatprep.subr.mxu0 0.0
      %1695 = vmatpush1.msra.mxu0 0.0
      %1696 = vmatprep.subr.mxu0 0.0
      %1697 = vmatpush1.msra.mxu0 0.0
      %1698 = vmatprep.subr.mxu0 0.0
      %1699 = vmatpush1.msra.mxu0 0.0
      %1700 = vmatprep.subr.mxu0 0.0
      %1701 = vmatpush1.msra.mxu0 0.0
      %1702 = vmatprep.subr.mxu0 0.0
      %1703 = vmatpush1.msra.mxu0 0.0
      %1704 = vmatprep.subr.mxu0 0.0
      %1705 = vmatpush1.msra.mxu0 0.0
      %1706 = vmatprep.subr.mxu0 0.0
      %1707 = vmatpush1.msra.mxu0 0.0
      %1708 = vmatprep.subr.mxu0 0.0
      %1709 = vmatpush1.msra.mxu0 0.0
      %1710 = vmatprep.subr.mxu0 0.0
      %1711 = vmatpush1.msra.mxu0 0.0
      %1712 = vmatprep.subr.mxu0 0.0
      %1713 = vmatpush1.msra.mxu0 0.0
      %1714 = vmatprep.subr.mxu0 0.0
      %1715 = vmatpush1.msra.mxu0 0.0
      %1716 = vmatprep.subr.mxu0 0.0
      %1717 = vmatpush1.msra.mxu0 0.0
      %1718 = vmatprep.subr.mxu0 0.0
      %1719 = vmatpush1.msra.mxu0 0.0
      %1720 = vmatprep.subr.mxu0 0.0
      %1721 = vmatpush1.msra.mxu0 0.0
      %1722 = vmatprep.subr.mxu0 0.0
      %1723 = vmatpush1.msra.mxu0 0.0
      %1724 = vmatprep.subr.mxu0 0.0
      %1725 = vmatpush1.msra.mxu0 %v1602
      %1726 = vmatprep.subr.mxu0 0.0
      %1727 = vmatpush2.msra.mxu0 0.0
      %1728 = vmatprep.subr.mxu0 0.0
      %1729 = vmatpush2.msra.mxu0 0.0
      %1730 = vmatprep.subr.mxu0 0.0
      %1731 = vmatpush2.msra.mxu0 0.0
      %1732 = vmatprep.subr.mxu0 0.0
      %1733 = vmatpush2.msra.mxu0 0.0
      %1734 = vmatprep.subr.mxu0 0.0
      %1735 = vmatpush2.msra.mxu0 0.0
      %1736 = vmatprep.subr.mxu0 0.0
      %1737 = vmatpush2.msra.mxu0 0.0
      %1738 = vmatprep.subr.mxu0 0.0
      %1739 = vmatpush2.msra.mxu0 0.0
      %1740 = vmatprep.subr.mxu0 0.0
      %1741 = vmatpush2.msra.mxu0 0.0
      %1742 = vmatprep.subr.mxu0 0.0
      %1743 = vmatpush2.msra.mxu0 0.0
      %1744 = vmatprep.subr.mxu0 0.0
      %1745 = vmatpush2.msra.mxu0 0.0
      %1746 = vmatprep.subr.mxu0 0.0
      %1747 = vmatpush2.msra.mxu0 0.0
      %1748 = vmatprep.subr.mxu0 0.0
      %1749 = vmatpush2.msra.mxu0 0.0
      %1750 = vmatprep.subr.mxu0 0.0
      %1751 = vmatpush2.msra.mxu0 0.0
      %1752 = vmatprep.subr.mxu0 0.0
      %1753 = vmatpush2.msra.mxu0 0.0
      %1754 = vmatprep.subr.mxu0 0.0
      %1755 = vmatpush2.msra.mxu0 0.0
      %1756 = vmatprep.subr.mxu0 0.0
      %1757 = vmatpush2.msra.mxu0 0.0
      %1758 = vmatprep.mubr.f32.mxu0 0.0
      %1759 = vmatmul.mubr.f32.gmra.mxu0 %v1692
      %v1760 = vpop.f32.mrf.mxu0
      %v1761 = vadd.f32 0.0, %v1760
      %v1762 = vpop.f32.mrf.mxu0
      %1763 = vdwg.mxu0
      %1765 = vrot.lane.b32.xlu0 %v1761, 16
      %v1766 = vpop.permute.xlu0 %1765
      %1768 = vst.msk [vmem:[#allocation4] sm:$0xff] %vm779, %v1766
      %1769 = vrot.lane.b32.xlu0 %v1187, 104
      %v1770 = vpop.permute.xlu0 %1769
      %1771 = vrot.lane.b32.xlu0 %v1271, 104
      %v1772 = vpop.permute.xlu0 %1771
      %v1773 = vsel %vm281, %v1770, 0
      %v1775 = vsel %vm281, %v1772, 0
      %1777 = vmatprep.subr.mxu0 0.0
      %1778 = vmatpush1.xpose.msra.mxu0 0.0
      %1779 = vmatprep.subr.mxu0 0.0
      %1780 = vmatpush1.xpose.msra.mxu0 0.0
      %1781 = vmatprep.subr.mxu0 0.0
      %1782 = vmatpush1.xpose.msra.mxu0 0.0
      %1783 = vmatprep.subr.mxu0 0.0
      %1784 = vmatpush1.xpose.msra.mxu0 0.0
      %1785 = vmatprep.subr.mxu0 0.0
      %1786 = vmatpush1.xpose.msra.mxu0 0.0
      %1787 = vmatprep.subr.mxu0 0.0
      %1788 = vmatpush1.xpose.msra.mxu0 0.0
      %1789 = vmatprep.subr.mxu0 0.0
      %1790 = vmatpush1.xpose.msra.mxu0 0.0
      %1791 = vmatprep.subr.mxu0 0.0
      %1792 = vmatpush1.xpose.msra.mxu0 0.0
      %1793 = vmatprep.subr.mxu0 0.0
      %1794 = vmatpush1.xpose.msra.mxu0 0.0
      %1795 = vmatprep.subr.mxu0 0.0
      %1796 = vmatpush1.xpose.msra.mxu0 0.0
      %1797 = vmatprep.subr.mxu0 0.0
      %1798 = vmatpush1.xpose.msra.mxu0 0.0
      %1799 = vmatprep.subr.mxu0 0.0
      %1800 = vmatpush1.xpose.msra.mxu0 0.0
      %1801 = vmatprep.subr.mxu0 0.0
      %1802 = vmatpush1.xpose.msra.mxu0 0.0
      %1803 = vmatprep.subr.mxu0 0.0
      %1804 = vmatpush1.xpose.msra.mxu0 0.0
      %1805 = vmatprep.subr.mxu0 0.0
      %1806 = vmatpush1.xpose.msra.mxu0 0.0
      %1807 = vmatprep.subr.mxu0 0.0
      %1808 = vmatpush1.xpose.msra.mxu0 %v1775
      %1809 = vmatprep.subr.mxu0 0.0
      %1810 = vmatpush2.xpose.msra.mxu0 0.0
      %1811 = vmatprep.subr.mxu0 0.0
      %1812 = vmatpush2.xpose.msra.mxu0 0.0
      %1813 = vmatprep.subr.mxu0 0.0
      %1814 = vmatpush2.xpose.msra.mxu0 0.0
      %1815 = vmatprep.subr.mxu0 0.0
      %1816 = vmatpush2.xpose.msra.mxu0 0.0
      %1817 = vmatprep.subr.mxu0 0.0
      %1818 = vmatpush2.xpose.msra.mxu0 0.0
      %1819 = vmatprep.subr.mxu0 0.0
      %1820 = vmatpush2.xpose.msra.mxu0 0.0
      %1821 = vmatprep.subr.mxu0 0.0
      %1822 = vmatpush2.xpose.msra.mxu0 0.0
      %1823 = vmatprep.subr.mxu0 0.0
      %1824 = vmatpush2.xpose.msra.mxu0 0.0
      %1825 = vmatprep.subr.mxu0 0.0
      %1826 = vmatpush2.xpose.msra.mxu0 0.0
      %1827 = vmatprep.subr.mxu0 0.0
      %1828 = vmatpush2.xpose.msra.mxu0 0.0
      %1829 = vmatprep.subr.mxu0 0.0
      %1830 = vmatpush2.xpose.msra.mxu0 0.0
      %1831 = vmatprep.subr.mxu0 0.0
      %1832 = vmatpush2.xpose.msra.mxu0 0.0
      %1833 = vmatprep.subr.mxu0 0.0
      %1834 = vmatpush2.xpose.msra.mxu0 0.0
      %1835 = vmatprep.subr.mxu0 0.0
      %1836 = vmatpush2.xpose.msra.mxu0 0.0
      %1837 = vmatprep.subr.mxu0 0.0
      %1838 = vmatpush2.xpose.msra.mxu0 0.0
      %1839 = vmatprep.subr.mxu0 0.0
      %1840 = vmatpush2.xpose.msra.mxu0 0.0
      %1841 = vmatprep.mubr.f32.mxu0 0.0
      %1842 = vmatmul.mubr.f32.gmra.mxu0 %v1773
      %v1843 = vpop.f32.mrf.mxu0
      %v1844 = vadd.f32 0.0, %v1843
      %v1845 = vpop.f32.mrf.mxu0
      %1846 = vdwg.mxu0
      %v1847 = vsel %vm281, %v1844, -inf
      %1848 = vmax.xlane.f32.xlu0 %v1847
      %v1849 = vpop.xlane.xlu0 %1848
      %v1850 = vsub.f32 %v1844, %v1849
      %v1851 = vmul.f32 %v1850, 1.442695
      %v1852 = vpow.pop %v1851
      %v1853 = vsel %vm281, %v1852, 0.0
      %1854 = vadd.xlane.f32.xlu0 %v1853
      %v1855 = vpop.xlane.xlu0 %1854
      %v1856 = vrcp.pop %v1855
      %v1857 = vmul.f32 %v1852, %v1856
      %v1860 = vsel %vm281, %v1857, 0
      %1862 = vmatprep.subr.mxu0 0.0
      %1863 = vmatpush1.msra.mxu0 0.0
      %1864 = vmatprep.subr.mxu0 0.0
      %1865 = vmatpush1.msra.mxu0 0.0
      %1866 = vmatprep.subr.mxu0 0.0
      %1867 = vmatpush1.msra.mxu0 0.0
      %1868 = vmatprep.subr.mxu0 0.0
      %1869 = vmatpush1.msra.mxu0 0.0
      %1870 = vmatprep.subr.mxu0 0.0
      %1871 = vmatpush1.msra.mxu0 0.0
      %1872 = vmatprep.subr.mxu0 0.0
      %1873 = vmatpush1.msra.mxu0 0.0
      %1874 = vmatprep.subr.mxu0 0.0
      %1875 = vmatpush1.msra.mxu0 0.0
      %1876 = vmatprep.subr.mxu0 0.0
      %1877 = vmatpush1.msra.mxu0 0.0
      %1878 = vmatprep.subr.mxu0 0.0
      %1879 = vmatpush1.msra.mxu0 0.0
      %1880 = vmatprep.subr.mxu0 0.0
      %1881 = vmatpush1.msra.mxu0 0.0
      %1882 = vmatprep.subr.mxu0 0.0
      %1883 = vmatpush1.msra.mxu0 0.0
      %1884 = vmatprep.subr.mxu0 0.0
      %1885 = vmatpush1.msra.mxu0 0.0
      %1886 = vmatprep.subr.mxu0 0.0
      %1887 = vmatpush1.msra.mxu0 0.0
      %1888 = vmatprep.subr.mxu0 0.0
      %1889 = vmatpush1.msra.mxu0 0.0
      %1890 = vmatprep.subr.mxu0 0.0
      %1891 = vmatpush1.msra.mxu0 0.0
      %1892 = vmatprep.subr.mxu0 0.0
      %1893 = vmatpush1.msra.mxu0 %v1770
      %1894 = vmatprep.subr.mxu0 0.0
      %1895 = vmatpush2.msra.mxu0 0.0
      %1896 = vmatprep.subr.mxu0 0.0
      %1897 = vmatpush2.msra.mxu0 0.0
      %1898 = vmatprep.subr.mxu0 0.0
      %1899 = vmatpush2.msra.mxu0 0.0
      %1900 = vmatprep.subr.mxu0 0.0
      %1901 = vmatpush2.msra.mxu0 0.0
      %1902 = vmatprep.subr.mxu0 0.0
      %1903 = vmatpush2.msra.mxu0 0.0
      %1904 = vmatprep.subr.mxu0 0.0
      %1905 = vmatpush2.msra.mxu0 0.0
      %1906 = vmatprep.subr.mxu0 0.0
      %1907 = vmatpush2.msra.mxu0 0.0
      %1908 = vmatprep.subr.mxu0 0.0
      %1909 = vmatpush2.msra.mxu0 0.0
      %1910 = vmatprep.subr.mxu0 0.0
      %1911 = vmatpush2.msra.mxu0 0.0
      %1912 = vmatprep.subr.mxu0 0.0
      %1913 = vmatpush2.msra.mxu0 0.0
      %1914 = vmatprep.subr.mxu0 0.0
      %1915 = vmatpush2.msra.mxu0 0.0
      %1916 = vmatprep.subr.mxu0 0.0
      %1917 = vmatpush2.msra.mxu0 0.0
      %1918 = vmatprep.subr.mxu0 0.0
      %1919 = vmatpush2.msra.mxu0 0.0
      %1920 = vmatprep.subr.mxu0 0.0
      %1921 = vmatpush2.msra.mxu0 0.0
      %1922 = vmatprep.subr.mxu0 0.0
      %1923 = vmatpush2.msra.mxu0 0.0
      %1924 = vmatprep.subr.mxu0 0.0
      %1925 = vmatpush2.msra.mxu0 0.0
      %1926 = vmatprep.mubr.f32.mxu0 0.0
      %1927 = vmatmul.mubr.f32.gmra.mxu0 %v1860
      %v1928 = vpop.f32.mrf.mxu0
      %v1929 = vadd.f32 0.0, %v1928
      %v1930 = vpop.f32.mrf.mxu0
      %1931 = vdwg.mxu0
      %1933 = vrot.lane.b32.xlu0 %v1929, 24
      %v1934 = vpop.permute.xlu0 %1933
      %1936 = vst.msk [vmem:[#allocation4] sm:$0xff] %vm948, %v1934
      %v1937 = vld [vmem:[#allocation4] sm:$0xff]
      %v1938 = vld [vmem:[%s7] sm:$0xff]
      %v1939 = vld [vmem:[%s7 + $0x8] sm:$0xff]
      %v1940 = vld [vmem:[%s7 + $0x10] sm:$0xff]
      %v1941 = vld [vmem:[%s7 + $0x18] sm:$0xff]
      %v1942 = vld [vmem:[%s8] sm:$0x1]
      %v1944 = vlaneseq
      %v1945 = vshrl.u32 %v1944, 7
      %v1946 = vsub.s32 0, %v1945
      %v1947 = vrot.slane %v1942, %v1946
      %v1950 = vsel %vm86, %v1937, 0
      %1952 = vmatprep.subr.mxu0 0.0
      %1953 = vmatpush1.msra.mxu0 0.0
      %1954 = vmatprep.subr.mxu0 0.0
      %1955 = vmatpush1.msra.mxu0 0.0
      %1956 = vmatprep.subr.mxu0 0.0
      %1957 = vmatpush1.msra.mxu0 0.0
      %1958 = vmatprep.subr.mxu0 0.0
      %1959 = vmatpush1.msra.mxu0 0.0
      %1960 = vmatprep.subr.mxu0 0.0
      %1961 = vmatpush1.msra.mxu0 0.0
      %1962 = vmatprep.subr.mxu0 0.0
      %1963 = vmatpush1.msra.mxu0 0.0
      %1964 = vmatprep.subr.mxu0 0.0
      %1965 = vmatpush1.msra.mxu0 0.0
      %1966 = vmatprep.subr.mxu0 0.0
      %1967 = vmatpush1.msra.mxu0 0.0
      %1968 = vmatprep.subr.mxu0 0.0
      %1969 = vmatpush1.msra.mxu0 0.0
      %1970 = vmatprep.subr.mxu0 0.0
      %1971 = vmatpush1.msra.mxu0 0.0
      %1972 = vmatprep.subr.mxu0 0.0
      %1973 = vmatpush1.msra.mxu0 0.0
      %1974 = vmatprep.subr.mxu0 0.0
      %1975 = vmatpush1.msra.mxu0 0.0
      %1976 = vmatprep.subr.mxu0 0.0
      %1977 = vmatpush1.msra.mxu0 %v1941
      %1978 = vmatprep.subr.mxu0 0.0
      %1979 = vmatpush1.msra.mxu0 %v1940
      %1980 = vmatprep.subr.mxu0 0.0
      %1981 = vmatpush1.msra.mxu0 %v1939
      %1982 = vmatprep.subr.mxu0 0.0
      %1983 = vmatpush1.msra.mxu0 %v1938
      %1984 = vmatprep.subr.mxu0 0.0
      %1985 = vmatpush2.msra.mxu0 0.0
      %1986 = vmatprep.subr.mxu0 0.0
      %1987 = vmatpush2.msra.mxu0 0.0
      %1988 = vmatprep.subr.mxu0 0.0
      %1989 = vmatpush2.msra.mxu0 0.0
      %1990 = vmatprep.subr.mxu0 0.0
      %1991 = vmatpush2.msra.mxu0 0.0
      %1992 = vmatprep.subr.mxu0 0.0
      %1993 = vmatpush2.msra.mxu0 0.0
      %1994 = vmatprep.subr.mxu0 0.0
      %1995 = vmatpush2.msra.mxu0 0.0
      %1996 = vmatprep.subr.mxu0 0.0
      %1997 = vmatpush2.msra.mxu0 0.0
      %1998 = vmatprep.subr.mxu0 0.0
      %1999 = vmatpush2.msra.mxu0 0.0
      %2000 = vmatprep.subr.mxu0 0.0
      %2001 = vmatpush2.msra.mxu0 0.0
      %2002 = vmatprep.subr.mxu0 0.0
      %2003 = vmatpush2.msra.mxu0 0.0
      %2004 = vmatprep.subr.mxu0 0.0
      %2005 = vmatpush2.msra.mxu0 0.0
      %2006 = vmatprep.subr.mxu0 0.0
      %2007 = vmatpush2.msra.mxu0 0.0
      %2008 = vmatprep.subr.mxu0 0.0
      %2009 = vmatpush2.msra.mxu0 0.0
      %2010 = vmatprep.subr.mxu0 0.0
      %2011 = vmatpush2.msra.mxu0 0.0
      %2012 = vmatprep.subr.mxu0 0.0
      %2013 = vmatpush2.msra.mxu0 0.0
      %2014 = vmatprep.subr.mxu0 0.0
      %2015 = vmatpush2.msra.mxu0 0.0
      %2016 = vmatprep.mubr.f32.mxu0 0.0
      %2017 = vmatmul.mubr.f32.gmra.mxu0 %v1950
      %v2018 = vpop.f32.mrf.mxu0
      %v2019 = vadd.f32 %v1947, %v2018
      %v2020 = vpop.f32.mrf.mxu0
      %2021 = vdwg.mxu0
      %v2022 = vadd.f32 %v1105, %v2019
      %v2023 = vld [vmem:[%s9] sm:$0x1]
      %v2024 = vld [vmem:[%s10] sm:$0x1]
      %v2025 = vsel %vm86, %v2022, 0.0
      %2026 = vadd.xlane.f32.xlu0 %v2025
      %v2027 = vpop.xlane.xlu0 %2026
      %v2028 = vmul.f32 %v2027, %v90
      %v2029 = vsub.f32 %v2022, %v2028
      %v2030 = vmul.f32 %v2029, %v2029
      %v2031 = vsel %vm86, %v2030, 0.0
      %2032 = vadd.xlane.f32.xlu0 %v2031
      %v2033 = vpop.xlane.xlu0 %2032
      %v2034 = vmul.f32 %v2033, %v90
      %v2035 = vadd.f32 %v2034, 1e-05
      %v2036 = vrsqrt.pop %v2035
      %v2037 = vmul.f32 %v2029, %v2036
      %v2039 = vlaneseq
      %v2040 = vshrl.u32 %v2039, 7
      %v2041 = vsub.s32 0, %v2040
      %v2042 = vrot.slane %v2023, %v2041
      %v2044 = vmul.f32 %v2037, %v2042
      %v2046 = vlaneseq
      %v2047 = vshrl.u32 %v2046, 7
      %v2048 = vsub.s32 0, %v2047
      %v2049 = vrot.slane %v2024, %v2048
      %v2051 = vadd.f32 %v2044, %v2049
      %s2052 = scalar_lea.vmem [#allocation2], 8
      %2053 = vst.msk [vmem:[%s2052] sm:$0xff] %vm86, %v2051
      %v2054 = vld [vmem:[%s14] sm:$0x1]
      %v2056 = vlaneseq
      %v2057 = vshrl.u32 %v2056, 7
      %v2058 = vsub.s32 0, %v2057
      %v2059 = vrot.slane %v2054, %v2058
      %v2061 = vadd.f32 %v2051, %v2059
      %s2062 = scalar_lea.vmem [#allocation3], 8
      %2063 = vst.msk [vmem:[%s2062] sm:$0xff] %vm86, %v2061
    $region73: #{tpu_custom_call.1} parent=1 // pred_fallthru
      _
    %v2064 = vld [vmem:[#allocation2] sm:$0xff]
    %v2065 = vld [vmem:[#allocation8] sm:$0xff]
    %v2066 = vld [vmem:[#allocation8 + $0x8] sm:$0xff]
    %v2067 = vld [vmem:[#allocation8 + $0x10] sm:$0xff]
    %v2068 = vld [vmem:[#allocation8 + $0x18] sm:$0xff]
    %v2069 = vld [vmem:[%s12] sm:$0x1]
    %v2071 = vlaneseq
    %v2072 = vshrl.u32 %v2071, 7
    %v2073 = vsub.s32 0, %v2072
    %v2074 = vrot.slane %v2069, %v2073
    %vm2076 = vcmask 261120
    %v2078 = vsel %vm2076, %v2064, 0
    %2080 = vmatprep.subr.mxu0 0.0
    %2081 = vmatpush1.msra.mxu0 0.0
    %2082 = vmatprep.subr.mxu0 0.0
    %2083 = vmatpush1.msra.mxu0 0.0
    %2084 = vmatprep.subr.mxu0 0.0
    %2085 = vmatpush1.msra.mxu0 0.0
    %2086 = vmatprep.subr.mxu0 0.0
    %2087 = vmatpush1.msra.mxu0 0.0
    %2088 = vmatprep.subr.mxu0 0.0
    %2089 = vmatpush1.msra.mxu0 0.0
    %2090 = vmatprep.subr.mxu0 0.0
    %2091 = vmatpush1.msra.mxu0 0.0
    %2092 = vmatprep.subr.mxu0 0.0
    %2093 = vmatpush1.msra.mxu0 0.0
    %2094 = vmatprep.subr.mxu0 0.0
    %2095 = vmatpush1.msra.mxu0 0.0
    %2096 = vmatprep.subr.mxu0 0.0
    %2097 = vmatpush1.msra.mxu0 0.0
    %2098 = vmatprep.subr.mxu0 0.0
    %2099 = vmatpush1.msra.mxu0 0.0
    %2100 = vmatprep.subr.mxu0 0.0
    %2101 = vmatpush1.msra.mxu0 0.0
    %2102 = vmatprep.subr.mxu0 0.0
    %2103 = vmatpush1.msra.mxu0 0.0
    %2104 = vmatprep.subr.mxu0 0.0
    %2105 = vmatpush1.msra.mxu0 %v2068
    %2106 = vmatprep.subr.mxu0 0.0
    %2107 = vmatpush1.msra.mxu0 %v2067
    %2108 = vmatprep.subr.mxu0 0.0
    %2109 = vmatpush1.msra.mxu0 %v2066
    %2110 = vmatprep.subr.mxu0 0.0
    %2111 = vmatpush1.msra.mxu0 %v2065
    %2112 = vmatprep.subr.mxu0 0.0
    %2113 = vmatpush2.msra.mxu0 0.0
    %2114 = vmatprep.subr.mxu0 0.0
    %2115 = vmatpush2.msra.mxu0 0.0
    %2116 = vmatprep.subr.mxu0 0.0
    %2117 = vmatpush2.msra.mxu0 0.0
    %2118 = vmatprep.subr.mxu0 0.0
    %2119 = vmatpush2.msra.mxu0 0.0
    %2120 = vmatprep.subr.mxu0 0.0
    %2121 = vmatpush2.msra.mxu0 0.0
    %2122 = vmatprep.subr.mxu0 0.0
    %2123 = vmatpush2.msra.mxu0 0.0
    %2124 = vmatprep.subr.mxu0 0.0
    %2125 = vmatpush2.msra.mxu0 0.0
    %2126 = vmatprep.subr.mxu0 0.0
    %2127 = vmatpush2.msra.mxu0 0.0
    %2128 = vmatprep.subr.mxu0 0.0
    %2129 = vmatpush2.msra.mxu0 0.0
    %2130 = vmatprep.subr.mxu0 0.0
    %2131 = vmatpush2.msra.mxu0 0.0
    %2132 = vmatprep.subr.mxu0 0.0
    %2133 = vmatpush2.msra.mxu0 0.0
    %2134 = vmatprep.subr.mxu0 0.0
    %2135 = vmatpush2.msra.mxu0 0.0
    %2136 = vmatprep.subr.mxu0 0.0
    %2137 = vmatpush2.msra.mxu0 0.0
    %2138 = vmatprep.subr.mxu0 0.0
    %2139 = vmatpush2.msra.mxu0 0.0
    %2140 = vmatprep.subr.mxu0 0.0
    %2141 = vmatpush2.msra.mxu0 0.0
    %2142 = vmatprep.subr.mxu0 0.0
    %2143 = vmatpush2.msra.mxu0 0.0
    %2144 = vmatprep.mubr.f32.mxu0 0.0
    %2145 = vmatmul.mubr.f32.gmra.mxu0 %v2078
    %v2146 = vpop.f32.mrf.mxu0
    %v2147 = vadd.f32 %v2074, %v2146
    %v2148 = vpop.f32.mrf.mxu0
    %2149 = vdwg.mxu0
    %v2150 = vmul.f32 %v2147, 0.5
    %v2151 = vmul.f32 %v2147, 0.70710677
    %v2152 = verf.f32.pop %v2151
    %v2153 = vadd.f32 %v2152, 1.0
    %v2154 = vmul.f32 %v2150, %v2153
    %v2155 = vld [vmem:[#allocation3] sm:$0xff]
    %v2156 = vld [vmem:[%s13] sm:$0xff]
    %v2157 = vld [vmem:[%s13 + $0x8] sm:$0xff]
    %v2158 = vld [vmem:[%s13 + $0x10] sm:$0xff]
    %v2159 = vld [vmem:[%s13 + $0x18] sm:$0xff]
    %v2160 = vld [vmem:[%s13 + $0x20] sm:$0xff]
    %v2161 = vld [vmem:[%s13 + $0x28] sm:$0xff]
    %v2162 = vld [vmem:[%s13 + $0x30] sm:$0xff]
    %v2163 = vld [vmem:[%s13 + $0x38] sm:$0xff]
    %vm2164 = vcmask 523264
    %v2166 = vsel %vm2164, %v2154, 0
    %2168 = vmatprep.subr.mxu0 0.0
    %2169 = vmatpush1.msra.mxu0 0.0
    %2170 = vmatprep.subr.mxu0 0.0
    %2171 = vmatpush1.msra.mxu0 0.0
    %2172 = vmatprep.subr.mxu0 0.0
    %2173 = vmatpush1.msra.mxu0 0.0
    %2174 = vmatprep.subr.mxu0 0.0
    %2175 = vmatpush1.msra.mxu0 0.0
    %2176 = vmatprep.subr.mxu0 0.0
    %2177 = vmatpush1.msra.mxu0 0.0
    %2178 = vmatprep.subr.mxu0 0.0
    %2179 = vmatpush1.msra.mxu0 0.0
    %2180 = vmatprep.subr.mxu0 0.0
    %2181 = vmatpush1.msra.mxu0 0.0
    %2182 = vmatprep.subr.mxu0 0.0
    %2183 = vmatpush1.msra.mxu0 0.0
    %2184 = vmatprep.subr.mxu0 0.0
    %2185 = vmatpush1.msra.mxu0 %v2163
    %2186 = vmatprep.subr.mxu0 0.0
    %2187 = vmatpush1.msra.mxu0 %v2162
    %2188 = vmatprep.subr.mxu0 0.0
    %2189 = vmatpush1.msra.mxu0 %v2161
    %2190 = vmatprep.subr.mxu0 0.0
    %2191 = vmatpush1.msra.mxu0 %v2160
    %2192 = vmatprep.subr.mxu0 0.0
    %2193 = vmatpush1.msra.mxu0 %v2159
    %2194 = vmatprep.subr.mxu0 0.0
    %2195 = vmatpush1.msra.mxu0 %v2158
    %2196 = vmatprep.subr.mxu0 0.0
    %2197 = vmatpush1.msra.mxu0 %v2157
    %2198 = vmatprep.subr.mxu0 0.0
    %2199 = vmatpush1.msra.mxu0 %v2156
    %2200 = vmatprep.subr.mxu0 0.0
    %2201 = vmatpush2.msra.mxu0 0.0
    %2202 = vmatprep.subr.mxu0 0.0
    %2203 = vmatpush2.msra.mxu0 0.0
    %2204 = vmatprep.subr.mxu0 0.0
    %2205 = vmatpush2.msra.mxu0 0.0
    %2206 = vmatprep.subr.mxu0 0.0
    %2207 = vmatpush2.msra.mxu0 0.0
    %2208 = vmatprep.subr.mxu0 0.0
    %2209 = vmatpush2.msra.mxu0 0.0
    %2210 = vmatprep.subr.mxu0 0.0
    %2211 = vmatpush2.msra.mxu0 0.0
    %2212 = vmatprep.subr.mxu0 0.0
    %2213 = vmatpush2.msra.mxu0 0.0
    %2214 = vmatprep.subr.mxu0 0.0
    %2215 = vmatpush2.msra.mxu0 0.0
    %2216 = vmatprep.subr.mxu0 0.0
    %2217 = vmatpush2.msra.mxu0 0.0
    %2218 = vmatprep.subr.mxu0 0.0
    %2219 = vmatpush2.msra.mxu0 0.0
    %2220 = vmatprep.subr.mxu0 0.0
    %2221 = vmatpush2.msra.mxu0 0.0
    %2222 = vmatprep.subr.mxu0 0.0
    %2223 = vmatpush2.msra.mxu0 0.0
    %2224 = vmatprep.subr.mxu0 0.0
    %2225 = vmatpush2.msra.mxu0 0.0
    %2226 = vmatprep.subr.mxu0 0.0
    %2227 = vmatpush2.msra.mxu0 0.0
    %2228 = vmatprep.subr.mxu0 0.0
    %2229 = vmatpush2.msra.mxu0 0.0
    %2230 = vmatprep.subr.mxu0 0.0
    %2231 = vmatpush2.msra.mxu0 0.0
    %2232 = vmatprep.mubr.f32.mxu0 0.0
    %2233 = vmatmul.mubr.f32.gmra.mxu0 %v2166
    %v2234 = vpop.f32.mrf.mxu0
    %v2235 = vadd.f32 0.0, %v2234
    %v2236 = vpop.f32.mrf.mxu0
    %2237 = vdwg.mxu0
    %v2238 = vadd.f32 %v2155, %v2235
    %2239 = vst.msk [vmem:[#allocation3] sm:$0xff] %vm2076, %v2238
    %s2240 = scalar_lea.vmem [#allocation2], 8
    %v2241 = vld [vmem:[%s2240] sm:$0xff]
    %v2242 = vld [vmem:[#allocation8] sm:$0xff]
    %v2243 = vld [vmem:[#allocation8 + $0x8] sm:$0xff]
    %v2244 = vld [vmem:[#allocation8 + $0x10] sm:$0xff]
    %v2245 = vld [vmem:[#allocation8 + $0x18] sm:$0xff]
    %v2246 = vld [vmem:[%s12] sm:$0x1]
    %v2248 = vlaneseq
    %v2249 = vshrl.u32 %v2248, 7
    %v2250 = vsub.s32 0, %v2249
    %v2251 = vrot.slane %v2246, %v2250
    %v2254 = vsel %vm2076, %v2241, 0
    %2256 = vmatprep.subr.mxu0 0.0
    %2257 = vmatpush1.msra.mxu0 0.0
    %2258 = vmatprep.subr.mxu0 0.0
    %2259 = vmatpush1.msra.mxu0 0.0
    %2260 = vmatprep.subr.mxu0 0.0
    %2261 = vmatpush1.msra.mxu0 0.0
    %2262 = vmatprep.subr.mxu0 0.0
    %2263 = vmatpush1.msra.mxu0 0.0
    %2264 = vmatprep.subr.mxu0 0.0
    %2265 = vmatpush1.msra.mxu0 0.0
    %2266 = vmatprep.subr.mxu0 0.0
    %2267 = vmatpush1.msra.mxu0 0.0
    %2268 = vmatprep.subr.mxu0 0.0
    %2269 = vmatpush1.msra.mxu0 0.0
    %2270 = vmatprep.subr.mxu0 0.0
    %2271 = vmatpush1.msra.mxu0 0.0
    %2272 = vmatprep.subr.mxu0 0.0
    %2273 = vmatpush1.msra.mxu0 0.0
    %2274 = vmatprep.subr.mxu0 0.0
    %2275 = vmatpush1.msra.mxu0 0.0
    %2276 = vmatprep.subr.mxu0 0.0
    %2277 = vmatpush1.msra.mxu0 0.0
    %2278 = vmatprep.subr.mxu0 0.0
    %2279 = vmatpush1.msra.mxu0 0.0
    %2280 = vmatprep.subr.mxu0 0.0
    %2281 = vmatpush1.msra.mxu0 %v2245
    %2282 = vmatprep.subr.mxu0 0.0
    %2283 = vmatpush1.msra.mxu0 %v2244
    %2284 = vmatprep.subr.mxu0 0.0
    %2285 = vmatpush1.msra.mxu0 %v2243
    %2286 = vmatprep.subr.mxu0 0.0
    %2287 = vmatpush1.msra.mxu0 %v2242
    %2288 = vmatprep.subr.mxu0 0.0
    %2289 = vmatpush2.msra.mxu0 0.0
    %2290 = vmatprep.subr.mxu0 0.0
    %2291 = vmatpush2.msra.mxu0 0.0
    %2292 = vmatprep.subr.mxu0 0.0
    %2293 = vmatpush2.msra.mxu0 0.0
    %2294 = vmatprep.subr.mxu0 0.0
    %2295 = vmatpush2.msra.mxu0 0.0
    %2296 = vmatprep.subr.mxu0 0.0
    %2297 = vmatpush2.msra.mxu0 0.0
    %2298 = vmatprep.subr.mxu0 0.0
    %2299 = vmatpush2.msra.mxu0 0.0
    %2300 = vmatprep.subr.mxu0 0.0
    %2301 = vmatpush2.msra.mxu0 0.0
    %2302 = vmatprep.subr.mxu0 0.0
    %2303 = vmatpush2.msra.mxu0 0.0
    %2304 = vmatprep.subr.mxu0 0.0
    %2305 = vmatpush2.msra.mxu0 0.0
    %2306 = vmatprep.subr.mxu0 0.0
    %2307 = vmatpush2.msra.mxu0 0.0
    %2308 = vmatprep.subr.mxu0 0.0
    %2309 = vmatpush2.msra.mxu0 0.0
    %2310 = vmatprep.subr.mxu0 0.0
    %2311 = vmatpush2.msra.mxu0 0.0
    %2312 = vmatprep.subr.mxu0 0.0
    %2313 = vmatpush2.msra.mxu0 0.0
    %2314 = vmatprep.subr.mxu0 0.0
    %2315 = vmatpush2.msra.mxu0 0.0
    %2316 = vmatprep.subr.mxu0 0.0
    %2317 = vmatpush2.msra.mxu0 0.0
    %2318 = vmatprep.subr.mxu0 0.0
    %2319 = vmatpush2.msra.mxu0 0.0
    %2320 = vmatprep.mubr.f32.mxu0 0.0
    %2321 = vmatmul.mubr.f32.gmra.mxu0 %v2254
    %v2322 = vpop.f32.mrf.mxu0
    %v2323 = vadd.f32 %v2251, %v2322
    %v2324 = vpop.f32.mrf.mxu0
    %2325 = vdwg.mxu0
    %v2326 = vmul.f32 %v2323, 0.5
    %v2327 = vmul.f32 %v2323, 0.70710677
    %v2328 = verf.f32.pop %v2327
    %v2329 = vadd.f32 %v2328, 1.0
    %v2330 = vmul.f32 %v2326, %v2329
    %s2331 = scalar_lea.vmem [#allocation3], 8
    %v2332 = vld [vmem:[%s2331] sm:$0xff]
    %v2333 = vld [vmem:[%s13] sm:$0xff]
    %v2334 = vld [vmem:[%s13 + $0x8] sm:$0xff]
    %v2335 = vld [vmem:[%s13 + $0x10] sm:$0xff]
    %v2336 = vld [vmem:[%s13 + $0x18] sm:$0xff]
    %v2337 = vld [vmem:[%s13 + $0x20] sm:$0xff]
    %v2338 = vld [vmem:[%s13 + $0x28] sm:$0xff]
    %v2339 = vld [vmem:[%s13 + $0x30] sm:$0xff]
    %v2340 = vld [vmem:[%s13 + $0x38] sm:$0xff]
    %v2342 = vsel %vm2164, %v2330, 0
    %2344 = vmatprep.subr.mxu0 0.0
    %2345 = vmatpush1.msra.mxu0 0.0
    %2346 = vmatprep.subr.mxu0 0.0
    %2347 = vmatpush1.msra.mxu0 0.0
    %2348 = vmatprep.subr.mxu0 0.0
    %2349 = vmatpush1.msra.mxu0 0.0
    %2350 = vmatprep.subr.mxu0 0.0
    %2351 = vmatpush1.msra.mxu0 0.0
    %2352 = vmatprep.subr.mxu0 0.0
    %2353 = vmatpush1.msra.mxu0 0.0
    %2354 = vmatprep.subr.mxu0 0.0
    %2355 = vmatpush1.msra.mxu0 0.0
    %2356 = vmatprep.subr.mxu0 0.0
    %2357 = vmatpush1.msra.mxu0 0.0
    %2358 = vmatprep.subr.mxu0 0.0
    %2359 = vmatpush1.msra.mxu0 0.0
    %2360 = vmatprep.subr.mxu0 0.0
    %2361 = vmatpush1.msra.mxu0 %v2340
    %2362 = vmatprep.subr.mxu0 0.0
    %2363 = vmatpush1.msra.mxu0 %v2339
    %2364 = vmatprep.subr.mxu0 0.0
    %2365 = vmatpush1.msra.mxu0 %v2338
    %2366 = vmatprep.subr.mxu0 0.0
    %2367 = vmatpush1.msra.mxu0 %v2337
    %2368 = vmatprep.subr.mxu0 0.0
    %2369 = vmatpush1.msra.mxu0 %v2336
    %2370 = vmatprep.subr.mxu0 0.0
    %2371 = vmatpush1.msra.mxu0 %v2335
    %2372 = vmatprep.subr.mxu0 0.0
    %2373 = vmatpush1.msra.mxu0 %v2334
    %2374 = vmatprep.subr.mxu0 0.0
    %2375 = vmatpush1.msra.mxu0 %v2333
    %2376 = vmatprep.subr.mxu0 0.0
    %2377 = vmatpush2.msra.mxu0 0.0
    %2378 = vmatprep.subr.mxu0 0.0
    %2379 = vmatpush2.msra.mxu0 0.0
    %2380 = vmatprep.subr.mxu0 0.0
    %2381 = vmatpush2.msra.mxu0 0.0
    %2382 = vmatprep.subr.mxu0 0.0
    %2383 = vmatpush2.msra.mxu0 0.0
    %2384 = vmatprep.subr.mxu0 0.0
    %2385 = vmatpush2.msra.mxu0 0.0
    %2386 = vmatprep.subr.mxu0 0.0
    %2387 = vmatpush2.msra.mxu0 0.0
    %2388 = vmatprep.subr.mxu0 0.0
    %2389 = vmatpush2.msra.mxu0 0.0
    %2390 = vmatprep.subr.mxu0 0.0
    %2391 = vmatpush2.msra.mxu0 0.0
    %2392 = vmatprep.subr.mxu0 0.0
    %2393 = vmatpush2.msra.mxu0 0.0
    %2394 = vmatprep.subr.mxu0 0.0
    %2395 = vmatpush2.msra.mxu0 0.0
    %2396 = vmatprep.subr.mxu0 0.0
    %2397 = vmatpush2.msra.mxu0 0.0
    %2398 = vmatprep.subr.mxu0 0.0
    %2399 = vmatpush2.msra.mxu0 0.0
    %2400 = vmatprep.subr.mxu0 0.0
    %2401 = vmatpush2.msra.mxu0 0.0
    %2402 = vmatprep.subr.mxu0 0.0
    %2403 = vmatpush2.msra.mxu0 0.0
    %2404 = vmatprep.subr.mxu0 0.0
    %2405 = vmatpush2.msra.mxu0 0.0
    %2406 = vmatprep.subr.mxu0 0.0
    %2407 = vmatpush2.msra.mxu0 0.0
    %2408 = vmatprep.mubr.f32.mxu0 0.0
    %2409 = vmatmul.mubr.f32.gmra.mxu0 %v2342
    %v2410 = vpop.f32.mrf.mxu0
    %v2411 = vadd.f32 0.0, %v2410
    %v2412 = vpop.f32.mrf.mxu0
    %2413 = vdwg.mxu0
    %v2414 = vadd.f32 %v2332, %v2411
    %2415 = vst.msk [vmem:[%s2331] sm:$0xff] %vm2076, %v2414
    // Predicated region
    $region74: #{tpu_custom_call.1} parent=1 // pred_check
      %p2416 = pneg %p79
    $region75: #{tpu_custom_call.1} parent=1 // pred_check_branch
      %2418 = sbr.rel (%p2416) target = $region77
    $region76: #{tpu_custom_call.1} parent=1 // pred_region
      %v2419 = vld [vmem:[#allocation3] sm:$0xff]
      %v2420 = vld [vmem:[#allocation3 + $0x8] sm:$0xff]
      %2421 = vst.msk [vmem:[#allocation10] sm:$0xff] %vm2076, %v2419
      %2422 = vst.msk [vmem:[#allocation10 + $0x8] sm:$0xff] %vm2076, %v2420
    $region77: #{tpu_custom_call.1} parent=1 // pred_fallthru
      _
    // Predicated region
    $region78: #{tpu_custom_call.1} parent=1 // pred_check
      _
    $region79: #{tpu_custom_call.1} parent=1 // pred_check_branch
      %2424 = sbr.rel (0) target = $region81
    $region80: #{tpu_custom_call.1} parent=1 // pred_region
      %s2426 = ssub.s32 256, 256
      %2427 = vsyncadd [#allocation7], %s2426
      %s2428 = sshll.u32 [#allocation10], 4
      %s2429 = int_to_ptr.vmem [resolvable:$true] %s2428
      %2434 = dma.vmem_to_hbm [thread:$0]  %s2429, 256, %s15, [#allocation7], 128, 128, 8
    $region81: #{tpu_custom_call.1} parent=1 // pred_fallthru
      _
    // Predicated region
    $region82: #{tpu_custom_call.1} parent=1 // pred_check
      _
    $region83: #{tpu_custom_call.1} parent=1 // pred_check_branch
      %2436 = sbr.rel (0) target = $region85
    $region84: #{tpu_custom_call.1} parent=1 // pred_region
      %2437 = dma.done [#allocation7], 256
    $region85: #{tpu_custom_call.1} parent=1 // pred_fallthru
      _
    %2438 = vsyncpa [#allocation6], 1
    %2439 = vsyncpa [#allocation9], 1
    %2440 = vsyncpa [#allocation7], 1

// kernel: tpu_custom_call.1
$region0: #{tpu_custom_call.1}
  #allocation0 [shape = 'u32[]', space=smem, size = 0x4, offset = 0x4, fixed_abs, tag = 'smem constant byte address 0x4 - core index']
  #allocation1 [shape = 'u32[144,128]{1,0:T(1,128)}', space=vmem, size = 0x12000, scoped, tag = 'internal scratch']
  #allocation2 [shape = 'f32[2,8,32]{2,1,0:T(8,128)}', space=vmem, size = 0x2000, scoped, tag = 'scratch operand']
  #allocation3 [shape = 'f32[2,8,32]{2,1,0:T(8,128)}', space=vmem, size = 0x2000, scoped, tag = 'scratch operand']
  #allocation4 [shape = 'f32[8,32]{1,0:T(8,128)}', space=vmem, size = 0x1000, scoped, tag = 'scratch operand']
  %s0 = inlined_call_operand.hbm [shape: f32[2,8,32], index: 0, kind: input, shape index: {}]
  %s1 = inlined_call_operand.vmem [shape: f32[1,32], index: 1, kind: input, shape index: {}]
  %s2 = inlined_call_operand.vmem [shape: f32[1,32], index: 2, kind: input, shape index: {}]
  %s3 = inlined_call_operand.vmem [shape: f32[32,32], index: 3, kind: input, shape index: {}]
  %s4 = inlined_call_operand.vmem [shape: f32[1,32], index: 4, kind: input, shape index: {}]
  %s5 = inlined_call_operand.vmem [shape: f32[32,32], index: 5, kind: input, shape index: {}]
  %s6 = inlined_call_operand.vmem [shape: f32[1,32], index: 6, kind: input, shape index: {}]
  %s7 = inlined_call_operand.vmem [shape: f32[32,32], index: 7, kind: input, shape index: {}]
  %s8 = inlined_call_operand.vmem [shape: f32[1,32], index: 8, kind: input, shape index: {}]
  %s9 = inlined_call_operand.vmem [shape: f32[1,32], index: 9, kind: input, shape index: {}]
  %s10 = inlined_call_operand.vmem [shape: f32[1,32], index: 10, kind: input, shape index: {}]
  %s11 = inlined_call_operand.hbm [shape: f32[32,64], index: 11, kind: input, shape index: {}]
  %s12 = inlined_call_operand.vmem [shape: f32[1,64], index: 12, kind: input, shape index: {}]
  %s13 = inlined_call_operand.vmem [shape: f32[64,32], index: 13, kind: input, shape index: {}]
  %s14 = inlined_call_operand.vmem [shape: f32[1,32], index: 14, kind: input, shape index: {}]
  %s15 = inlined_call_operand.hbm [shape: f32[2,8,32], index: 15, kind: output, shape index: {}]
  %s16 = sld [smem:[#allocation0]]
  $region86: #{tpu_custom_call.1} parent=0
    _
  %s18 = ssub.s32 1, %s16
  %s19 = scalar_select 0, %s18, %s16
  $region1: #{tpu_custom_call.1} parent=0
    #allocation5 [shape = 'u8[8192]{0}', space=vmem, size = 0x2000, scoped, tag = 'input window, operand 0, single buffered']
    #allocation6 [shape = 's32[1]{0}', space=sflag, size = 0x4, scoped, tag = 'scoped memory for tpu_custom_call.1']
    #allocation7 [shape = 's32[1]{0}', space=sflag, size = 0x4, scoped, tag = 'scoped memory for tpu_custom_call.1']
    #allocation8 [shape = 'u8[16384]{0}', space=vmem, size = 0x4000, scoped, tag = 'input window, operand 11, single buffered']
    #allocation9 [shape = 's32[1]{0}', space=sflag, size = 0x4, scoped, tag = 'scoped memory for tpu_custom_call.1']
    #allocation10 [shape = 'u8[8192]{0}', space=vmem, size = 0x2000, scoped, tag = 'output window, operand 0, single buffered']
    %20 = vsyncpa [#allocation6], 0
    %21 = vsyncpa [#allocation9], 0
    %22 = vsyncpa [#allocation7], 0
    // Predicated region
    $region2: #{tpu_custom_call.1} parent=1 // pred_check
      _
    $region3: #{tpu_custom_call.1} parent=1 // pred_check_branch
      %24 = sbr.rel (0) target = $region5
    $region4: #{tpu_custom_call.1} parent=1 // pred_region
      %s26 = ssub.s32 256, 256
      %27 = vsyncadd [#allocation6], %s26
      %s28 = sshll.u32 [#allocation5], 4
      %s29 = int_to_ptr.vmem [resolvable:$true] %s28
      %34 = dma.hbm_to_vmem [thread:$0]  %s0, 256, %s29, [#allocation6], 128, 128, 8
    $region5: #{tpu_custom_call.1} parent=1 // pred_fallthru
      _
    // Predicated region
    $region6: #{tpu_custom_call.1} parent=1 // pred_check
      _
    $region7: #{tpu_custom_call.1} parent=1 // pred_check_branch
      %36 = sbr.rel (0) target = $region9
    $region8: #{tpu_custom_call.1} parent=1 // pred_region
      _
    $region9: #{tpu_custom_call.1} parent=1 // pred_fallthru
      _
    // Predicated region
    $region10: #{tpu_custom_call.1} parent=1 // pred_check
      _
    $region11: #{tpu_custom_call.1} parent=1 // pred_check_branch
      %38 = sbr.rel (0) target = $region13
    $region12: #{tpu_custom_call.1} parent=1 // pred_region
      _
    $region13: #{tpu_custom_call.1} parent=1 // pred_fallthru
      _
    // Predicated region
    $region14: #{tpu_custom_call.1} parent=1 // pred_check
      _
    $region15: #{tpu_custom_call.1} parent=1 // pred_check_branch
      %40 = sbr.rel (0) target = $region17
    $region16: #{tpu_custom_call.1} parent=1 // pred_region
      _
    $region17: #{tpu_custom_call.1} parent=1 // pred_fallthru
      _
    // Predicated region
    $region18: #{tpu_custom_call.1} parent=1 // pred_check
      _
    $region19: #{tpu_custom_call.1} parent=1 // pred_check_branch
      %42 = sbr.rel (0) target = $region21
    $region20: #{tpu_custom_call.1} parent=1 // pred_region
      _
    $region21: #{tpu_custom_call.1} parent=1 // pred_fallthru
      _
    // Predicated region
    $region22: #{tpu_custom_call.1} parent=1 // pred_check
      _
    $region23: #{tpu_custom_call.1} parent=1 // pred_check_branch
      %44 = sbr.rel (0) target = $region25
    $region24: #{tpu_custom_call.1} parent=1 // pred_region
      _
    $region25: #{tpu_custom_call.1} parent=1 // pred_fallthru
      _
    // Predicated region
    $region26: #{tpu_custom_call.1} parent=1 // pred_check
      _
    $region27: #{tpu_custom_call.1} parent=1 // pred_check_branch
      %46 = sbr.rel (0) target = $region29
    $region28: #{tpu_custom_call.1} parent=1 // pred_region
      _
    $region29: #{tpu_custom_call.1} parent=1 // pred_fallthru
      _
    // Predicated region
    $region30: #{tpu_custom_call.1} parent=1 // pred_check
      _
    $region31: #{tpu_custom_call.1} parent=1 // pred_check_branch
      %48 = sbr.rel (0) target = $region33
    $region32: #{tpu_custom_call.1} parent=1 // pred_region
      _
    $region33: #{tpu_custom_call.1} parent=1 // pred_fallthru
      _
    // Predicated region
    $region34: #{tpu_custom_call.1} parent=1 // pred_check
      _
    $region35: #{tpu_custom_call.1} parent=1 // pred_check_branch
      %50 = sbr.rel (0) target = $region37
    $region36: #{tpu_custom_call.1} parent=1 // pred_region
      _
    $region37: #{tpu_custom_call.1} parent=1 // pred_fallthru
      _
    // Predicated region
    $region38: #{tpu_custom_call.1} parent=1 // pred_check
      _
    $region39: #{tpu_custom_call.1} parent=1 // pred_check_branch
      %52 = sbr.rel (0) target = $region41
    $region40: #{tpu_custom_call.1} parent=1 // pred_region
      _
    $region41: #{tpu_custom_call.1} parent=1 // pred_fallthru
      _
    // Predicated region
    $region42: #{tpu_custom_call.1} parent=1 // pred_check
      _
    $region43: #{tpu_custom_call.1} parent=1 // pred_check_branch
      %54 = sbr.rel (0) target = $region45
    $region44: #{tpu_custom_call.1} parent=1 // pred_region
      _
    $region45: #{tpu_custom_call.1} parent=1 // pred_fallthru
      _
    // Predicated region
    $region46: #{tpu_custom_call.1} parent=1 // pred_check
      _
    $region47: #{tpu_custom_call.1} parent=1 // pred_check_branch
      %56 = sbr.rel (0) target = $region49
    $region48: #{tpu_custom_call.1} parent=1 // pred_region
      %s58 = ssub.s32 512, 512
      %59 = vsyncadd [#allocation9], %s58
      %s60 = sshll.u32 [#allocation8], 4
      %s61 = int_to_ptr.vmem [resolvable:$true] %s60
      %66 = dma.hbm_to_vmem [thread:$0]  %s11, 512, %s61, [#allocation9], 128, 128, 8
    $region49: #{tpu_custom_call.1} parent=1 // pred_fallthru
      _
    // Predicated region
    $region50: #{tpu_custom_call.1} parent=1 // pred_check
      _
    $region51: #{tpu_custom_call.1} parent=1 // pred_check_branch
      %68 = sbr.rel (0) target = $region53
    $region52: #{tpu_custom_call.1} parent=1 // pred_region
      _
    $region53: #{tpu_custom_call.1} parent=1 // pred_fallthru
      _
    // Predicated region
    $region54: #{tpu_custom_call.1} parent=1 // pred_check
      _
    $region55: #{tpu_custom_call.1} parent=1 // pred_check_branch
      %70 = sbr.rel (0) target = $region57
    $region56: #{tpu_custom_call.1} parent=1 // pred_region
      _
    $region57: #{tpu_custom_call.1} parent=1 // pred_fallthru
      _
    // Predicated region
    $region58: #{tpu_custom_call.1} parent=1 // pred_check
      _
    $region59: #{tpu_custom_call.1} parent=1 // pred_check_branch
      %72 = sbr.rel (0) target = $region61
    $region60: #{tpu_custom_call.1} parent=1 // pred_region
      _
    $region61: #{tpu_custom_call.1} parent=1 // pred_fallthru
      _
    // Predicated region
    $region62: #{tpu_custom_call.1} parent=1 // pred_check
      _
    $region63: #{tpu_custom_call.1} parent=1 // pred_check_branch
      %74 = sbr.rel (0) target = $region65
    $region64: #{tpu_custom_call.1} parent=1 // pred_region
      %75 = dma.done [#allocation6], 256
    $region65: #{tpu_custom_call.1} parent=1 // pred_fallthru
      _
    // Predicated region
    $region66: #{tpu_custom_call.1} parent=1 // pred_check
      _
    $region67: #{tpu_custom_call.1} parent=1 // pred_check_branch
      %77 = sbr.rel (0) target = $region69
    $region68: #{tpu_custom_call.1} parent=1 // pred_region
      %78 = dma.done [#allocation9], 512
    $region69: #{tpu_custom_call.1} parent=1 // pred_fallthru
      _
    %p79 = scmp.eq.s32.totalorder 0, 0
    // Predicated region
    $region70: #{tpu_custom_call.1} parent=1 // pred_check
      %p80 = pneg %p79
    $region71: #{tpu_custom_call.1} parent=1 // pred_check_branch
      %82 = sbr.rel (%p80) target = $region73
    $region72: #{tpu_custom_call.1} parent=1 // pred_region
      %v83 = vld [vmem:[#allocation5] sm:$0xff]
      %v84 = vld [vmem:[%s1] sm:$0x1]
      %v85 = vld [vmem:[%s2] sm:$0x1]
      %vm86 = vcmask 261120
      %v87 = vsel %vm86, %v83, 0.0
      %88 = vadd.xlane.f32.xlu0 %v87
      %v89 = vpop.xlane.xlu0 %88
      %v90 = vrcp.pop 32.0
      %v91 = vmul.f32 %v89, %v90
      %v92 = vsub.f32 %v83, %v91
      %v93 = vmul.f32 %v92, %v92
      %v94 = vsel %vm86, %v93, 0.0
      %95 = vadd.xlane.f32.xlu0 %v94
      %v96 = vpop.xlane.xlu0 %95
      %v97 = vmul.f32 %v96, %v90
      %v98 = vadd.f32 %v97, 1e-05
      %v99 = vrsqrt.pop %v98
      %v100 = vmul.f32 %v92, %v99
      %v102 = vlaneseq
      %v103 = vshrl.u32 %v102, 7
      %v104 = vsub.s32 0, %v103
      %v105 = vrot.slane %v84, %v104
      %v107 = vmul.f32 %v100, %v105
      %v109 = vlaneseq
      %v110 = vshrl.u32 %v109, 7
      %v111 = vsub.s32 0, %v110
      %v112 = vrot.slane %v85, %v111
      %v114 = vadd.f32 %v107, %v112
      %v115 = vld [vmem:[%s3] sm:$0xff]
      %v116 = vld [vmem:[%s3 + $0x8] sm:$0xff]
      %v117 = vld [vmem:[%s3 + $0x10] sm:$0xff]
      %v118 = vld [vmem:[%s3 + $0x18] sm:$0xff]
      %v119 = vld [vmem:[%s4] sm:$0x1]
      %v121 = vlaneseq
      %v122 = vshrl.u32 %v121, 7
      %v123 = vsub.s32 0, %v122
      %v124 = vrot.slane %v119, %v123
      %v127 = vsel %vm86, %v114, 0
      %129 = vmatprep.subr.mxu0 0.0
      %130 = vmatpush1.msra.mxu0 0.0
      %131 = vmatprep.subr.mxu0 0.0
      %132 = vmatpush1.msra.mxu0 0.0
      %133 = vmatprep.subr.mxu0 0.0
      %134 = vmatpush1.msra.mxu0 0.0
      %135 = vmatprep.subr.mxu0 0.0
      %136 = vmatpush1.msra.mxu0 0.0
      %137 = vmatprep.subr.mxu0 0.0
      %138 = vmatpush1.msra.mxu0 0.0
      %139 = vmatprep.subr.mxu0 0.0
      %140 = vmatpush1.msra.mxu0 0.0
      %141 = vmatprep.subr.mxu0 0.0
      %142 = vmatpush1.msra.mxu0 0.0
      %143 = vmatprep.subr.mxu0 0.0
      %144 = vmatpush1.msra.mxu0 0.0
      %145 = vmatprep.subr.mxu0 0.0
      %146 = vmatpush1.msra.mxu0 0.0
      %147 = vmatprep.subr.mxu0 0.0
      %148 = vmatpush1.msra.mxu0 0.0
      %149 = vmatprep.subr.mxu0 0.0
      %150 = vmatpush1.msra.mxu0 0.0
      %151 = vmatprep.subr.mxu0 0.0
      %152 = vmatpush1.msra.mxu0 0.0
      %153 = vmatprep.subr.mxu0 0.0
      %154 = vmatpush1.msra.mxu0 %v118
      %155 = vmatprep.subr.mxu0 0.0
      %156 = vmatpush1.msra.mxu0 %v117
      %157 = vmatprep.subr.mxu0 0.0
      %158 = vmatpush1.msra.mxu0 %v116
      %159 = vmatprep.subr.mxu0 0.0
      %160 = vmatpush1.msra.mxu0 %v115
      %161 = vmatprep.subr.mxu0 0.0
      %162 = vmatpush2.msra.mxu0 0.0
      %163 = vmatprep.subr.mxu0 0.0
      %164 = vmatpush2.msra.mxu0 0.0
      %165 = vmatprep.subr.mxu0 0.0
      %166 = vmatpush2.msra.mxu0 0.0
      %167 = vmatprep.subr.mxu0 0.0
      %168 = vmatpush2.msra.mxu0 0.0
      %169 = vmatprep.subr.mxu0 0.0
      %170 = vmatpush2.msra.mxu0 0.0
      %171 = vmatprep.subr.mxu0 0.0
      %172 = vmatpush2.msra.mxu0 0.0
      %173 = vmatprep.subr.mxu0 0.0
      %174 = vmatpush2.msra.mxu0 0.0
      %175 = vmatprep.subr.mxu0 0.0
      %176 = vmatpush2.msra.mxu0 0.0
      %177 = vmatprep.subr.mxu0 0.0
      %178 = vmatpush2.msra.mxu0 0.0
      %179 = vmatprep.subr.mxu0 0.0
      %180 = vmatpush2.msra.mxu0 0.0
      %181 = vmatprep.subr.mxu0 0.0
      %182 = vmatpush2.msra.mxu0 0.0
      %183 = vmatprep.subr.mxu0 0.0
      %184 = vmatpush2.msra.mxu0 0.0
      %185 = vmatprep.subr.mxu0 0.0
      %186 = vmatpush2.msra.mxu0 0.0
      %187 = vmatprep.subr.mxu0 0.0
      %188 = vmatpush2.msra.mxu0 0.0
      %189 = vmatprep.subr.mxu0 0.0
      %190 = vmatpush2.msra.mxu0 0.0
      %191 = vmatprep.subr.mxu0 0.0
      %192 = vmatpush2.msra.mxu0 0.0
      %193 = vmatprep.mubr.f32.mxu0 0.0
      %194 = vmatmul.mubr.f32.gmra.mxu0 %v127
      %v195 = vpop.f32.mrf.mxu0
      %v196 = vadd.f32 %v124, %v195
      %v197 = vpop.f32.mrf.mxu0
      %198 = vdwg.mxu0
      %v199 = vld [vmem:[%s5] sm:$0xff]
      %v200 = vld [vmem:[%s5 + $0x8] sm:$0xff]
      %v201 = vld [vmem:[%s5 + $0x10] sm:$0xff]
      %v202 = vld [vmem:[%s5 + $0x18] sm:$0xff]
      %v203 = vld [vmem:[%s6] sm:$0x1]
      %v205 = vlaneseq
      %v206 = vshrl.u32 %v205, 7
      %v207 = vsub.s32 0, %v206
      %v208 = vrot.slane %v203, %v207
      %210 = vmatprep.subr.mxu0 0.0
      %211 = vmatpush1.msra.mxu0 0.0
      %212 = vmatprep.subr.mxu0 0.0
      %213 = vmatpush1.msra.mxu0 0.0
      %214 = vmatprep.subr.mxu0 0.0
      %215 = vmatpush1.msra.mxu0 0.0
      %216 = vmatprep.subr.mxu0 0.0
      %217 = vmatpush1.msra.mxu0 0.0
      %218 = vmatprep.subr.mxu0 0.0
      %219 = vmatpush1.msra.mxu0 0.0
      %220 = vmatprep.subr.mxu0 0.0
      %221 = vmatpush1.msra.mxu0 0.0
      %222 = vmatprep.subr.mxu0 0.0
      %223 = vmatpush1.msra.mxu0 0.0
      %224 = vmatprep.subr.mxu0 0.0
      %225 = vmatpush1.msra.mxu0 0.0
      %226 = vmatprep.subr.mxu0 0.0
      %227 = vmatpush1.msra.mxu0 0.0
      %228 = vmatprep.subr.mxu0 0.0
      %229 = vmatpush1.msra.mxu0 0.0
      %230 = vmatprep.subr.mxu0 0.0
      %231 = vmatpush1.msra.mxu0 0.0
      %232 = vmatprep.subr.mxu0 0.0
      %233 = vmatpush1.msra.mxu0 0.0
      %234 = vmatprep.subr.mxu0 0.0
      %235 = vmatpush1.msra.mxu0 %v202
      %236 = vmatprep.subr.mxu0 0.0
      %237 = vmatpush1.msra.mxu0 %v201
      %238 = vmatprep.subr.mxu0 0.0
      %239 = vmatpush1.msra.mxu0 %v200
      %240 = vmatprep.subr.mxu0 0.0
      %241 = vmatpush1.msra.mxu0 %v199
      %242 = vmatprep.subr.mxu0 0.0
      %243 = vmatpush2.msra.mxu0 0.0
      %244 = vmatprep.subr.mxu0 0.0
      %245 = vmatpush2.msra.mxu0 0.0
      %246 = vmatprep.subr.mxu0 0.0
      %247 = vmatpush2.msra.mxu0 0.0
      %248 = vmatprep.subr.mxu0 0.0
      %249 = vmatpush2.msra.mxu0 0.0
      %250 = vmatprep.subr.mxu0 0.0
      %251 = vmatpush2.msra.mxu0 0.0
      %252 = vmatprep.subr.mxu0 0.0
      %253 = vmatpush2.msra.mxu0 0.0
      %254 = vmatprep.subr.mxu0 0.0
      %255 = vmatpush2.msra.mxu0 0.0
      %256 = vmatprep.subr.mxu0 0.0
      %257 = vmatpush2.msra.mxu0 0.0
      %258 = vmatprep.subr.mxu0 0.0
      %259 = vmatpush2.msra.mxu0 0.0
      %260 = vmatprep.subr.mxu0 0.0
      %261 = vmatpush2.msra.mxu0 0.0
      %262 = vmatprep.subr.mxu0 0.0
      %263 = vmatpush2.msra.mxu0 0.0
      %264 = vmatprep.subr.mxu0 0.0
      %265 = vmatpush2.msra.mxu0 0.0
      %266 = vmatprep.subr.mxu0 0.0
      %267 = vmatpush2.msra.mxu0 0.0
      %268 = vmatprep.subr.mxu0 0.0
      %269 = vmatpush2.msra.mxu0 0.0
      %270 = vmatprep.subr.mxu0 0.0
      %271 = vmatpush2.msra.mxu0 0.0
      %272 = vmatprep.subr.mxu0 0.0
      %273 = vmatpush2.msra.mxu0 0.0
      %274 = vmatprep.mubr.f32.mxu0 0.0
      %275 = vmatmul.mubr.f32.gmra.mxu0 %v127
      %v276 = vpop.f32.mrf.mxu0
      %v277 = vadd.f32 %v208, %v276
      %v278 = vpop.f32.mrf.mxu0
      %279 = vdwg.mxu0
      %v280 = vmul.f32 %v277, 0.35355338
      %vm281 = vcmask 64512
      %v283 = vsel %vm281, %v196, 0
      %v286 = vsel %vm281, %v280, 0
      %288 = vmatprep.subr.mxu0 0.0
      %289 = vmatpush1.xpose.msra.mxu0 0.0
      %290 = vmatprep.subr.mxu0 0.0
      %291 = vmatpush1.xpose.msra.mxu0 0.0
      %292 = vmatprep.subr.mxu0 0.0
      %293 = vmatpush1.xpose.msra.mxu0 0.0
      %294 = vmatprep.subr.mxu0 0.0
      %295 = vmatpush1.xpose.msra.mxu0 0.0
      %296 = vmatprep.subr.mxu0 0.0
      %297 = vmatpush1.xpose.msra.mxu0 0.0
      %298 = vmatprep.subr.mxu0 0.0
      %299 = vmatpush1.xpose.msra.mxu0 0.0
      %300 = vmatprep.subr.mxu0 0.0
      %301 = vmatpush1.xpose.msra.mxu0 0.0
      %302 = vmatprep.subr.mxu0 0.0
      %303 = vmatpush1.xpose.msra.mxu0 0.0
      %304 = vmatprep.subr.mxu0 0.0
      %305 = vmatpush1.xpose.msra.mxu0 0.0
      %306 = vmatprep.subr.mxu0 0.0
      %307 = vmatpush1.xpose.msra.mxu0 0.0
      %308 = vmatprep.subr.mxu0 0.0
      %309 = vmatpush1.xpose.msra.mxu0 0.0
      %310 = vmatprep.subr.mxu0 0.0
      %311 = vmatpush1.xpose.msra.mxu0 0.0
      %312 = vmatprep.subr.mxu0 0.0
      %313 = vmatpush1.xpose.msra.mxu0 0.0
      %314 = vmatprep.subr.mxu0 0.0
      %315 = vmatpush1.xpose.msra.mxu0 0.0
      %316 = vmatprep.subr.mxu0 0.0
      %317 = vmatpush1.xpose.msra.mxu0 0.0
      %318 = vmatprep.subr.mxu0 0.0
      %319 = vmatpush1.xpose.msra.mxu0 %v286
      %320 = vmatprep.subr.mxu0 0.0
      %321 = vmatpush2.xpose.msra.mxu0 0.0
      %322 = vmatprep.subr.mxu0 0.0
      %323 = vmatpush2.xpose.msra.mxu0 0.0
      %324 = vmatprep.subr.mxu0 0.0
      %325 = vmatpush2.xpose.msra.mxu0 0.0
      %326 = vmatprep.subr.mxu0 0.0
      %327 = vmatpush2.xpose.msra.mxu0 0.0
      %328 = vmatprep.subr.mxu0 0.0
      %329 = vmatpush2.xpose.msra.mxu0 0.0
      %330 = vmatprep.subr.mxu0 0.0
      %331 = vmatpush2.xpose.msra.mxu0 0.0
      %332 = vmatprep.subr.mxu0 0.0
      %333 = vmatpush2.xpose.msra.mxu0 0.0
      %334 = vmatprep.subr.mxu0 0.0
      %335 = vmatpush2.xpose.msra.mxu0 0.0
      %336 = vmatprep.subr.mxu0 0.0
      %337 = vmatpush2.xpose.msra.mxu0 0.0
      %338 = vmatprep.subr.mxu0 0.0
      %339 = vmatpush2.xpose.msra.mxu0 0.0
      %340 = vmatprep.subr.mxu0 0.0
      %341 = vmatpush2.xpose.msra.mxu0 0.0
      %342 = vmatprep.subr.mxu0 0.0
      %343 = vmatpush2.xpose.msra.mxu0 0.0
      %344 = vmatprep.subr.mxu0 0.0
      %345 = vmatpush2.xpose.msra.mxu0 0.0
      %346 = vmatprep.subr.mxu0 0.0
      %347 = vmatpush2.xpose.msra.mxu0 0.0
      %348 = vmatprep.subr.mxu0 0.0
      %349 = vmatpush2.xpose.msra.mxu0 0.0
      %350 = vmatprep.subr.mxu0 0.0
      %351 = vmatpush2.xpose.msra.mxu0 0.0
      %352 = vmatprep.mubr.f32.mxu0 0.0
      %353 = vmatmul.mubr.f32.gmra.mxu0 %v283
      %v354 = vpop.f32.mrf.mxu0
      %v355 = vadd.f32 0.0, %v354
      %v356 = vpop.f32.mrf.mxu0
      %357 = vdwg.mxu0
      %v358 = vsel %vm281, %v355, -inf
      %359 = vmax.xlane.f32.xlu0 %v358
      %v360 = vpop.xlane.xlu0 %359
      %v361 = vsub.f32 %v355, %v360
      %v362 = vmul.f32 %v361, 1.442695
      %v363 = vpow.pop %v362
      %v364 = vsel %vm281, %v363, 0.0
      %365 = vadd.xlane.f32.xlu0 %v364
      %v366 = vpop.xlane.xlu0 %365
      %v367 = vrcp.pop %v366
      %v368 = vmul.f32 %v363, %v367
      %v370 = vsel %vm281, %v368, 0
      %372 = vmatprep.subr.mxu0 0.0
      %373 = vmatpush1.msra.mxu0 0.0
      %374 = vmatprep.subr.mxu0 0.0
      %375 = vmatpush1.msra.mxu0 0.0
      %376 = vmatprep.subr.mxu0 0.0
      %377 = vmatpush1.msra.mxu0 0.0
      %378 = vmatprep.subr.mxu0 0.0
      %379 = vmatpush1.msra.mxu0 0.0
      %380 = vmatprep.subr.mxu0 0.0
      %381 = vmatpush1.msra.mxu0 0.0
      %382 = vmatprep.subr.mxu0 0.0
      %383 = vmatpush1.msra.mxu0 0.0
      %384 = vmatprep.subr.mxu0 0.0
      %385 = vmatpush1.msra.mxu0 0.0
      %386 = vmatprep.subr.mxu0 0.0
      %387 = vmatpush1.msra.mxu0 0.0
      %388 = vmatprep.subr.mxu0 0.0
      %389 = vmatpush1.msra.mxu0 0.0
      %390 = vmatprep.subr.mxu0 0.0
      %391 = vmatpush1.msra.mxu0 0.0
      %392 = vmatprep.subr.mxu0 0.0
      %393 = vmatpush1.msra.mxu0 0.0
      %394 = vmatprep.subr.mxu0 0.0
      %395 = vmatpush1.msra.mxu0 0.0
      %396 = vmatprep.subr.mxu0 0.0
      %397 = vmatpush1.msra.mxu0 0.0
      %398 = vmatprep.subr.mxu0 0.0
      %399 = vmatpush1.msra.mxu0 0.0
      %400 = vmatprep.subr.mxu0 0.0
      %401 = vmatpush1.msra.mxu0 0.0
      %402 = vmatprep.subr.mxu0 0.0
      %403 = vmatpush1.msra.mxu0 %v196
      %404 = vmatprep.subr.mxu0 0.0
      %405 = vmatpush2.msra.mxu0 0.0
      %406 = vmatprep.subr.mxu0 0.0
      %407 = vmatpush2.msra.mxu0 0.0
      %408 = vmatprep.subr.mxu0 0.0
      %409 = vmatpush2.msra.mxu0 0.0
      %410 = vmatprep.subr.mxu0 0.0
      %411 = vmatpush2.msra.mxu0 0.0
      %412 = vmatprep.subr.mxu0 0.0
      %413 = vmatpush2.msra.mxu0 0.0
      %414 = vmatprep.subr.mxu0 0.0
      %415 = vmatpush2.msra.mxu0 0.0
      %416 = vmatprep.subr.mxu0 0.0
      %417 = vmatpush2.msra.mxu0 0.0
      %418 = vmatprep.subr.mxu0 0.0
      %419 = vmatpush2.msra.mxu0 0.0
      %420 = vmatprep.subr.mxu0 0.0
      %421 = vmatpush2.msra.mxu0 0.0
      %422 = vmatprep.subr.mxu0 0.0
      %423 = vmatpush2.msra.mxu0 0.0
      %424 = vmatprep.subr.mxu0 0.0
      %425 = vmatpush2.msra.mxu0 0.0
      %426 = vmatprep.subr.mxu0 0.0
      %427 = vmatpush2.msra.mxu0 0.0
      %428 = vmatprep.subr.mxu0 0.0
      %429 = vmatpush2.msra.mxu0 0.0
      %430 = vmatprep.subr.mxu0 0.0
      %431 = vmatpush2.msra.mxu0 0.0
      %432 = vmatprep.subr.mxu0 0.0
      %433 = vmatpush2.msra.mxu0 0.0
      %434 = vmatprep.subr.mxu0 0.0
      %435 = vmatpush2.msra.mxu0 0.0
      %436 = vmatprep.mubr.f32.mxu0 0.0
      %437 = vmatmul.mubr.f32.gmra.mxu0 %v370
      %v438 = vpop.f32.mrf.mxu0
      %v439 = vadd.f32 0.0, %v438
      %v440 = vpop.f32.mrf.mxu0
      %441 = vdwg.mxu0
      %442 = vst.msk [vmem:[#allocation4] sm:$0xff] %vm281, %v439
      %443 = vrot.lane.b32.xlu0 %v196, 120
      %v444 = vpop.permute.xlu0 %443
      %445 = vrot.lane.b32.xlu0 %v280, 120
      %v446 = vpop.permute.xlu0 %445
      %v447 = vsel %vm281, %v444, 0
      %v449 = vsel %vm281, %v446, 0
      %451 = vmatprep.subr.mxu0 0.0
      %452 = vmatpush1.xpose.msra.mxu0 0.0
      %453 = vmatprep.subr.mxu0 0.0
      %454 = vmatpush1.xpose.msra.mxu0 0.0
      %455 = vmatprep.subr.mxu0 0.0
      %456 = vmatpush1.xpose.msra.mxu0 0.0
      %457 = vmatprep.subr.mxu0 0.0
      %458 = vmatpush1.xpose.msra.mxu0 0.0
      %459 = vmatprep.subr.mxu0 0.0
      %460 = vmatpush1.xpose.msra.mxu0 0.0
      %461 = vmatprep.subr.mxu0 0.0
      %462 = vmatpush1.xpose.msra.mxu0 0.0
      %463 = vmatprep.subr.mxu0 0.0
      %464 = vmatpush1.xpose.msra.mxu0 0.0
      %465 = vmatprep.subr.mxu0 0.0
      %466 = vmatpush1.xpose.msra.mxu0 0.0
      %467 = vmatprep.subr.mxu0 0.0
      %468 = vmatpush1.xpose.msra.mxu0 0.0
      %469 = vmatprep.subr.mxu0 0.0
      %470 = vmatpush1.xpose.msra.mxu0 0.0
      %471 = vmatprep.subr.mxu0 0.0
      %472 = vmatpush1.xpose.msra.mxu0 0.0
      %473 = vmatprep.subr.mxu0 0.0
      %474 = vmatpush1.xpose.msra.mxu0 0.0
      %475 = vmatprep.subr.mxu0 0.0
      %476 = vmatpush1.xpose.msra.mxu0 0.0
      %477 = vmatprep.subr.mxu0 0.0
      %478 = vmatpush1.xpose.msra.mxu0 0.0
      %479 = vmatprep.subr.mxu0 0.0
      %480 = vmatpush1.xpose.msra.mxu0 0.0
      %481 = vmatprep.subr.mxu0 0.0
      %482 = vmatpush1.xpose.msra.mxu0 %v449
      %483 = vmatprep.subr.mxu0 0.0
      %484 = vmatpush2.xpose.msra.mxu0 0.0
      %485 = vmatprep.subr.mxu0 0.0
      %486 = vmatpush2.xpose.msra.mxu0 0.0
      %487 = vmatprep.subr.mxu0 0.0
      %488 = vmatpush2.xpose.msra.mxu0 0.0
      %489 = vmatprep.subr.mxu0 0.0
      %490 = vmatpush2.xpose.msra.mxu0 0.0
      %491 = vmatprep.subr.mxu0 0.0
      %492 = vmatpush2.xpose.msra.mxu0 0.0
      %493 = vmatprep.subr.mxu0 0.0
      %494 = vmatpush2.xpose.msra.mxu0 0.0
      %495 = vmatprep.subr.mxu0 0.0
      %496 = vmatpush2.xpose.msra.mxu0 0.0
      %497 = vmatprep.subr.mxu0 0.0
      %498 = vmatpush2.xpose.msra.mxu0 0.0
      %499 = vmatprep.subr.mxu0 0.0
      %500 = vmatpush2.xpose.msra.mxu0 0.0
      %501 = vmatprep.subr.mxu0 0.0
      %502 = vmatpush2.xpose.msra.mxu0 0.0
      %503 = vmatprep.subr.mxu0 0.0
      %504 = vmatpush2.xpose.msra.mxu0 0.0
      %505 = vmatprep.subr.mxu0 0.0
      %506 = vmatpush2.xpose.msra.mxu0 0.0
      %507 = vmatprep.subr.mxu0 0.0
      %508 = vmatpush2.xpose.msra.mxu0 0.0
      %509 = vmatprep.subr.mxu0 0.0
      %510 = vmatpush2.xpose.msra.mxu0 0.0
      %511 = vmatprep.subr.mxu0 0.0
      %512 = vmatpush2.xpose.msra.mxu0 0.0
      %513 = vmatprep.subr.mxu0 0.0
      %514 = vmatpush2.xpose.msra.mxu0 0.0
      %515 = vmatprep.mubr.f32.mxu0 0.0
      %516 = vmatmul.mubr.f32.gmra.mxu0 %v447
      %v517 = vpop.f32.mrf.mxu0
      %v518 = vadd.f32 0.0, %v517
      %v519 = vpop.f32.mrf.mxu0
      %520 = vdwg.mxu0
      %v521 = vsel %vm281, %v518, -inf
      %522 = vmax.xlane.f32.xlu0 %v521
      %v523 = vpop.xlane.xlu0 %522
      %v524 = vsub.f32 %v518, %v523
      %v525 = vmul.f32 %v524, 1.442695
      %v526 = vpow.pop %v525
      %v527 = vsel %vm281, %v526, 0.0
      %528 = vadd.xlane.f32.xlu0 %v527
      %v529 = vpop.xlane.xlu0 %528
      %v530 = vrcp.pop %v529
      %v531 = vmul.f32 %v526, %v530
      %v534 = vsel %vm281, %v531, 0
      %536 = vmatprep.subr.mxu0 0.0
      %537 = vmatpush1.msra.mxu0 0.0
      %538 = vmatprep.subr.mxu0 0.0
      %539 = vmatpush1.msra.mxu0 0.0
      %540 = vmatprep.subr.mxu0 0.0
      %541 = vmatpush1.msra.mxu0 0.0
      %542 = vmatprep.subr.mxu0 0.0
      %543 = vmatpush1.msra.mxu0 0.0
      %544 = vmatprep.subr.mxu0 0.0
      %545 = vmatpush1.msra.mxu0 0.0
      %546 = vmatprep.subr.mxu0 0.0
      %547 = vmatpush1.msra.mxu0 0.0
      %548 = vmatprep.subr.mxu0 0.0
      %549 = vmatpush1.msra.mxu0 0.0
      %550 = vmatprep.subr.mxu0 0.0
      %551 = vmatpush1.msra.mxu0 0.0
      %552 = vmatprep.subr.mxu0 0.0
      %553 = vmatpush1.msra.mxu0 0.0
      %554 = vmatprep.subr.mxu0 0.0
      %555 = vmatpush1.msra.mxu0 0.0
      %556 = vmatprep.subr.mxu0 0.0
      %557 = vmatpush1.msra.mxu0 0.0
      %558 = vmatprep.subr.mxu0 0.0
      %559 = vmatpush1.msra.mxu0 0.0
      %560 = vmatprep.subr.mxu0 0.0
      %561 = vmatpush1.msra.mxu0 0.0
      %562 = vmatprep.subr.mxu0 0.0
      %563 = vmatpush1.msra.mxu0 0.0
      %564 = vmatprep.subr.mxu0 0.0
      %565 = vmatpush1.msra.mxu0 0.0
      %566 = vmatprep.subr.mxu0 0.0
      %567 = vmatpush1.msra.mxu0 %v444
      %568 = vmatprep.subr.mxu0 0.0
      %569 = vmatpush2.msra.mxu0 0.0
      %570 = vmatprep.subr.mxu0 0.0
      %571 = vmatpush2.msra.mxu0 0.0
      %572 = vmatprep.subr.mxu0 0.0
      %573 = vmatpush2.msra.mxu0 0.0
      %574 = vmatprep.subr.mxu0 0.0
      %575 = vmatpush2.msra.mxu0 0.0
      %576 = vmatprep.subr.mxu0 0.0
      %577 = vmatpush2.msra.mxu0 0.0
      %578 = vmatprep.subr.mxu0 0.0
      %579 = vmatpush2.msra.mxu0 0.0
      %580 = vmatprep.subr.mxu0 0.0
      %581 = vmatpush2.msra.mxu0 0.0
      %582 = vmatprep.subr.mxu0 0.0
      %583 = vmatpush2.msra.mxu0 0.0
      %584 = vmatprep.subr.mxu0 0.0
      %585 = vmatpush2.msra.mxu0 0.0
      %586 = vmatprep.subr.mxu0 0.0
      %587 = vmatpush2.msra.mxu0 0.0
      %588 = vmatprep.subr.mxu0 0.0
      %589 = vmatpush2.msra.mxu0 0.0
      %590 = vmatprep.subr.mxu0 0.0
      %591 = vmatpush2.msra.mxu0 0.0
      %592 = vmatprep.subr.mxu0 0.0
      %593 = vmatpush2.msra.mxu0 0.0
      %594 = vmatprep.subr.mxu0 0.0
      %595 = vmatpush2.msra.mxu0 0.0
      %596 = vmatprep.subr.mxu0 0.0
      %597 = vmatpush2.msra.mxu0 0.0
      %598 = vmatprep.subr.mxu0 0.0
      %599 = vmatpush2.msra.mxu0 0.0
      %600 = vmatprep.mubr.f32.mxu0 0.0
      %601 = vmatmul.mubr.f32.gmra.mxu0 %v534
      %v602 = vpop.f32.mrf.mxu0
      %v603 = vadd.f32 0.0, %v602
      %v604 = vpop.f32.mrf.mxu0
      %605 = vdwg.mxu0
      %607 = vrot.lane.b32.xlu0 %v603, 8
      %v608 = vpop.permute.xlu0 %607
      %vm610 = vcmask 130112
      %611 = vst.msk [vmem:[#allocation4] sm:$0xff] %vm610, %v608
      %612 = vrot.lane.b32.xlu0 %v196, 112
      %v613 = vpop.permute.xlu0 %612
      %614 = vrot.lane.b32.xlu0 %v280, 112
      %v615 = vpop.permute.xlu0 %614
      %v616 = vsel %vm281, %v613, 0
      %v618 = vsel %vm281, %v615, 0
      %620 = vmatprep.subr.mxu0 0.0
      %621 = vmatpush1.xpose.msra.mxu0 0.0
      %622 = vmatprep.subr.mxu0 0.0
      %623 = vmatpush1.xpose.msra.mxu0 0.0
      %624 = vmatprep.subr.mxu0 0.0
      %625 = vmatpush1.xpose.msra.mxu0 0.0
      %626 = vmatprep.subr.mxu0 0.0
      %627 = vmatpush1.xpose.msra.mxu0 0.0
      %628 = vmatprep.subr.mxu0 0.0
      %629 = vmatpush1.xpose.msra.mxu0 0.0
      %630 = vmatprep.subr.mxu0 0.0
      %631 = vmatpush1.xpose.msra.mxu0 0.0
      %632 = vmatprep.subr.mxu0 0.0
      %633 = vmatpush1.xpose.msra.mxu0 0.0
      %634 = vmatprep.subr.mxu0 0.0
      %635 = vmatpush1.xpose.msra.mxu0 0.0
      %636 = vmatprep.subr.mxu0 0.0
      %637 = vmatpush1.xpose.msra.mxu0 0.0
      %638 = vmatprep.subr.mxu0 0.0
      %639 = vmatpush1.xpose.msra.mxu0 0.0
      %640 = vmatprep.subr.mxu0 0.0
      %641 = vmatpush1.xpose.msra.mxu0 0.0
      %642 = vmatprep.subr.mxu0 0.0
      %643 = vmatpush1.xpose.msra.mxu0 0.0
      %644 = vmatprep.subr.mxu0 0.0
      %645 = vmatpush1.xpose.msra.mxu0 0.0
      %646 = vmatprep.subr.mxu0 0.0
      %647 = vmatpush1.xpose.msra.mxu0 0.0
      %648 = vmatprep.subr.mxu0 0.0
      %649 = vmatpush1.xpose.msra.mxu0 0.0
      %650 = vmatprep.subr.mxu0 0.0
      %651 = vmatpush1.xpose.msra.mxu0 %v618
      %652 = vmatprep.subr.mxu0 0.0
      %653 = vmatpush2.xpose.msra.mxu0 0.0
      %654 = vmatprep.subr.mxu0 0.0
      %655 = vmatpush2.xpose.msra.mxu0 0.0
      %656 = vmatprep.subr.mxu0 0.0
      %657 = vmatpush2.xpose.msra.mxu0 0.0
      %658 = vmatprep.subr.mxu0 0.0
      %659 = vmatpush2.xpose.msra.mxu0 0.0
      %660 = vmatprep.subr.mxu0 0.0
      %661 = vmatpush2.xpose.msra.mxu0 0.0
      %662 = vmatprep.subr.mxu0 0.0
      %663 = vmatpush2.xpose.msra.mxu0 0.0
      %664 = vmatprep.subr.mxu0 0.0
      %665 = vmatpush2.xpose.msra.mxu0 0.0
      %666 = vmatprep.subr.mxu0 0.0
      %667 = vmatpush2.xpose.msra.mxu0 0.0
      %668 = vmatprep.subr.mxu0 0.0
      %669 = vmatpush2.xpose.msra.mxu0 0.0
      %670 = vmatprep.subr.mxu0 0.0
      %671 = vmatpush2.xpose.msra.mxu0 0.0
      %672 = vmatprep.subr.mxu0 0.0
      %673 = vmatpush2.xpose.msra.mxu0 0.0
      %674 = vmatprep.subr.mxu0 0.0
      %675 = vmatpush2.xpose.msra.mxu0 0.0
      %676 = vmatprep.subr.mxu0 0.0
      %677 = vmatpush2.xpose.msra.mxu0 0.0
      %678 = vmatprep.subr.mxu0 0.0
      %679 = vmatpush2.xpose.msra.mxu0 0.0
      %680 = vmatprep.subr.mxu0 0.0
      %681 = vmatpush2.xpose.msra.mxu0 0.0
      %682 = vmatprep.subr.mxu0 0.0
      %683 = vmatpush2.xpose.msra.mxu0 0.0
      %684 = vmatprep.mubr.f32.mxu0 0.0
      %685 = vmatmul.mubr.f32.gmra.mxu0 %v616
      %v686 = vpop.f32.mrf.mxu0
      %v687 = vadd.f32 0.0, %v686
      %v688 = vpop.f32.mrf.mxu0
      %689 = vdwg.mxu0
      %v690 = vsel %vm281, %v687, -inf
      %691 = vmax.xlane.f32.xlu0 %v690
      %v692 = vpop.xlane.xlu0 %691
      %v693 = vsub.f32 %v687, %v692
      %v694 = vmul.f32 %v693, 1.442695
      %v695 = vpow.pop %v694
      %v696 = vsel %vm281, %v695, 0.0
      %697 = vadd.xlane.f32.xlu0 %v696
      %v698 = vpop.xlane.xlu0 %697
      %v699 = vrcp.pop %v698
      %v700 = vmul.f32 %v695, %v699
      %v703 = vsel %vm281, %v700, 0
      %705 = vmatprep.subr.mxu0 0.0
      %706 = vmatpush1.msra.mxu0 0.0
      %707 = vmatprep.subr.mxu0 0.0
      %708 = vmatpush1.msra.mxu0 0.0
      %709 = vmatprep.subr.mxu0 0.0
      %710 = vmatpush1.msra.mxu0 0.0
      %711 = vmatprep.subr.mxu0 0.0
      %712 = vmatpush1.msra.mxu0 0.0
      %713 = vmatprep.subr.mxu0 0.0
      %714 = vmatpush1.msra.mxu0 0.0
      %715 = vmatprep.subr.mxu0 0.0
      %716 = vmatpush1.msra.mxu0 0.0
      %717 = vmatprep.subr.mxu0 0.0
      %718 = vmatpush1.msra.mxu0 0.0
      %719 = vmatprep.subr.mxu0 0.0
      %720 = vmatpush1.msra.mxu0 0.0
      %721 = vmatprep.subr.mxu0 0.0
      %722 = vmatpush1.msra.mxu0 0.0
      %723 = vmatprep.subr.mxu0 0.0
      %724 = vmatpush1.msra.mxu0 0.0
      %725 = vmatprep.subr.mxu0 0.0
      %726 = vmatpush1.msra.mxu0 0.0
      %727 = vmatprep.subr.mxu0 0.0
      %728 = vmatpush1.msra.mxu0 0.0
      %729 = vmatprep.subr.mxu0 0.0
      %730 = vmatpush1.msra.mxu0 0.0
      %731 = vmatprep.subr.mxu0 0.0
      %732 = vmatpush1.msra.mxu0 0.0
      %733 = vmatprep.subr.mxu0 0.0
      %734 = vmatpush1.msra.mxu0 0.0
      %735 = vmatprep.subr.mxu0 0.0
      %736 = vmatpush1.msra.mxu0 %v613
      %737 = vmatprep.subr.mxu0 0.0
      %738 = vmatpush2.msra.mxu0 0.0
      %739 = vmatprep.subr.mxu0 0.0
      %740 = vmatpush2.msra.mxu0 0.0
      %741 = vmatprep.subr.mxu0 0.0
      %742 = vmatpush2.msra.mxu0 0.0
      %743 = vmatprep.subr.mxu0 0.0
      %744 = vmatpush2.msra.mxu0 0.0
      %745 = vmatprep.subr.mxu0 0.0
      %746 = vmatpush2.msra.mxu0 0.0
      %747 = vmatprep.subr.mxu0 0.0
      %748 = vmatpush2.msra.mxu0 0.0
      %749 = vmatprep.subr.mxu0 0.0
      %750 = vmatpush2.msra.mxu0 0.0
      %751 = vmatprep.subr.mxu0 0.0
      %752 = vmatpush2.msra.mxu0 0.0
      %753 = vmatprep.subr.mxu0 0.0
      %754 = vmatpush2.msra.mxu0 0.0
      %755 = vmatprep.subr.mxu0 0.0
      %756 = vmatpush2.msra.mxu0 0.0
      %757 = vmatprep.subr.mxu0 0.0
      %758 = vmatpush2.msra.mxu0 0.0
      %759 = vmatprep.subr.mxu0 0.0
      %760 = vmatpush2.msra.mxu0 0.0
      %761 = vmatprep.subr.mxu0 0.0
      %762 = vmatpush2.msra.mxu0 0.0
      %763 = vmatprep.subr.mxu0 0.0
      %764 = vmatpush2.msra.mxu0 0.0
      %765 = vmatprep.subr.mxu0 0.0
      %766 = vmatpush2.msra.mxu0 0.0
      %767 = vmatprep.subr.mxu0 0.0
      %768 = vmatpush2.msra.mxu0 0.0
      %769 = vmatprep.mubr.f32.mxu0 0.0
      %770 = vmatmul.mubr.f32.gmra.mxu0 %v703
      %v771 = vpop.f32.mrf.mxu0
      %v772 = vadd.f32 0.0, %v771
      %v773 = vpop.f32.mrf.mxu0
      %774 = vdwg.mxu0
      %776 = vrot.lane.b32.xlu0 %v772, 16
      %v777 = vpop.permute.xlu0 %776
      %vm779 = vcmask 195712
      %780 = vst.msk [vmem:[#allocation4] sm:$0xff] %vm779, %v777
      %781 = vrot.lane.b32.xlu0 %v196, 104
      %v782 = vpop.permute.xlu0 %781
      %783 = vrot.lane.b32.xlu0 %v280, 104
      %v784 = vpop.permute.xlu0 %783
      %v785 = vsel %vm281, %v782, 0
      %v787 = vsel %vm281, %v784, 0
      %789 = vmatprep.subr.mxu0 0.0
      %790 = vmatpush1.xpose.msra.mxu0 0.0
      %791 = vmatprep.subr.mxu0 0.0
      %792 = vmatpush1.xpose.msra.mxu0 0.0
      %793 = vmatprep.subr.mxu0 0.0
      %794 = vmatpush1.xpose.msra.mxu0 0.0
      %795 = vmatprep.subr.mxu0 0.0
      %796 = vmatpush1.xpose.msra.mxu0 0.0
      %797 = vmatprep.subr.mxu0 0.0
      %798 = vmatpush1.xpose.msra.mxu0 0.0
      %799 = vmatprep.subr.mxu0 0.0
      %800 = vmatpush1.xpose.msra.mxu0 0.0
      %801 = vmatprep.subr.mxu0 0.0
      %802 = vmatpush1.xpose.msra.mxu0 0.0
      %803 = vmatprep.subr.mxu0 0.0
      %804 = vmatpush1.xpose.msra.mxu0 0.0
      %805 = vmatprep.subr.mxu0 0.0
      %806 = vmatpush1.xpose.msra.mxu0 0.0
      %807 = vmatprep.subr.mxu0 0.0
      %808 = vmatpush1.xpose.msra.mxu0 0.0
      %809 = vmatprep.subr.mxu0 0.0
      %810 = vmatpush1.xpose.msra.mxu0 0.0
      %811 = vmatprep.subr.mxu0 0.0
      %812 = vmatpush1.xpose.msra.mxu0 0.0
      %813 = vmatprep.subr.mxu0 0.0
      %814 = vmatpush1.xpose.msra.mxu0 0.0
      %815 = vmatprep.subr.mxu0 0.0
      %816 = vmatpush1.xpose.msra.mxu0 0.0
      %817 = vmatprep.subr.mxu0 0.0
      %818 = vmatpush1.xpose.msra.mxu0 0.0
      %819 = vmatprep.subr.mxu0 0.0
      %820 = vmatpush1.xpose.msra.mxu0 %v787
      %821 = vmatprep.subr.mxu0 0.0
      %822 = vmatpush2.xpose.msra.mxu0 0.0
      %823 = vmatprep.subr.mxu0 0.0
      %824 = vmatpush2.xpose.msra.mxu0 0.0
      %825 = vmatprep.subr.mxu0 0.0
      %826 = vmatpush2.xpose.msra.mxu0 0.0
      %827 = vmatprep.subr.mxu0 0.0
      %828 = vmatpush2.xpose.msra.mxu0 0.0
      %829 = vmatprep.subr.mxu0 0.0
      %830 = vmatpush2.xpose.msra.mxu0 0.0
      %831 = vmatprep.subr.mxu0 0.0
      %832 = vmatpush2.xpose.msra.mxu0 0.0
      %833 = vmatprep.subr.mxu0 0.0
      %834 = vmatpush2.xpose.msra.mxu0 0.0
      %835 = vmatprep.subr.mxu0 0.0
      %836 = vmatpush2.xpose.msra.mxu0 0.0
      %837 = vmatprep.subr.mxu0 0.0
      %838 = vmatpush2.xpose.msra.mxu0 0.0
      %839 = vmatprep.subr.mxu0 0.0
      %840 = vmatpush2.xpose.msra.mxu0 0.0
      %841 = vmatprep.subr.mxu0 0.0
      %842 = vmatpush2.xpose.msra.mxu0 0.0
      %843 = vmatprep.subr.mxu0 0.0
      %844 = vmatpush2.xpose.msra.mxu0 0.0
      %845 = vmatprep.subr.mxu0 0.0
      %846 = vmatpush2.xpose.msra.mxu0 0.0
      %847 = vmatprep.subr.mxu0 0.0
      %848 = vmatpush2.xpose.msra.mxu0 0.0
      %849 = vmatprep.subr.mxu0 0.0
      %850 = vmatpush2.xpose.msra.mxu0 0.0
      %851 = vmatprep.subr.mxu0 0.0
      %852 = vmatpush2.xpose.msra.mxu0 0.0
      %853 = vmatprep.mubr.f32.mxu0 0.0
      %854 = vmatmul.mubr.f32.gmra.mxu0 %v785
      %v855 = vpop.f32.mrf.mxu0
      %v856 = vadd.f32 0.0, %v855
      %v857 = vpop.f32.mrf.mxu0
      %858 = vdwg.mxu0
      %v859 = vsel %vm281, %v856, -inf
      %860 = vmax.xlane.f32.xlu0 %v859
      %v861 = vpop.xlane.xlu0 %860
      %v862 = vsub.f32 %v856, %v861
      %v863 = vmul.f32 %v862, 1.442695
      %v864 = vpow.pop %v863
      %v865 = vsel %vm281, %v864, 0.0
      %866 = vadd.xlane.f32.xlu0 %v865
      %v867 = vpop.xlane.xlu0 %866
      %v868 = vrcp.pop %v867
      %v869 = vmul.f32 %v864, %v868
      %v872 = vsel %vm281, %v869, 0
      %874 = vmatprep.subr.mxu0 0.0
      %875 = vmatpush1.msra.mxu0 0.0
      %876 = vmatprep.subr.mxu0 0.0
      %877 = vmatpush1.msra.mxu0 0.0
      %878 = vmatprep.subr.mxu0 0.0
      %879 = vmatpush1.msra.mxu0 0.0
      %880 = vmatprep.subr.mxu0 0.0
      %881 = vmatpush1.msra.mxu0 0.0
      %882 = vmatprep.subr.mxu0 0.0
      %883 = vmatpush1.msra.mxu0 0.0
      %884 = vmatprep.subr.mxu0 0.0
      %885 = vmatpush1.msra.mxu0 0.0
      %886 = vmatprep.subr.mxu0 0.0
      %887 = vmatpush1.msra.mxu0 0.0
      %888 = vmatprep.subr.mxu0 0.0
      %889 = vmatpush1.msra.mxu0 0.0
      %890 = vmatprep.subr.mxu0 0.0
      %891 = vmatpush1.msra.mxu0 0.0
      %892 = vmatprep.subr.mxu0 0.0
      %893 = vmatpush1.msra.mxu0 0.0
      %894 = vmatprep.subr.mxu0 0.0
      %895 = vmatpush1.msra.mxu0 0.0
      %896 = vmatprep.subr.mxu0 0.0
      %897 = vmatpush1.msra.mxu0 0.0
      %898 = vmatprep.subr.mxu0 0.0
      %899 = vmatpush1.msra.mxu0 0.0
      %900 = vmatprep.subr.mxu0 0.0
      %901 = vmatpush1.msra.mxu0 0.0
      %902 = vmatprep.subr.mxu0 0.0
      %903 = vmatpush1.msra.mxu0 0.0
      %904 = vmatprep.subr.mxu0 0.0
      %905 = vmatpush1.msra.mxu0 %v782
      %906 = vmatprep.subr.mxu0 0.0
      %907 = vmatpush2.msra.mxu0 0.0
      %908 = vmatprep.subr.mxu0 0.0
      %909 = vmatpush2.msra.mxu0 0.0
      %910 = vmatprep.subr.mxu0 0.0
      %911 = vmatpush2.msra.mxu0 0.0
      %912 = vmatprep.subr.mxu0 0.0
      %913 = vmatpush2.msra.mxu0 0.0
      %914 = vmatprep.subr.mxu0 0.0
      %915 = vmatpush2.msra.mxu0 0.0
      %916 = vmatprep.subr.mxu0 0.0
      %917 = vmatpush2.msra.mxu0 0.0
      %918 = vmatprep.subr.mxu0 0.0
      %919 = vmatpush2.msra.mxu0 0.0
      %920 = vmatprep.subr.mxu0 0.0
      %921 = vmatpush2.msra.mxu0 0.0
      %922 = vmatprep.subr.mxu0 0.0
      %923 = vmatpush2.msra.mxu0 0.0
      %924 = vmatprep.subr.mxu0 0.0
      %925 = vmatpush2.msra.mxu0 0.0
      %926 = vmatprep.subr.mxu0 0.0
      %927 = vmatpush2.msra.mxu0 0.0
      %928 = vmatprep.subr.mxu0 0.0
      %929 = vmatpush2.msra.mxu0 0.0
      %930 = vmatprep.subr.mxu0 0.0
      %931 = vmatpush2.msra.mxu0 0.0
      %932 = vmatprep.subr.mxu0 0.0
      %933 = vmatpush2.msra.mxu0 0.0
      %934 = vmatprep.subr.mxu0 0.0
      %935 = vmatpush2.msra.mxu0 0.0
      %936 = vmatprep.subr.mxu0 0.0
      %937 = vmatpush2.msra.mxu0 0.0
      %938 = vmatprep.mubr.f32.mxu0 0.0
      %939 = vmatmul.mubr.f32.gmra.mxu0 %v872
      %v940 = vpop.f32.mrf.mxu0
      %v941 = vadd.f32 0.0, %v940
      %v942 = vpop.f32.mrf.mxu0
      %943 = vdwg.mxu0
      %945 = vrot.lane.b32.xlu0 %v941, 24
      %v946 = vpop.permute.xlu0 %945
      %vm948 = vcmask 261312
      %949 = vst.msk [vmem:[#allocation4] sm:$0xff] %vm948, %v946
      %v950 = vld [vmem:[#allocation4] sm:$0xff]
      %v951 = vld [vmem:[%s7] sm:$0xff]
      %v952 = vld [vmem:[%s7 + $0x8] sm:$0xff]
      %v953 = vld [vmem:[%s7 + $0x10] sm:$0xff]
      %v954 = vld [vmem:[%s7 + $0x18] sm:$0xff]
      %v955 = vld [vmem:[%s8] sm:$0x1]
      %v957 = vlaneseq
      %v958 = vshrl.u32 %v957, 7
      %v959 = vsub.s32 0, %v958
      %v960 = vrot.slane %v955, %v959
      %v963 = vsel %vm86, %v950, 0
      %965 = vmatprep.subr.mxu0 0.0
      %966 = vmatpush1.msra.mxu0 0.0
      %967 = vmatprep.subr.mxu0 0.0
      %968 = vmatpush1.msra.mxu0 0.0
      %969 = vmatprep.subr.mxu0 0.0
      %970 = vmatpush1.msra.mxu0 0.0
      %971 = vmatprep.subr.mxu0 0.0
      %972 = vmatpush1.msra.mxu0 0.0
      %973 = vmatprep.subr.mxu0 0.0
      %974 = vmatpush1.msra.mxu0 0.0
      %975 = vmatprep.subr.mxu0 0.0
      %976 = vmatpush1.msra.mxu0 0.0
      %977 = vmatprep.subr.mxu0 0.0
      %978 = vmatpush1.msra.mxu0 0.0
      %979 = vmatprep.subr.mxu0 0.0
      %980 = vmatpush1.msra.mxu0 0.0
      %981 = vmatprep.subr.mxu0 0.0
      %982 = vmatpush1.msra.mxu0 0.0
      %983 = vmatprep.subr.mxu0 0.0
      %984 = vmatpush1.msra.mxu0 0.0
      %985 = vmatprep.subr.mxu0 0.0
      %986 = vmatpush1.msra.mxu0 0.0
      %987 = vmatprep.subr.mxu0 0.0
      %988 = vmatpush1.msra.mxu0 0.0
      %989 = vmatprep.subr.mxu0 0.0
      %990 = vmatpush1.msra.mxu0 %v954
      %991 = vmatprep.subr.mxu0 0.0
      %992 = vmatpush1.msra.mxu0 %v953
      %993 = vmatprep.subr.mxu0 0.0
      %994 = vmatpush1.msra.mxu0 %v952
      %995 = vmatprep.subr.mxu0 0.0
      %996 = vmatpush1.msra.mxu0 %v951
      %997 = vmatprep.subr.mxu0 0.0
      %998 = vmatpush2.msra.mxu0 0.0
      %999 = vmatprep.subr.mxu0 0.0
      %1000 = vmatpush2.msra.mxu0 0.0
      %1001 = vmatprep.subr.mxu0 0.0
      %1002 = vmatpush2.msra.mxu0 0.0
      %1003 = vmatprep.subr.mxu0 0.0
      %1004 = vmatpush2.msra.mxu0 0.0
      %1005 = vmatprep.subr.mxu0 0.0
      %1006 = vmatpush2.msra.mxu0 0.0
      %1007 = vmatprep.subr.mxu0 0.0
      %1008 = vmatpush2.msra.mxu0 0.0
      %1009 = vmatprep.subr.mxu0 0.0
      %1010 = vmatpush2.msra.mxu0 0.0
      %1011 = vmatprep.subr.mxu0 0.0
      %1012 = vmatpush2.msra.mxu0 0.0
      %1013 = vmatprep.subr.mxu0 0.0
      %1014 = vmatpush2.msra.mxu0 0.0
      %1015 = vmatprep.subr.mxu0 0.0
      %1016 = vmatpush2.msra.mxu0 0.0
      %1017 = vmatprep.subr.mxu0 0.0
      %1018 = vmatpush2.msra.mxu0 0.0
      %1019 = vmatprep.subr.mxu0 0.0
      %1020 = vmatpush2.msra.mxu0 0.0
      %1021 = vmatprep.subr.mxu0 0.0
      %1022 = vmatpush2.msra.mxu0 0.0
      %1023 = vmatprep.subr.mxu0 0.0
      %1024 = vmatpush2.msra.mxu0 0.0
      %1025 = vmatprep.subr.mxu0 0.0
      %1026 = vmatpush2.msra.mxu0 0.0
      %1027 = vmatprep.subr.mxu0 0.0
      %1028 = vmatpush2.msra.mxu0 0.0
      %1029 = vmatprep.mubr.f32.mxu0 0.0
      %1030 = vmatmul.mubr.f32.gmra.mxu0 %v963
      %v1031 = vpop.f32.mrf.mxu0
      %v1032 = vadd.f32 %v960, %v1031
      %v1033 = vpop.f32.mrf.mxu0
      %1034 = vdwg.mxu0
      %v1035 = vadd.f32 %v114, %v1032
      %v1036 = vld [vmem:[%s9] sm:$0x1]
      %v1037 = vld [vmem:[%s10] sm:$0x1]
      %v1038 = vsel %vm86, %v1035, 0.0
      %1039 = vadd.xlane.f32.xlu0 %v1038
      %v1040 = vpop.xlane.xlu0 %1039
      %v1041 = vmul.f32 %v1040, %v90
      %v1042 = vsub.f32 %v1035, %v1041
      %v1043 = vmul.f32 %v1042, %v1042
      %v1044 = vsel %vm86, %v1043, 0.0
      %1045 = vadd.xlane.f32.xlu0 %v1044
      %v1046 = vpop.xlane.xlu0 %1045
      %v1047 = vmul.f32 %v1046, %v90
      %v1048 = vadd.f32 %v1047, 1e-05
      %v1049 = vrsqrt.pop %v1048
      %v1050 = vmul.f32 %v1042, %v1049
      %v1052 = vlaneseq
      %v1053 = vshrl.u32 %v1052, 7
      %v1054 = vsub.s32 0, %v1053
      %v1055 = vrot.slane %v1036, %v1054
      %v1057 = vmul.f32 %v1050, %v1055
      %v1059 = vlaneseq
      %v1060 = vshrl.u32 %v1059, 7
      %v1061 = vsub.s32 0, %v1060
      %v1062 = vrot.slane %v1037, %v1061
      %v1064 = vadd.f32 %v1057, %v1062
      %1065 = vst.msk [vmem:[#allocation2] sm:$0xff] %vm86, %v1064
      %v1066 = vld [vmem:[%s14] sm:$0x1]
      %v1068 = vlaneseq
      %v1069 = vshrl.u32 %v1068, 7
      %v1070 = vsub.s32 0, %v1069
      %v1071 = vrot.slane %v1066, %v1070
      %v1073 = vadd.f32 %v1064, %v1071
      %1074 = vst.msk [vmem:[#allocation3] sm:$0xff] %vm86, %v1073
      %s1075 = scalar_lea.vmem [#allocation5], 8
      %v1076 = vld [vmem:[%s1075] sm:$0xff]
      %v1077 = vld [vmem:[%s1] sm:$0x1]
      %v1078 = vld [vmem:[%s2] sm:$0x1]
      %v1079 = vsel %vm86, %v1076, 0.0
      %1080 = vadd.xlane.f32.xlu0 %v1079
      %v1081 = vpop.xlane.xlu0 %1080
      %v1082 = vmul.f32 %v1081, %v90
      %v1083 = vsub.f32 %v1076, %v1082
      %v1084 = vmul.f32 %v1083, %v1083
      %v1085 = vsel %vm86, %v1084, 0.0
      %1086 = vadd.xlane.f32.xlu0 %v1085
      %v1087 = vpop.xlane.xlu0 %1086
      %v1088 = vmul.f32 %v1087, %v90
      %v1089 = vadd.f32 %v1088, 1e-05
      %v1090 = vrsqrt.pop %v1089
      %v1091 = vmul.f32 %v1083, %v1090
      %v1093 = vlaneseq
      %v1094 = vshrl.u32 %v1093, 7
      %v1095 = vsub.s32 0, %v1094
      %v1096 = vrot.slane %v1077, %v1095
      %v1098 = vmul.f32 %v1091, %v1096
      %v1100 = vlaneseq
      %v1101 = vshrl.u32 %v1100, 7
      %v1102 = vsub.s32 0, %v1101
      %v1103 = vrot.slane %v1078, %v1102
      %v1105 = vadd.f32 %v1098, %v1103
      %v1106 = vld [vmem:[%s3] sm:$0xff]
      %v1107 = vld [vmem:[%s3 + $0x8] sm:$0xff]
      %v1108 = vld [vmem:[%s3 + $0x10] sm:$0xff]
      %v1109 = vld [vmem:[%s3 + $0x18] sm:$0xff]
      %v1110 = vld [vmem:[%s4] sm:$0x1]
      %v1112 = vlaneseq
      %v1113 = vshrl.u32 %v1112, 7
      %v1114 = vsub.s32 0, %v1113
      %v1115 = vrot.slane %v1110, %v1114
      %v1118 = vsel %vm86, %v1105, 0
      %1120 = vmatprep.subr.mxu0 0.0
      %1121 = vmatpush1.msra.mxu0 0.0
      %1122 = vmatprep.subr.mxu0 0.0
      %1123 = vmatpush1.msra.mxu0 0.0
      %1124 = vmatprep.subr.mxu0 0.0
      %1125 = vmatpush1.msra.mxu0 0.0
      %1126 = vmatprep.subr.mxu0 0.0
      %1127 = vmatpush1.msra.mxu0 0.0
      %1128 = vmatprep.subr.mxu0 0.0
      %1129 = vmatpush1.msra.mxu0 0.0
      %1130 = vmatprep.subr.mxu0 0.0
      %1131 = vmatpush1.msra.mxu0 0.0
      %1132 = vmatprep.subr.mxu0 0.0
      %1133 = vmatpush1.msra.mxu0 0.0
      %1134 = vmatprep.subr.mxu0 0.0
      %1135 = vmatpush1.msra.mxu0 0.0
      %1136 = vmatprep.subr.mxu0 0.0
      %1137 = vmatpush1.msra.mxu0 0.0
      %1138 = vmatprep.subr.mxu0 0.0
      %1139 = vmatpush1.msra.mxu0 0.0
      %1140 = vmatprep.subr.mxu0 0.0
      %1141 = vmatpush1.msra.mxu0 0.0
      %1142 = vmatprep.subr.mxu0 0.0
      %1143 = vmatpush1.msra.mxu0 0.0
      %1144 = vmatprep.subr.mxu0 0.0
      %1145 = vmatpush1.msra.mxu0 %v1109
      %1146 = vmatprep.subr.mxu0 0.0
      %1147 = vmatpush1.msra.mxu0 %v1108
      %1148 = vmatprep.subr.mxu0 0.0
      %1149 = vmatpush1.msra.mxu0 %v1107
      %1150 = vmatprep.subr.mxu0 0.0
      %1151 = vmatpush1.msra.mxu0 %v1106
      %1152 = vmatprep.subr.mxu0 0.0
      %1153 = vmatpush2.msra.mxu0 0.0
      %1154 = vmatprep.subr.mxu0 0.0
      %1155 = vmatpush2.msra.mxu0 0.0
      %1156 = vmatprep.subr.mxu0 0.0
      %1157 = vmatpush2.msra.mxu0 0.0
      %1158 = vmatprep.subr.mxu0 0.0
      %1159 = vmatpush2.msra.mxu0 0.0
      %1160 = vmatprep.subr.mxu0 0.0
      %1161 = vmatpush2.msra.mxu0 0.0
      %1162 = vmatprep.subr.mxu0 0.0
      %1163 = vmatpush2.msra.mxu0 0.0
      %1164 = vmatprep.subr.mxu0 0.0
      %1165 = vmatpush2.msra.mxu0 0.0
      %1166 = vmatprep.subr.mxu0 0.0
      %1167 = vmatpush2.msra.mxu0 0.0
      %1168 = vmatprep.subr.mxu0 0.0
      %1169 = vmatpush2.msra.mxu0 0.0
      %1170 = vmatprep.subr.mxu0 0.0
      %1171 = vmatpush2.msra.mxu0 0.0
      %1172 = vmatprep.subr.mxu0 0.0
      %1173 = vmatpush2.msra.mxu0 0.0
      %1174 = vmatprep.subr.mxu0 0.0
      %1175 = vmatpush2.msra.mxu0 0.0
      %1176 = vmatprep.subr.mxu0 0.0
      %1177 = vmatpush2.msra.mxu0 0.0
      %1178 = vmatprep.subr.mxu0 0.0
      %1179 = vmatpush2.msra.mxu0 0.0
      %1180 = vmatprep.subr.mxu0 0.0
      %1181 = vmatpush2.msra.mxu0 0.0
      %1182 = vmatprep.subr.mxu0 0.0
      %1183 = vmatpush2.msra.mxu0 0.0
      %1184 = vmatprep.mubr.f32.mxu0 0.0
      %1185 = vmatmul.mubr.f32.gmra.mxu0 %v1118
      %v1186 = vpop.f32.mrf.mxu0
      %v1187 = vadd.f32 %v1115, %v1186
      %v1188 = vpop.f32.mrf.mxu0
      %1189 = vdwg.mxu0
      %v1190 = vld [vmem:[%s5] sm:$0xff]
      %v1191 = vld [vmem:[%s5 + $0x8] sm:$0xff]
      %v1192 = vld [vmem:[%s5 + $0x10] sm:$0xff]
      %v1193 = vld [vmem:[%s5 + $0x18] sm:$0xff]
      %v1194 = vld [vmem:[%s6] sm:$0x1]
      %v1196 = vlaneseq
      %v1197 = vshrl.u32 %v1196, 7
      %v1198 = vsub.s32 0, %v1197
      %v1199 = vrot.slane %v1194, %v1198
      %1201 = vmatprep.subr.mxu0 0.0
      %1202 = vmatpush1.msra.mxu0 0.0
      %1203 = vmatprep.subr.mxu0 0.0
      %1204 = vmatpush1.msra.mxu0 0.0
      %1205 = vmatprep.subr.mxu0 0.0
      %1206 = vmatpush1.msra.mxu0 0.0
      %1207 = vmatprep.subr.mxu0 0.0
      %1208 = vmatpush1.msra.mxu0 0.0
      %1209 = vmatprep.subr.mxu0 0.0
      %1210 = vmatpush1.msra.mxu0 0.0
      %1211 = vmatprep.subr.mxu0 0.0
      %1212 = vmatpush1.msra.mxu0 0.0
      %1213 = vmatprep.subr.mxu0 0.0
      %1214 = vmatpush1.msra.mxu0 0.0
      %1215 = vmatprep.subr.mxu0 0.0
      %1216 = vmatpush1.msra.mxu0 0.0
      %1217 = vmatprep.subr.mxu0 0.0
      %1218 = vmatpush1.msra.mxu0 0.0
      %1219 = vmatprep.subr.mxu0 0.0
      %1220 = vmatpush1.msra.mxu0 0.0
      %1221 = vmatprep.subr.mxu0 0.0
      %1222 = vmatpush1.msra.mxu0 0.0
      %1223 = vmatprep.subr.mxu0 0.0
      %1224 = vmatpush1.msra.mxu0 0.0
      %1225 = vmatprep.subr.mxu0 0.0
      %1226 = vmatpush1.msra.mxu0 %v1193
      %1227 = vmatprep.subr.mxu0 0.0
      %1228 = vmatpush1.msra.mxu0 %v1192
      %1229 = vmatprep.subr.mxu0 0.0
      %1230 = vmatpush1.msra.mxu0 %v1191
      %1231 = vmatprep.subr.mxu0 0.0
      %1232 = vmatpush1.msra.mxu0 %v1190
      %1233 = vmatprep.subr.mxu0 0.0
      %1234 = vmatpush2.msra.mxu0 0.0
      %1235 = vmatprep.subr.mxu0 0.0
      %1236 = vmatpush2.msra.mxu0 0.0
      %1237 = vmatprep.subr.mxu0 0.0
      %1238 = vmatpush2.msra.mxu0 0.0
      %1239 = vmatprep.subr.mxu0 0.0
      %1240 = vmatpush2.msra.mxu0 0.0
      %1241 = vmatprep.subr.mxu0 0.0
      %1242 = vmatpush2.msra.mxu0 0.0
      %1243 = vmatprep.subr.mxu0 0.0
      %1244 = vmatpush2.msra.mxu0 0.0
      %1245 = vmatprep.subr.mxu0 0.0
      %1246 = vmatpush2.msra.mxu0 0.0
      %1247 = vmatprep.subr.mxu0 0.0
      %1248 = vmatpush2.msra.mxu0 0.0
      %1249 = vmatprep.subr.mxu0 0.0
      %1250 = vmatpush2.msra.mxu0 0.0
      %1251 = vmatprep.subr.mxu0 0.0
      %1252 = vmatpush2.msra.mxu0 0.0
      %1253 = vmatprep.subr.mxu0 0.0
      %1254 = vmatpush2.msra.mxu0 0.0
      %1255 = vmatprep.subr.mxu0 0.0
      %1256 = vmatpush2.msra.mxu0 0.0
      %1257 = vmatprep.subr.mxu0 0.0
      %1258 = vmatpush2.msra.mxu0 0.0
      %1259 = vmatprep.subr.mxu0 0.0
      %1260 = vmatpush2.msra.mxu0 0.0
      %1261 = vmatprep.subr.mxu0 0.0
      %1262 = vmatpush2.msra.mxu0 0.0
      %1263 = vmatprep.subr.mxu0 0.0
      %1264 = vmatpush2.msra.mxu0 0.0
      %1265 = vmatprep.mubr.f32.mxu0 0.0
      %1266 = vmatmul.mubr.f32.gmra.mxu0 %v1118
      %v1267 = vpop.f32.mrf.mxu0
      %v1268 = vadd.f32 %v1199, %v1267
      %v1269 = vpop.f32.mrf.mxu0
      %1270 = vdwg.mxu0
      %v1271 = vmul.f32 %v1268, 0.35355338
      %v1273 = vsel %vm281, %v1187, 0
      %v1276 = vsel %vm281, %v1271, 0
      %1278 = vmatprep.subr.mxu0 0.0
      %1279 = vmatpush1.xpose.msra.mxu0 0.0
      %1280 = vmatprep.subr.mxu0 0.0
      %1281 = vmatpush1.xpose.msra.mxu0 0.0
      %1282 = vmatprep.subr.mxu0 0.0
      %1283 = vmatpush1.xpose.msra.mxu0 0.0
      %1284 = vmatprep.subr.mxu0 0.0
      %1285 = vmatpush1.xpose.msra.mxu0 0.0
      %1286 = vmatprep.subr.mxu0 0.0
      %1287 = vmatpush1.xpose.msra.mxu0 0.0
      %1288 = vmatprep.subr.mxu0 0.0
      %1289 = vmatpush1.xpose.msra.mxu0 0.0
      %1290 = vmatprep.subr.mxu0 0.0
      %1291 = vmatpush1.xpose.msra.mxu0 0.0
      %1292 = vmatprep.subr.mxu0 0.0
      %1293 = vmatpush1.xpose.msra.mxu0 0.0
      %1294 = vmatprep.subr.mxu0 0.0
      %1295 = vmatpush1.xpose.msra.mxu0 0.0
      %1296 = vmatprep.subr.mxu0 0.0
      %1297 = vmatpush1.xpose.msra.mxu0 0.0
      %1298 = vmatprep.subr.mxu0 0.0
      %1299 = vmatpush1.xpose.msra.mxu0 0.0
      %1300 = vmatprep.subr.mxu0 0.0
      %1301 = vmatpush1.xpose.msra.mxu0 0.0
      %1302 = vmatprep.subr.mxu0 0.0
      %1303 = vmatpush1.xpose.msra.mxu0 0.0
      %1304 = vmatprep.subr.mxu0 0.0
      %1305 = vmatpush1.xpose.msra.mxu0 0.0
      %1306 = vmatprep.subr.mxu0 0.0
      %1307 = vmatpush1.xpose.msra.mxu0 0.0
      %1308 = vmatprep.subr.mxu0 0.0
      %1309 = vmatpush1.xpose.msra.mxu0 %v1276
      %1310 = vmatprep.subr.mxu0 0.0
      %1311 = vmatpush2.xpose.msra.mxu0 0.0
      %1312 = vmatprep.subr.mxu0 0.0
      %1313 = vmatpush2.xpose.msra.mxu0 0.0
      %1314 = vmatprep.subr.mxu0 0.0
      %1315 = vmatpush2.xpose.msra.mxu0 0.0
      %1316 = vmatprep.subr.mxu0 0.0
      %1317 = vmatpush2.xpose.msra.mxu0 0.0
      %1318 = vmatprep.subr.mxu0 0.0
      %1319 = vmatpush2.xpose.msra.mxu0 0.0
      %1320 = vmatprep.subr.mxu0 0.0
      %1321 = vmatpush2.xpose.msra.mxu0 0.0
      %1322 = vmatprep.subr.mxu0 0.0
      %1323 = vmatpush2.xpose.msra.mxu0 0.0
      %1324 = vmatprep.subr.mxu0 0.0
      %1325 = vmatpush2.xpose.msra.mxu0 0.0
      %1326 = vmatprep.subr.mxu0 0.0
      %1327 = vmatpush2.xpose.msra.mxu0 0.0
      %1328 = vmatprep.subr.mxu0 0.0
      %1329 = vmatpush2.xpose.msra.mxu0 0.0
      %1330 = vmatprep.subr.mxu0 0.0
      %1331 = vmatpush2.xpose.msra.mxu0 0.0
      %1332 = vmatprep.subr.mxu0 0.0
      %1333 = vmatpush2.xpose.msra.mxu0 0.0
      %1334 = vmatprep.subr.mxu0 0.0
      %1335 = vmatpush2.xpose.msra.mxu0 0.0
      %1336 = vmatprep.subr.mxu0 0.0
      %1337 = vmatpush2.xpose.msra.mxu0 0.0
      %1338 = vmatprep.subr.mxu0 0.0
      %1339 = vmatpush2.xpose.msra.mxu0 0.0
      %1340 = vmatprep.subr.mxu0 0.0
      %1341 = vmatpush2.xpose.msra.mxu0 0.0
      %1342 = vmatprep.mubr.f32.mxu0 0.0
      %1343 = vmatmul.mubr.f32.gmra.mxu0 %v1273
      %v1344 = vpop.f32.mrf.mxu0
      %v1345 = vadd.f32 0.0, %v1344
      %v1346 = vpop.f32.mrf.mxu0
      %1347 = vdwg.mxu0
      %v1348 = vsel %vm281, %v1345, -inf
      %1349 = vmax.xlane.f32.xlu0 %v1348
      %v1350 = vpop.xlane.xlu0 %1349
      %v1351 = vsub.f32 %v1345, %v1350
      %v1352 = vmul.f32 %v1351, 1.442695
      %v1353 = vpow.pop %v1352
      %v1354 = vsel %vm281, %v1353, 0.0
      %1355 = vadd.xlane.f32.xlu0 %v1354
      %v1356 = vpop.xlane.xlu0 %1355
      %v1357 = vrcp.pop %v1356
      %v1358 = vmul.f32 %v1353, %v1357
      %v1360 = vsel %vm281, %v1358, 0
      %1362 = vmatprep.subr.mxu0 0.0
      %1363 = vmatpush1.msra.mxu0 0.0
      %1364 = vmatprep.subr.mxu0 0.0
      %1365 = vmatpush1.msra.mxu0 0.0
      %1366 = vmatprep.subr.mxu0 0.0
      %1367 = vmatpush1.msra.mxu0 0.0
      %1368 = vmatprep.subr.mxu0 0.0
      %1369 = vmatpush1.msra.mxu0 0.0
      %1370 = vmatprep.subr.mxu0 0.0
      %1371 = vmatpush1.msra.mxu0 0.0
      %1372 = vmatprep.subr.mxu0 0.0
      %1373 = vmatpush1.msra.mxu0 0.0
      %1374 = vmatprep.subr.mxu0 0.0
      %1375 = vmatpush1.msra.mxu0 0.0
      %1376 = vmatprep.subr.mxu0 0.0
      %1377 = vmatpush1.msra.mxu0 0.0
      %1378 = vmatprep.subr.mxu0 0.0
      %1379 = vmatpush1.msra.mxu0 0.0
      %1380 = vmatprep.subr.mxu0 0.0
      %1381 = vmatpush1.msra.mxu0 0.0
      %1382 = vmatprep.subr.mxu0 0.0
      %1383 = vmatpush1.msra.mxu0 0.0
      %1384 = vmatprep.subr.mxu0 0.0
      %1385 = vmatpush1.msra.mxu0 0.0
      %1386 = vmatprep.subr.mxu0 0.0
      %1387 = vmatpush1.msra.mxu0 0.0
      %1388 = vmatprep.subr.mxu0 0.0
      %1389 = vmatpush1.msra.mxu0 0.0
      %1390 = vmatprep.subr.mxu0 0.0
      %1391 = vmatpush1.msra.mxu0 0.0
      %1392 = vmatprep.subr.mxu0 0.0
      %1393 = vmatpush1.msra.mxu0 %v1187
      %1394 = vmatprep.subr.mxu0 0.0
      %1395 = vmatpush2.msra.mxu0 0.0
      %1396 = vmatprep.subr.mxu0 0.0
      %1397 = vmatpush2.msra.mxu0 0.0
      %1398 = vmatprep.subr.mxu0 0.0
      %1399 = vmatpush2.msra.mxu0 0.0
      %1400 = vmatprep.subr.mxu0 0.0
      %1401 = vmatpush2.msra.mxu0 0.0
      %1402 = vmatprep.subr.mxu0 0.0
      %1403 = vmatpush2.msra.mxu0 0.0
      %1404 = vmatprep.subr.mxu0 0.0
      %1405 = vmatpush2.msra.mxu0 0.0
      %1406 = vmatprep.subr.mxu0 0.0
      %1407 = vmatpush2.msra.mxu0 0.0
      %1408 = vmatprep.subr.mxu0 0.0
      %1409 = vmatpush2.msra.mxu0 0.0
      %1410 = vmatprep.subr.mxu0 0.0
      %1411 = vmatpush2.msra.mxu0 0.0
      %1412 = vmatprep.subr.mxu0 0.0
      %1413 = vmatpush2.msra.mxu0 0.0
      %1414 = vmatprep.subr.mxu0 0.0
      %1415 = vmatpush2.msra.mxu0 0.0
      %1416 = vmatprep.subr.mxu0 0.0
      %1417 = vmatpush2.msra.mxu0 0.0
      %1418 = vmatprep.subr.mxu0 0.0
      %1419 = vmatpush2.msra.mxu0 0.0
      %1420 = vmatprep.subr.mxu0 0.0
      %1421 = vmatpush2.msra.mxu0 0.0
      %1422 = vmatprep.subr.mxu0 0.0
      %1423 = vmatpush2.msra.mxu0 0.0
      %1424 = vmatprep.subr.mxu0 0.0
      %1425 = vmatpush2.msra.mxu0 0.0
      %1426 = vmatprep.mubr.f32.mxu0 0.0
      %1427 = vmatmul.mubr.f32.gmra.mxu0 %v1360
      %v1428 = vpop.f32.mrf.mxu0
      %v1429 = vadd.f32 0.0, %v1428
      %v1430 = vpop.f32.mrf.mxu0
      %1431 = vdwg.mxu0
      %1432 = vst.msk [vmem:[#allocation4] sm:$0xff] %vm281, %v1429
      %1433 = vrot.lane.b32.xlu0 %v1187, 120
      %v1434 = vpop.permute.xlu0 %1433
      %1435 = vrot.lane.b32.xlu0 %v1271, 120
      %v1436 = vpop.permute.xlu0 %1435
      %v1437 = vsel %vm281, %v1434, 0
      %v1439 = vsel %vm281, %v1436, 0
      %1441 = vmatprep.subr.mxu0 0.0
      %1442 = vmatpush1.xpose.msra.mxu0 0.0
      %1443 = vmatprep.subr.mxu0 0.0
      %1444 = vmatpush1.xpose.msra.mxu0 0.0
      %1445 = vmatprep.subr.mxu0 0.0
      %1446 = vmatpush1.xpose.msra.mxu0 0.0
      %1447 = vmatprep.subr.mxu0 0.0
      %1448 = vmatpush1.xpose.msra.mxu0 0.0
      %1449 = vmatprep.subr.mxu0 0.0
      %1450 = vmatpush1.xpose.msra.mxu0 0.0
      %1451 = vmatprep.subr.mxu0 0.0
      %1452 = vmatpush1.xpose.msra.mxu0 0.0
      %1453 = vmatprep.subr.mxu0 0.0
      %1454 = vmatpush1.xpose.msra.mxu0 0.0
      %1455 = vmatprep.subr.mxu0 0.0
      %1456 = vmatpush1.xpose.msra.mxu0 0.0
      %1457 = vmatprep.subr.mxu0 0.0
      %1458 = vmatpush1.xpose.msra.mxu0 0.0
      %1459 = vmatprep.subr.mxu0 0.0
      %1460 = vmatpush1.xpose.msra.mxu0 0.0
      %1461 = vmatprep.subr.mxu0 0.0
      %1462 = vmatpush1.xpose.msra.mxu0 0.0
      %1463 = vmatprep.subr.mxu0 0.0
      %1464 = vmatpush1.xpose.msra.mxu0 0.0
      %1465 = vmatprep.subr.mxu0 0.0
      %1466 = vmatpush1.xpose.msra.mxu0 0.0
      %1467 = vmatprep.subr.mxu0 0.0
      %1468 = vmatpush1.xpose.msra.mxu0 0.0
      %1469 = vmatprep.subr.mxu0 0.0
      %1470 = vmatpush1.xpose.msra.mxu0 0.0
      %1471 = vmatprep.subr.mxu0 0.0
      %1472 = vmatpush1.xpose.msra.mxu0 %v1439
      %1473 = vmatprep.subr.mxu0 0.0
      %1474 = vmatpush2.xpose.msra.mxu0 0.0
      %1475 = vmatprep.subr.mxu0 0.0
      %1476 = vmatpush2.xpose.msra.mxu0 0.0
      %1477 = vmatprep.subr.mxu0 0.0
      %1478 = vmatpush2.xpose.msra.mxu0 0.0
      %1479 = vmatprep.subr.mxu0 0.0
      %1480 = vmatpush2.xpose.msra.mxu0 0.0
      %1481 = vmatprep.subr.mxu0 0.0
      %1482 = vmatpush2.xpose.msra.mxu0 0.0
      %1483 = vmatprep.subr.mxu0 0.0
      %1484 = vmatpush2.xpose.msra.mxu0 0.0
      %1485 = vmatprep.subr.mxu0 0.0
      %1486 = vmatpush2.xpose.msra.mxu0 0.0
      %1487 = vmatprep.subr.mxu0 0.0
      %1488 = vmatpush2.xpose.msra.mxu0 0.0
      %1489 = vmatprep.subr.mxu0 0.0
      %1490 = vmatpush2.xpose.msra.mxu0 0.0
      %1491 = vmatprep.subr.mxu0 0.0
      %1492 = vmatpush2.xpose.msra.mxu0 0.0
      %1493 = vmatprep.subr.mxu0 0.0
      %1494 = vmatpush2.xpose.msra.mxu0 0.0
      %1495 = vmatprep.subr.mxu0 0.0
      %1496 = vmatpush2.xpose.msra.mxu0 0.0
      %1497 = vmatprep.subr.mxu0 0.0
      %1498 = vmatpush2.xpose.msra.mxu0 0.0
      %1499 = vmatprep.subr.mxu0 0.0
      %1500 = vmatpush2.xpose.msra.mxu0 0.0
      %1501 = vmatprep.subr.mxu0 0.0
      %1502 = vmatpush2.xpose.msra.mxu0 0.0
      %1503 = vmatprep.subr.mxu0 0.0
      %1504 = vmatpush2.xpose.msra.mxu0 0.0
      %1505 = vmatprep.mubr.f32.mxu0 0.0
      %1506 = vmatmul.mubr.f32.gmra.mxu0 %v1437
      %v1507 = vpop.f32.mrf.mxu0
      %v1508 = vadd.f32 0.0, %v1507
      %v1509 = vpop.f32.mrf.mxu0
      %1510 = vdwg.mxu0
      %v1511 = vsel %vm281, %v1508, -inf
      %1512 = vmax.xlane.f32.xlu0 %v1511
      %v1513 = vpop.xlane.xlu0 %1512
      %v1514 = vsub.f32 %v1508, %v1513
      %v1515 = vmul.f32 %v1514, 1.442695
      %v1516 = vpow.pop %v1515
      %v1517 = vsel %vm281, %v1516, 0.0
      %1518 = vadd.xlane.f32.xlu0 %v1517
      %v1519 = vpop.xlane.xlu0 %1518
      %v1520 = vrcp.pop %v1519
      %v1521 = vmul.f32 %v1516, %v1520
      %v1524 = vsel %vm281, %v1521, 0
      %1526 = vmatprep.subr.mxu0 0.0
      %1527 = vmatpush1.msra.mxu0 0.0
      %1528 = vmatprep.subr.mxu0 0.0
      %1529 = vmatpush1.msra.mxu0 0.0
      %1530 = vmatprep.subr.mxu0 0.0
      %1531 = vmatpush1.msra.mxu0 0.0
      %1532 = vmatprep.subr.mxu0 0.0
      %1533 = vmatpush1.msra.mxu0 0.0
      %1534 = vmatprep.subr.mxu0 0.0
      %1535 = vmatpush1.msra.mxu0 0.0
      %1536 = vmatprep.subr.mxu0 0.0
      %1537 = vmatpush1.msra.mxu0 0.0
      %1538 = vmatprep.subr.mxu0 0.0
      %1539 = vmatpush1.msra.mxu0 0.0
      %1540 = vmatprep.subr.mxu0 0.0
      %1541 = vmatpush1.msra.mxu0 0.0
      %1542 = vmatprep.subr.mxu0 0.0
      %1543 = vmatpush1.msra.mxu0 0.0
      %1544 = vmatprep.subr.mxu0 0.0
      %1545 = vmatpush1.msra.mxu0 0.0
      %1546 = vmatprep.subr.mxu0 0.0
      %1547 = vmatpush1.msra.mxu0 0.0
      %1548 = vmatprep.subr.mxu0 0.0
      %1549 = vmatpush1.msra.mxu0 0.0
      %1550 = vmatprep.subr.mxu0 0.0
      %1551 = vmatpush1.msra.mxu0 0.0
      %1552 = vmatprep.subr.mxu0 0.0
      %1553 = vmatpush1.msra.mxu0 0.0
      %1554 = vmatprep.subr.mxu0 0.0
      %1555 = vmatpush1.msra.mxu0 0.0
      %1556 = vmatprep.subr.mxu0 0.0
      %1557 = vmatpush1.msra.mxu0 %v1434
      %1558 = vmatprep.subr.mxu0 0.0
      %1559 = vmatpush2.msra.mxu0 0.0
      %1560 = vmatprep.subr.mxu0 0.0
      %1561 = vmatpush2.msra.mxu0 0.0
      %1562 = vmatprep.subr.mxu0 0.0
      %1563 = vmatpush2.msra.mxu0 0.0
      %1564 = vmatprep.subr.mxu0 0.0
      %1565 = vmatpush2.msra.mxu0 0.0
      %1566 = vmatprep.subr.mxu0 0.0
      %1567 = vmatpush2.msra.mxu0 0.0
      %1568 = vmatprep.subr.mxu0 0.0
      %1569 = vmatpush2.msra.mxu0 0.0
      %1570 = vmatprep.subr.mxu0 0.0
      %1571 = vmatpush2.msra.mxu0 0.0
      %1572 = vmatprep.subr.mxu0 0.0
      %1573 = vmatpush2.msra.mxu0 0.0
      %1574 = vmatprep.subr.mxu0 0.0
      %1575 = vmatpush2.msra.mxu0 0.0
      %1576 = vmatprep.subr.mxu0 0.0
      %1577 = vmatpush2.msra.mxu0 0.0
      %1578 = vmatprep.subr.mxu0 0.0
      %1579 = vmatpush2.msra.mxu0 0.0
      %1580 = vmatprep.subr.mxu0 0.0
      %1581 = vmatpush2.msra.mxu0 0.0
      %1582 = vmatprep.subr.mxu0 0.0
      %1583 = vmatpush2.msra.mxu0 0.0
      %1584 = vmatprep.subr.mxu0 0.0
      %1585 = vmatpush2.msra.mxu0 0.0
      %1586 = vmatprep.subr.mxu0 0.0
      %1587 = vmatpush2.msra.mxu0 0.0
      %1588 = vmatprep.subr.mxu0 0.0
      %1589 = vmatpush2.msra.mxu0 0.0
      %1590 = vmatprep.mubr.f32.mxu0 0.0
      %1591 = vmatmul.mubr.f32.gmra.mxu0 %v1524
      %v1592 = vpop.f32.mrf.mxu0
      %v1593 = vadd.f32 0.0, %v1592
      %v1594 = vpop.f32.mrf.mxu0
      %1595 = vdwg.mxu0
      %1597 = vrot.lane.b32.xlu0 %v1593, 8
      %v1598 = vpop.permute.xlu0 %1597
      %1600 = vst.msk [vmem:[#allocation4] sm:$0xff] %vm610, %v1598
      %1601 = vrot.lane.b32.xlu0 %v1187, 112
      %v1602 = vpop.permute.xlu0 %1601
      %1603 = vrot.lane.b32.xlu0 %v1271, 112
      %v1604 = vpop.permute.xlu0 %1603
      %v1605 = vsel %vm281, %v1602, 0
      %v1607 = vsel %vm281, %v1604, 0
      %1609 = vmatprep.subr.mxu0 0.0
      %1610 = vmatpush1.xpose.msra.mxu0 0.0
      %1611 = vmatprep.subr.mxu0 0.0
      %1612 = vmatpush1.xpose.msra.mxu0 0.0
      %1613 = vmatprep.subr.mxu0 0.0
      %1614 = vmatpush1.xpose.msra.mxu0 0.0
      %1615 = vmatprep.subr.mxu0 0.0
      %1616 = vmatpush1.xpose.msra.mxu0 0.0
      %1617 = vmatprep.subr.mxu0 0.0
      %1618 = vmatpush1.xpose.msra.mxu0 0.0
      %1619 = vmatprep.subr.mxu0 0.0
      %1620 = vmatpush1.xpose.msra.mxu0 0.0
      %1621 = vmatprep.subr.mxu0 0.0
      %1622 = vmatpush1.xpose.msra.mxu0 0.0
      %1623 = vmatprep.subr.mxu0 0.0
      %1624 = vmatpush1.xpose.msra.mxu0 0.0
      %1625 = vmatprep.subr.mxu0 0.0
      %1626 = vmatpush1.xpose.msra.mxu0 0.0
      %1627 = vmatprep.subr.mxu0 0.0
      %1628 = vmatpush1.xpose.msra.mxu0 0.0
      %1629 = vmatprep.subr.mxu0 0.0
      %1630 = vmatpush1.xpose.msra.mxu0 0.0
      %1631 = vmatprep.subr.mxu0 0.0
      %1632 = vmatpush1.xpose.msra.mxu0 0.0
      %1633 = vmatprep.subr.mxu0 0.0
      %1634 = vmatpush1.xpose.msra.mxu0 0.0
      %1635 = vmatprep.subr.mxu0 0.0
      %1636 = vmatpush1.xpose.msra.mxu0 0.0
      %1637 = vmatprep.subr.mxu0 0.0
      %1638 = vmatpush1.xpose.msra.mxu0 0.0
      %1639 = vmatprep.subr.mxu0 0.0
      %1640 = vmatpush1.xpose.msra.mxu0 %v1607
      %1641 = vmatprep.subr.mxu0 0.0
      %1642 = vmatpush2.xpose.msra.mxu0 0.0
      %1643 = vmatprep.subr.mxu0 0.0
      %1644 = vmatpush2.xpose.msra.mxu0 0.0
      %1645 = vmatprep.subr.mxu0 0.0
      %1646 = vmatpush2.xpose.msra.mxu0 0.0
      %1647 = vmatprep.subr.mxu0 0.0
      %1648 = vmatpush2.xpose.msra.mxu0 0.0
      %1649 = vmatprep.subr.mxu0 0.0
      %1650 = vmatpush2.xpose.msra.mxu0 0.0
      %1651 = vmatprep.subr.mxu0 0.0
      %1652 = vmatpush2.xpose.msra.mxu0 0.0
      %1653 = vmatprep.subr.mxu0 0.0
      %1654 = vmatpush2.xpose.msra.mxu0 0.0
      %1655 = vmatprep.subr.mxu0 0.0
      %1656 = vmatpush2.xpose.msra.mxu0 0.0
      %1657 = vmatprep.subr.mxu0 0.0
      %1658 = vmatpush2.xpose.msra.mxu0 0.0
      %1659 = vmatprep.subr.mxu0 0.0
      %1660 = vmatpush2.xpose.msra.mxu0 0.0
      %1661 = vmatprep.subr.mxu0 0.0
      %1662 = vmatpush2.xpose.msra.mxu0 0.0
      %1663 = vmatprep.subr.mxu0 0.0
      %1664 = vmatpush2.xpose.msra.mxu0 0.0
      %1665 = vmatprep.subr.mxu0 0.0
      %1666 = vmatpush2.xpose.msra.mxu0 0.0
      %1667 = vmatprep.subr.mxu0 0.0
      %1668 = vmatpush2.xpose.msra.mxu0 0.0
      %1669 = vmatprep.subr.mxu0 0.0
      %1670 = vmatpush2.xpose.msra.mxu0 0.0
      %1671 = vmatprep.subr.mxu0 0.0
      %1672 = vmatpush2.xpose.msra.mxu0 0.0
      %1673 = vmatprep.mubr.f32.mxu0 0.0
      %1674 = vmatmul.mubr.f32.gmra.mxu0 %v1605
      %v1675 = vpop.f32.mrf.mxu0
      %v1676 = vadd.f32 0.0, %v1675
      %v1677 = vpop.f32.mrf.mxu0
      %1678 = vdwg.mxu0
      %v1679 = vsel %vm281, %v1676, -inf
      %1680 = vmax.xlane.f32.xlu0 %v1679
      %v1681 = vpop.xlane.xlu0 %1680
      %v1682 = vsub.f32 %v1676, %v1681
      %v1683 = vmul.f32 %v1682, 1.442695
      %v1684 = vpow.pop %v1683
      %v1685 = vsel %vm281, %v1684, 0.0
      %1686 = vadd.xlane.f32.xlu0 %v1685
      %v1687 = vpop.xlane.xlu0 %1686
      %v1688 = vrcp.pop %v1687
      %v1689 = vmul.f32 %v1684, %v1688
      %v1692 = vsel %vm281, %v1689, 0
      %1694 = vmatprep.subr.mxu0 0.0
      %1695 = vmatpush1.msra.mxu0 0.0
      %1696 = vmatprep.subr.mxu0 0.0
      %1697 = vmatpush1.msra.mxu0 0.0
      %1698 = vmatprep.subr.mxu0 0.0
      %1699 = vmatpush1.msra.mxu0 0.0
      %1700 = vmatprep.subr.mxu0 0.0
      %1701 = vmatpush1.msra.mxu0 0.0
      %1702 = vmatprep.subr.mxu0 0.0
      %1703 = vmatpush1.msra.mxu0 0.0
      %1704 = vmatprep.subr.mxu0 0.0
      %1705 = vmatpush1.msra.mxu0 0.0
      %1706 = vmatprep.subr.mxu0 0.0
      %1707 = vmatpush1.msra.mxu0 0.0
      %1708 = vmatprep.subr.mxu0 0.0
      %1709 = vmatpush1.msra.mxu0 0.0
      %1710 = vmatprep.subr.mxu0 0.0
      %1711 = vmatpush1.msra.mxu0 0.0
      %1712 = vmatprep.subr.mxu0 0.0
      %1713 = vmatpush1.msra.mxu0 0.0
      %1714 = vmatprep.subr.mxu0 0.0
      %1715 = vmatpush1.msra.mxu0 0.0
      %1716 = vmatprep.subr.mxu0 0.0
      %1717 = vmatpush1.msra.mxu0 0.0
      %1718 = vmatprep.subr.mxu0 0.0
      %1719 = vmatpush1.msra.mxu0 0.0
      %1720 = vmatprep.subr.mxu0 0.0
      %1721 = vmatpush1.msra.mxu0 0.0
      %1722 = vmatprep.subr.mxu0 0.0
      %1723 = vmatpush1.msra.mxu0 0.0
      %1724 = vmatprep.subr.mxu0 0.0
      %1725 = vmatpush1.msra.mxu0 %v1602
      %1726 = vmatprep.subr.mxu0 0.0
      %1727 = vmatpush2.msra.mxu0 0.0
      %1728 = vmatprep.subr.mxu0 0.0
      %1729 = vmatpush2.msra.mxu0 0.0
      %1730 = vmatprep.subr.mxu0 0.0
      %1731 = vmatpush2.msra.mxu0 0.0
      %1732 = vmatprep.subr.mxu0 0.0
      %1733 = vmatpush2.msra.mxu0 0.0
      %1734 = vmatprep.subr.mxu0 0.0
      %1735 = vmatpush2.msra.mxu0 0.0
      %1736 = vmatprep.subr.mxu0 0.0
      %1737 = vmatpush2.msra.mxu0 0.0
      %1738 = vmatprep.subr.mxu0 0.0
      %1739 = vmatpush2.msra.mxu0 0.0
      %1740 = vmatprep.subr.mxu0 0.0
      %1741 = vmatpush2.msra.mxu0 0.0
      %1742 = vmatprep.subr.mxu0 0.0
      %1743 = vmatpush2.msra.mxu0 0.0
      %1744 = vmatprep.subr.mxu0 0.0
      %1745 = vmatpush2.msra.mxu0 0.0
      %1746 = vmatprep.subr.mxu0 0.0
      %1747 = vmatpush2.msra.mxu0 0.0
      %1748 = vmatprep.subr.mxu0 0.0
      %1749 = vmatpush2.msra.mxu0 0.0
      %1750 = vmatprep.subr.mxu0 0.0
      %1751 = vmatpush2.msra.mxu0 0.0
      %1752 = vmatprep.subr.mxu0 0.0
      %1753 = vmatpush2.msra.mxu0 0.0
      %1754 = vmatprep.subr.mxu0 0.0
      %1755 = vmatpush2.msra.mxu0 0.0
      %1756 = vmatprep.subr.mxu0 0.0
      %1757 = vmatpush2.msra.mxu0 0.0
      %1758 = vmatprep.mubr.f32.mxu0 0.0
      %1759 = vmatmul.mubr.f32.gmra.mxu0 %v1692
      %v1760 = vpop.f32.mrf.mxu0
      %v1761 = vadd.f32 0.0, %v1760
      %v1762 = vpop.f32.mrf.mxu0
      %1763 = vdwg.mxu0
      %1765 = vrot.lane.b32.xlu0 %v1761, 16
      %v1766 = vpop.permute.xlu0 %1765
      %1768 = vst.msk [vmem:[#allocation4] sm:$0xff] %vm779, %v1766
      %1769 = vrot.lane.b32.xlu0 %v1187, 104
      %v1770 = vpop.permute.xlu0 %1769
      %1771 = vrot.lane.b32.xlu0 %v1271, 104
      %v1772 = vpop.permute.xlu0 %1771
      %v1773 = vsel %vm281, %v1770, 0
      %v1775 = vsel %vm281, %v1772, 0
      %1777 = vmatprep.subr.mxu0 0.0
      %1778 = vmatpush1.xpose.msra.mxu0 0.0
      %1779 = vmatprep.subr.mxu0 0.0
      %1780 = vmatpush1.xpose.msra.mxu0 0.0
      %1781 = vmatprep.subr.mxu0 0.0
      %1782 = vmatpush1.xpose.msra.mxu0 0.0
      %1783 = vmatprep.subr.mxu0 0.0
      %1784 = vmatpush1.xpose.msra.mxu0 0.0
      %1785 = vmatprep.subr.mxu0 0.0
      %1786 = vmatpush1.xpose.msra.mxu0 0.0
      %1787 = vmatprep.subr.mxu0 0.0
      %1788 = vmatpush1.xpose.msra.mxu0 0.0
      %1789 = vmatprep.subr.mxu0 0.0
      %1790 = vmatpush1.xpose.msra.mxu0 0.0
      %1791 = vmatprep.subr.mxu0 0.0
      %1792 = vmatpush1.xpose.msra.mxu0 0.0
      %1793 = vmatprep.subr.mxu0 0.0
      %1794 = vmatpush1.xpose.msra.mxu0 0.0
      %1795 = vmatprep.subr.mxu0 0.0
      %1796 = vmatpush1.xpose.msra.mxu0 0.0
      %1797 = vmatprep.subr.mxu0 0.0
      %1798 = vmatpush1.xpose.msra.mxu0 0.0
      %1799 = vmatprep.subr.mxu0 0.0
      %1800 = vmatpush1.xpose.msra.mxu0 0.0
      %1801 = vmatprep.subr.mxu0 0.0
      %1802 = vmatpush1.xpose.msra.mxu0 0.0
      %1803 = vmatprep.subr.mxu0 0.0
      %1804 = vmatpush1.xpose.msra.mxu0 0.0
      %1805 = vmatprep.subr.mxu0 0.0
      %1806 = vmatpush1.xpose.msra.mxu0 0.0
      %1807 = vmatprep.subr.mxu0 0.0
      %1808 = vmatpush1.xpose.msra.mxu0 %v1775
      %1809 = vmatprep.subr.mxu0 0.0
      %1810 = vmatpush2.xpose.msra.mxu0 0.0
      %1811 = vmatprep.subr.mxu0 0.0
      %1812 = vmatpush2.xpose.msra.mxu0 0.0
      %1813 = vmatprep.subr.mxu0 0.0
      %1814 = vmatpush2.xpose.msra.mxu0 0.0
      %1815 = vmatprep.subr.mxu0 0.0
      %1816 = vmatpush2.xpose.msra.mxu0 0.0
      %1817 = vmatprep.subr.mxu0 0.0
      %1818 = vmatpush2.xpose.msra.mxu0 0.0
      %1819 = vmatprep.subr.mxu0 0.0
      %1820 = vmatpush2.xpose.msra.mxu0 0.0
      %1821 = vmatprep.subr.mxu0 0.0
      %1822 = vmatpush2.xpose.msra.mxu0 0.0
      %1823 = vmatprep.subr.mxu0 0.0
      %1824 = vmatpush2.xpose.msra.mxu0 0.0
      %1825 = vmatprep.subr.mxu0 0.0
      %1826 = vmatpush2.xpose.msra.mxu0 0.0
      %1827 = vmatprep.subr.mxu0 0.0
      %1828 = vmatpush2.xpose.msra.mxu0 0.0
      %1829 = vmatprep.subr.mxu0 0.0
      %1830 = vmatpush2.xpose.msra.mxu0 0.0
      %1831 = vmatprep.subr.mxu0 0.0
      %1832 = vmatpush2.xpose.msra.mxu0 0.0
      %1833 = vmatprep.subr.mxu0 0.0
      %1834 = vmatpush2.xpose.msra.mxu0 0.0
      %1835 = vmatprep.subr.mxu0 0.0
      %1836 = vmatpush2.xpose.msra.mxu0 0.0
      %1837 = vmatprep.subr.mxu0 0.0
      %1838 = vmatpush2.xpose.msra.mxu0 0.0
      %1839 = vmatprep.subr.mxu0 0.0
      %1840 = vmatpush2.xpose.msra.mxu0 0.0
      %1841 = vmatprep.mubr.f32.mxu0 0.0
      %1842 = vmatmul.mubr.f32.gmra.mxu0 %v1773
      %v1843 = vpop.f32.mrf.mxu0
      %v1844 = vadd.f32 0.0, %v1843
      %v1845 = vpop.f32.mrf.mxu0
      %1846 = vdwg.mxu0
      %v1847 = vsel %vm281, %v1844, -inf
      %1848 = vmax.xlane.f32.xlu0 %v1847
      %v1849 = vpop.xlane.xlu0 %1848
      %v1850 = vsub.f32 %v1844, %v1849
      %v1851 = vmul.f32 %v1850, 1.442695
      %v1852 = vpow.pop %v1851
      %v1853 = vsel %vm281, %v1852, 0.0
      %1854 = vadd.xlane.f32.xlu0 %v1853
      %v1855 = vpop.xlane.xlu0 %1854
      %v1856 = vrcp.pop %v1855
      %v1857 = vmul.f32 %v1852, %v1856
      %v1860 = vsel %vm281, %v1857, 0
      %1862 = vmatprep.subr.mxu0 0.0
      %1863 = vmatpush1.msra.mxu0 0.0
      %1864 = vmatprep.subr.mxu0 0.0
      %1865 = vmatpush1.msra.mxu0 0.0
      %1866 = vmatprep.subr.mxu0 0.0
      %1867 = vmatpush1.msra.mxu0 0.0
      %1868 = vmatprep.subr.mxu0 0.0
      %1869 = vmatpush1.msra.mxu0 0.0
      %1870 = vmatprep.subr.mxu0 0.0
      %1871 = vmatpush1.msra.mxu0 0.0
      %1872 = vmatprep.subr.mxu0 0.0
      %1873 = vmatpush1.msra.mxu0 0.0
      %1874 = vmatprep.subr.mxu0 0.0
      %1875 = vmatpush1.msra.mxu0 0.0
      %1876 = vmatprep.subr.mxu0 0.0
      %1877 = vmatpush1.msra.mxu0 0.0
      %1878 = vmatprep.subr.mxu0 0.0
      %1879 = vmatpush1.msra.mxu0 0.0
      %1880 = vmatprep.subr.mxu0 0.0
      %1881 = vmatpush1.msra.mxu0 0.0
      %1882 = vmatprep.subr.mxu0 0.0
      %1883 = vmatpush1.msra.mxu0 0.0
      %1884 = vmatprep.subr.mxu0 0.0
      %1885 = vmatpush1.msra.mxu0 0.0
      %1886 = vmatprep.subr.mxu0 0.0
      %1887 = vmatpush1.msra.mxu0 0.0
      %1888 = vmatprep.subr.mxu0 0.0
      %1889 = vmatpush1.msra.mxu0 0.0
      %1890 = vmatprep.subr.mxu0 0.0
      %1891 = vmatpush1.msra.mxu0 0.0
      %1892 = vmatprep.subr.mxu0 0.0
      %1893 = vmatpush1.msra.mxu0 %v1770
      %1894 = vmatprep.subr.mxu0 0.0
      %1895 = vmatpush2.msra.mxu0 0.0
      %1896 = vmatprep.subr.mxu0 0.0
      %1897 = vmatpush2.msra.mxu0 0.0
      %1898 = vmatprep.subr.mxu0 0.0
      %1899 = vmatpush2.msra.mxu0 0.0
      %1900 = vmatprep.subr.mxu0 0.0
      %1901 = vmatpush2.msra.mxu0 0.0
      %1902 = vmatprep.subr.mxu0 0.0
      %1903 = vmatpush2.msra.mxu0 0.0
      %1904 = vmatprep.subr.mxu0 0.0
      %1905 = vmatpush2.msra.mxu0 0.0
      %1906 = vmatprep.subr.mxu0 0.0
      %1907 = vmatpush2.msra.mxu0 0.0
      %1908 = vmatprep.subr.mxu0 0.0
      %1909 = vmatpush2.msra.mxu0 0.0
      %1910 = vmatprep.subr.mxu0 0.0
      %1911 = vmatpush2.msra.mxu0 0.0
      %1912 = vmatprep.subr.mxu0 0.0
      %1913 = vmatpush2.msra.mxu0 0.0
      %1914 = vmatprep.subr.mxu0 0.0
      %1915 = vmatpush2.msra.mxu0 0.0
      %1916 = vmatprep.subr.mxu0 0.0
      %1917 = vmatpush2.msra.mxu0 0.0
      %1918 = vmatprep.subr.mxu0 0.0
      %1919 = vmatpush2.msra.mxu0 0.0
      %1920 = vmatprep.subr.mxu0 0.0
      %1921 = vmatpush2.msra.mxu0 0.0
      %1922 = vmatprep.subr.mxu0 0.0
      %1923 = vmatpush2.msra.mxu0 0.0
      %1924 = vmatprep.subr.mxu0 0.0
      %1925 = vmatpush2.msra.mxu0 0.0
      %1926 = vmatprep.mubr.f32.mxu0 0.0
      %1927 = vmatmul.mubr.f32.gmra.mxu0 %v1860
      %v1928 = vpop.f32.mrf.mxu0
      %v1929 = vadd.f32 0.0, %v1928
      %v1930 = vpop.f32.mrf.mxu0
      %1931 = vdwg.mxu0
      %1933 = vrot.lane.b32.xlu0 %v1929, 24
      %v1934 = vpop.permute.xlu0 %1933
      %1936 = vst.msk [vmem:[#allocation4] sm:$0xff] %vm948, %v1934
      %v1937 = vld [vmem:[#allocation4] sm:$0xff]
      %v1938 = vld [vmem:[%s7] sm:$0xff]
      %v1939 = vld [vmem:[%s7 + $0x8] sm:$0xff]
      %v1940 = vld [vmem:[%s7 + $0x10] sm:$0xff]
      %v1941 = vld [vmem:[%s7 + $0x18] sm:$0xff]
      %v1942 = vld [vmem:[%s8] sm:$0x1]
      %v1944 = vlaneseq
      %v1945 = vshrl.u32 %v1944, 7
      %v1946 = vsub.s32 0, %v1945
      %v1947 = vrot.slane %v1942, %v1946
      %v1950 = vsel %vm86, %v1937, 0
      %1952 = vmatprep.subr.mxu0 0.0
      %1953 = vmatpush1.msra.mxu0 0.0
      %1954 = vmatprep.subr.mxu0 0.0
      %1955 = vmatpush1.msra.mxu0 0.0
      %1956 = vmatprep.subr.mxu0 0.0
      %1957 = vmatpush1.msra.mxu0 0.0
      %1958 = vmatprep.subr.mxu0 0.0
      %1959 = vmatpush1.msra.mxu0 0.0
      %1960 = vmatprep.subr.mxu0 0.0
      %1961 = vmatpush1.msra.mxu0 0.0
      %1962 = vmatprep.subr.mxu0 0.0
      %1963 = vmatpush1.msra.mxu0 0.0
      %1964 = vmatprep.subr.mxu0 0.0
      %1965 = vmatpush1.msra.mxu0 0.0
      %1966 = vmatprep.subr.mxu0 0.0
      %1967 = vmatpush1.msra.mxu0 0.0
      %1968 = vmatprep.subr.mxu0 0.0
      %1969 = vmatpush1.msra.mxu0 0.0
      %1970 = vmatprep.subr.mxu0 0.0
      %1971 = vmatpush1.msra.mxu0 0.0
      %1972 = vmatprep.subr.mxu0 0.0
      %1973 = vmatpush1.msra.mxu0 0.0
      %1974 = vmatprep.subr.mxu0 0.0
      %1975 = vmatpush1.msra.mxu0 0.0
      %1976 = vmatprep.subr.mxu0 0.0
      %1977 = vmatpush1.msra.mxu0 %v1941
      %1978 = vmatprep.subr.mxu0 0.0
      %1979 = vmatpush1.msra.mxu0 %v1940
      %1980 = vmatprep.subr.mxu0 0.0
      %1981 = vmatpush1.msra.mxu0 %v1939
      %1982 = vmatprep.subr.mxu0 0.0
      %1983 = vmatpush1.msra.mxu0 %v1938
      %1984 = vmatprep.subr.mxu0 0.0
      %1985 = vmatpush2.msra.mxu0 0.0
      %1986 = vmatprep.subr.mxu0 0.0
      %1987 = vmatpush2.msra.mxu0 0.0
      %1988 = vmatprep.subr.mxu0 0.0
      %1989 = vmatpush2.msra.mxu0 0.0
      %1990 = vmatprep.subr.mxu0 0.0
      %1991 = vmatpush2.msra.mxu0 0.0
      %1992 = vmatprep.subr.mxu0 0.0
      %1993 = vmatpush2.msra.mxu0 0.0
      %1994 = vmatprep.subr.mxu0 0.0
      %1995 = vmatpush2.msra.mxu0 0.0
      %1996 = vmatprep.subr.mxu0 0.0
      %1997 = vmatpush2.msra.mxu0 0.0
      %1998 = vmatprep.subr.mxu0 0.0
      %1999 = vmatpush2.msra.mxu0 0.0
      %2000 = vmatprep.subr.mxu0 0.0
      %2001 = vmatpush2.msra.mxu0 0.0
      %2002 = vmatprep.subr.mxu0 0.0
      %2003 = vmatpush2.msra.mxu0 0.0
      %2004 = vmatprep.subr.mxu0 0.0
      %2005 = vmatpush2.msra.mxu0 0.0
      %2006 = vmatprep.subr.mxu0 0.0
      %2007 = vmatpush2.msra.mxu0 0.0
      %2008 = vmatprep.subr.mxu0 0.0
      %2009 = vmatpush2.msra.mxu0 0.0
      %2010 = vmatprep.subr.mxu0 0.0
      %2011 = vmatpush2.msra.mxu0 0.0
      %2012 = vmatprep.subr.mxu0 0.0
      %2013 = vmatpush2.msra.mxu0 0.0
      %2014 = vmatprep.subr.mxu0 0.0
      %2015 = vmatpush2.msra.mxu0 0.0
      %2016 = vmatprep.mubr.f32.mxu0 0.0
      %2017 = vmatmul.mubr.f32.gmra.mxu0 %v1950
      %v2018 = vpop.f32.mrf.mxu0
      %v2019 = vadd.f32 %v1947, %v2018
      %v2020 = vpop.f32.mrf.mxu0
      %2021 = vdwg.mxu0
      %v2022 = vadd.f32 %v1105, %v2019
      %v2023 = vld [vmem:[%s9] sm:$0x1]
      %v2024 = vld [vmem:[%s10] sm:$0x1]
      %v2025 = vsel %vm86, %v2022, 0.0
      %2026 = vadd.xlane.f32.xlu0 %v2025
      %v2027 = vpop.xlane.xlu0 %2026
      %v2028 = vmul.f32 %v2027, %v90
      %v2029 = vsub.f32 %v2022, %v2028
      %v2030 = vmul.f32 %v2029, %v2029
      %v2031 = vsel %vm86, %v2030, 0.0
      %2032 = vadd.xlane.f32.xlu0 %v2031
      %v2033 = vpop.xlane.xlu0 %2032
      %v2034 = vmul.f32 %v2033, %v90
      %v2035 = vadd.f32 %v2034, 1e-05
      %v2036 = vrsqrt.pop %v2035
      %v2037 = vmul.f32 %v2029, %v2036
      %v2039 = vlaneseq
      %v2040 = vshrl.u32 %v2039, 7
      %v2041 = vsub.s32 0, %v2040
      %v2042 = vrot.slane %v2023, %v2041
      %v2044 = vmul.f32 %v2037, %v2042
      %v2046 = vlaneseq
      %v2047 = vshrl.u32 %v2046, 7
      %v2048 = vsub.s32 0, %v2047
      %v2049 = vrot.slane %v2024, %v2048
      %v2051 = vadd.f32 %v2044, %v2049
      %s2052 = scalar_lea.vmem [#allocation2], 8
      %2053 = vst.msk [vmem:[%s2052] sm:$0xff] %vm86, %v2051
      %v2054 = vld [vmem:[%s14] sm:$0x1]
      %v2056 = vlaneseq
      %v2057 = vshrl.u32 %v2056, 7
      %v2058 = vsub.s32 0, %v2057
      %v2059 = vrot.slane %v2054, %v2058
      %v2061 = vadd.f32 %v2051, %v2059
      %s2062 = scalar_lea.vmem [#allocation3], 8
      %2063 = vst.msk [vmem:[%s2062] sm:$0xff] %vm86, %v2061
    $region73: #{tpu_custom_call.1} parent=1 // pred_fallthru
      _
    %v2064 = vld [vmem:[#allocation2] sm:$0xff]
    %v2065 = vld [vmem:[#allocation8] sm:$0xff]
    %v2066 = vld [vmem:[#allocation8 + $0x8] sm:$0xff]
    %v2067 = vld [vmem:[#allocation8 + $0x10] sm:$0xff]
    %v2068 = vld [vmem:[#allocation8 + $0x18] sm:$0xff]
    %v2069 = vld [vmem:[%s12] sm:$0x1]
    %v2071 = vlaneseq
    %v2072 = vshrl.u32 %v2071, 7
    %v2073 = vsub.s32 0, %v2072
    %v2074 = vrot.slane %v2069, %v2073
    %vm2076 = vcmask 261120
    %v2078 = vsel %vm2076, %v2064, 0
    %2080 = vmatprep.subr.mxu0 0.0
    %2081 = vmatpush1.msra.mxu0 0.0
    %2082 = vmatprep.subr.mxu0 0.0
    %2083 = vmatpush1.msra.mxu0 0.0
    %2084 = vmatprep.subr.mxu0 0.0
    %2085 = vmatpush1.msra.mxu0 0.0
    %2086 = vmatprep.subr.mxu0 0.0
    %2087 = vmatpush1.msra.mxu0 0.0
    %2088 = vmatprep.subr.mxu0 0.0
    %2089 = vmatpush1.msra.mxu0 0.0
    %2090 = vmatprep.subr.mxu0 0.0
    %2091 = vmatpush1.msra.mxu0 0.0
    %2092 = vmatprep.subr.mxu0 0.0
    %2093 = vmatpush1.msra.mxu0 0.0
    %2094 = vmatprep.subr.mxu0 0.0
    %2095 = vmatpush1.msra.mxu0 0.0
    %2096 = vmatprep.subr.mxu0 0.0
    %2097 = vmatpush1.msra.mxu0 0.0
    %2098 = vmatprep.subr.mxu0 0.0
    %2099 = vmatpush1.msra.mxu0 0.0
    %2100 = vmatprep.subr.mxu0 0.0
    %2101 = vmatpush1.msra.mxu0 0.0
    %2102 = vmatprep.subr.mxu0 0.0
    %2103 = vmatpush1.msra.mxu0 0.0
    %2104 = vmatprep.subr.mxu0 0.0
    %2105 = vmatpush1.msra.mxu0 %v2068
    %2106 = vmatprep.subr.mxu0 0.0
    %2107 = vmatpush1.msra.mxu0 %v2067
    %2108 = vmatprep.subr.mxu0 0.0
    %2109 = vmatpush1.msra.mxu0 %v2066
    %2110 = vmatprep.subr.mxu0 0.0
    %2111 = vmatpush1.msra.mxu0 %v2065
    %2112 = vmatprep.subr.mxu0 0.0
    %2113 = vmatpush2.msra.mxu0 0.0
    %2114 = vmatprep.subr.mxu0 0.0
    %2115 = vmatpush2.msra.mxu0 0.0
    %2116 = vmatprep.subr.mxu0 0.0
    %2117 = vmatpush2.msra.mxu0 0.0
    %2118 = vmatprep.subr.mxu0 0.0
    %2119 = vmatpush2.msra.mxu0 0.0
    %2120 = vmatprep.subr.mxu0 0.0
    %2121 = vmatpush2.msra.mxu0 0.0
    %2122 = vmatprep.subr.mxu0 0.0
    %2123 = vmatpush2.msra.mxu0 0.0
    %2124 = vmatprep.subr.mxu0 0.0
    %2125 = vmatpush2.msra.mxu0 0.0
    %2126 = vmatprep.subr.mxu0 0.0
    %2127 = vmatpush2.msra.mxu0 0.0
    %2128 = vmatprep.subr.mxu0 0.0
    %2129 = vmatpush2.msra.mxu0 0.0
    %2130 = vmatprep.subr.mxu0 0.0
    %2131 = vmatpush2.msra.mxu0 0.0
    %2132 = vmatprep.subr.mxu0 0.0
    %2133 = vmatpush2.msra.mxu0 0.0
    %2134 = vmatprep.subr.mxu0 0.0
    %2135 = vmatpush2.msra.mxu0 0.0
    %2136 = vmatprep.subr.mxu0 0.0
    %2137 = vmatpush2.msra.mxu0 0.0
    %2138 = vmatprep.subr.mxu0 0.0
    %2139 = vmatpush2.msra.mxu0 0.0
    %2140 = vmatprep.subr.mxu0 0.0
    %2141 = vmatpush2.msra.mxu0 0.0
    %2142 = vmatprep.subr.mxu0 0.0
    %2143 = vmatpush2.msra.mxu0 0.0
    %2144 = vmatprep.mubr.f32.mxu0 0.0
    %2145 = vmatmul.mubr.f32.gmra.mxu0 %v2078
    %v2146 = vpop.f32.mrf.mxu0
    %v2147 = vadd.f32 %v2074, %v2146
    %v2148 = vpop.f32.mrf.mxu0
    %2149 = vdwg.mxu0
    %v2150 = vmul.f32 %v2147, 0.5
    %v2151 = vmul.f32 %v2147, 0.70710677
    %v2152 = verf.f32.pop %v2151
    %v2153 = vadd.f32 %v2152, 1.0
    %v2154 = vmul.f32 %v2150, %v2153
    %v2155 = vld [vmem:[#allocation3] sm:$0xff]
    %v2156 = vld [vmem:[%s13] sm:$0xff]
    %v2157 = vld [vmem:[%s13 + $0x8] sm:$0xff]
    %v2158 = vld [vmem:[%s13 + $0x10] sm:$0xff]
    %v2159 = vld [vmem:[%s13 + $0x18] sm:$0xff]
    %v2160 = vld [vmem:[%s13 + $0x20] sm:$0xff]
    %v2161 = vld [vmem:[%s13 + $0x28] sm:$0xff]
    %v2162 = vld [vmem:[%s13 + $0x30] sm:$0xff]
    %v2163 = vld [vmem:[%s13 + $0x38] sm:$0xff]
    %vm2164 = vcmask 523264
    %v2166 = vsel %vm2164, %v2154, 0
    %2168 = vmatprep.subr.mxu0 0.0
    %2169 = vmatpush1.msra.mxu0 0.0
    %2170 = vmatprep.subr.mxu0 0.0
    %2171 = vmatpush1.msra.mxu0 0.0
    %2172 = vmatprep.subr.mxu0 0.0
    %2173 = vmatpush1.msra.mxu0 0.0
    %2174 = vmatprep.subr.mxu0 0.0
    %2175 = vmatpush1.msra.mxu0 0.0
    %2176 = vmatprep.subr.mxu0 0.0
    %2177 = vmatpush1.msra.mxu0 0.0
    %2178 = vmatprep.subr.mxu0 0.0
    %2179 = vmatpush1.msra.mxu0 0.0
    %2180 = vmatprep.subr.mxu0 0.0
    %2181 = vmatpush1.msra.mxu0 0.0
    %2182 = vmatprep.subr.mxu0 0.0
    %2183 = vmatpush1.msra.mxu0 0.0
    %2184 = vmatprep.subr.mxu0 0.0
    %2185 = vmatpush1.msra.mxu0 %v2163
    %2186 = vmatprep.subr.mxu0 0.0
    %2187 = vmatpush1.msra.mxu0 %v2162
    %2188 = vmatprep.subr.mxu0 0.0
    %2189 = vmatpush1.msra.mxu0 %v2161
    %2190 = vmatprep.subr.mxu0 0.0
    %2191 = vmatpush1.msra.mxu0 %v2160
    %2192 = vmatprep.subr.mxu0 0.0
    %2193 = vmatpush1.msra.mxu0 %v2159
    %2194 = vmatprep.subr.mxu0 0.0
    %2195 = vmatpush1.msra.mxu0 %v2158
    %2196 = vmatprep.subr.mxu0 0.0
    %2197 = vmatpush1.msra.mxu0 %v2157
    %2198 = vmatprep.subr.mxu0 0.0
    %2199 = vmatpush1.msra.mxu0 %v2156
    %2200 = vmatprep.subr.mxu0 0.0
    %2201 = vmatpush2.msra.mxu0 0.0
    %2202 = vmatprep.subr.mxu0 0.0
    %2203 = vmatpush2.msra.mxu0 0.0
    %2204 = vmatprep.subr.mxu0 0.0
    %2205 = vmatpush2.msra.mxu0 0.0
    %2206 = vmatprep.subr.mxu0 0.0
    %2207 = vmatpush2.msra.mxu0 0.0
    %2208 = vmatprep.subr.mxu0 0.0
    %2209 = vmatpush2.msra.mxu0 0.0
    %2210 = vmatprep.subr.mxu0 0.0
    %2211 = vmatpush2.msra.mxu0 0.0
    %2212 = vmatprep.subr.mxu0 0.0
    %2213 = vmatpush2.msra.mxu0 0.0
    %2214 = vmatprep.subr.mxu0 0.0
    %2215 = vmatpush2.msra.mxu0 0.0
    %2216 = vmatprep.subr.mxu0 0.0
    %2217 = vmatpush2.msra.mxu0 0.0
    %2218 = vmatprep.subr.mxu0 0.0
    %2219 = vmatpush2.msra.mxu0 0.0
    %2220 = vmatprep.subr.mxu0 0.0
    %2221 = vmatpush2.msra.mxu0 0.0
    %2222 = vmatprep.subr.mxu0 0.0
    %2223 = vmatpush2.msra.mxu0 0.0
    %2224 = vmatprep.subr.mxu0 0.0
    %2225 = vmatpush2.msra.mxu0 0.0
    %2226 = vmatprep.subr.mxu0 0.0
    %2227 = vmatpush2.msra.mxu0 0.0
    %2228 = vmatprep.subr.mxu0 0.0
    %2229 = vmatpush2.msra.mxu0 0.0
    %2230 = vmatprep.subr.mxu0 0.0
    %2231 = vmatpush2.msra.mxu0 0.0
    %2232 = vmatprep.mubr.f32.mxu0 0.0
    %2233 = vmatmul.mubr.f32.gmra.mxu0 %v2166
    %v2234 = vpop.f32.mrf.mxu0
    %v2235 = vadd.f32 0.0, %v2234
    %v2236 = vpop.f32.mrf.mxu0
    %2237 = vdwg.mxu0
    %v2238 = vadd.f32 %v2155, %v2235
    %2239 = vst.msk [vmem:[#allocation3] sm:$0xff] %vm2076, %v2238
    %s2240 = scalar_lea.vmem [#allocation2], 8
    %v2241 = vld [vmem:[%s2240] sm:$0xff]
    %v2242 = vld [vmem:[#allocation8] sm:$0xff]
    %v2243 = vld [vmem:[#allocation8 + $0x8] sm:$0xff]
    %v2244 = vld [vmem:[#allocation8 + $0x10] sm:$0xff]
    %v2245 = vld [vmem:[#allocation8 + $0x18] sm:$0xff]
    %v2246 = vld [vmem:[%s12] sm:$0x1]
    %v2248 = vlaneseq
    %v2249 = vshrl.u32 %v2248, 7
    %v2250 = vsub.s32 0, %v2249
    %v2251 = vrot.slane %v2246, %v2250
    %v2254 = vsel %vm2076, %v2241, 0
    %2256 = vmatprep.subr.mxu0 0.0
    %2257 = vmatpush1.msra.mxu0 0.0
    %2258 = vmatprep.subr.mxu0 0.0
    %2259 = vmatpush1.msra.mxu0 0.0
    %2260 = vmatprep.subr.mxu0 0.0
    %2261 = vmatpush1.msra.mxu0 0.0
    %2262 = vmatprep.subr.mxu0 0.0
    %2263 = vmatpush1.msra.mxu0 0.0
    %2264 = vmatprep.subr.mxu0 0.0
    %2265 = vmatpush1.msra.mxu0 0.0
    %2266 = vmatprep.subr.mxu0 0.0
    %2267 = vmatpush1.msra.mxu0 0.0
    %2268 = vmatprep.subr.mxu0 0.0
    %2269 = vmatpush1.msra.mxu0 0.0
    %2270 = vmatprep.subr.mxu0 0.0
    %2271 = vmatpush1.msra.mxu0 0.0
    %2272 = vmatprep.subr.mxu0 0.0
    %2273 = vmatpush1.msra.mxu0 0.0
    %2274 = vmatprep.subr.mxu0 0.0
    %2275 = vmatpush1.msra.mxu0 0.0
    %2276 = vmatprep.subr.mxu0 0.0
    %2277 = vmatpush1.msra.mxu0 0.0
    %2278 = vmatprep.subr.mxu0 0.0
    %2279 = vmatpush1.msra.mxu0 0.0
    %2280 = vmatprep.subr.mxu0 0.0
    %2281 = vmatpush1.msra.mxu0 %v2245
    %2282 = vmatprep.subr.mxu0 0.0
    %2283 = vmatpush1.msra.mxu0 %v2244
    %2284 = vmatprep.subr.mxu0 0.0
    %2285 = vmatpush1.msra.mxu0 %v2243
    %2286 = vmatprep.subr.mxu0 0.0
    %2287 = vmatpush1.msra.mxu0 %v2242
    %2288 = vmatprep.subr.mxu0 0.0
    %2289 = vmatpush2.msra.mxu0 0.0
    %2290 = vmatprep.subr.mxu0 0.0
    %2291 = vmatpush2.msra.mxu0 0.0
    %2292 = vmatprep.subr.mxu0 0.0
    %2293 = vmatpush2.msra.mxu0 0.0
    %2294 = vmatprep.subr.mxu0 0.0
    %2295 = vmatpush2.msra.mxu0 0.0
    %2296 = vmatprep.subr.mxu0 0.0
    %2297 = vmatpush2.msra.mxu0 0.0
    %2298 = vmatprep.subr.mxu0 0.0
    %2299 = vmatpush2.msra.mxu0 0.0
    %2300 = vmatprep.subr.mxu0 0.0
    %2301 = vmatpush2.msra.mxu0 0.0
    %2302 = vmatprep.subr.mxu0 0.0
    %2303 = vmatpush2.msra.mxu0 0.0
    %2304 = vmatprep.subr.mxu0 0.0
    %2305 = vmatpush2.msra.mxu0 0.0
    %2306 = vmatprep.subr.mxu0 0.0
    %2307 = vmatpush2.msra.mxu0 0.0
    %2308 = vmatprep.subr.mxu0 0.0
    %2309 = vmatpush2.msra.mxu0 0.0
    %2310 = vmatprep.subr.mxu0 0.0
    %2311 = vmatpush2.msra.mxu0 0.0
    %2312 = vmatprep.subr.mxu0 0.0
    %2313 = vmatpush2.msra.mxu0 0.0
    %2314 = vmatprep.subr.mxu0 0.0
    %2315 = vmatpush2.msra.mxu0 0.0
    %2316 = vmatprep.subr.mxu0 0.0
    %2317 = vmatpush2.msra.mxu0 0.0
    %2318 = vmatprep.subr.mxu0 0.0
    %2319 = vmatpush2.msra.mxu0 0.0
    %2320 = vmatprep.mubr.f32.mxu0 0.0
    %2321 = vmatmul.mubr.f32.gmra.mxu0 %v2254
    %v2322 = vpop.f32.mrf.mxu0
    %v2323 = vadd.f32 %v2251, %v2322
    %v2324 = vpop.f32.mrf.mxu0
    %2325 = vdwg.mxu0
    %v2326 = vmul.f32 %v2323, 0.5
    %v2327 = vmul.f32 %v2323, 0.70710677
    %v2328 = verf.f32.pop %v2327
    %v2329 = vadd.f32 %v2328, 1.0
    %v2330 = vmul.f32 %v2326, %v2329
    %s2331 = scalar_lea.vmem [#allocation3], 8
    %v2332 = vld [vmem:[%s2331] sm:$0xff]
    %v2333 = vld [vmem:[%s13] sm:$0xff]
    %v2334 = vld [vmem:[%s13 + $0x8] sm:$0xff]
    %v2335 = vld [vmem:[%s13 + $0x10] sm:$0xff]
    %v2336 = vld [vmem:[%s13 + $0x18] sm:$0xff]
    %v2337 = vld [vmem:[%s13 + $0x20] sm:$0xff]
    %v2338 = vld [vmem:[%s13 + $0x28] sm:$0xff]
    %v2339 = vld [vmem:[%s13 + $0x30] sm:$0xff]
    %v2340 = vld [vmem:[%s13 + $0x38] sm:$0xff]
    %v2342 = vsel %vm2164, %v2330, 0
    %2344 = vmatprep.subr.mxu0 0.0
    %2345 = vmatpush1.msra.mxu0 0.0
    %2346 = vmatprep.subr.mxu0 0.0
    %2347 = vmatpush1.msra.mxu0 0.0
    %2348 = vmatprep.subr.mxu0 0.0
    %2349 = vmatpush1.msra.mxu0 0.0
    %2350 = vmatprep.subr.mxu0 0.0
    %2351 = vmatpush1.msra.mxu0 0.0
    %2352 = vmatprep.subr.mxu0 0.0
    %2353 = vmatpush1.msra.mxu0 0.0
    %2354 = vmatprep.subr.mxu0 0.0
    %2355 = vmatpush1.msra.mxu0 0.0
    %2356 = vmatprep.subr.mxu0 0.0
    %2357 = vmatpush1.msra.mxu0 0.0
    %2358 = vmatprep.subr.mxu0 0.0
    %2359 = vmatpush1.msra.mxu0 0.0
    %2360 = vmatprep.subr.mxu0 0.0
    %2361 = vmatpush1.msra.mxu0 %v2340
    %2362 = vmatprep.subr.mxu0 0.0
    %2363 = vmatpush1.msra.mxu0 %v2339
    %2364 = vmatprep.subr.mxu0 0.0
    %2365 = vmatpush1.msra.mxu0 %v2338
    %2366 = vmatprep.subr.mxu0 0.0
    %2367 = vmatpush1.msra.mxu0 %v2337
    %2368 = vmatprep.subr.mxu0 0.0
    %2369 = vmatpush1.msra.mxu0 %v2336
    %2370 = vmatprep.subr.mxu0 0.0
    %2371 = vmatpush1.msra.mxu0 %v2335
    %2372 = vmatprep.subr.mxu0 0.0
    %2373 = vmatpush1.msra.mxu0 %v2334
    %2374 = vmatprep.subr.mxu0 0.0
    %2375 = vmatpush1.msra.mxu0 %v2333
    %2376 = vmatprep.subr.mxu0 0.0
    %2377 = vmatpush2.msra.mxu0 0.0
    %2378 = vmatprep.subr.mxu0 0.0
    %2379 = vmatpush2.msra.mxu0 0.0
    %2380 = vmatprep.subr.mxu0 0.0
    %2381 = vmatpush2.msra.mxu0 0.0
    %2382 = vmatprep.subr.mxu0 0.0
    %2383 = vmatpush2.msra.mxu0 0.0
    %2384 = vmatprep.subr.mxu0 0.0
    %2385 = vmatpush2.msra.mxu0 0.0
    %2386 = vmatprep.subr.mxu0 0.0
    %2387 = vmatpush2.msra.mxu0 0.0
    %2388 = vmatprep.subr.mxu0 0.0
    %2389 = vmatpush2.msra.mxu0 0.0
    %2390 = vmatprep.subr.mxu0 0.0
    %2391 = vmatpush2.msra.mxu0 0.0
    %2392 = vmatprep.subr.mxu0 0.0
    %2393 = vmatpush2.msra.mxu0 0.0
    %2394 = vmatprep.subr.mxu0 0.0
    %2395 = vmatpush2.msra.mxu0 0.0
    %2396 = vmatprep.subr.mxu0 0.0
    %2397 = vmatpush2.msra.mxu0 0.0
    %2398 = vmatprep.subr.mxu0 0.0
    %2399 = vmatpush2.msra.mxu0 0.0
    %2400 = vmatprep.subr.mxu0 0.0
    %2401 = vmatpush2.msra.mxu0 0.0
    %2402 = vmatprep.subr.mxu0 0.0
    %2403 = vmatpush2.msra.mxu0 0.0
    %2404 = vmatprep.subr.mxu0 0.0
    %2405 = vmatpush2.msra.mxu0 0.0
    %2406 = vmatprep.subr.mxu0 0.0
    %2407 = vmatpush2.msra.mxu0 0.0
    %2408 = vmatprep.mubr.f32.mxu0 0.0
    %2409 = vmatmul.mubr.f32.gmra.mxu0 %v2342
    %v2410 = vpop.f32.mrf.mxu0
    %v2411 = vadd.f32 0.0, %v2410
    %v2412 = vpop.f32.mrf.mxu0
    %2413 = vdwg.mxu0
    %v2414 = vadd.f32 %v2332, %v2411
    %2415 = vst.msk [vmem:[%s2331] sm:$0xff] %vm2076, %v2414
    // Predicated region
    $region74: #{tpu_custom_call.1} parent=1 // pred_check
      %p2416 = pneg %p79
    $region75: #{tpu_custom_call.1} parent=1 // pred_check_branch
      %2418 = sbr.rel (%p2416) target = $region77
    $region76: #{tpu_custom_call.1} parent=1 // pred_region
      %v2419 = vld [vmem:[#allocation3] sm:$0xff]
      %v2420 = vld [vmem:[#allocation3 + $0x8] sm:$0xff]
      %2421 = vst.msk [vmem:[#allocation10] sm:$0xff] %vm2076, %v2419
      %2422 = vst.msk [vmem:[#allocation10 + $0x8] sm:$0xff] %vm2076, %v2420
    $region77: #{tpu_custom_call.1} parent=1 // pred_fallthru
      _
    // Predicated region
    $region78: #{tpu_custom_call.1} parent=1 // pred_check
      _
    $region79: #{tpu_custom_call.1} parent=1 // pred_check_branch
      %2424 = sbr.rel (0) target = $region81
    $region80: #{tpu_custom_call.1} parent=1 // pred_region
      %s2426 = ssub.s32 256, 256
      %2427 = vsyncadd [#allocation7], %s2426
      %s2428 = sshll.u32 [#allocation10], 4
      %s2429 = int_to_ptr.vmem [resolvable:$true] %s2428
      %2434 = dma.vmem_to_hbm [thread:$0]  %s2429, 256, %s15, [#allocation7], 128, 128, 8
    $region81: #{tpu_custom_call.1} parent=1 // pred_fallthru
      _
    // Predicated region
    $region82: #{tpu_custom_call.1} parent=1 // pred_check
      _
    $region83: #{tpu_custom_call.1} parent=1 // pred_check_branch
      %2436 = sbr.rel (0) target = $region85
    $region84: #{tpu_custom_call.1} parent=1 // pred_region
      %2437 = dma.done [#allocation7], 256
    $region85: #{tpu_custom_call.1} parent=1 // pred_fallthru
      _
    %2438 = vsyncpa [#allocation6], 1
    %2439 = vsyncpa [#allocation9], 1
    %2440 = vsyncpa [#allocation7], 1

</llo_original>
